<compile_context>
chip_gen: v6e
topology: v6e:2x2x1
jax: 0.10.0
libtpu: 0.0.40
codegen_flags: <defaults>
</compile_context>

<pallas_src>
import numpy as np
import jax
import jax.numpy as jnp
from jax.experimental import pallas as pl
from jax.experimental.pallas import tpu as pltpu

LEAKY_SLOPE = 0.1   # nn.LeakyReLU(0.1)
NP_BINS = 8         # AdaptiveAvgPool1d(8)


# ---------------------------------------------------------------------------
# Small shape helpers
# ---------------------------------------------------------------------------
def _conv_out_len(Lin, k, s, p):
    return (Lin + 2 * p - k) // s + 1


def _convT_out_len(Lin, k, s, p, op):
    return (Lin - 1) * s - 2 * p + k + op


# ---------------------------------------------------------------------------
# Host-side builders for the 0/1 gather / scatter / pool / upsample matrices
# ---------------------------------------------------------------------------
def _conv_gcat(B, Lin, Lout, k, stride, padding):
    """Conv1d gather, taps concatenated along K:
       G[b*Lout+lo, t*B*Lin + b*Lin+li] = 1  iff  li == stride*lo + t - padding."""
    G = np.zeros((B * Lout, k * B * Lin), np.float32)
    for t in range(k):
        for b in range(B):
            for lo in range(Lout):
                li = stride * lo + t - padding
                if 0 <= li < Lin:
                    G[b * Lout + lo, t * B * Lin + b * Lin + li] = 1.0
    return G


def _convT_gcat(B, Lin, Lout, k, stride, padding, in_index=None):
    """ConvTranspose1d scatter, taps concatenated along K:
       G[b*Lout+lo, t*B*Lin + in_index(b,li)] = 1  iff  lo == stride*li + t - padding."""
    if in_index is None:
        in_index = lambda b, li: b * Lin + li
    G = np.zeros((B * Lout, k * B * Lin), np.float32)
    for t in range(k):
        for b in range(B):
            for li in range(Lin):
                lo = stride * li + t - padding
                if 0 <= lo < Lout:
                    G[b * Lout + lo, t * B * Lin + in_index(b, li)] = 1.0
    return G


def _convT_gather_vert(B, Lin, Lout, k, stride, padding):
    """ConvTranspose1d read-form gather, taps stacked along rows (for dec3):
       G[t*B*Lout + b*Lout+lo, b*Lin+li] = 1  iff  lo == stride*li + t - padding."""
    G = np.zeros((k * B * Lout, B * Lin), np.float32)
    for t in range(k):
        for b in range(B):
            for li in range(Lin):
                lo = stride * li + t - padding
                if 0 <= lo < Lout:
                    G[t * B * Lout + b * Lout + lo, b * Lin + li] = 1.0
    return G


def _pool_and_mean_matrix(B, Lin, n_bins):
    """Rows 0..B*n_bins-1 (row index j*B+b): AdaptiveAvgPool1d(n_bins).
       Rows B*n_bins..B*n_bins+B-1: per-batch mean (AdaptiveAvgPool1d(1))."""
    PM = np.zeros((B * n_bins + B, B * Lin), np.float32)
    for j in range(n_bins):
        s = (j * Lin) // n_bins
        e = -(-((j + 1) * Lin) // n_bins)  # ceil
        w = 1.0 / (e - s)
        for b in range(B):
            PM[j * B + b, b * Lin + s:b * Lin + e] = w
    for b in range(B):
        PM[B * n_bins + b, b * Lin:(b + 1) * Lin] = 1.0 / Lin
    return PM


def _upsample_linear_matrix(Lin, Lout):
    """(Lout, Lin) matrix for nn.Upsample(mode='linear', align_corners=False)."""
    U = np.zeros((Lout, Lin), np.float32)
    scale = Lin / Lout
    for lo in range(Lout):
        src = max((lo + 0.5) * scale - 0.5, 0.0)
        i0 = min(int(np.floor(src)), Lin - 1)
        i1 = min(i0 + 1, Lin - 1)
        lam = src - i0
        U[lo, i0] += 1.0 - lam
        U[lo, i1] += lam
    return U


# ---------------------------------------------------------------------------
# Parameters (deterministic, synthetic; BatchNorm folded at eval stats)
# ---------------------------------------------------------------------------
def init_params(key, latent_dim=32):
    ks = jax.random.split(key, 16)

    def w(k, shape, fan_in):
        return jax.random.normal(k, shape, jnp.float32) / np.sqrt(fan_in)

    p = {}
    # Encoder convs: (Cout, Cin, k)  (PyTorch Conv1d layout)
    p["enc1_w"] = w(ks[0], (32, 2, 7), 2 * 7);     p["enc1_b"] = jnp.zeros((32,), jnp.float32)
    p["enc2_w"] = w(ks[1], (64, 32, 5), 32 * 5);   p["enc2_b"] = jnp.zeros((64,), jnp.float32)
    p["enc3_w"] = w(ks[2], (128, 64, 3), 64 * 3);  p["enc3_b"] = jnp.zeros((128,), jnp.float32)
    # Attention linears stored as (in, out)
    p["att1_w"] = w(ks[3], (128, 64), 128);        p["att1_b"] = jnp.zeros((64,), jnp.float32)
    p["att2_w"] = w(ks[4], (64, 128), 64);         p["att2_b"] = jnp.zeros((128,), jnp.float32)
    # Latent heads: (128*8, latent)   (row index = c*8 + j, PyTorch flatten order)
    p["mu_w"] = w(ks[5], (128 * 8, latent_dim), 128 * 8); p["mu_b"] = jnp.zeros((latent_dim,), jnp.float32)
    p["lv_w"] = w(ks[6], (128 * 8, latent_dim), 128 * 8); p["lv_b"] = jnp.zeros((latent_dim,), jnp.float32)
    # Decoder FC: (latent, 128*8)     (col index = c*8 + j, Unflatten order)
    p["dec_fc_w"] = w(ks[7], (latent_dim, 128 * 8), latent_dim)
    p["dec_fc_b"] = jnp.zeros((128 * 8,), jnp.float32)
    # Decoder transposed convs: (Cin, Cout, k)  (PyTorch ConvTranspose1d layout)
    p["dec1_w"] = w(ks[8], (128, 64, 3), 128 * 3); p["dec1_b"] = jnp.zeros((64,), jnp.float32)
    p["dec2_w"] = w(ks[9], (64, 32, 5), 64 * 5);   p["dec2_b"] = jnp.zeros((32,), jnp.float32)
    p["dec3_w"] = w(ks[10], (32, 2, 7), 32 * 7);   p["dec3_b"] = jnp.zeros((2,), jnp.float32)

    # Fold eval-mode BatchNorm (gamma=1, beta=0, mean=0, var=1) into conv params.
    eps = 1e-5
    for name, c, cout_axis in [("enc1", 32, 0), ("enc2", 64, 0), ("enc3", 128, 0),
                               ("dec1", 64, 1), ("dec2", 32, 1)]:
        gamma = jnp.ones((c,), jnp.float32)
        beta = jnp.zeros((c,), jnp.float32)
        mean = jnp.zeros((c,), jnp.float32)
        var = jnp.ones((c,), jnp.float32)
        s = gamma / jnp.sqrt(var + eps)
        if cout_axis == 0:
            p[name + "_w"] = p[name + "_w"] * s[:, None, None]
        else:
            p[name + "_w"] = p[name + "_w"] * s[None, :, None]
        p[name + "_b"] = (p[name + "_b"] - mean) * s + beta
    return p


# ---------------------------------------------------------------------------
# Pack all weights + constant matrices into the kernel's operand list (once).
# ---------------------------------------------------------------------------
def _prepare_operands(params, B, input_size, latent_dim):
    def c(x):        # bf16 constants feeding the MXU
        return jnp.asarray(np.asarray(x, np.float32), dtype=jnp.bfloat16)

    def f(x):        # f32 constants (VPU path)
        return jnp.asarray(np.asarray(x, np.float32), dtype=jnp.float32)

    def rowvec(x):   # f32 biases, shaped (1, N) for lane-broadcast adds
        return f(np.asarray(x, np.float32).reshape(1, -1))

    NB = NP_BINS
    C = 128
    ops = []

    L0 = input_size
    L1 = _conv_out_len(L0, 7, 2, 3)
    L2 = _conv_out_len(L1, 5, 2, 2)
    L3 = _conv_out_len(L2, 3, 2, 1)

    def conv_wcat(W_ocik):   # (Cout, Cin, k) -> (Cin, k*Cout)
        Cout, Cin, k = W_ocik.shape
        Wc = np.zeros((Cin, k * Cout), np.float32)
        for t in range(k):
            Wc[:, t * Cout:(t + 1) * Cout] = W_ocik[:, :, t].T
        return Wc

    def convT_wcat(W_iok):   # (Cin, Cout, k) -> (Cin, k*Cout)
        Cin, Cout, k = W_iok.shape
        Wc = np.zeros((Cin, k * Cout), np.float32)
        for t in range(k):
            Wc[:, t * Cout:(t + 1) * Cout] = W_iok[:, :, t]
        return Wc

    # ---- encoder (enc1 inner runs on the VPU -> keep its Wcat in f32) ----
    ops += [f(conv_wcat(np.asarray(params["enc1_w"]))), rowvec(params["enc1_b"]),
            c(_conv_gcat(B, L0, L1, 7, 2, 3))]
    ops += [c(conv_wcat(np.asarray(params["enc2_w"]))), rowvec(params["enc2_b"]),
            c(_conv_gcat(B, L1, L2, 5, 2, 2))]
    ops += [c(conv_wcat(np.asarray(params["enc3_w"]))), rowvec(params["enc3_b"]),
            c(_conv_gcat(B, L2, L3, 3, 2, 1))]

    # ---- attention MLP + fused AdaptiveAvgPool1d(8)/(1) matrix ----
    ops += [c(_pool_and_mean_matrix(B, L3, NB)),
            c(params["att1_w"]), rowvec(params["att1_b"]),
            c(params["att2_w"]), rowvec(params["att2_b"])]

    # ---- fused mu||logvar head: K index ordered (j, c) = j*128 + c ----
    jj, cc = np.meshgrid(np.arange(NB), np.arange(C), indexing="ij")
    src = (cc * NB + jj).reshape(-1)                       # (1024,) -> PyTorch c*8+j order
    Wmu = np.asarray(params["mu_w"]); Wlv = np.asarray(params["lv_w"])
    Whead = np.concatenate([Wmu[src, :], Wlv[src, :]], axis=1)          # (1024, 2*latent)
    bhead = np.concatenate([np.asarray(params["mu_b"]), np.asarray(params["lv_b"])])
    ops += [c(Whead), rowvec(bhead)]

    # ---- decoder FC (+Unflatten), output lanes ordered (j, c) ----
    Wd = np.asarray(params["dec_fc_w"]); bd_ = np.asarray(params["dec_fc_b"])
    ops += [c(Wd[:, src]), rowvec(bd_[src])]

    # ---- decoder transposed convs ----
    D0 = NB
    D1 = _convT_out_len(D0, 3, 2, 1, 1)    # 16
    D2 = _convT_out_len(D1, 5, 2, 2, 1)    # 32
    D3 = _convT_out_len(D2, 7, 2, 3, 1)    # 64

    # dec1: input rows are the decoder-FC scratch in (j, b) order -> li*B + b
    ops += [c(convT_wcat(np.asarray(params["dec1_w"]))), rowvec(params["dec1_b"]),
            c(_convT_gcat(B, D0, D1, 3, 2, 1, in_index=lambda b, li: li * B + b))]
    # dec2: standard (b, position) row order
    ops += [c(convT_wcat(np.asarray(params["dec2_w"]))), rowvec(params["dec2_b"]),
            c(_convT_gcat(B, D1, D2, 5, 2, 2))]

    # dec3 (Cout=2): gather-first form + separate Upsample GEMM
    Wt3 = np.asarray(params["dec3_w"])                     # (32, 2, 7)
    Wmat3 = np.zeros((7 * 32, 2), np.float32)
    for t in range(7):
        Wmat3[t * 32:(t + 1) * 32, :] = Wt3[:, :, t]
    U1 = _upsample_linear_matrix(D3, input_size)           # (input_size, 64)
    Ublk = np.kron(np.eye(B, dtype=np.float32), U1)        # (B*input_size, B*64)
    ops += [c(_convT_gather_vert(B, D2, D3, 7, 2, 3)), c(Wmat3),
            rowvec(params["dec3_b"]), c(Ublk)]

    meta = dict(L0=L0, L1=L1, L2=L2, L3=L3, D0=D0, D1=D1, D2=D2, D3=D3)
    return ops, meta


# ---------------------------------------------------------------------------
# The single fused Pallas kernel
# ---------------------------------------------------------------------------
def _build_kernel(B, L0, L1, L2, L3, D0, D1, D2, D3, latent):
    NB = NP_BINS
    BL0, BL1, BL2 = B * L0, B * L1, B * L2

    def kernel(x_ref, eps_ref,
               e1w, e1b, e1g,
               e2w, e2b, e2g,
               e3w, e3b, e3g,
               pm, aw1, ab1, aw2, ab2,
               whead, bhead,
               wd, bd,
               d1w, d1b, d1g,
               d2w, d2b, d2g,
               d3g, d3w, d3b, ublk,
               recon_ref, mulv_ref,
               zs1, zs2, zs3, flat_sc, d_sc, zsd1, zsd2, xcol_sc):
        bf16 = jnp.bfloat16

        def mxu(a, b):
            return jnp.dot(a, b, preferred_element_type=jnp.float32)

        def leaky(v):
            return jnp.where(v >= 0.0, v, LEAKY_SLOPE * v)

        # ---- encoder conv1 (Cin=2): per-tap inner products on the VPU, tap sum
        #      carried by the K dimension of ONE gather GEMM. ----
        x = x_ref[...]                                        # (B*L0, 2) f32
        x0, x1 = x[:, 0:1], x[:, 1:2]
        for t in range(7):
            w0 = e1w[0:1, t * 32:(t + 1) * 32]                # (1, 32) f32
            w1 = e1w[1:2, t * 32:(t + 1) * 32]
            zs1[t * BL0:(t + 1) * BL0, :] = (x0 * w0 + x1 * w1).astype(bf16)
        h = leaky(mxu(e1g[...], zs1[...]) + e1b[...])         # (B*L1, 32) f32

        # ---- generic fused conv / deconv: inner Wcat GEMM + single gather GEMM ----
        def conv_layer(h_in, wcat, bias, gcat, zstack, k, cout, rows_in, act=True):
            zwide = mxu(h_in.astype(bf16), wcat[...])         # (rows_in, k*cout) f32
            for t in range(k):                                # cheap lane->row block copies
                zstack[t * rows_in:(t + 1) * rows_in, :] = (
                    zwide[:, t * cout:(t + 1) * cout].astype(bf16))
            y = mxu(gcat[...], zstack[...]) + bias[...]
            return leaky(y) if act else y

        h = conv_layer(h, e2w, e2b, e2g, zs2, k=5, cout=64, rows_in=BL1)    # (B*L2, 64)
        h = conv_layer(h, e3w, e3b, e3g, zs3, k=3, cout=128, rows_in=BL2)   # (B*L3, 128)

        # ---- attention + AdaptiveAvgPool1d(8): one stacked pool GEMM also yields
        #      the AdaptiveAvgPool1d(1) rows; sigmoid gate applied post-pool on the
        #      VPU in f32 (gate commutes with average pooling). ----
        pmx = mxu(pm[...], h.astype(bf16))                    # (B*8 + B, 128) f32
        a0 = pmx[B * NB:B * NB + B, :]                        # (B, 128) global means
        a1 = jnp.maximum(mxu(a0.astype(bf16), aw1[...]) + ab1[...], 0.0)
        att = jax.nn.sigmoid(mxu(a1.astype(bf16), aw2[...]) + ab2[...])     # (B, 128) f32

        for j in range(NB):                                   # gate + flatten -> (B, 8*128)
            blk = pmx[j * B:(j + 1) * B, :] * att
            flat_sc[:, j * 128:(j + 1) * 128] = blk.astype(bf16)

        # ---- mu / logvar: one fused head GEMM; reparameterize in f32 ----
        mulv = mxu(flat_sc[...], whead[...]) + bhead[...]     # (B, 2*latent) f32
        mulv_ref[...] = mulv
        mu = mulv[:, 0:latent]
        lv = mulv[:, latent:2 * latent]
        z = mu + eps_ref[...] * jnp.exp(0.5 * lv)             # (B, latent)

        # ---- decoder FC + ReLU + Unflatten: one GEMM + 8 row-block copies ----
        dwide = jnp.maximum(mxu(z.astype(bf16), wd[...]) + bd[...], 0.0)    # (B, 8*128)
        for j in range(NB):
            d_sc[j * B:(j + 1) * B, :] = dwide[:, j * 128:(j + 1) * 128].astype(bf16)

        # ---- decoder deconv 1 & 2 (same fused 2-GEMM structure) ----
        d = conv_layer(d_sc[...], d1w, d1b, d1g, zsd1, k=3, cout=64, rows_in=B * D0)
        d = conv_layer(d, d2w, d2b, d2g, zsd2, k=5, cout=32, rows_in=B * D1)

        # ---- decoder deconv 3 (Cout=2): gather-first (all relayouts lane-aligned);
        #      bias in f32; linear Upsample applied once, after the tap sum. ----
        xg = mxu(d3g[...], d.astype(bf16))                    # (7*B*D3, 32) f32
        for t in range(7):
            xcol_sc[:, t * 32:(t + 1) * 32] = xg[t * B * D3:(t + 1) * B * D3, :].astype(bf16)
        y = mxu(xcol_sc[...], d3w[...]) + d3b[...]            # (B*D3, 2), no activation
        recon_ref[...] = mxu(ublk[...], y.astype(bf16))       # (B*L0, 2)

    return kernel


# ---------------------------------------------------------------------------
# Forward builder: one pallas_call for the whole model
# ---------------------------------------------------------------------------
def make_forward(params, B, input_size, latent_dim=32):
    ops, m = _prepare_operands(params, B, input_size, latent_dim)
    L0, L1, L2, L3 = m["L0"], m["L1"], m["L2"], m["L3"]
    D0, D1, D2, D3 = m["D0"], m["D1"], m["D2"], m["D3"]

    kernel = _build_kernel(B, L0, L1, L2, L3, D0, D1, D2, D3, latent_dim)

    scratch_shapes = [
        pltpu.VMEM((7 * B * L0, 32), jnp.bfloat16),   # enc1 tap stack
        pltpu.VMEM((5 * B * L1, 64), jnp.bfloat16),   # enc2 tap stack
        pltpu.VMEM((3 * B * L2, 128), jnp.bfloat16),  # enc3 tap stack
        pltpu.VMEM((B, NP_BINS * 128), jnp.bfloat16),  # gated + flattened pooled features
        pltpu.VMEM((NP_BINS * B, 128), jnp.bfloat16),  # decoder-FC rows, (j, b) order
        pltpu.VMEM((3 * B * D0, 64), jnp.bfloat16),   # dec1 tap stack
        pltpu.VMEM((5 * B * D1, 32), jnp.bfloat16),   # dec2 tap stack
        pltpu.VMEM((B * D3, 7 * 32), jnp.bfloat16),   # dec3 im2col columns
    ]

    call = pl.pallas_call(
        kernel,
        out_shape=(
            jax.ShapeDtypeStruct((B * input_size, 2), jnp.float32),    # recon rows
            jax.ShapeDtypeStruct((B, 2 * latent_dim), jnp.float32),    # mu || logvar
        ),
        scratch_shapes=scratch_shapes,
        compiler_params=pltpu.CompilerParams(vmem_limit_bytes=32 * 1024 * 1024),
    )

    @jax.jit
    def fwd(x, eps, *consts):
        # (B, 2, L) -> (B*L, 2): channels on lanes, (batch, position) on rows.
        x_rows = jnp.transpose(x, (0, 2, 1)).reshape(B * input_size, 2)
        recon_rows, mu_lv = call(x_rows, eps, *consts)
        recon = jnp.transpose(recon_rows.reshape(B, input_size, 2), (0, 2, 1))
        return recon, mu_lv[:, :latent_dim], mu_lv[:, latent_dim:]

    return lambda x, eps: fwd(x, eps, *ops)


# ---------------------------------------------------------------------------
if __name__ == "__main__":
    B, input_size, latent_dim = 2, 128, 32
    key = jax.random.PRNGKey(0)
    k_param, k_x, k_eps = jax.random.split(key, 3)

    params = init_params(k_param, latent_dim=latent_dim)
    x = jax.random.normal(k_x, (B, 2, input_size), jnp.float32)
    eps = jax.random.normal(k_eps, (B, latent_dim), jnp.float32)

    forward = make_forward(params, B, input_size, latent_dim)
    recon, mu, logvar = forward(x, eps)
    jax.block_until_ready((recon, mu, logvar))

    assert recon.shape == (B, 2, input_size)
    assert mu.shape == (B, latent_dim)
    assert logvar.shape == (B, latent_dim)
    assert bool(jnp.all(jnp.isfinite(recon)))
    assert bool(jnp.all(jnp.isfinite(mu)))
    assert bool(jnp.all(jnp.isfinite(logvar)))
    print("KERNEL_OK")
</pallas_src>

<mosaic_0001>
module attributes {stable_mosaic.version = 11 : i64} {
  func.func @kernel(%arg0: memref<256x2xf32, #tpu.memory_space<vmem>>, %arg1: memref<2x32xf32, #tpu.memory_space<vmem>>, %arg2: memref<2x224xf32, #tpu.memory_space<vmem>>, %arg3: memref<1x32xf32, #tpu.memory_space<vmem>>, %arg4: memref<128x1792xbf16, #tpu.memory_space<vmem>>, %arg5: memref<32x320xbf16, #tpu.memory_space<vmem>>, %arg6: memref<1x64xf32, #tpu.memory_space<vmem>>, %arg7: memref<64x640xbf16, #tpu.memory_space<vmem>>, %arg8: memref<64x384xbf16, #tpu.memory_space<vmem>>, %arg9: memref<1x128xf32, #tpu.memory_space<vmem>>, %arg10: memref<32x192xbf16, #tpu.memory_space<vmem>>, %arg11: memref<18x32xbf16, #tpu.memory_space<vmem>>, %arg12: memref<128x64xbf16, #tpu.memory_space<vmem>>, %arg13: memref<1x64xf32, #tpu.memory_space<vmem>>, %arg14: memref<64x128xbf16, #tpu.memory_space<vmem>>, %arg15: memref<1x128xf32, #tpu.memory_space<vmem>>, %arg16: memref<1024x64xbf16, #tpu.memory_space<vmem>>, %arg17: memref<1x64xf32, #tpu.memory_space<vmem>>, %arg18: memref<32x1024xbf16, #tpu.memory_space<vmem>>, %arg19: memref<1x1024xf32, #tpu.memory_space<vmem>>, %arg20: memref<128x192xbf16, #tpu.memory_space<vmem>>, %arg21: memref<1x64xf32, #tpu.memory_space<vmem>>, %arg22: memref<32x48xbf16, #tpu.memory_space<vmem>>, %arg23: memref<64x160xbf16, #tpu.memory_space<vmem>>, %arg24: memref<1x32xf32, #tpu.memory_space<vmem>>, %arg25: memref<64x160xbf16, #tpu.memory_space<vmem>>, %arg26: memref<896x64xbf16, #tpu.memory_space<vmem>>, %arg27: memref<224x2xbf16, #tpu.memory_space<vmem>>, %arg28: memref<1x2xf32, #tpu.memory_space<vmem>>, %arg29: memref<256x128xbf16, #tpu.memory_space<vmem>>, %arg30: memref<256x2xf32, #tpu.memory_space<vmem>>, %arg31: memref<2x64xf32, #tpu.memory_space<vmem>>, %arg32: memref<1792x32xbf16, #tpu.memory_space<vmem>>, %arg33: memref<640x64xbf16, #tpu.memory_space<vmem>>, %arg34: memref<192x128xbf16, #tpu.memory_space<vmem>>, %arg35: memref<2x1024xbf16, #tpu.memory_space<vmem>>, %arg36: memref<16x128xbf16, #tpu.memory_space<vmem>>, %arg37: memref<48x64xbf16, #tpu.memory_space<vmem>>, %arg38: memref<160x32xbf16, #tpu.memory_space<vmem>>, %arg39: memref<128x224xbf16, #tpu.memory_space<vmem>>) attributes {dimension_semantics = [], scalar_prefetch = 0 : i64, scratch_operands = 8 : i64, tpu.core_type = #tpu.core_type<tc>} {
    %c0 = arith.constant 0 : index
    %c0_0 = arith.constant 0 : index
    %0 = vector.load %arg0[%c0, %c0_0] : memref<256x2xf32, #tpu.memory_space<vmem>>, vector<256x2xf32>
    %1 = vector.extract_strided_slice %0 {offsets = [0, 0], sizes = [256, 1], strides = [1, 1]} : vector<256x2xf32> to vector<256x1xf32>
    %2 = vector.extract_strided_slice %0 {offsets = [0, 1], sizes = [256, 1], strides = [1, 1]} : vector<256x2xf32> to vector<256x1xf32>
    %c0_1 = arith.constant 0 : index
    %c0_2 = arith.constant 0 : index
    %3 = vector.load %arg2[%c0_1, %c0_2] : memref<2x224xf32, #tpu.memory_space<vmem>>, vector<1x32xf32>
    %c1 = arith.constant 1 : index
    %c0_3 = arith.constant 0 : index
    %4 = vector.load %arg2[%c1, %c0_3] : memref<2x224xf32, #tpu.memory_space<vmem>>, vector<1x32xf32>
    %5 = vector.broadcast %1 : vector<256x1xf32> to vector<256x32xf32>
    %6 = vector.broadcast %3 : vector<1x32xf32> to vector<256x32xf32>
    %7 = arith.mulf %5, %6 : vector<256x32xf32>
    %8 = vector.broadcast %2 : vector<256x1xf32> to vector<256x32xf32>
    %9 = vector.broadcast %4 : vector<1x32xf32> to vector<256x32xf32>
    %10 = arith.mulf %8, %9 : vector<256x32xf32>
    %11 = arith.addf %7, %10 : vector<256x32xf32>
    %12 = arith.truncf %11 : vector<256x32xf32> to vector<256x32xbf16>
    %c0_4 = arith.constant 0 : index
    %c0_5 = arith.constant 0 : index
    %13 = vector.load %arg32[%c0_4, %c0_5] : memref<1792x32xbf16, #tpu.memory_space<vmem>>, vector<256x32xbf16>
    tpu.vector_store %arg32[%c0_4, %c0_5], %12 {strides = array<i32>} : memref<1792x32xbf16, #tpu.memory_space<vmem>>, vector<256x32xbf16>,
    %c0_6 = arith.constant 0 : index
    %c32 = arith.constant 32 : index
    %14 = vector.load %arg2[%c0_6, %c32] : memref<2x224xf32, #tpu.memory_space<vmem>>, vector<1x32xf32>
    %c1_7 = arith.constant 1 : index
    %c32_8 = arith.constant 32 : index
    %15 = vector.load %arg2[%c1_7, %c32_8] : memref<2x224xf32, #tpu.memory_space<vmem>>, vector<1x32xf32>
    %16 = vector.broadcast %1 : vector<256x1xf32> to vector<256x32xf32>
    %17 = vector.broadcast %14 : vector<1x32xf32> to vector<256x32xf32>
    %18 = arith.mulf %16, %17 : vector<256x32xf32>
    %19 = vector.broadcast %2 : vector<256x1xf32> to vector<256x32xf32>
    %20 = vector.broadcast %15 : vector<1x32xf32> to vector<256x32xf32>
    %21 = arith.mulf %19, %20 : vector<256x32xf32>
    %22 = arith.addf %18, %21 : vector<256x32xf32>
    %23 = arith.truncf %22 : vector<256x32xf32> to vector<256x32xbf16>
    %c256 = arith.constant 256 : index
    %c0_9 = arith.constant 0 : index
    %24 = vector.load %arg32[%c256, %c0_9] : memref<1792x32xbf16, #tpu.memory_space<vmem>>, vector<256x32xbf16>
    tpu.vector_store %arg32[%c256, %c0_9], %23 {strides = array<i32>} : memref<1792x32xbf16, #tpu.memory_space<vmem>>, vector<256x32xbf16>,
    %c0_10 = arith.constant 0 : index
    %c64 = arith.constant 64 : index
    %25 = vector.load %arg2[%c0_10, %c64] : memref<2x224xf32, #tpu.memory_space<vmem>>, vector<1x32xf32>
    %c1_11 = arith.constant 1 : index
    %c64_12 = arith.constant 64 : index
    %26 = vector.load %arg2[%c1_11, %c64_12] : memref<2x224xf32, #tpu.memory_space<vmem>>, vector<1x32xf32>
    %27 = vector.broadcast %1 : vector<256x1xf32> to vector<256x32xf32>
    %28 = vector.broadcast %25 : vector<1x32xf32> to vector<256x32xf32>
    %29 = arith.mulf %27, %28 : vector<256x32xf32>
    %30 = vector.broadcast %2 : vector<256x1xf32> to vector<256x32xf32>
    %31 = vector.broadcast %26 : vector<1x32xf32> to vector<256x32xf32>
    %32 = arith.mulf %30, %31 : vector<256x32xf32>
    %33 = arith.addf %29, %32 : vector<256x32xf32>
    %34 = arith.truncf %33 : vector<256x32xf32> to vector<256x32xbf16>
    %c512 = arith.constant 512 : index
    %c0_13 = arith.constant 0 : index
    %35 = vector.load %arg32[%c512, %c0_13] : memref<1792x32xbf16, #tpu.memory_space<vmem>>, vector<256x32xbf16>
    tpu.vector_store %arg32[%c512, %c0_13], %34 {strides = array<i32>} : memref<1792x32xbf16, #tpu.memory_space<vmem>>, vector<256x32xbf16>,
    %c0_14 = arith.constant 0 : index
    %c96 = arith.constant 96 : index
    %36 = vector.load %arg2[%c0_14, %c96] : memref<2x224xf32, #tpu.memory_space<vmem>>, vector<1x32xf32>
    %c1_15 = arith.constant 1 : index
    %c96_16 = arith.constant 96 : index
    %37 = vector.load %arg2[%c1_15, %c96_16] : memref<2x224xf32, #tpu.memory_space<vmem>>, vector<1x32xf32>
    %38 = vector.broadcast %1 : vector<256x1xf32> to vector<256x32xf32>
    %39 = vector.broadcast %36 : vector<1x32xf32> to vector<256x32xf32>
    %40 = arith.mulf %38, %39 : vector<256x32xf32>
    %41 = vector.broadcast %2 : vector<256x1xf32> to vector<256x32xf32>
    %42 = vector.broadcast %37 : vector<1x32xf32> to vector<256x32xf32>
    %43 = arith.mulf %41, %42 : vector<256x32xf32>
    %44 = arith.addf %40, %43 : vector<256x32xf32>
    %45 = arith.truncf %44 : vector<256x32xf32> to vector<256x32xbf16>
    %c768 = arith.constant 768 : index
    %c0_17 = arith.constant 0 : index
    %46 = vector.load %arg32[%c768, %c0_17] : memref<1792x32xbf16, #tpu.memory_space<vmem>>, vector<256x32xbf16>
    tpu.vector_store %arg32[%c768, %c0_17], %45 {strides = array<i32>} : memref<1792x32xbf16, #tpu.memory_space<vmem>>, vector<256x32xbf16>,
    %c0_18 = arith.constant 0 : index
    %c128 = arith.constant 128 : index
    %47 = vector.load %arg2[%c0_18, %c128] : memref<2x224xf32, #tpu.memory_space<vmem>>, vector<1x32xf32>
    %c1_19 = arith.constant 1 : index
    %c128_20 = arith.constant 128 : index
    %48 = vector.load %arg2[%c1_19, %c128_20] : memref<2x224xf32, #tpu.memory_space<vmem>>, vector<1x32xf32>
    %49 = vector.broadcast %1 : vector<256x1xf32> to vector<256x32xf32>
    %50 = vector.broadcast %47 : vector<1x32xf32> to vector<256x32xf32>
    %51 = arith.mulf %49, %50 : vector<256x32xf32>
    %52 = vector.broadcast %2 : vector<256x1xf32> to vector<256x32xf32>
    %53 = vector.broadcast %48 : vector<1x32xf32> to vector<256x32xf32>
    %54 = arith.mulf %52, %53 : vector<256x32xf32>
    %55 = arith.addf %51, %54 : vector<256x32xf32>
    %56 = arith.truncf %55 : vector<256x32xf32> to vector<256x32xbf16>
    %c1024 = arith.constant 1024 : index
    %c0_21 = arith.constant 0 : index
    %57 = vector.load %arg32[%c1024, %c0_21] : memref<1792x32xbf16, #tpu.memory_space<vmem>>, vector<256x32xbf16>
    tpu.vector_store %arg32[%c1024, %c0_21], %56 {strides = array<i32>} : memref<1792x32xbf16, #tpu.memory_space<vmem>>, vector<256x32xbf16>,
    %c0_22 = arith.constant 0 : index
    %c160 = arith.constant 160 : index
    %58 = vector.load %arg2[%c0_22, %c160] : memref<2x224xf32, #tpu.memory_space<vmem>>, vector<1x32xf32>
    %c1_23 = arith.constant 1 : index
    %c160_24 = arith.constant 160 : index
    %59 = vector.load %arg2[%c1_23, %c160_24] : memref<2x224xf32, #tpu.memory_space<vmem>>, vector<1x32xf32>
    %60 = vector.broadcast %1 : vector<256x1xf32> to vector<256x32xf32>
    %61 = vector.broadcast %58 : vector<1x32xf32> to vector<256x32xf32>
    %62 = arith.mulf %60, %61 : vector<256x32xf32>
    %63 = vector.broadcast %2 : vector<256x1xf32> to vector<256x32xf32>
    %64 = vector.broadcast %59 : vector<1x32xf32> to vector<256x32xf32>
    %65 = arith.mulf %63, %64 : vector<256x32xf32>
    %66 = arith.addf %62, %65 : vector<256x32xf32>
    %67 = arith.truncf %66 : vector<256x32xf32> to vector<256x32xbf16>
    %c1280 = arith.constant 1280 : index
    %c0_25 = arith.constant 0 : index
    %68 = vector.load %arg32[%c1280, %c0_25] : memref<1792x32xbf16, #tpu.memory_space<vmem>>, vector<256x32xbf16>
    tpu.vector_store %arg32[%c1280, %c0_25], %67 {strides = array<i32>} : memref<1792x32xbf16, #tpu.memory_space<vmem>>, vector<256x32xbf16>,
    %c0_26 = arith.constant 0 : index
    %c192 = arith.constant 192 : index
    %69 = vector.load %arg2[%c0_26, %c192] : memref<2x224xf32, #tpu.memory_space<vmem>>, vector<1x32xf32>
    %c1_27 = arith.constant 1 : index
    %c192_28 = arith.constant 192 : index
    %70 = vector.load %arg2[%c1_27, %c192_28] : memref<2x224xf32, #tpu.memory_space<vmem>>, vector<1x32xf32>
    %71 = vector.broadcast %1 : vector<256x1xf32> to vector<256x32xf32>
    %72 = vector.broadcast %69 : vector<1x32xf32> to vector<256x32xf32>
    %73 = arith.mulf %71, %72 : vector<256x32xf32>
    %74 = vector.broadcast %2 : vector<256x1xf32> to vector<256x32xf32>
    %75 = vector.broadcast %70 : vector<1x32xf32> to vector<256x32xf32>
    %76 = arith.mulf %74, %75 : vector<256x32xf32>
    %77 = arith.addf %73, %76 : vector<256x32xf32>
    %78 = arith.truncf %77 : vector<256x32xf32> to vector<256x32xbf16>
    %c1536 = arith.constant 1536 : index
    %c0_29 = arith.constant 0 : index
    %79 = vector.load %arg32[%c1536, %c0_29] : memref<1792x32xbf16, #tpu.memory_space<vmem>>, vector<256x32xbf16>
    tpu.vector_store %arg32[%c1536, %c0_29], %78 {strides = array<i32>} : memref<1792x32xbf16, #tpu.memory_space<vmem>>, vector<256x32xbf16>,
    %c0_30 = arith.constant 0 : index
    %c0_31 = arith.constant 0 : index
    %80 = vector.load %arg4[%c0_30, %c0_31] : memref<128x1792xbf16, #tpu.memory_space<vmem>>, vector<128x1792xbf16>
    %c0_32 = arith.constant 0 : index
    %c0_33 = arith.constant 0 : index
    %81 = vector.load %arg32[%c0_32, %c0_33] : memref<1792x32xbf16, #tpu.memory_space<vmem>>, vector<1792x32xbf16>
    %cst = arith.constant dense<0.000000e+00> : vector<128x32xf32>
    %82 = tpu.matmul %80, %81, %cst {dimension_numbers = #tpu.dot_dimension_numbers<[1], [0], [0], [1], [0, 0, 1, 1], [], []>} : vector<128x1792xbf16>, vector<1792x32xbf16>, vector<128x32xf32> -> vector<128x32xf32>
    %c0_34 = arith.constant 0 : index
    %c0_35 = arith.constant 0 : index
    %83 = vector.load %arg3[%c0_34, %c0_35] : memref<1x32xf32, #tpu.memory_space<vmem>>, vector<1x32xf32>
    %84 = vector.broadcast %83 : vector<1x32xf32> to vector<128x32xf32>
    %85 = arith.addf %82, %84 : vector<128x32xf32>
    %cst_36 = arith.constant 0.000000e+00 : f32
    %86 = vector.broadcast %cst_36 : f32 to vector<128x32xf32>
    %87 = arith.cmpf oge, %85, %86 : vector<128x32xf32>
    %cst_37 = arith.constant 1.000000e-01 : f32
    %88 = vector.broadcast %cst_37 : f32 to vector<128x32xf32>
    %89 = arith.mulf %88, %85 : vector<128x32xf32>
    %90 = arith.select %87, %85, %89 : vector<128x32xi1>, vector<128x32xf32>
    %91 = arith.truncf %90 : vector<128x32xf32> to vector<128x32xbf16>
    %c0_38 = arith.constant 0 : index
    %c0_39 = arith.constant 0 : index
    %92 = vector.load %arg5[%c0_38, %c0_39] : memref<32x320xbf16, #tpu.memory_space<vmem>>, vector<32x320xbf16>
    %cst_40 = arith.constant dense<0.000000e+00> : vector<128x320xf32>
    %93 = tpu.matmul %91, %92, %cst_40 {dimension_numbers = #tpu.dot_dimension_numbers<[1], [0], [0], [1], [0, 0, 1, 1], [], []>} : vector<128x32xbf16>, vector<32x320xbf16>, vector<128x320xf32> -> vector<128x320xf32>
    %94 = vector.extract_strided_slice %93 {offsets = [0, 0], sizes = [128, 64], strides = [1, 1]} : vector<128x320xf32> to vector<128x64xf32>
    %95 = arith.truncf %94 : vector<128x64xf32> to vector<128x64xbf16>
    %c0_41 = arith.constant 0 : index
    %c0_42 = arith.constant 0 : index
    %96 = vector.load %arg33[%c0_41, %c0_42] : memref<640x64xbf16, #tpu.memory_space<vmem>>, vector<128x64xbf16>
    tpu.vector_store %arg33[%c0_41, %c0_42], %95 {strides = array<i32>} : memref<640x64xbf16, #tpu.memory_space<vmem>>, vector<128x64xbf16>,
    %97 = vector.extract_strided_slice %93 {offsets = [0, 64], sizes = [128, 64], strides = [1, 1]} : vector<128x320xf32> to vector<128x64xf32>
    %98 = arith.truncf %97 : vector<128x64xf32> to vector<128x64xbf16>
    %c128_43 = arith.constant 128 : index
    %c0_44 = arith.constant 0 : index
    %99 = vector.load %arg33[%c128_43, %c0_44] : memref<640x64xbf16, #tpu.memory_space<vmem>>, vector<128x64xbf16>
    tpu.vector_store %arg33[%c128_43, %c0_44], %98 {strides = array<i32>} : memref<640x64xbf16, #tpu.memory_space<vmem>>, vector<128x64xbf16>,
    %100 = vector.extract_strided_slice %93 {offsets = [0, 128], sizes = [128, 64], strides = [1, 1]} : vector<128x320xf32> to vector<128x64xf32>
    %101 = arith.truncf %100 : vector<128x64xf32> to vector<128x64xbf16>
    %c256_45 = arith.constant 256 : index
    %c0_46 = arith.constant 0 : index
    %102 = vector.load %arg33[%c256_45, %c0_46] : memref<640x64xbf16, #tpu.memory_space<vmem>>, vector<128x64xbf16>
    tpu.vector_store %arg33[%c256_45, %c0_46], %101 {strides = array<i32>} : memref<640x64xbf16, #tpu.memory_space<vmem>>, vector<128x64xbf16>,
    %103 = vector.extract_strided_slice %93 {offsets = [0, 192], sizes = [128, 64], strides = [1, 1]} : vector<128x320xf32> to vector<128x64xf32>
    %104 = arith.truncf %103 : vector<128x64xf32> to vector<128x64xbf16>
    %c384 = arith.constant 384 : index
    %c0_47 = arith.constant 0 : index
    %105 = vector.load %arg33[%c384, %c0_47] : memref<640x64xbf16, #tpu.memory_space<vmem>>, vector<128x64xbf16>
    tpu.vector_store %arg33[%c384, %c0_47], %104 {strides = array<i32>} : memref<640x64xbf16, #tpu.memory_space<vmem>>, vector<128x64xbf16>,
    %106 = vector.extract_strided_slice %93 {offsets = [0, 256], sizes = [128, 64], strides = [1, 1]} : vector<128x320xf32> to vector<128x64xf32>
    %107 = arith.truncf %106 : vector<128x64xf32> to vector<128x64xbf16>
    %c512_48 = arith.constant 512 : index
    %c0_49 = arith.constant 0 : index
    %108 = vector.load %arg33[%c512_48, %c0_49] : memref<640x64xbf16, #tpu.memory_space<vmem>>, vector<128x64xbf16>
    tpu.vector_store %arg33[%c512_48, %c0_49], %107 {strides = array<i32>} : memref<640x64xbf16, #tpu.memory_space<vmem>>, vector<128x64xbf16>,
    %c0_50 = arith.constant 0 : index
    %c0_51 = arith.constant 0 : index
    %109 = vector.load %arg7[%c0_50, %c0_51] : memref<64x640xbf16, #tpu.memory_space<vmem>>, vector<64x640xbf16>
    %c0_52 = arith.constant 0 : index
    %c0_53 = arith.constant 0 : index
    %110 = vector.load %arg33[%c0_52, %c0_53] : memref<640x64xbf16, #tpu.memory_space<vmem>>, vector<640x64xbf16>
    %cst_54 = arith.constant dense<0.000000e+00> : vector<64x64xf32>
    %111 = tpu.matmul %109, %110, %cst_54 {dimension_numbers = #tpu.dot_dimension_numbers<[1], [0], [0], [1], [0, 0, 1, 1], [], []>} : vector<64x640xbf16>, vector<640x64xbf16>, vector<64x64xf32> -> vector<64x64xf32>
    %c0_55 = arith.constant 0 : index
    %c0_56 = arith.constant 0 : index
    %112 = vector.load %arg6[%c0_55, %c0_56] : memref<1x64xf32, #tpu.memory_space<vmem>>, vector<1x64xf32>
    %113 = vector.broadcast %112 : vector<1x64xf32> to vector<64x64xf32>
    %114 = arith.addf %111, %113 : vector<64x64xf32>
    %cst_57 = arith.constant 0.000000e+00 : f32
    %115 = vector.broadcast %cst_57 : f32 to vector<64x64xf32>
    %116 = arith.cmpf oge, %114, %115 : vector<64x64xf32>
    %cst_58 = arith.constant 1.000000e-01 : f32
    %117 = vector.broadcast %cst_58 : f32 to vector<64x64xf32>
    %118 = arith.mulf %117, %114 : vector<64x64xf32>
    %119 = arith.select %116, %114, %118 : vector<64x64xi1>, vector<64x64xf32>
    %120 = arith.truncf %119 : vector<64x64xf32> to vector<64x64xbf16>
    %c0_59 = arith.constant 0 : index
    %c0_60 = arith.constant 0 : index
    %121 = vector.load %arg8[%c0_59, %c0_60] : memref<64x384xbf16, #tpu.memory_space<vmem>>, vector<64x384xbf16>
    %cst_61 = arith.constant dense<0.000000e+00> : vector<64x384xf32>
    %122 = tpu.matmul %120, %121, %cst_61 {dimension_numbers = #tpu.dot_dimension_numbers<[1], [0], [0], [1], [0, 0, 1, 1], [], []>} : vector<64x64xbf16>, vector<64x384xbf16>, vector<64x384xf32> -> vector<64x384xf32>
    %123 = vector.extract_strided_slice %122 {offsets = [0, 0], sizes = [64, 128], strides = [1, 1]} : vector<64x384xf32> to vector<64x128xf32>
    %124 = arith.truncf %123 : vector<64x128xf32> to vector<64x128xbf16>
    %c0_62 = arith.constant 0 : index
    %c0_63 = arith.constant 0 : index
    %125 = vector.load %arg34[%c0_62, %c0_63] : memref<192x128xbf16, #tpu.memory_space<vmem>>, vector<64x128xbf16>
    tpu.vector_store %arg34[%c0_62, %c0_63], %124 {strides = array<i32>} : memref<192x128xbf16, #tpu.memory_space<vmem>>, vector<64x128xbf16>,
    %126 = vector.extract_strided_slice %122 {offsets = [0, 128], sizes = [64, 128], strides = [1, 1]} : vector<64x384xf32> to vector<64x128xf32>
    %127 = arith.truncf %126 : vector<64x128xf32> to vector<64x128xbf16>
    %c64_64 = arith.constant 64 : index
    %c0_65 = arith.constant 0 : index
    %128 = vector.load %arg34[%c64_64, %c0_65] : memref<192x128xbf16, #tpu.memory_space<vmem>>, vector<64x128xbf16>
    tpu.vector_store %arg34[%c64_64, %c0_65], %127 {strides = array<i32>} : memref<192x128xbf16, #tpu.memory_space<vmem>>, vector<64x128xbf16>,
    %129 = vector.extract_strided_slice %122 {offsets = [0, 256], sizes = [64, 128], strides = [1, 1]} : vector<64x384xf32> to vector<64x128xf32>
    %130 = arith.truncf %129 : vector<64x128xf32> to vector<64x128xbf16>
    %c128_66 = arith.constant 128 : index
    %c0_67 = arith.constant 0 : index
    %131 = vector.load %arg34[%c128_66, %c0_67] : memref<192x128xbf16, #tpu.memory_space<vmem>>, vector<64x128xbf16>
    tpu.vector_store %arg34[%c128_66, %c0_67], %130 {strides = array<i32>} : memref<192x128xbf16, #tpu.memory_space<vmem>>, vector<64x128xbf16>,
    %c0_68 = arith.constant 0 : index
    %c0_69 = arith.constant 0 : index
    %132 = vector.load %arg10[%c0_68, %c0_69] : memref<32x192xbf16, #tpu.memory_space<vmem>>, vector<32x192xbf16>
    %c0_70 = arith.constant 0 : index
    %c0_71 = arith.constant 0 : index
    %133 = vector.load %arg34[%c0_70, %c0_71] : memref<192x128xbf16, #tpu.memory_space<vmem>>, vector<192x128xbf16>
    %cst_72 = arith.constant dense<0.000000e+00> : vector<32x128xf32>
    %134 = tpu.matmul %132, %133, %cst_72 {dimension_numbers = #tpu.dot_dimension_numbers<[1], [0], [0], [1], [0, 0, 1, 1], [], []>} : vector<32x192xbf16>, vector<192x128xbf16>, vector<32x128xf32> -> vector<32x128xf32>
    %c0_73 = arith.constant 0 : index
    %c0_74 = arith.constant 0 : index
    %135 = vector.load %arg9[%c0_73, %c0_74] : memref<1x128xf32, #tpu.memory_space<vmem>>, vector<1x128xf32>
    %136 = vector.broadcast %135 : vector<1x128xf32> to vector<32x128xf32>
    %137 = arith.addf %134, %136 : vector<32x128xf32>
    %cst_75 = arith.constant 0.000000e+00 : f32
    %138 = vector.broadcast %cst_75 : f32 to vector<32x128xf32>
    %139 = arith.cmpf oge, %137, %138 : vector<32x128xf32>
    %cst_76 = arith.constant 1.000000e-01 : f32
    %140 = vector.broadcast %cst_76 : f32 to vector<32x128xf32>
    %141 = arith.mulf %140, %137 : vector<32x128xf32>
    %142 = arith.select %139, %137, %141 : vector<32x128xi1>, vector<32x128xf32>
    %c0_77 = arith.constant 0 : index
    %c0_78 = arith.constant 0 : index
    %143 = vector.load %arg11[%c0_77, %c0_78] : memref<18x32xbf16, #tpu.memory_space<vmem>>, vector<18x32xbf16>
    %144 = arith.truncf %142 : vector<32x128xf32> to vector<32x128xbf16>
    %cst_79 = arith.constant dense<0.000000e+00> : vector<18x128xf32>
    %145 = tpu.matmul %143, %144, %cst_79 {dimension_numbers = #tpu.dot_dimension_numbers<[1], [0], [0], [1], [0, 0, 1, 1], [], []>} : vector<18x32xbf16>, vector<32x128xbf16>, vector<18x128xf32> -> vector<18x128xf32>
    %146 = vector.extract_strided_slice %145 {offsets = [16, 0], sizes = [2, 128], strides = [1, 1]} : vector<18x128xf32> to vector<2x128xf32>
    %147 = arith.truncf %146 : vector<2x128xf32> to vector<2x128xbf16>
    %c0_80 = arith.constant 0 : index
    %c0_81 = arith.constant 0 : index
    %148 = vector.load %arg12[%c0_80, %c0_81] : memref<128x64xbf16, #tpu.memory_space<vmem>>, vector<128x64xbf16>
    %cst_82 = arith.constant dense<0.000000e+00> : vector<2x64xf32>
    %149 = tpu.matmul %147, %148, %cst_82 {dimension_numbers = #tpu.dot_dimension_numbers<[1], [0], [0], [1], [0, 0, 1, 1], [], []>} : vector<2x128xbf16>, vector<128x64xbf16>, vector<2x64xf32> -> vector<2x64xf32>
    %c0_83 = arith.constant 0 : index
    %c0_84 = arith.constant 0 : index
    %150 = vector.load %arg13[%c0_83, %c0_84] : memref<1x64xf32, #tpu.memory_space<vmem>>, vector<1x64xf32>
    %151 = vector.broadcast %150 : vector<1x64xf32> to vector<2x64xf32>
    %152 = arith.addf %149, %151 : vector<2x64xf32>
    %cst_85 = arith.constant 0.000000e+00 : f32
    %153 = vector.broadcast %cst_85 : f32 to vector<2x64xf32>
    %154 = arith.maximumf %152, %153 : vector<2x64xf32>
    %155 = arith.truncf %154 : vector<2x64xf32> to vector<2x64xbf16>
    %c0_86 = arith.constant 0 : index
    %c0_87 = arith.constant 0 : index
    %156 = vector.load %arg14[%c0_86, %c0_87] : memref<64x128xbf16, #tpu.memory_space<vmem>>, vector<64x128xbf16>
    %cst_88 = arith.constant dense<0.000000e+00> : vector<2x128xf32>
    %157 = tpu.matmul %155, %156, %cst_88 {dimension_numbers = #tpu.dot_dimension_numbers<[1], [0], [0], [1], [0, 0, 1, 1], [], []>} : vector<2x64xbf16>, vector<64x128xbf16>, vector<2x128xf32> -> vector<2x128xf32>
    %c0_89 = arith.constant 0 : index
    %c0_90 = arith.constant 0 : index
    %158 = vector.load %arg15[%c0_89, %c0_90] : memref<1x128xf32, #tpu.memory_space<vmem>>, vector<1x128xf32>
    %159 = vector.broadcast %158 : vector<1x128xf32> to vector<2x128xf32>
    %160 = arith.addf %157, %159 : vector<2x128xf32>
    %161 = arith.negf %160 : vector<2x128xf32>
    %162 = math.exp %161 : vector<2x128xf32>
    %cst_91 = arith.constant 1.000000e+00 : f32
    %163 = vector.broadcast %cst_91 : f32 to vector<2x128xf32>
    %164 = arith.addf %163, %162 : vector<2x128xf32>
    %165 = arith.divf %163, %164 : vector<2x128xf32>
    %166 = vector.extract_strided_slice %145 {offsets = [0, 0], sizes = [2, 128], strides = [1, 1]} : vector<18x128xf32> to vector<2x128xf32>
    %167 = arith.mulf %166, %165 : vector<2x128xf32>
    %168 = arith.truncf %167 : vector<2x128xf32> to vector<2x128xbf16>
    %c0_92 = arith.constant 0 : index
    %c0_93 = arith.constant 0 : index
    %169 = vector.load %arg35[%c0_92, %c0_93] : memref<2x1024xbf16, #tpu.memory_space<vmem>>, vector<2x128xbf16>
    tpu.vector_store %arg35[%c0_92, %c0_93], %168 {strides = array<i32>} : memref<2x1024xbf16, #tpu.memory_space<vmem>>, vector<2x128xbf16>,
    %170 = vector.extract_strided_slice %145 {offsets = [2, 0], sizes = [2, 128], strides = [1, 1]} : vector<18x128xf32> to vector<2x128xf32>
    %171 = arith.mulf %170, %165 : vector<2x128xf32>
    %172 = arith.truncf %171 : vector<2x128xf32> to vector<2x128xbf16>
    %c0_94 = arith.constant 0 : index
    %c128_95 = arith.constant 128 : index
    %173 = vector.load %arg35[%c0_94, %c128_95] : memref<2x1024xbf16, #tpu.memory_space<vmem>>, vector<2x128xbf16>
    tpu.vector_store %arg35[%c0_94, %c128_95], %172 {strides = array<i32>} : memref<2x1024xbf16, #tpu.memory_space<vmem>>, vector<2x128xbf16>,
    %174 = vector.extract_strided_slice %145 {offsets = [4, 0], sizes = [2, 128], strides = [1, 1]} : vector<18x128xf32> to vector<2x128xf32>
    %175 = arith.mulf %174, %165 : vector<2x128xf32>
    %176 = arith.truncf %175 : vector<2x128xf32> to vector<2x128xbf16>
    %c0_96 = arith.constant 0 : index
    %c256_97 = arith.constant 256 : index
    %177 = vector.load %arg35[%c0_96, %c256_97] : memref<2x1024xbf16, #tpu.memory_space<vmem>>, vector<2x128xbf16>
    tpu.vector_store %arg35[%c0_96, %c256_97], %176 {strides = array<i32>} : memref<2x1024xbf16, #tpu.memory_space<vmem>>, vector<2x128xbf16>,
    %178 = vector.extract_strided_slice %145 {offsets = [6, 0], sizes = [2, 128], strides = [1, 1]} : vector<18x128xf32> to vector<2x128xf32>
    %179 = arith.mulf %178, %165 : vector<2x128xf32>
    %180 = arith.truncf %179 : vector<2x128xf32> to vector<2x128xbf16>
    %c0_98 = arith.constant 0 : index
    %c384_99 = arith.constant 384 : index
    %181 = vector.load %arg35[%c0_98, %c384_99] : memref<2x1024xbf16, #tpu.memory_space<vmem>>, vector<2x128xbf16>
    tpu.vector_store %arg35[%c0_98, %c384_99], %180 {strides = array<i32>} : memref<2x1024xbf16, #tpu.memory_space<vmem>>, vector<2x128xbf16>,
    %182 = vector.extract_strided_slice %145 {offsets = [8, 0], sizes = [2, 128], strides = [1, 1]} : vector<18x128xf32> to vector<2x128xf32>
    %183 = arith.mulf %182, %165 : vector<2x128xf32>
    %184 = arith.truncf %183 : vector<2x128xf32> to vector<2x128xbf16>
    %c0_100 = arith.constant 0 : index
    %c512_101 = arith.constant 512 : index
    %185 = vector.load %arg35[%c0_100, %c512_101] : memref<2x1024xbf16, #tpu.memory_space<vmem>>, vector<2x128xbf16>
    tpu.vector_store %arg35[%c0_100, %c512_101], %184 {strides = array<i32>} : memref<2x1024xbf16, #tpu.memory_space<vmem>>, vector<2x128xbf16>,
    %186 = vector.extract_strided_slice %145 {offsets = [10, 0], sizes = [2, 128], strides = [1, 1]} : vector<18x128xf32> to vector<2x128xf32>
    %187 = arith.mulf %186, %165 : vector<2x128xf32>
    %188 = arith.truncf %187 : vector<2x128xf32> to vector<2x128xbf16>
    %c0_102 = arith.constant 0 : index
    %c640 = arith.constant 640 : index
    %189 = vector.load %arg35[%c0_102, %c640] : memref<2x1024xbf16, #tpu.memory_space<vmem>>, vector<2x128xbf16>
    tpu.vector_store %arg35[%c0_102, %c640], %188 {strides = array<i32>} : memref<2x1024xbf16, #tpu.memory_space<vmem>>, vector<2x128xbf16>,
    %190 = vector.extract_strided_slice %145 {offsets = [12, 0], sizes = [2, 128], strides = [1, 1]} : vector<18x128xf32> to vector<2x128xf32>
    %191 = arith.mulf %190, %165 : vector<2x128xf32>
    %192 = arith.truncf %191 : vector<2x128xf32> to vector<2x128xbf16>
    %c0_103 = arith.constant 0 : index
    %c768_104 = arith.constant 768 : index
    %193 = vector.load %arg35[%c0_103, %c768_104] : memref<2x1024xbf16, #tpu.memory_space<vmem>>, vector<2x128xbf16>
    tpu.vector_store %arg35[%c0_103, %c768_104], %192 {strides = array<i32>} : memref<2x1024xbf16, #tpu.memory_space<vmem>>, vector<2x128xbf16>,
    %194 = vector.extract_strided_slice %145 {offsets = [14, 0], sizes = [2, 128], strides = [1, 1]} : vector<18x128xf32> to vector<2x128xf32>
    %195 = arith.mulf %194, %165 : vector<2x128xf32>
    %196 = arith.truncf %195 : vector<2x128xf32> to vector<2x128xbf16>
    %c0_105 = arith.constant 0 : index
    %c896 = arith.constant 896 : index
    %197 = vector.load %arg35[%c0_105, %c896] : memref<2x1024xbf16, #tpu.memory_space<vmem>>, vector<2x128xbf16>
    tpu.vector_store %arg35[%c0_105, %c896], %196 {strides = array<i32>} : memref<2x1024xbf16, #tpu.memory_space<vmem>>, vector<2x128xbf16>,
    %c0_106 = arith.constant 0 : index
    %c0_107 = arith.constant 0 : index
    %198 = vector.load %arg35[%c0_106, %c0_107] : memref<2x1024xbf16, #tpu.memory_space<vmem>>, vector<2x1024xbf16>
    %c0_108 = arith.constant 0 : index
    %c0_109 = arith.constant 0 : index
    %199 = vector.load %arg16[%c0_108, %c0_109] : memref<1024x64xbf16, #tpu.memory_space<vmem>>, vector<1024x64xbf16>
    %cst_110 = arith.constant dense<0.000000e+00> : vector<2x64xf32>
    %200 = tpu.matmul %198, %199, %cst_110 {dimension_numbers = #tpu.dot_dimension_numbers<[1], [0], [0], [1], [0, 0, 1, 1], [], []>} : vector<2x1024xbf16>, vector<1024x64xbf16>, vector<2x64xf32> -> vector<2x64xf32>
    %c0_111 = arith.constant 0 : index
    %c0_112 = arith.constant 0 : index
    %201 = vector.load %arg17[%c0_111, %c0_112] : memref<1x64xf32, #tpu.memory_space<vmem>>, vector<1x64xf32>
    %202 = vector.broadcast %201 : vector<1x64xf32> to vector<2x64xf32>
    %203 = arith.addf %200, %202 : vector<2x64xf32>
    %c0_113 = arith.constant 0 : index
    %c0_114 = arith.constant 0 : index
    %204 = vector.load %arg31[%c0_113, %c0_114] : memref<2x64xf32, #tpu.memory_space<vmem>>, vector<2x64xf32>
    tpu.vector_store %arg31[%c0_113, %c0_114], %203 {strides = array<i32>} : memref<2x64xf32, #tpu.memory_space<vmem>>, vector<2x64xf32>,
    %205 = vector.extract_strided_slice %203 {offsets = [0, 0], sizes = [2, 32], strides = [1, 1]} : vector<2x64xf32> to vector<2x32xf32>
    %206 = vector.extract_strided_slice %203 {offsets = [0, 32], sizes = [2, 32], strides = [1, 1]} : vector<2x64xf32> to vector<2x32xf32>
    %c0_115 = arith.constant 0 : index
    %c0_116 = arith.constant 0 : index
    %207 = vector.load %arg1[%c0_115, %c0_116] : memref<2x32xf32, #tpu.memory_space<vmem>>, vector<2x32xf32>
    %cst_117 = arith.constant 5.000000e-01 : f32
    %208 = vector.broadcast %cst_117 : f32 to vector<2x32xf32>
    %209 = arith.mulf %208, %206 : vector<2x32xf32>
    %210 = math.exp %209 : vector<2x32xf32>
    %211 = arith.mulf %207, %210 : vector<2x32xf32>
    %212 = arith.addf %205, %211 : vector<2x32xf32>
    %213 = arith.truncf %212 : vector<2x32xf32> to vector<2x32xbf16>
    %c0_118 = arith.constant 0 : index
    %c0_119 = arith.constant 0 : index
    %214 = vector.load %arg18[%c0_118, %c0_119] : memref<32x1024xbf16, #tpu.memory_space<vmem>>, vector<32x1024xbf16>
    %cst_120 = arith.constant dense<0.000000e+00> : vector<2x1024xf32>
    %215 = tpu.matmul %213, %214, %cst_120 {dimension_numbers = #tpu.dot_dimension_numbers<[1], [0], [0], [1], [0, 0, 1, 1], [], []>} : vector<2x32xbf16>, vector<32x1024xbf16>, vector<2x1024xf32> -> vector<2x1024xf32>
    %c0_121 = arith.constant 0 : index
    %c0_122 = arith.constant 0 : index
    %216 = vector.load %arg19[%c0_121, %c0_122] : memref<1x1024xf32, #tpu.memory_space<vmem>>, vector<1x1024xf32>
    %217 = vector.broadcast %216 : vector<1x1024xf32> to vector<2x1024xf32>
    %218 = arith.addf %215, %217 : vector<2x1024xf32>
    %cst_123 = arith.constant 0.000000e+00 : f32
    %219 = vector.broadcast %cst_123 : f32 to vector<2x1024xf32>
    %220 = arith.maximumf %218, %219 : vector<2x1024xf32>
    %221 = vector.extract_strided_slice %220 {offsets = [0, 0], sizes = [2, 128], strides = [1, 1]} : vector<2x1024xf32> to vector<2x128xf32>
    %222 = arith.truncf %221 : vector<2x128xf32> to vector<2x128xbf16>
    %c0_124 = arith.constant 0 : index
    %c0_125 = arith.constant 0 : index
    %223 = vector.load %arg36[%c0_124, %c0_125] : memref<16x128xbf16, #tpu.memory_space<vmem>>, vector<2x128xbf16>
    tpu.vector_store %arg36[%c0_124, %c0_125], %222 {strides = array<i32>} : memref<16x128xbf16, #tpu.memory_space<vmem>>, vector<2x128xbf16>,
    %224 = vector.extract_strided_slice %220 {offsets = [0, 128], sizes = [2, 128], strides = [1, 1]} : vector<2x1024xf32> to vector<2x128xf32>
    %225 = arith.truncf %224 : vector<2x128xf32> to vector<2x128xbf16>
    %c2 = arith.constant 2 : index
    %c0_126 = arith.constant 0 : index
    %226 = vector.load %arg36[%c2, %c0_126] : memref<16x128xbf16, #tpu.memory_space<vmem>>, vector<2x128xbf16>
    tpu.vector_store %arg36[%c2, %c0_126], %225 {strides = array<i32>} : memref<16x128xbf16, #tpu.memory_space<vmem>>, vector<2x128xbf16>,
    %227 = vector.extract_strided_slice %220 {offsets = [0, 256], sizes = [2, 128], strides = [1, 1]} : vector<2x1024xf32> to vector<2x128xf32>
    %228 = arith.truncf %227 : vector<2x128xf32> to vector<2x128xbf16>
    %c4 = arith.constant 4 : index
    %c0_127 = arith.constant 0 : index
    %229 = vector.load %arg36[%c4, %c0_127] : memref<16x128xbf16, #tpu.memory_space<vmem>>, vector<2x128xbf16>
    tpu.vector_store %arg36[%c4, %c0_127], %228 {strides = array<i32>} : memref<16x128xbf16, #tpu.memory_space<vmem>>, vector<2x128xbf16>,
    %230 = vector.extract_strided_slice %220 {offsets = [0, 384], sizes = [2, 128], strides = [1, 1]} : vector<2x1024xf32> to vector<2x128xf32>
    %231 = arith.truncf %230 : vector<2x128xf32> to vector<2x128xbf16>
    %c6 = arith.constant 6 : index
    %c0_128 = arith.constant 0 : index
    %232 = vector.load %arg36[%c6, %c0_128] : memref<16x128xbf16, #tpu.memory_space<vmem>>, vector<2x128xbf16>
    tpu.vector_store %arg36[%c6, %c0_128], %231 {strides = array<i32>} : memref<16x128xbf16, #tpu.memory_space<vmem>>, vector<2x128xbf16>,
    %233 = vector.extract_strided_slice %220 {offsets = [0, 512], sizes = [2, 128], strides = [1, 1]} : vector<2x1024xf32> to vector<2x128xf32>
    %234 = arith.truncf %233 : vector<2x128xf32> to vector<2x128xbf16>
    %c8 = arith.constant 8 : index
    %c0_129 = arith.constant 0 : index
    %235 = vector.load %arg36[%c8, %c0_129] : memref<16x128xbf16, #tpu.memory_space<vmem>>, vector<2x128xbf16>
    tpu.vector_store %arg36[%c8, %c0_129], %234 {strides = array<i32>} : memref<16x128xbf16, #tpu.memory_space<vmem>>, vector<2x128xbf16>,
    %236 = vector.extract_strided_slice %220 {offsets = [0, 640], sizes = [2, 128], strides = [1, 1]} : vector<2x1024xf32> to vector<2x128xf32>
    %237 = arith.truncf %236 : vector<2x128xf32> to vector<2x128xbf16>
    %c10 = arith.constant 10 : index
    %c0_130 = arith.constant 0 : index
    %238 = vector.load %arg36[%c10, %c0_130] : memref<16x128xbf16, #tpu.memory_space<vmem>>, vector<2x128xbf16>
    tpu.vector_store %arg36[%c10, %c0_130], %237 {strides = array<i32>} : memref<16x128xbf16, #tpu.memory_space<vmem>>, vector<2x128xbf16>,
    %239 = vector.extract_strided_slice %220 {offsets = [0, 768], sizes = [2, 128], strides = [1, 1]} : vector<2x1024xf32> to vector<2x128xf32>
    %240 = arith.truncf %239 : vector<2x128xf32> to vector<2x128xbf16>
    %c12 = arith.constant 12 : index
    %c0_131 = arith.constant 0 : index
    %241 = vector.load %arg36[%c12, %c0_131] : memref<16x128xbf16, #tpu.memory_space<vmem>>, vector<2x128xbf16>
    tpu.vector_store %arg36[%c12, %c0_131], %240 {strides = array<i32>} : memref<16x128xbf16, #tpu.memory_space<vmem>>, vector<2x128xbf16>,
    %242 = vector.extract_strided_slice %220 {offsets = [0, 896], sizes = [2, 128], strides = [1, 1]} : vector<2x1024xf32> to vector<2x128xf32>
    %243 = arith.truncf %242 : vector<2x128xf32> to vector<2x128xbf16>
    %c14 = arith.constant 14 : index
    %c0_132 = arith.constant 0 : index
    %244 = vector.load %arg36[%c14, %c0_132] : memref<16x128xbf16, #tpu.memory_space<vmem>>, vector<2x128xbf16>
    tpu.vector_store %arg36[%c14, %c0_132], %243 {strides = array<i32>} : memref<16x128xbf16, #tpu.memory_space<vmem>>, vector<2x128xbf16>,
    %c0_133 = arith.constant 0 : index
    %c0_134 = arith.constant 0 : index
    %245 = vector.load %arg36[%c0_133, %c0_134] : memref<16x128xbf16, #tpu.memory_space<vmem>>, vector<16x128xbf16>
    %c0_135 = arith.constant 0 : index
    %c0_136 = arith.constant 0 : index
    %246 = vector.load %arg20[%c0_135, %c0_136] : memref<128x192xbf16, #tpu.memory_space<vmem>>, vector<128x192xbf16>
    %cst_137 = arith.constant dense<0.000000e+00> : vector<16x192xf32>
    %247 = tpu.matmul %245, %246, %cst_137 {dimension_numbers = #tpu.dot_dimension_numbers<[1], [0], [0], [1], [0, 0, 1, 1], [], []>} : vector<16x128xbf16>, vector<128x192xbf16>, vector<16x192xf32> -> vector<16x192xf32>
    %248 = vector.extract_strided_slice %247 {offsets = [0, 0], sizes = [16, 64], strides = [1, 1]} : vector<16x192xf32> to vector<16x64xf32>
    %249 = arith.truncf %248 : vector<16x64xf32> to vector<16x64xbf16>
    %c0_138 = arith.constant 0 : index
    %c0_139 = arith.constant 0 : index
    %250 = vector.load %arg37[%c0_138, %c0_139] : memref<48x64xbf16, #tpu.memory_space<vmem>>, vector<16x64xbf16>
    tpu.vector_store %arg37[%c0_138, %c0_139], %249 {strides = array<i32>} : memref<48x64xbf16, #tpu.memory_space<vmem>>, vector<16x64xbf16>,
    %251 = vector.extract_strided_slice %247 {offsets = [0, 64], sizes = [16, 64], strides = [1, 1]} : vector<16x192xf32> to vector<16x64xf32>
    %252 = arith.truncf %251 : vector<16x64xf32> to vector<16x64xbf16>
    %c16 = arith.constant 16 : index
    %c0_140 = arith.constant 0 : index
    %253 = vector.load %arg37[%c16, %c0_140] : memref<48x64xbf16, #tpu.memory_space<vmem>>, vector<16x64xbf16>
    tpu.vector_store %arg37[%c16, %c0_140], %252 {strides = array<i32>} : memref<48x64xbf16, #tpu.memory_space<vmem>>, vector<16x64xbf16>,
    %254 = vector.extract_strided_slice %247 {offsets = [0, 128], sizes = [16, 64], strides = [1, 1]} : vector<16x192xf32> to vector<16x64xf32>
    %255 = arith.truncf %254 : vector<16x64xf32> to vector<16x64xbf16>
    %c32_141 = arith.constant 32 : index
    %c0_142 = arith.constant 0 : index
    %256 = vector.load %arg37[%c32_141, %c0_142] : memref<48x64xbf16, #tpu.memory_space<vmem>>, vector<16x64xbf16>
    tpu.vector_store %arg37[%c32_141, %c0_142], %255 {strides = array<i32>} : memref<48x64xbf16, #tpu.memory_space<vmem>>, vector<16x64xbf16>,
    %c0_143 = arith.constant 0 : index
    %c0_144 = arith.constant 0 : index
    %257 = vector.load %arg22[%c0_143, %c0_144] : memref<32x48xbf16, #tpu.memory_space<vmem>>, vector<32x48xbf16>
    %c0_145 = arith.constant 0 : index
    %c0_146 = arith.constant 0 : index
    %258 = vector.load %arg37[%c0_145, %c0_146] : memref<48x64xbf16, #tpu.memory_space<vmem>>, vector<48x64xbf16>
    %cst_147 = arith.constant dense<0.000000e+00> : vector<32x64xf32>
    %259 = tpu.matmul %257, %258, %cst_147 {dimension_numbers = #tpu.dot_dimension_numbers<[1], [0], [0], [1], [0, 0, 1, 1], [], []>} : vector<32x48xbf16>, vector<48x64xbf16>, vector<32x64xf32> -> vector<32x64xf32>
    %c0_148 = arith.constant 0 : index
    %c0_149 = arith.constant 0 : index
    %260 = vector.load %arg21[%c0_148, %c0_149] : memref<1x64xf32, #tpu.memory_space<vmem>>, vector<1x64xf32>
    %261 = vector.broadcast %260 : vector<1x64xf32> to vector<32x64xf32>
    %262 = arith.addf %259, %261 : vector<32x64xf32>
    %cst_150 = arith.constant 0.000000e+00 : f32
    %263 = vector.broadcast %cst_150 : f32 to vector<32x64xf32>
    %264 = arith.cmpf oge, %262, %263 : vector<32x64xf32>
    %cst_151 = arith.constant 1.000000e-01 : f32
    %265 = vector.broadcast %cst_151 : f32 to vector<32x64xf32>
    %266 = arith.mulf %265, %262 : vector<32x64xf32>
    %267 = arith.select %264, %262, %266 : vector<32x64xi1>, vector<32x64xf32>
    %268 = arith.truncf %267 : vector<32x64xf32> to vector<32x64xbf16>
    %c0_152 = arith.constant 0 : index
    %c0_153 = arith.constant 0 : index
    %269 = vector.load %arg23[%c0_152, %c0_153] : memref<64x160xbf16, #tpu.memory_space<vmem>>, vector<64x160xbf16>
    %cst_154 = arith.constant dense<0.000000e+00> : vector<32x160xf32>
    %270 = tpu.matmul %268, %269, %cst_154 {dimension_numbers = #tpu.dot_dimension_numbers<[1], [0], [0], [1], [0, 0, 1, 1], [], []>} : vector<32x64xbf16>, vector<64x160xbf16>, vector<32x160xf32> -> vector<32x160xf32>
    %271 = vector.extract_strided_slice %270 {offsets = [0, 0], sizes = [32, 32], strides = [1, 1]} : vector<32x160xf32> to vector<32x32xf32>
    %272 = arith.truncf %271 : vector<32x32xf32> to vector<32x32xbf16>
    %c0_155 = arith.constant 0 : index
    %c0_156 = arith.constant 0 : index
    %273 = vector.load %arg38[%c0_155, %c0_156] : memref<160x32xbf16, #tpu.memory_space<vmem>>, vector<32x32xbf16>
    tpu.vector_store %arg38[%c0_155, %c0_156], %272 {strides = array<i32>} : memref<160x32xbf16, #tpu.memory_space<vmem>>, vector<32x32xbf16>,
    %274 = vector.extract_strided_slice %270 {offsets = [0, 32], sizes = [32, 32], strides = [1, 1]} : vector<32x160xf32> to vector<32x32xf32>
    %275 = arith.truncf %274 : vector<32x32xf32> to vector<32x32xbf16>
    %c32_157 = arith.constant 32 : index
    %c0_158 = arith.constant 0 : index
    %276 = vector.load %arg38[%c32_157, %c0_158] : memref<160x32xbf16, #tpu.memory_space<vmem>>, vector<32x32xbf16>
    tpu.vector_store %arg38[%c32_157, %c0_158], %275 {strides = array<i32>} : memref<160x32xbf16, #tpu.memory_space<vmem>>, vector<32x32xbf16>,
    %277 = vector.extract_strided_slice %270 {offsets = [0, 64], sizes = [32, 32], strides = [1, 1]} : vector<32x160xf32> to vector<32x32xf32>
    %278 = arith.truncf %277 : vector<32x32xf32> to vector<32x32xbf16>
    %c64_159 = arith.constant 64 : index
    %c0_160 = arith.constant 0 : index
    %279 = vector.load %arg38[%c64_159, %c0_160] : memref<160x32xbf16, #tpu.memory_space<vmem>>, vector<32x32xbf16>
    tpu.vector_store %arg38[%c64_159, %c0_160], %278 {strides = array<i32>} : memref<160x32xbf16, #tpu.memory_space<vmem>>, vector<32x32xbf16>,
    %280 = vector.extract_strided_slice %270 {offsets = [0, 96], sizes = [32, 32], strides = [1, 1]} : vector<32x160xf32> to vector<32x32xf32>
    %281 = arith.truncf %280 : vector<32x32xf32> to vector<32x32xbf16>
    %c96_161 = arith.constant 96 : index
    %c0_162 = arith.constant 0 : index
    %282 = vector.load %arg38[%c96_161, %c0_162] : memref<160x32xbf16, #tpu.memory_space<vmem>>, vector<32x32xbf16>
    tpu.vector_store %arg38[%c96_161, %c0_162], %281 {strides = array<i32>} : memref<160x32xbf16, #tpu.memory_space<vmem>>, vector<32x32xbf16>,
    %283 = vector.extract_strided_slice %270 {offsets = [0, 128], sizes = [32, 32], strides = [1, 1]} : vector<32x160xf32> to vector<32x32xf32>
    %284 = arith.truncf %283 : vector<32x32xf32> to vector<32x32xbf16>
    %c128_163 = arith.constant 128 : index
    %c0_164 = arith.constant 0 : index
    %285 = vector.load %arg38[%c128_163, %c0_164] : memref<160x32xbf16, #tpu.memory_space<vmem>>, vector<32x32xbf16>
    tpu.vector_store %arg38[%c128_163, %c0_164], %284 {strides = array<i32>} : memref<160x32xbf16, #tpu.memory_space<vmem>>, vector<32x32xbf16>,
    %c0_165 = arith.constant 0 : index
    %c0_166 = arith.constant 0 : index
    %286 = vector.load %arg25[%c0_165, %c0_166] : memref<64x160xbf16, #tpu.memory_space<vmem>>, vector<64x160xbf16>
    %c0_167 = arith.constant 0 : index
    %c0_168 = arith.constant 0 : index
    %287 = vector.load %arg38[%c0_167, %c0_168] : memref<160x32xbf16, #tpu.memory_space<vmem>>, vector<160x32xbf16>
    %cst_169 = arith.constant dense<0.000000e+00> : vector<64x32xf32>
    %288 = tpu.matmul %286, %287, %cst_169 {dimension_numbers = #tpu.dot_dimension_numbers<[1], [0], [0], [1], [0, 0, 1, 1], [], []>} : vector<64x160xbf16>, vector<160x32xbf16>, vector<64x32xf32> -> vector<64x32xf32>
    %c0_170 = arith.constant 0 : index
    %c0_171 = arith.constant 0 : index
    %289 = vector.load %arg24[%c0_170, %c0_171] : memref<1x32xf32, #tpu.memory_space<vmem>>, vector<1x32xf32>
    %290 = vector.broadcast %289 : vector<1x32xf32> to vector<64x32xf32>
    %291 = arith.addf %288, %290 : vector<64x32xf32>
    %cst_172 = arith.constant 0.000000e+00 : f32
    %292 = vector.broadcast %cst_172 : f32 to vector<64x32xf32>
    %293 = arith.cmpf oge, %291, %292 : vector<64x32xf32>
    %cst_173 = arith.constant 1.000000e-01 : f32
    %294 = vector.broadcast %cst_173 : f32 to vector<64x32xf32>
    %295 = arith.mulf %294, %291 : vector<64x32xf32>
    %296 = arith.select %293, %291, %295 : vector<64x32xi1>, vector<64x32xf32>
    %c0_174 = arith.constant 0 : index
    %c0_175 = arith.constant 0 : index
    %297 = vector.load %arg26[%c0_174, %c0_175] : memref<896x64xbf16, #tpu.memory_space<vmem>>, vector<896x64xbf16>
    %298 = arith.truncf %296 : vector<64x32xf32> to vector<64x32xbf16>
    %cst_176 = arith.constant dense<0.000000e+00> : vector<896x32xf32>
    %299 = tpu.matmul %297, %298, %cst_176 {dimension_numbers = #tpu.dot_dimension_numbers<[1], [0], [0], [1], [0, 0, 1, 1], [], []>} : vector<896x64xbf16>, vector<64x32xbf16>, vector<896x32xf32> -> vector<896x32xf32>
    %300 = vector.extract_strided_slice %299 {offsets = [0, 0], sizes = [128, 32], strides = [1, 1]} : vector<896x32xf32> to vector<128x32xf32>
    %301 = arith.truncf %300 : vector<128x32xf32> to vector<128x32xbf16>
    %c0_177 = arith.constant 0 : index
    %c0_178 = arith.constant 0 : index
    %302 = vector.load %arg39[%c0_177, %c0_178] : memref<128x224xbf16, #tpu.memory_space<vmem>>, vector<128x32xbf16>
    tpu.vector_store %arg39[%c0_177, %c0_178], %301 {strides = array<i32>} : memref<128x224xbf16, #tpu.memory_space<vmem>>, vector<128x32xbf16>,
    %303 = vector.extract_strided_slice %299 {offsets = [128, 0], sizes = [128, 32], strides = [1, 1]} : vector<896x32xf32> to vector<128x32xf32>
    %304 = arith.truncf %303 : vector<128x32xf32> to vector<128x32xbf16>
    %c0_179 = arith.constant 0 : index
    %c32_180 = arith.constant 32 : index
    %305 = vector.load %arg39[%c0_179, %c32_180] : memref<128x224xbf16, #tpu.memory_space<vmem>>, vector<128x32xbf16>
    tpu.vector_store %arg39[%c0_179, %c32_180], %304 {strides = array<i32>} : memref<128x224xbf16, #tpu.memory_space<vmem>>, vector<128x32xbf16>,
    %306 = vector.extract_strided_slice %299 {offsets = [256, 0], sizes = [128, 32], strides = [1, 1]} : vector<896x32xf32> to vector<128x32xf32>
    %307 = arith.truncf %306 : vector<128x32xf32> to vector<128x32xbf16>
    %c0_181 = arith.constant 0 : index
    %c64_182 = arith.constant 64 : index
    %308 = vector.load %arg39[%c0_181, %c64_182] : memref<128x224xbf16, #tpu.memory_space<vmem>>, vector<128x32xbf16>
    tpu.vector_store %arg39[%c0_181, %c64_182], %307 {strides = array<i32>} : memref<128x224xbf16, #tpu.memory_space<vmem>>, vector<128x32xbf16>,
    %309 = vector.extract_strided_slice %299 {offsets = [384, 0], sizes = [128, 32], strides = [1, 1]} : vector<896x32xf32> to vector<128x32xf32>
    %310 = arith.truncf %309 : vector<128x32xf32> to vector<128x32xbf16>
    %c0_183 = arith.constant 0 : index
    %c96_184 = arith.constant 96 : index
    %311 = vector.load %arg39[%c0_183, %c96_184] : memref<128x224xbf16, #tpu.memory_space<vmem>>, vector<128x32xbf16>
    tpu.vector_store %arg39[%c0_183, %c96_184], %310 {strides = array<i32>} : memref<128x224xbf16, #tpu.memory_space<vmem>>, vector<128x32xbf16>,
    %312 = vector.extract_strided_slice %299 {offsets = [512, 0], sizes = [128, 32], strides = [1, 1]} : vector<896x32xf32> to vector<128x32xf32>
    %313 = arith.truncf %312 : vector<128x32xf32> to vector<128x32xbf16>
    %c0_185 = arith.constant 0 : index
    %c128_186 = arith.constant 128 : index
    %314 = vector.load %arg39[%c0_185, %c128_186] : memref<128x224xbf16, #tpu.memory_space<vmem>>, vector<128x32xbf16>
    tpu.vector_store %arg39[%c0_185, %c128_186], %313 {strides = array<i32>} : memref<128x224xbf16, #tpu.memory_space<vmem>>, vector<128x32xbf16>,
    %315 = vector.extract_strided_slice %299 {offsets = [640, 0], sizes = [128, 32], strides = [1, 1]} : vector<896x32xf32> to vector<128x32xf32>
    %316 = arith.truncf %315 : vector<128x32xf32> to vector<128x32xbf16>
    %c0_187 = arith.constant 0 : index
    %c160_188 = arith.constant 160 : index
    %317 = vector.load %arg39[%c0_187, %c160_188] : memref<128x224xbf16, #tpu.memory_space<vmem>>, vector<128x32xbf16>
    tpu.vector_store %arg39[%c0_187, %c160_188], %316 {strides = array<i32>} : memref<128x224xbf16, #tpu.memory_space<vmem>>, vector<128x32xbf16>,
    %318 = vector.extract_strided_slice %299 {offsets = [768, 0], sizes = [128, 32], strides = [1, 1]} : vector<896x32xf32> to vector<128x32xf32>
    %319 = arith.truncf %318 : vector<128x32xf32> to vector<128x32xbf16>
    %c0_189 = arith.constant 0 : index
    %c192_190 = arith.constant 192 : index
    %320 = vector.load %arg39[%c0_189, %c192_190] : memref<128x224xbf16, #tpu.memory_space<vmem>>, vector<128x32xbf16>
    tpu.vector_store %arg39[%c0_189, %c192_190], %319 {strides = array<i32>} : memref<128x224xbf16, #tpu.memory_space<vmem>>, vector<128x32xbf16>,
    %c0_191 = arith.constant 0 : index
    %c0_192 = arith.constant 0 : index
    %321 = vector.load %arg39[%c0_191, %c0_192] : memref<128x224xbf16, #tpu.memory_space<vmem>>, vector<128x224xbf16>
    %c0_193 = arith.constant 0 : index
    %c0_194 = arith.constant 0 : index
    %322 = vector.load %arg27[%c0_193, %c0_194] : memref<224x2xbf16, #tpu.memory_space<vmem>>, vector<224x2xbf16>
    %cst_195 = arith.constant dense<0.000000e+00> : vector<128x2xf32>
    %323 = tpu.matmul %321, %322, %cst_195 {dimension_numbers = #tpu.dot_dimension_numbers<[1], [0], [0], [1], [0, 0, 1, 1], [], []>} : vector<128x224xbf16>, vector<224x2xbf16>, vector<128x2xf32> -> vector<128x2xf32>
    %c0_196 = arith.constant 0 : index
    %c0_197 = arith.constant 0 : index
    %324 = vector.load %arg28[%c0_196, %c0_197] : memref<1x2xf32, #tpu.memory_space<vmem>>, vector<1x2xf32>
    %325 = vector.broadcast %324 : vector<1x2xf32> to vector<128x2xf32>
    %326 = arith.addf %323, %325 : vector<128x2xf32>
    %c0_198 = arith.constant 0 : index
    %c0_199 = arith.constant 0 : index
    %327 = vector.load %arg29[%c0_198, %c0_199] : memref<256x128xbf16, #tpu.memory_space<vmem>>, vector<256x128xbf16>
    %328 = arith.truncf %326 : vector<128x2xf32> to vector<128x2xbf16>
    %cst_200 = arith.constant dense<0.000000e+00> : vector<256x2xf32>
    %329 = tpu.matmul %327, %328, %cst_200 {dimension_numbers = #tpu.dot_dimension_numbers<[1], [0], [0], [1], [0, 0, 1, 1], [], []>} : vector<256x128xbf16>, vector<128x2xbf16>, vector<256x2xf32> -> vector<256x2xf32>
    %c0_201 = arith.constant 0 : index
    %c0_202 = arith.constant 0 : index
    %330 = vector.load %arg30[%c0_201, %c0_202] : memref<256x2xf32, #tpu.memory_space<vmem>>, vector<256x2xf32>
    tpu.vector_store %arg30[%c0_201, %c0_202], %329 {strides = array<i32>} : memref<256x2xf32, #tpu.memory_space<vmem>>, vector<256x2xf32>,
    return
  }
}

</mosaic_0001>

<llo_original>
// kernel: fwd.1
$region0: #{fwd.1}
  #allocation0 [shape = 'u32[]', space=smem, size = 0x4, offset = 0x4, fixed_abs, tag = 'smem constant byte address 0x4 - core index']
  #allocation1 [shape = 'u32[144,128]{1,0:T(1,128)}', space=vmem, size = 0x12000, scoped, tag = 'internal scratch']
  #allocation2 [shape = 'bf16[1792,32]{1,0:T(8,128)(2,1)}', space=vmem, size = 0x70000, scoped, tag = 'scratch operand']
  #allocation3 [shape = 'bf16[640,64]{1,0:T(8,128)(2,1)}', space=vmem, size = 0x28000, scoped, tag = 'scratch operand']
  #allocation4 [shape = 'bf16[192,128]{1,0:T(8,128)(2,1)}', space=vmem, size = 0xc000, scoped, tag = 'scratch operand']
  #allocation5 [shape = 'bf16[2,1024]{1,0:T(2,128)(2,1)}', space=vmem, size = 0x1000, scoped, tag = 'scratch operand']
  #allocation6 [shape = 'bf16[16,128]{1,0:T(8,128)(2,1)}', space=vmem, size = 0x1000, scoped, tag = 'scratch operand']
  #allocation7 [shape = 'bf16[48,64]{1,0:T(8,128)(2,1)}', space=vmem, size = 0x3000, scoped, tag = 'scratch operand']
  #allocation8 [shape = 'bf16[160,32]{1,0:T(8,128)(2,1)}', space=vmem, size = 0xa000, scoped, tag = 'scratch operand']
  #allocation9 [shape = 'bf16[128,224]{1,0:T(8,128)(2,1)}', space=vmem, size = 0x10000, scoped, tag = 'scratch operand']
  %s0 = inlined_call_operand.smem [shape: u32[32], index: -1, kind: input, shape index: {}]
  %s1 = sld [smem:[%s0]]
  %s2 = scalar_lea.smem %s0, 1
  %s3 = sld [smem:[%s2]]
  %s4 = scalar_lea.smem %s0, 2
  %s5 = sld [smem:[%s4]]
  %s6 = scalar_lea.smem %s0, 3
  %s7 = sld [smem:[%s6]]
  %s8 = scalar_lea.smem %s0, 4
  %s9 = sld [smem:[%s8]]
  %s10 = scalar_lea.smem %s0, 5
  %s11 = sld [smem:[%s10]]
  %s12 = scalar_lea.smem %s0, 6
  %s13 = sld [smem:[%s12]]
  %s14 = scalar_lea.smem %s0, 7
  %s15 = sld [smem:[%s14]]
  %s16 = scalar_lea.smem %s0, 8
  %s17 = sld [smem:[%s16]]
  %s18 = scalar_lea.smem %s0, 9
  %s19 = sld [smem:[%s18]]
  %s20 = scalar_lea.smem %s0, 10
  %s21 = sld [smem:[%s20]]
  %s22 = scalar_lea.smem %s0, 11
  %s23 = sld [smem:[%s22]]
  %s24 = scalar_lea.smem %s0, 12
  %s25 = sld [smem:[%s24]]
  %s26 = scalar_lea.smem %s0, 13
  %s27 = sld [smem:[%s26]]
  %s28 = scalar_lea.smem %s0, 14
  %s29 = sld [smem:[%s28]]
  %s30 = scalar_lea.smem %s0, 15
  %s31 = sld [smem:[%s30]]
  %s32 = scalar_lea.smem %s0, 16
  %s33 = sld [smem:[%s32]]
  %s34 = scalar_lea.smem %s0, 17
  %s35 = sld [smem:[%s34]]
  %s36 = scalar_lea.smem %s0, 18
  %s37 = sld [smem:[%s36]]
  %s38 = scalar_lea.smem %s0, 19
  %s39 = sld [smem:[%s38]]
  %s40 = scalar_lea.smem %s0, 20
  %s41 = sld [smem:[%s40]]
  %s42 = scalar_lea.smem %s0, 21
  %s43 = sld [smem:[%s42]]
  %s44 = scalar_lea.smem %s0, 22
  %s45 = sld [smem:[%s44]]
  %s46 = scalar_lea.smem %s0, 23
  %s47 = sld [smem:[%s46]]
  %s48 = scalar_lea.smem %s0, 24
  %s49 = sld [smem:[%s48]]
  %s50 = scalar_lea.smem %s0, 25
  %s51 = sld [smem:[%s50]]
  %s52 = scalar_lea.smem %s0, 26
  %s53 = sld [smem:[%s52]]
  %s54 = scalar_lea.smem %s0, 27
  %s55 = sld [smem:[%s54]]
  %s56 = scalar_lea.smem %s0, 28
  %s57 = sld [smem:[%s56]]
  %s58 = scalar_lea.smem %s0, 29
  %s59 = sld [smem:[%s58]]
  %s60 = scalar_lea.smem %s0, 30
  %s61 = sld [smem:[%s60]]
  %s62 = scalar_lea.smem %s0, 31
  %s63 = sld [smem:[%s62]]
  %64 = xla_tuple %s61, %s63
  %s65 = sld [smem:[#allocation0]]
  $region186: #{fwd.1} parent=0
    _
  %s67 = ssub.s32 1, %s65
  %s68 = scalar_select 0, %s67, %s65
  $region1: #{fwd.1} parent=0
    #allocation10 [shape = 'u8[1024]{0}', space=vmem, size = 0x400, scoped, tag = 'input window, operand 1, single buffered']
    #allocation11 [shape = 's32[1]{0}', space=sflag, size = 0x4, scoped, tag = 'scoped memory for fwd.1']
    #allocation12 [shape = 'u8[2048]{0}', space=vmem, size = 0x800, scoped, tag = 'input window, operand 2, single buffered']
    #allocation13 [shape = 's32[1]{0}', space=sflag, size = 0x4, scoped, tag = 'scoped memory for fwd.1']
    #allocation14 [shape = 'u8[24576]{0}', space=vmem, size = 0x6000, scoped, tag = 'input window, operand 5, single buffered']
    #allocation15 [shape = 'u8[512]{0}', space=vmem, size = 0x400, scoped, tag = 'input window, operand 6, single buffered']
    #allocation16 [shape = 's32[1]{0}', space=sflag, size = 0x4, scoped, tag = 'scoped memory for fwd.1']
    #allocation17 [shape = 'u8[512]{0}', space=vmem, size = 0x400, scoped, tag = 'input window, operand 9, single buffered']
    #allocation18 [shape = 'u8[512]{0}', space=vmem, size = 0x400, scoped, tag = 'input window, operand 13, single buffered']
    #allocation19 [shape = 's32[1]{0}', space=sflag, size = 0x4, scoped, tag = 'scoped memory for fwd.1']
    #allocation20 [shape = 'u8[16384]{0}', space=vmem, size = 0x4000, scoped, tag = 'input window, operand 14, single buffered']
    #allocation21 [shape = 'u8[512]{0}', space=vmem, size = 0x400, scoped, tag = 'input window, operand 15, single buffered']
    #allocation22 [shape = 's32[1]{0}', space=sflag, size = 0x4, scoped, tag = 'scoped memory for fwd.1']
    #allocation23 [shape = 'u8[512]{0}', space=vmem, size = 0x400, scoped, tag = 'input window, operand 17, single buffered']
    #allocation24 [shape = 'u8[4096]{0}', space=vmem, size = 0x1000, scoped, tag = 'input window, operand 19, single buffered']
    #allocation25 [shape = 's32[1]{0}', space=sflag, size = 0x4, scoped, tag = 'scoped memory for fwd.1']
    #allocation26 [shape = 'u8[512]{0}', space=vmem, size = 0x400, scoped, tag = 'input window, operand 21, single buffered']
    #allocation27 [shape = 'u8[8192]{0}', space=vmem, size = 0x2000, scoped, tag = 'input window, operand 22, single buffered']
    #allocation28 [shape = 's32[1]{0}', space=sflag, size = 0x4, scoped, tag = 'scoped memory for fwd.1']
    %69 = vsyncpa [#allocation11], 0
    %70 = vsyncpa [#allocation13], 0
    %71 = vsyncpa [#allocation16], 0
    %72 = vsyncpa [#allocation19], 0
    %73 = vsyncpa [#allocation22], 0
    %74 = vsyncpa [#allocation25], 0
    %75 = vsyncpa [#allocation28], 0
    // Predicated region
    $region2: #{fwd.1} parent=1 // pred_check
      _
    $region3: #{fwd.1} parent=1 // pred_check_branch
      %77 = sbr.rel (0) target = $region5
    $region4: #{fwd.1} parent=1 // pred_region
      _
    $region5: #{fwd.1} parent=1 // pred_fallthru
      _
    // Predicated region
    $region6: #{fwd.1} parent=1 // pred_check
      _
    $region7: #{fwd.1} parent=1 // pred_check_branch
      %79 = sbr.rel (0) target = $region9
    $region8: #{fwd.1} parent=1 // pred_region
      %s81 = ssub.s32 32, 32
      %82 = vsyncadd [#allocation11], %s81
      %s84 = sshll.u32 [#allocation10], 4
      %s85 = int_to_ptr.vmem [resolvable:$true] %s84
      %87 = dma.hbm_to_vmem [thread:$0]  %s3, 32, %s85, [#allocation11]
    $region9: #{fwd.1} parent=1 // pred_fallthru
      _
    // Predicated region
    $region10: #{fwd.1} parent=1 // pred_check
      _
    $region11: #{fwd.1} parent=1 // pred_check_branch
      %89 = sbr.rel (0) target = $region13
    $region12: #{fwd.1} parent=1 // pred_region
      %s91 = ssub.s32 64, 64
      %92 = vsyncadd [#allocation13], %s91
      %s94 = sshll.u32 [#allocation12], 4
      %s95 = int_to_ptr.vmem [resolvable:$true] %s94
      %97 = dma.hbm_to_vmem [thread:$0]  %s5, 64, %s95, [#allocation13]
    $region13: #{fwd.1} parent=1 // pred_fallthru
      _
    // Predicated region
    $region14: #{fwd.1} parent=1 // pred_check
      _
    $region15: #{fwd.1} parent=1 // pred_check_branch
      %99 = sbr.rel (0) target = $region17
    $region16: #{fwd.1} parent=1 // pred_region
      _
    $region17: #{fwd.1} parent=1 // pred_fallthru
      _
    // Predicated region
    $region18: #{fwd.1} parent=1 // pred_check
      _
    $region19: #{fwd.1} parent=1 // pred_check_branch
      %101 = sbr.rel (0) target = $region21
    $region20: #{fwd.1} parent=1 // pred_region
      _
    $region21: #{fwd.1} parent=1 // pred_fallthru
      _
    // Predicated region
    $region22: #{fwd.1} parent=1 // pred_check
      _
    $region23: #{fwd.1} parent=1 // pred_check_branch
      %103 = sbr.rel (0) target = $region25
    $region24: #{fwd.1} parent=1 // pred_region
      %s105 = ssub.s32 768, 768
      %106 = vsyncadd [#allocation13], %s105
      %s107 = sshll.u32 [#allocation14], 4
      %s108 = int_to_ptr.vmem [resolvable:$true] %s107
      %113 = dma.hbm_to_vmem [thread:$0]  %s11, 768, %s108, [#allocation13], 192, 192, 12
    $region25: #{fwd.1} parent=1 // pred_fallthru
      _
    // Predicated region
    $region26: #{fwd.1} parent=1 // pred_check
      _
    $region27: #{fwd.1} parent=1 // pred_check_branch
      %115 = sbr.rel (0) target = $region29
    $region28: #{fwd.1} parent=1 // pred_region
      %s117 = ssub.s32 16, 16
      %118 = vsyncadd [#allocation16], %s117
      %s120 = sshll.u32 [#allocation15], 4
      %s121 = int_to_ptr.vmem [resolvable:$true] %s120
      %123 = dma.hbm_to_vmem [thread:$0]  %s13, 16, %s121, [#allocation16]
    $region29: #{fwd.1} parent=1 // pred_fallthru
      _
    // Predicated region
    $region30: #{fwd.1} parent=1 // pred_check
      _
    $region31: #{fwd.1} parent=1 // pred_check_branch
      %125 = sbr.rel (0) target = $region33
    $region32: #{fwd.1} parent=1 // pred_region
      _
    $region33: #{fwd.1} parent=1 // pred_fallthru
      _
    // Predicated region
    $region34: #{fwd.1} parent=1 // pred_check
      _
    $region35: #{fwd.1} parent=1 // pred_check_branch
      %127 = sbr.rel (0) target = $region37
    $region36: #{fwd.1} parent=1 // pred_region
      _
    $region37: #{fwd.1} parent=1 // pred_fallthru
      _
    // Predicated region
    $region38: #{fwd.1} parent=1 // pred_check
      _
    $region39: #{fwd.1} parent=1 // pred_check_branch
      %129 = sbr.rel (0) target = $region41
    $region40: #{fwd.1} parent=1 // pred_region
      %s131 = ssub.s32 16, 16
      %132 = vsyncadd [#allocation16], %s131
      %s134 = sshll.u32 [#allocation17], 4
      %s135 = int_to_ptr.vmem [resolvable:$true] %s134
      %137 = dma.hbm_to_vmem [thread:$0]  %s19, 16, %s135, [#allocation16]
    $region41: #{fwd.1} parent=1 // pred_fallthru
      _
    // Predicated region
    $region42: #{fwd.1} parent=1 // pred_check
      _
    $region43: #{fwd.1} parent=1 // pred_check_branch
      %139 = sbr.rel (0) target = $region45
    $region44: #{fwd.1} parent=1 // pred_region
      _
    $region45: #{fwd.1} parent=1 // pred_fallthru
      _
    // Predicated region
    $region46: #{fwd.1} parent=1 // pred_check
      _
    $region47: #{fwd.1} parent=1 // pred_check_branch
      %141 = sbr.rel (0) target = $region49
    $region48: #{fwd.1} parent=1 // pred_region
      _
    $region49: #{fwd.1} parent=1 // pred_fallthru
      _
    // Predicated region
    $region50: #{fwd.1} parent=1 // pred_check
      _
    $region51: #{fwd.1} parent=1 // pred_check_branch
      %143 = sbr.rel (0) target = $region53
    $region52: #{fwd.1} parent=1 // pred_region
      _
    $region53: #{fwd.1} parent=1 // pred_fallthru
      _
    // Predicated region
    $region54: #{fwd.1} parent=1 // pred_check
      _
    $region55: #{fwd.1} parent=1 // pred_check_branch
      %145 = sbr.rel (0) target = $region57
    $region56: #{fwd.1} parent=1 // pred_region
      %s147 = ssub.s32 16, 16
      %148 = vsyncadd [#allocation19], %s147
      %s150 = sshll.u32 [#allocation18], 4
      %s151 = int_to_ptr.vmem [resolvable:$true] %s150
      %153 = dma.hbm_to_vmem [thread:$0]  %s27, 16, %s151, [#allocation19]
    $region57: #{fwd.1} parent=1 // pred_fallthru
      _
    // Predicated region
    $region58: #{fwd.1} parent=1 // pred_check
      _
    $region59: #{fwd.1} parent=1 // pred_check_branch
      %155 = sbr.rel (0) target = $region61
    $region60: #{fwd.1} parent=1 // pred_region
      %s157 = ssub.s32 512, 512
      %158 = vsyncadd [#allocation19], %s157
      %s159 = sshll.u32 [#allocation20], 4
      %s160 = int_to_ptr.vmem [resolvable:$true] %s159
      %165 = dma.hbm_to_vmem [thread:$0]  %s29, 512, %s160, [#allocation19], 64, 64, 4
    $region61: #{fwd.1} parent=1 // pred_fallthru
      _
    // Predicated region
    $region62: #{fwd.1} parent=1 // pred_check
      _
    $region63: #{fwd.1} parent=1 // pred_check_branch
      %167 = sbr.rel (0) target = $region65
    $region64: #{fwd.1} parent=1 // pred_region
      %s169 = ssub.s32 16, 16
      %170 = vsyncadd [#allocation22], %s169
      %s172 = sshll.u32 [#allocation21], 4
      %s173 = int_to_ptr.vmem [resolvable:$true] %s172
      %175 = dma.hbm_to_vmem [thread:$0]  %s31, 16, %s173, [#allocation22]
    $region65: #{fwd.1} parent=1 // pred_fallthru
      _
    // Predicated region
    $region66: #{fwd.1} parent=1 // pred_check
      _
    $region67: #{fwd.1} parent=1 // pred_check_branch
      %177 = sbr.rel (0) target = $region69
    $region68: #{fwd.1} parent=1 // pred_region
      _
    $region69: #{fwd.1} parent=1 // pred_fallthru
      _
    // Predicated region
    $region70: #{fwd.1} parent=1 // pred_check
      _
    $region71: #{fwd.1} parent=1 // pred_check_branch
      %179 = sbr.rel (0) target = $region73
    $region72: #{fwd.1} parent=1 // pred_region
      %s181 = ssub.s32 16, 16
      %182 = vsyncadd [#allocation22], %s181
      %s184 = sshll.u32 [#allocation23], 4
      %s185 = int_to_ptr.vmem [resolvable:$true] %s184
      %187 = dma.hbm_to_vmem [thread:$0]  %s35, 16, %s185, [#allocation22]
    $region73: #{fwd.1} parent=1 // pred_fallthru
      _
    // Predicated region
    $region74: #{fwd.1} parent=1 // pred_check
      _
    $region75: #{fwd.1} parent=1 // pred_check_branch
      %189 = sbr.rel (0) target = $region77
    $region76: #{fwd.1} parent=1 // pred_region
      _
    $region77: #{fwd.1} parent=1 // pred_fallthru
      _
    // Predicated region
    $region78: #{fwd.1} parent=1 // pred_check
      _
    $region79: #{fwd.1} parent=1 // pred_check_branch
      %191 = sbr.rel (0) target = $region81
    $region80: #{fwd.1} parent=1 // pred_region
      %s193 = ssub.s32 128, 128
      %194 = vsyncadd [#allocation25], %s193
      %s196 = sshll.u32 [#allocation24], 4
      %s197 = int_to_ptr.vmem [resolvable:$true] %s196
      %199 = dma.hbm_to_vmem [thread:$0]  %s39, 128, %s197, [#allocation25]
    $region81: #{fwd.1} parent=1 // pred_fallthru
      _
    // Predicated region
    $region82: #{fwd.1} parent=1 // pred_check
      _
    $region83: #{fwd.1} parent=1 // pred_check_branch
      %201 = sbr.rel (0) target = $region85
    $region84: #{fwd.1} parent=1 // pred_region
      _
    $region85: #{fwd.1} parent=1 // pred_fallthru
      _
    // Predicated region
    $region86: #{fwd.1} parent=1 // pred_check
      _
    $region87: #{fwd.1} parent=1 // pred_check_branch
      %203 = sbr.rel (0) target = $region89
    $region88: #{fwd.1} parent=1 // pred_region
      %s205 = ssub.s32 16, 16
      %206 = vsyncadd [#allocation25], %s205
      %s208 = sshll.u32 [#allocation26], 4
      %s209 = int_to_ptr.vmem [resolvable:$true] %s208
      %211 = dma.hbm_to_vmem [thread:$0]  %s43, 16, %s209, [#allocation25]
    $region89: #{fwd.1} parent=1 // pred_fallthru
      _
    // Predicated region
    $region90: #{fwd.1} parent=1 // pred_check
      _
    $region91: #{fwd.1} parent=1 // pred_check_branch
      %213 = sbr.rel (0) target = $region93
    $region92: #{fwd.1} parent=1 // pred_region
      %s215 = ssub.s32 256, 256
      %216 = vsyncadd [#allocation28], %s215
      %s217 = sshll.u32 [#allocation27], 4
      %s218 = int_to_ptr.vmem [resolvable:$true] %s217
      %223 = dma.hbm_to_vmem [thread:$0]  %s45, 256, %s218, [#allocation28], 64, 64, 4
    $region93: #{fwd.1} parent=1 // pred_fallthru
      _
    // Predicated region
    $region94: #{fwd.1} parent=1 // pred_check
      _
    $region95: #{fwd.1} parent=1 // pred_check_branch
      %225 = sbr.rel (0) target = $region97
    $region96: #{fwd.1} parent=1 // pred_region
      _
    $region97: #{fwd.1} parent=1 // pred_fallthru
      _
    // Predicated region
    $region98: #{fwd.1} parent=1 // pred_check
      _
    $region99: #{fwd.1} parent=1 // pred_check_branch
      %227 = sbr.rel (0) target = $region101
    $region100: #{fwd.1} parent=1 // pred_region
      _
    $region101: #{fwd.1} parent=1 // pred_fallthru
      _
    // Predicated region
    $region102: #{fwd.1} parent=1 // pred_check
      _
    $region103: #{fwd.1} parent=1 // pred_check_branch
      %229 = sbr.rel (0) target = $region105
    $region104: #{fwd.1} parent=1 // pred_region
      _
    $region105: #{fwd.1} parent=1 // pred_fallthru
      _
    // Predicated region
    $region106: #{fwd.1} parent=1 // pred_check
      _
    $region107: #{fwd.1} parent=1 // pred_check_branch
      %231 = sbr.rel (0) target = $region109
    $region108: #{fwd.1} parent=1 // pred_region
      _
    $region109: #{fwd.1} parent=1 // pred_fallthru
      _
    // Predicated region
    $region110: #{fwd.1} parent=1 // pred_check
      _
    $region111: #{fwd.1} parent=1 // pred_check_branch
      %233 = sbr.rel (0) target = $region113
    $region112: #{fwd.1} parent=1 // pred_region
      _
    $region113: #{fwd.1} parent=1 // pred_fallthru
      _
    // Predicated region
    $region114: #{fwd.1} parent=1 // pred_check
      _
    $region115: #{fwd.1} parent=1 // pred_check_branch
      %235 = sbr.rel (0) target = $region117
    $region116: #{fwd.1} parent=1 // pred_region
      _
    $region117: #{fwd.1} parent=1 // pred_fallthru
      _
    // Predicated region
    $region118: #{fwd.1} parent=1 // pred_check
      _
    $region119: #{fwd.1} parent=1 // pred_check_branch
      %237 = sbr.rel (0) target = $region121
    $region120: #{fwd.1} parent=1 // pred_region
      _
    $region121: #{fwd.1} parent=1 // pred_fallthru
      _
    // Predicated region
    $region122: #{fwd.1} parent=1 // pred_check
      _
    $region123: #{fwd.1} parent=1 // pred_check_branch
      %239 = sbr.rel (0) target = $region125
    $region124: #{fwd.1} parent=1 // pred_region
      %240 = dma.done [#allocation11], 32
    $region125: #{fwd.1} parent=1 // pred_fallthru
      _
    // Predicated region
    $region126: #{fwd.1} parent=1 // pred_check
      _
    $region127: #{fwd.1} parent=1 // pred_check_branch
      %242 = sbr.rel (0) target = $region129
    $region128: #{fwd.1} parent=1 // pred_region
      %243 = dma.done [#allocation13], 64
    $region129: #{fwd.1} parent=1 // pred_fallthru
      _
    // Predicated region
    $region130: #{fwd.1} parent=1 // pred_check
      _
    $region131: #{fwd.1} parent=1 // pred_check_branch
      %245 = sbr.rel (0) target = $region133
    $region132: #{fwd.1} parent=1 // pred_region
      %246 = dma.done [#allocation13], 768
    $region133: #{fwd.1} parent=1 // pred_fallthru
      _
    // Predicated region
    $region134: #{fwd.1} parent=1 // pred_check
      _
    $region135: #{fwd.1} parent=1 // pred_check_branch
      %248 = sbr.rel (0) target = $region137
    $region136: #{fwd.1} parent=1 // pred_region
      %249 = dma.done [#allocation16], 16
    $region137: #{fwd.1} parent=1 // pred_fallthru
      _
    // Predicated region
    $region138: #{fwd.1} parent=1 // pred_check
      _
    $region139: #{fwd.1} parent=1 // pred_check_branch
      %251 = sbr.rel (0) target = $region141
    $region140: #{fwd.1} parent=1 // pred_region
      %252 = dma.done [#allocation16], 16
    $region141: #{fwd.1} parent=1 // pred_fallthru
      _
    // Predicated region
    $region142: #{fwd.1} parent=1 // pred_check
      _
    $region143: #{fwd.1} parent=1 // pred_check_branch
      %254 = sbr.rel (0) target = $region145
    $region144: #{fwd.1} parent=1 // pred_region
      %255 = dma.done [#allocation19], 16
    $region145: #{fwd.1} parent=1 // pred_fallthru
      _
    // Predicated region
    $region146: #{fwd.1} parent=1 // pred_check
      _
    $region147: #{fwd.1} parent=1 // pred_check_branch
      %257 = sbr.rel (0) target = $region149
    $region148: #{fwd.1} parent=1 // pred_region
      %258 = dma.done [#allocation19], 512
    $region149: #{fwd.1} parent=1 // pred_fallthru
      _
    // Predicated region
    $region150: #{fwd.1} parent=1 // pred_check
      _
    $region151: #{fwd.1} parent=1 // pred_check_branch
      %260 = sbr.rel (0) target = $region153
    $region152: #{fwd.1} parent=1 // pred_region
      %261 = dma.done [#allocation22], 16
    $region153: #{fwd.1} parent=1 // pred_fallthru
      _
    // Predicated region
    $region154: #{fwd.1} parent=1 // pred_check
      _
    $region155: #{fwd.1} parent=1 // pred_check_branch
      %263 = sbr.rel (0) target = $region157
    $region156: #{fwd.1} parent=1 // pred_region
      %264 = dma.done [#allocation22], 16
    $region157: #{fwd.1} parent=1 // pred_fallthru
      _
    // Predicated region
    $region158: #{fwd.1} parent=1 // pred_check
      _
    $region159: #{fwd.1} parent=1 // pred_check_branch
      %266 = sbr.rel (0) target = $region161
    $region160: #{fwd.1} parent=1 // pred_region
      %267 = dma.done [#allocation25], 128
    $region161: #{fwd.1} parent=1 // pred_fallthru
      _
    // Predicated region
    $region162: #{fwd.1} parent=1 // pred_check
      _
    $region163: #{fwd.1} parent=1 // pred_check_branch
      %269 = sbr.rel (0) target = $region165
    $region164: #{fwd.1} parent=1 // pred_region
      %270 = dma.done [#allocation25], 16
    $region165: #{fwd.1} parent=1 // pred_fallthru
      _
    // Predicated region
    $region166: #{fwd.1} parent=1 // pred_check
      _
    $region167: #{fwd.1} parent=1 // pred_check_branch
      %272 = sbr.rel (0) target = $region169
    $region168: #{fwd.1} parent=1 // pred_region
      %273 = dma.done [#allocation28], 256
    $region169: #{fwd.1} parent=1 // pred_fallthru
      _
    %v275 = vld [vmem:[%s1] sm:$0xff]
    %v276 = vld [vmem:[%s1 + $0x8] sm:$0xff]
    %v277 = vld [vmem:[%s1 + $0x10] sm:$0xff]
    %v278 = vld [vmem:[%s1 + $0x18] sm:$0xff]
    %v279 = vld [vmem:[%s1 + $0x20] sm:$0xff]
    %v280 = vld [vmem:[%s1 + $0x28] sm:$0xff]
    %v281 = vld [vmem:[%s1 + $0x30] sm:$0xff]
    %v282 = vld [vmem:[%s1 + $0x38] sm:$0xff]
    %v283 = vld [vmem:[%s1 + $0x40] sm:$0xff]
    %v284 = vld [vmem:[%s1 + $0x48] sm:$0xff]
    %v285 = vld [vmem:[%s1 + $0x50] sm:$0xff]
    %v286 = vld [vmem:[%s1 + $0x58] sm:$0xff]
    %v287 = vld [vmem:[%s1 + $0x60] sm:$0xff]
    %v288 = vld [vmem:[%s1 + $0x68] sm:$0xff]
    %v289 = vld [vmem:[%s1 + $0x70] sm:$0xff]
    %v290 = vld [vmem:[%s1 + $0x78] sm:$0xff]
    %v291 = vld [vmem:[%s1 + $0x80] sm:$0xff]
    %v292 = vld [vmem:[%s1 + $0x88] sm:$0xff]
    %v293 = vld [vmem:[%s1 + $0x90] sm:$0xff]
    %v294 = vld [vmem:[%s1 + $0x98] sm:$0xff]
    %v295 = vld [vmem:[%s1 + $0xa0] sm:$0xff]
    %v296 = vld [vmem:[%s1 + $0xa8] sm:$0xff]
    %v297 = vld [vmem:[%s1 + $0xb0] sm:$0xff]
    %v298 = vld [vmem:[%s1 + $0xb8] sm:$0xff]
    %v299 = vld [vmem:[%s1 + $0xc0] sm:$0xff]
    %v300 = vld [vmem:[%s1 + $0xc8] sm:$0xff]
    %v301 = vld [vmem:[%s1 + $0xd0] sm:$0xff]
    %v302 = vld [vmem:[%s1 + $0xd8] sm:$0xff]
    %v303 = vld [vmem:[%s1 + $0xe0] sm:$0xff]
    %v304 = vld [vmem:[%s1 + $0xe8] sm:$0xff]
    %v305 = vld [vmem:[%s1 + $0xf0] sm:$0xff]
    %v306 = vld [vmem:[%s1 + $0xf8] sm:$0xff]
    %v307 = vld [vmem:[#allocation12] sm:$0x1]
    %v308 = vld [vmem:[#allocation12 + $0x1] sm:$0x1]
    %310 = vset.pattern.permute.xlu0 0
    %311 = vperm.xlu0 %310, %v275
    %v312 = vpop.permute.xlu0 %311
    %315 = vset.pattern.permute.xlu0 0
    %316 = vperm.xlu0 %315, %v276
    %v317 = vpop.permute.xlu0 %316
    %320 = vset.pattern.permute.xlu0 0
    %321 = vperm.xlu0 %320, %v277
    %v322 = vpop.permute.xlu0 %321
    %325 = vset.pattern.permute.xlu0 0
    %326 = vperm.xlu0 %325, %v278
    %v327 = vpop.permute.xlu0 %326
    %330 = vset.pattern.permute.xlu0 0
    %331 = vperm.xlu0 %330, %v279
    %v332 = vpop.permute.xlu0 %331
    %335 = vset.pattern.permute.xlu0 0
    %336 = vperm.xlu0 %335, %v280
    %v337 = vpop.permute.xlu0 %336
    %340 = vset.pattern.permute.xlu0 0
    %341 = vperm.xlu0 %340, %v281
    %v342 = vpop.permute.xlu0 %341
    %345 = vset.pattern.permute.xlu0 0
    %346 = vperm.xlu0 %345, %v282
    %v347 = vpop.permute.xlu0 %346
    %350 = vset.pattern.permute.xlu0 0
    %351 = vperm.xlu0 %350, %v283
    %v352 = vpop.permute.xlu0 %351
    %355 = vset.pattern.permute.xlu0 0
    %356 = vperm.xlu0 %355, %v284
    %v357 = vpop.permute.xlu0 %356
    %360 = vset.pattern.permute.xlu0 0
    %361 = vperm.xlu0 %360, %v285
    %v362 = vpop.permute.xlu0 %361
    %365 = vset.pattern.permute.xlu0 0
    %366 = vperm.xlu0 %365, %v286
    %v367 = vpop.permute.xlu0 %366
    %370 = vset.pattern.permute.xlu0 0
    %371 = vperm.xlu0 %370, %v287
    %v372 = vpop.permute.xlu0 %371
    %375 = vset.pattern.permute.xlu0 0
    %376 = vperm.xlu0 %375, %v288
    %v377 = vpop.permute.xlu0 %376
    %380 = vset.pattern.permute.xlu0 0
    %381 = vperm.xlu0 %380, %v289
    %v382 = vpop.permute.xlu0 %381
    %385 = vset.pattern.permute.xlu0 0
    %386 = vperm.xlu0 %385, %v290
    %v387 = vpop.permute.xlu0 %386
    %390 = vset.pattern.permute.xlu0 0
    %391 = vperm.xlu0 %390, %v291
    %v392 = vpop.permute.xlu0 %391
    %395 = vset.pattern.permute.xlu0 0
    %396 = vperm.xlu0 %395, %v292
    %v397 = vpop.permute.xlu0 %396
    %400 = vset.pattern.permute.xlu0 0
    %401 = vperm.xlu0 %400, %v293
    %v402 = vpop.permute.xlu0 %401
    %405 = vset.pattern.permute.xlu0 0
    %406 = vperm.xlu0 %405, %v294
    %v407 = vpop.permute.xlu0 %406
    %410 = vset.pattern.permute.xlu0 0
    %411 = vperm.xlu0 %410, %v295
    %v412 = vpop.permute.xlu0 %411
    %415 = vset.pattern.permute.xlu0 0
    %416 = vperm.xlu0 %415, %v296
    %v417 = vpop.permute.xlu0 %416
    %420 = vset.pattern.permute.xlu0 0
    %421 = vperm.xlu0 %420, %v297
    %v422 = vpop.permute.xlu0 %421
    %425 = vset.pattern.permute.xlu0 0
    %426 = vperm.xlu0 %425, %v298
    %v427 = vpop.permute.xlu0 %426
    %430 = vset.pattern.permute.xlu0 0
    %431 = vperm.xlu0 %430, %v299
    %v432 = vpop.permute.xlu0 %431
    %435 = vset.pattern.permute.xlu0 0
    %436 = vperm.xlu0 %435, %v300
    %v437 = vpop.permute.xlu0 %436
    %440 = vset.pattern.permute.xlu0 0
    %441 = vperm.xlu0 %440, %v301
    %v442 = vpop.permute.xlu0 %441
    %445 = vset.pattern.permute.xlu0 0
    %446 = vperm.xlu0 %445, %v302
    %v447 = vpop.permute.xlu0 %446
    %450 = vset.pattern.permute.xlu0 0
    %451 = vperm.xlu0 %450, %v303
    %v452 = vpop.permute.xlu0 %451
    %455 = vset.pattern.permute.xlu0 0
    %456 = vperm.xlu0 %455, %v304
    %v457 = vpop.permute.xlu0 %456
    %460 = vset.pattern.permute.xlu0 0
    %461 = vperm.xlu0 %460, %v305
    %v462 = vpop.permute.xlu0 %461
    %465 = vset.pattern.permute.xlu0 0
    %466 = vperm.xlu0 %465, %v306
    %v467 = vpop.permute.xlu0 %466
    %v469 = vlaneseq
    %v470 = vshrl.u32 %v469, 7
    %v471 = vsub.s32 0, %v470
    %v472 = vrot.slane %v307, %v471
    %v473 = vmul.f32 %v312, %v472
    %v474 = vmul.f32 %v317, %v472
    %v475 = vmul.f32 %v322, %v472
    %v476 = vmul.f32 %v327, %v472
    %v477 = vmul.f32 %v332, %v472
    %v478 = vmul.f32 %v337, %v472
    %v479 = vmul.f32 %v342, %v472
    %v480 = vmul.f32 %v347, %v472
    %v481 = vmul.f32 %v352, %v472
    %v482 = vmul.f32 %v357, %v472
    %v483 = vmul.f32 %v362, %v472
    %v484 = vmul.f32 %v367, %v472
    %v485 = vmul.f32 %v372, %v472
    %v486 = vmul.f32 %v377, %v472
    %v487 = vmul.f32 %v382, %v472
    %v488 = vmul.f32 %v387, %v472
    %v489 = vmul.f32 %v392, %v472
    %v490 = vmul.f32 %v397, %v472
    %v491 = vmul.f32 %v402, %v472
    %v492 = vmul.f32 %v407, %v472
    %v493 = vmul.f32 %v412, %v472
    %v494 = vmul.f32 %v417, %v472
    %v495 = vmul.f32 %v422, %v472
    %v496 = vmul.f32 %v427, %v472
    %v497 = vmul.f32 %v432, %v472
    %v498 = vmul.f32 %v437, %v472
    %v499 = vmul.f32 %v442, %v472
    %v500 = vmul.f32 %v447, %v472
    %v501 = vmul.f32 %v452, %v472
    %v502 = vmul.f32 %v457, %v472
    %v503 = vmul.f32 %v462, %v472
    %v504 = vmul.f32 %v467, %v472
    %505 = vset.pattern.permute.xlu0 1
    %506 = vperm.xlu0 %505, %v275
    %v507 = vpop.permute.xlu0 %506
    %509 = vset.pattern.permute.xlu0 1
    %510 = vperm.xlu0 %509, %v276
    %v511 = vpop.permute.xlu0 %510
    %513 = vset.pattern.permute.xlu0 1
    %514 = vperm.xlu0 %513, %v277
    %v515 = vpop.permute.xlu0 %514
    %517 = vset.pattern.permute.xlu0 1
    %518 = vperm.xlu0 %517, %v278
    %v519 = vpop.permute.xlu0 %518
    %521 = vset.pattern.permute.xlu0 1
    %522 = vperm.xlu0 %521, %v279
    %v523 = vpop.permute.xlu0 %522
    %525 = vset.pattern.permute.xlu0 1
    %526 = vperm.xlu0 %525, %v280
    %v527 = vpop.permute.xlu0 %526
    %529 = vset.pattern.permute.xlu0 1
    %530 = vperm.xlu0 %529, %v281
    %v531 = vpop.permute.xlu0 %530
    %533 = vset.pattern.permute.xlu0 1
    %534 = vperm.xlu0 %533, %v282
    %v535 = vpop.permute.xlu0 %534
    %537 = vset.pattern.permute.xlu0 1
    %538 = vperm.xlu0 %537, %v283
    %v539 = vpop.permute.xlu0 %538
    %541 = vset.pattern.permute.xlu0 1
    %542 = vperm.xlu0 %541, %v284
    %v543 = vpop.permute.xlu0 %542
    %545 = vset.pattern.permute.xlu0 1
    %546 = vperm.xlu0 %545, %v285
    %v547 = vpop.permute.xlu0 %546
    %549 = vset.pattern.permute.xlu0 1
    %550 = vperm.xlu0 %549, %v286
    %v551 = vpop.permute.xlu0 %550
    %553 = vset.pattern.permute.xlu0 1
    %554 = vperm.xlu0 %553, %v287
    %v555 = vpop.permute.xlu0 %554
    %557 = vset.pattern.permute.xlu0 1
    %558 = vperm.xlu0 %557, %v288
    %v559 = vpop.permute.xlu0 %558
    %561 = vset.pattern.permute.xlu0 1
    %562 = vperm.xlu0 %561, %v289
    %v563 = vpop.permute.xlu0 %562
    %565 = vset.pattern.permute.xlu0 1
    %566 = vperm.xlu0 %565, %v290
    %v567 = vpop.permute.xlu0 %566
    %569 = vset.pattern.permute.xlu0 1
    %570 = vperm.xlu0 %569, %v291
    %v571 = vpop.permute.xlu0 %570
    %573 = vset.pattern.permute.xlu0 1
    %574 = vperm.xlu0 %573, %v292
    %v575 = vpop.permute.xlu0 %574
    %577 = vset.pattern.permute.xlu0 1
    %578 = vperm.xlu0 %577, %v293
    %v579 = vpop.permute.xlu0 %578
    %581 = vset.pattern.permute.xlu0 1
    %582 = vperm.xlu0 %581, %v294
    %v583 = vpop.permute.xlu0 %582
    %585 = vset.pattern.permute.xlu0 1
    %586 = vperm.xlu0 %585, %v295
    %v587 = vpop.permute.xlu0 %586
    %589 = vset.pattern.permute.xlu0 1
    %590 = vperm.xlu0 %589, %v296
    %v591 = vpop.permute.xlu0 %590
    %593 = vset.pattern.permute.xlu0 1
    %594 = vperm.xlu0 %593, %v297
    %v595 = vpop.permute.xlu0 %594
    %597 = vset.pattern.permute.xlu0 1
    %598 = vperm.xlu0 %597, %v298
    %v599 = vpop.permute.xlu0 %598
    %601 = vset.pattern.permute.xlu0 1
    %602 = vperm.xlu0 %601, %v299
    %v603 = vpop.permute.xlu0 %602
    %605 = vset.pattern.permute.xlu0 1
    %606 = vperm.xlu0 %605, %v300
    %v607 = vpop.permute.xlu0 %606
    %609 = vset.pattern.permute.xlu0 1
    %610 = vperm.xlu0 %609, %v301
    %v611 = vpop.permute.xlu0 %610
    %613 = vset.pattern.permute.xlu0 1
    %614 = vperm.xlu0 %613, %v302
    %v615 = vpop.permute.xlu0 %614
    %617 = vset.pattern.permute.xlu0 1
    %618 = vperm.xlu0 %617, %v303
    %v619 = vpop.permute.xlu0 %618
    %621 = vset.pattern.permute.xlu0 1
    %622 = vperm.xlu0 %621, %v304
    %v623 = vpop.permute.xlu0 %622
    %625 = vset.pattern.permute.xlu0 1
    %626 = vperm.xlu0 %625, %v305
    %v627 = vpop.permute.xlu0 %626
    %629 = vset.pattern.permute.xlu0 1
    %630 = vperm.xlu0 %629, %v306
    %v631 = vpop.permute.xlu0 %630
    %v633 = vlaneseq
    %v634 = vshrl.u32 %v633, 7
    %v635 = vsub.s32 0, %v634
    %v636 = vrot.slane %v308, %v635
    %v637 = vmul.f32 %v507, %v636
    %v638 = vmul.f32 %v511, %v636
    %v639 = vmul.f32 %v515, %v636
    %v640 = vmul.f32 %v519, %v636
    %v641 = vmul.f32 %v523, %v636
    %v642 = vmul.f32 %v527, %v636
    %v643 = vmul.f32 %v531, %v636
    %v644 = vmul.f32 %v535, %v636
    %v645 = vmul.f32 %v539, %v636
    %v646 = vmul.f32 %v543, %v636
    %v647 = vmul.f32 %v547, %v636
    %v648 = vmul.f32 %v551, %v636
    %v649 = vmul.f32 %v555, %v636
    %v650 = vmul.f32 %v559, %v636
    %v651 = vmul.f32 %v563, %v636
    %v652 = vmul.f32 %v567, %v636
    %v653 = vmul.f32 %v571, %v636
    %v654 = vmul.f32 %v575, %v636
    %v655 = vmul.f32 %v579, %v636
    %v656 = vmul.f32 %v583, %v636
    %v657 = vmul.f32 %v587, %v636
    %v658 = vmul.f32 %v591, %v636
    %v659 = vmul.f32 %v595, %v636
    %v660 = vmul.f32 %v599, %v636
    %v661 = vmul.f32 %v603, %v636
    %v662 = vmul.f32 %v607, %v636
    %v663 = vmul.f32 %v611, %v636
    %v664 = vmul.f32 %v615, %v636
    %v665 = vmul.f32 %v619, %v636
    %v666 = vmul.f32 %v623, %v636
    %v667 = vmul.f32 %v627, %v636
    %v668 = vmul.f32 %v631, %v636
    %v669 = vadd.f32 %v473, %v637
    %v670 = vadd.f32 %v474, %v638
    %v671 = vadd.f32 %v475, %v639
    %v672 = vadd.f32 %v476, %v640
    %v673 = vadd.f32 %v477, %v641
    %v674 = vadd.f32 %v478, %v642
    %v675 = vadd.f32 %v479, %v643
    %v676 = vadd.f32 %v480, %v644
    %v677 = vadd.f32 %v481, %v645
    %v678 = vadd.f32 %v482, %v646
    %v679 = vadd.f32 %v483, %v647
    %v680 = vadd.f32 %v484, %v648
    %v681 = vadd.f32 %v485, %v649
    %v682 = vadd.f32 %v486, %v650
    %v683 = vadd.f32 %v487, %v651
    %v684 = vadd.f32 %v488, %v652
    %v685 = vadd.f32 %v489, %v653
    %v686 = vadd.f32 %v490, %v654
    %v687 = vadd.f32 %v491, %v655
    %v688 = vadd.f32 %v492, %v656
    %v689 = vadd.f32 %v493, %v657
    %v690 = vadd.f32 %v494, %v658
    %v691 = vadd.f32 %v495, %v659
    %v692 = vadd.f32 %v496, %v660
    %v693 = vadd.f32 %v497, %v661
    %v694 = vadd.f32 %v498, %v662
    %v695 = vadd.f32 %v499, %v663
    %v696 = vadd.f32 %v500, %v664
    %v697 = vadd.f32 %v501, %v665
    %v698 = vadd.f32 %v502, %v666
    %v699 = vadd.f32 %v503, %v667
    %v700 = vadd.f32 %v504, %v668
    %v701 = vpack.c.bf16 %v670, %v669
    %v702 = vpack.c.bf16 %v672, %v671
    %v703 = vpack.c.bf16 %v674, %v673
    %v704 = vpack.c.bf16 %v676, %v675
    %v705 = vpack.c.bf16 %v678, %v677
    %v706 = vpack.c.bf16 %v680, %v679
    %v707 = vpack.c.bf16 %v682, %v681
    %v708 = vpack.c.bf16 %v684, %v683
    %v709 = vpack.c.bf16 %v686, %v685
    %v710 = vpack.c.bf16 %v688, %v687
    %v711 = vpack.c.bf16 %v690, %v689
    %v712 = vpack.c.bf16 %v692, %v691
    %v713 = vpack.c.bf16 %v694, %v693
    %v714 = vpack.c.bf16 %v696, %v695
    %v715 = vpack.c.bf16 %v698, %v697
    %v716 = vpack.c.bf16 %v700, %v699
    %v733 = vunpack.c.l.b16 %v701
    %v734 = vunpack.c.h.b16 %v701
    %v735 = vunpack.c.l.b16 %v702
    %v736 = vunpack.c.h.b16 %v702
    %v737 = vunpack.c.l.b16 %v703
    %v738 = vunpack.c.h.b16 %v703
    %v739 = vunpack.c.l.b16 %v704
    %v740 = vunpack.c.h.b16 %v704
    %v741 = vunpack.c.l.b16 %v705
    %v742 = vunpack.c.h.b16 %v705
    %v743 = vunpack.c.l.b16 %v706
    %v744 = vunpack.c.h.b16 %v706
    %v745 = vunpack.c.l.b16 %v707
    %v746 = vunpack.c.h.b16 %v707
    %v747 = vunpack.c.l.b16 %v708
    %v748 = vunpack.c.h.b16 %v708
    %v749 = vunpack.c.l.b16 %v709
    %v750 = vunpack.c.h.b16 %v709
    %v751 = vunpack.c.l.b16 %v710
    %v752 = vunpack.c.h.b16 %v710
    %v753 = vunpack.c.l.b16 %v711
    %v754 = vunpack.c.h.b16 %v711
    %v755 = vunpack.c.l.b16 %v712
    %v756 = vunpack.c.h.b16 %v712
    %v757 = vunpack.c.l.b16 %v713
    %v758 = vunpack.c.h.b16 %v713
    %v759 = vunpack.c.l.b16 %v714
    %v760 = vunpack.c.h.b16 %v714
    %v761 = vunpack.c.l.b16 %v715
    %v762 = vunpack.c.h.b16 %v715
    %v763 = vunpack.c.l.b16 %v716
    %v764 = vunpack.c.h.b16 %v716
    %v765 = vpack.c.b16 %v733, %v733
    %v766 = vpack.c.b16 %v734, %v734
    %v767 = vpack.c.b16 %v735, %v735
    %v768 = vpack.c.b16 %v736, %v736
    %v769 = vpack.c.b16 %v737, %v737
    %v770 = vpack.c.b16 %v738, %v738
    %v771 = vpack.c.b16 %v739, %v739
    %v772 = vpack.c.b16 %v740, %v740
    %v773 = vpack.c.b16 %v741, %v741
    %v774 = vpack.c.b16 %v742, %v742
    %v775 = vpack.c.b16 %v743, %v743
    %v776 = vpack.c.b16 %v744, %v744
    %v777 = vpack.c.b16 %v745, %v745
    %v778 = vpack.c.b16 %v746, %v746
    %v779 = vpack.c.b16 %v747, %v747
    %v780 = vpack.c.b16 %v748, %v748
    %v781 = vpack.c.b16 %v749, %v749
    %v782 = vpack.c.b16 %v750, %v750
    %v783 = vpack.c.b16 %v751, %v751
    %v784 = vpack.c.b16 %v752, %v752
    %v785 = vpack.c.b16 %v753, %v753
    %v786 = vpack.c.b16 %v754, %v754
    %v787 = vpack.c.b16 %v755, %v755
    %v788 = vpack.c.b16 %v756, %v756
    %v789 = vpack.c.b16 %v757, %v757
    %v790 = vpack.c.b16 %v758, %v758
    %v791 = vpack.c.b16 %v759, %v759
    %v792 = vpack.c.b16 %v760, %v760
    %v793 = vpack.c.b16 %v761, %v761
    %v794 = vpack.c.b16 %v762, %v762
    %v795 = vpack.c.b16 %v763, %v763
    %v796 = vpack.c.b16 %v764, %v764
    %vm829 = vcmask 257024
    %830 = vst.msk [vmem:[#allocation2] sm:$0xf] %vm829, %v765
    %831 = vst.msk [vmem:[#allocation2 + $0x4] sm:$0xf] %vm829, %v766
    %832 = vst.msk [vmem:[#allocation2 + $0x8] sm:$0xf] %vm829, %v767
    %833 = vst.msk [vmem:[#allocation2 + $0xc] sm:$0xf] %vm829, %v768
    %834 = vst.msk [vmem:[#allocation2 + $0x10] sm:$0xf] %vm829, %v769
    %835 = vst.msk [vmem:[#allocation2 + $0x14] sm:$0xf] %vm829, %v770
    %836 = vst.msk [vmem:[#allocation2 + $0x18] sm:$0xf] %vm829, %v771
    %837 = vst.msk [vmem:[#allocation2 + $0x1c] sm:$0xf] %vm829, %v772
    %838 = vst.msk [vmem:[#allocation2 + $0x20] sm:$0xf] %vm829, %v773
    %839 = vst.msk [vmem:[#allocation2 + $0x24] sm:$0xf] %vm829, %v774
    %840 = vst.msk [vmem:[#allocation2 + $0x28] sm:$0xf] %vm829, %v775
    %841 = vst.msk [vmem:[#allocation2 + $0x2c] sm:$0xf] %vm829, %v776
    %842 = vst.msk [vmem:[#allocation2 + $0x30] sm:$0xf] %vm829, %v777
    %843 = vst.msk [vmem:[#allocation2 + $0x34] sm:$0xf] %vm829, %v778
    %844 = vst.msk [vmem:[#allocation2 + $0x38] sm:$0xf] %vm829, %v779
    %845 = vst.msk [vmem:[#allocation2 + $0x3c] sm:$0xf] %vm829, %v780
    %846 = vst.msk [vmem:[#allocation2 + $0x40] sm:$0xf] %vm829, %v781
    %847 = vst.msk [vmem:[#allocation2 + $0x44] sm:$0xf] %vm829, %v782
    %848 = vst.msk [vmem:[#allocation2 + $0x48] sm:$0xf] %vm829, %v783
    %849 = vst.msk [vmem:[#allocation2 + $0x4c] sm:$0xf] %vm829, %v784
    %850 = vst.msk [vmem:[#allocation2 + $0x50] sm:$0xf] %vm829, %v785
    %851 = vst.msk [vmem:[#allocation2 + $0x54] sm:$0xf] %vm829, %v786
    %852 = vst.msk [vmem:[#allocation2 + $0x58] sm:$0xf] %vm829, %v787
    %853 = vst.msk [vmem:[#allocation2 + $0x5c] sm:$0xf] %vm829, %v788
    %854 = vst.msk [vmem:[#allocation2 + $0x60] sm:$0xf] %vm829, %v789
    %855 = vst.msk [vmem:[#allocation2 + $0x64] sm:$0xf] %vm829, %v790
    %856 = vst.msk [vmem:[#allocation2 + $0x68] sm:$0xf] %vm829, %v791
    %857 = vst.msk [vmem:[#allocation2 + $0x6c] sm:$0xf] %vm829, %v792
    %858 = vst.msk [vmem:[#allocation2 + $0x70] sm:$0xf] %vm829, %v793
    %859 = vst.msk [vmem:[#allocation2 + $0x74] sm:$0xf] %vm829, %v794
    %860 = vst.msk [vmem:[#allocation2 + $0x78] sm:$0xf] %vm829, %v795
    %861 = vst.msk [vmem:[#allocation2 + $0x7c] sm:$0xf] %vm829, %v796
    %v862 = vld [vmem:[#allocation12] sm:$0x1]
    %v863 = vld [vmem:[#allocation12 + $0x1] sm:$0x1]
    %v864 = vlaneseq
    %v865 = vshrl.u32 %v864, 7
    %v866 = vsub.s32 0, %v865
    %v867 = vrot.slane %v862, %v866
    %v868 = vmul.f32 %v312, %v867
    %v869 = vmul.f32 %v317, %v867
    %v870 = vmul.f32 %v322, %v867
    %v871 = vmul.f32 %v327, %v867
    %v872 = vmul.f32 %v332, %v867
    %v873 = vmul.f32 %v337, %v867
    %v874 = vmul.f32 %v342, %v867
    %v875 = vmul.f32 %v347, %v867
    %v876 = vmul.f32 %v352, %v867
    %v877 = vmul.f32 %v357, %v867
    %v878 = vmul.f32 %v362, %v867
    %v879 = vmul.f32 %v367, %v867
    %v880 = vmul.f32 %v372, %v867
    %v881 = vmul.f32 %v377, %v867
    %v882 = vmul.f32 %v382, %v867
    %v883 = vmul.f32 %v387, %v867
    %v884 = vmul.f32 %v392, %v867
    %v885 = vmul.f32 %v397, %v867
    %v886 = vmul.f32 %v402, %v867
    %v887 = vmul.f32 %v407, %v867
    %v888 = vmul.f32 %v412, %v867
    %v889 = vmul.f32 %v417, %v867
    %v890 = vmul.f32 %v422, %v867
    %v891 = vmul.f32 %v427, %v867
    %v892 = vmul.f32 %v432, %v867
    %v893 = vmul.f32 %v437, %v867
    %v894 = vmul.f32 %v442, %v867
    %v895 = vmul.f32 %v447, %v867
    %v896 = vmul.f32 %v452, %v867
    %v897 = vmul.f32 %v457, %v867
    %v898 = vmul.f32 %v462, %v867
    %v899 = vmul.f32 %v467, %v867
    %v900 = vlaneseq
    %v901 = vshrl.u32 %v900, 7
    %v902 = vsub.s32 0, %v901
    %v903 = vrot.slane %v863, %v902
    %v904 = vmul.f32 %v507, %v903
    %v905 = vmul.f32 %v511, %v903
    %v906 = vmul.f32 %v515, %v903
    %v907 = vmul.f32 %v519, %v903
    %v908 = vmul.f32 %v523, %v903
    %v909 = vmul.f32 %v527, %v903
    %v910 = vmul.f32 %v531, %v903
    %v911 = vmul.f32 %v535, %v903
    %v912 = vmul.f32 %v539, %v903
    %v913 = vmul.f32 %v543, %v903
    %v914 = vmul.f32 %v547, %v903
    %v915 = vmul.f32 %v551, %v903
    %v916 = vmul.f32 %v555, %v903
    %v917 = vmul.f32 %v559, %v903
    %v918 = vmul.f32 %v563, %v903
    %v919 = vmul.f32 %v567, %v903
    %v920 = vmul.f32 %v571, %v903
    %v921 = vmul.f32 %v575, %v903
    %v922 = vmul.f32 %v579, %v903
    %v923 = vmul.f32 %v583, %v903
    %v924 = vmul.f32 %v587, %v903
    %v925 = vmul.f32 %v591, %v903
    %v926 = vmul.f32 %v595, %v903
    %v927 = vmul.f32 %v599, %v903
    %v928 = vmul.f32 %v603, %v903
    %v929 = vmul.f32 %v607, %v903
    %v930 = vmul.f32 %v611, %v903
    %v931 = vmul.f32 %v615, %v903
    %v932 = vmul.f32 %v619, %v903
    %v933 = vmul.f32 %v623, %v903
    %v934 = vmul.f32 %v627, %v903
    %v935 = vmul.f32 %v631, %v903
    %v936 = vadd.f32 %v868, %v904
    %v937 = vadd.f32 %v869, %v905
    %v938 = vadd.f32 %v870, %v906
    %v939 = vadd.f32 %v871, %v907
    %v940 = vadd.f32 %v872, %v908
    %v941 = vadd.f32 %v873, %v909
    %v942 = vadd.f32 %v874, %v910
    %v943 = vadd.f32 %v875, %v911
    %v944 = vadd.f32 %v876, %v912
    %v945 = vadd.f32 %v877, %v913
    %v946 = vadd.f32 %v878, %v914
    %v947 = vadd.f32 %v879, %v915
    %v948 = vadd.f32 %v880, %v916
    %v949 = vadd.f32 %v881, %v917
    %v950 = vadd.f32 %v882, %v918
    %v951 = vadd.f32 %v883, %v919
    %v952 = vadd.f32 %v884, %v920
    %v953 = vadd.f32 %v885, %v921
    %v954 = vadd.f32 %v886, %v922
    %v955 = vadd.f32 %v887, %v923
    %v956 = vadd.f32 %v888, %v924
    %v957 = vadd.f32 %v889, %v925
    %v958 = vadd.f32 %v890, %v926
    %v959 = vadd.f32 %v891, %v927
    %v960 = vadd.f32 %v892, %v928
    %v961 = vadd.f32 %v893, %v929
    %v962 = vadd.f32 %v894, %v930
    %v963 = vadd.f32 %v895, %v931
    %v964 = vadd.f32 %v896, %v932
    %v965 = vadd.f32 %v897, %v933
    %v966 = vadd.f32 %v898, %v934
    %v967 = vadd.f32 %v899, %v935
    %v968 = vpack.c.bf16 %v937, %v936
    %v969 = vpack.c.bf16 %v939, %v938
    %v970 = vpack.c.bf16 %v941, %v940
    %v971 = vpack.c.bf16 %v943, %v942
    %v972 = vpack.c.bf16 %v945, %v944
    %v973 = vpack.c.bf16 %v947, %v946
    %v974 = vpack.c.bf16 %v949, %v948
    %v975 = vpack.c.bf16 %v951, %v950
    %v976 = vpack.c.bf16 %v953, %v952
    %v977 = vpack.c.bf16 %v955, %v954
    %v978 = vpack.c.bf16 %v957, %v956
    %v979 = vpack.c.bf16 %v959, %v958
    %v980 = vpack.c.bf16 %v961, %v960
    %v981 = vpack.c.bf16 %v963, %v962
    %v982 = vpack.c.bf16 %v965, %v964
    %v983 = vpack.c.bf16 %v967, %v966
    %v1000 = vunpack.c.l.b16 %v968
    %v1001 = vunpack.c.h.b16 %v968
    %v1002 = vunpack.c.l.b16 %v969
    %v1003 = vunpack.c.h.b16 %v969
    %v1004 = vunpack.c.l.b16 %v970
    %v1005 = vunpack.c.h.b16 %v970
    %v1006 = vunpack.c.l.b16 %v971
    %v1007 = vunpack.c.h.b16 %v971
    %v1008 = vunpack.c.l.b16 %v972
    %v1009 = vunpack.c.h.b16 %v972
    %v1010 = vunpack.c.l.b16 %v973
    %v1011 = vunpack.c.h.b16 %v973
    %v1012 = vunpack.c.l.b16 %v974
    %v1013 = vunpack.c.h.b16 %v974
    %v1014 = vunpack.c.l.b16 %v975
    %v1015 = vunpack.c.h.b16 %v975
    %v1016 = vunpack.c.l.b16 %v976
    %v1017 = vunpack.c.h.b16 %v976
    %v1018 = vunpack.c.l.b16 %v977
    %v1019 = vunpack.c.h.b16 %v977
    %v1020 = vunpack.c.l.b16 %v978
    %v1021 = vunpack.c.h.b16 %v978
    %v1022 = vunpack.c.l.b16 %v979
    %v1023 = vunpack.c.h.b16 %v979
    %v1024 = vunpack.c.l.b16 %v980
    %v1025 = vunpack.c.h.b16 %v980
    %v1026 = vunpack.c.l.b16 %v981
    %v1027 = vunpack.c.h.b16 %v981
    %v1028 = vunpack.c.l.b16 %v982
    %v1029 = vunpack.c.h.b16 %v982
    %v1030 = vunpack.c.l.b16 %v983
    %v1031 = vunpack.c.h.b16 %v983
    %v1032 = vpack.c.b16 %v1000, %v1000
    %v1033 = vpack.c.b16 %v1001, %v1001
    %v1034 = vpack.c.b16 %v1002, %v1002
    %v1035 = vpack.c.b16 %v1003, %v1003
    %v1036 = vpack.c.b16 %v1004, %v1004
    %v1037 = vpack.c.b16 %v1005, %v1005
    %v1038 = vpack.c.b16 %v1006, %v1006
    %v1039 = vpack.c.b16 %v1007, %v1007
    %v1040 = vpack.c.b16 %v1008, %v1008
    %v1041 = vpack.c.b16 %v1009, %v1009
    %v1042 = vpack.c.b16 %v1010, %v1010
    %v1043 = vpack.c.b16 %v1011, %v1011
    %v1044 = vpack.c.b16 %v1012, %v1012
    %v1045 = vpack.c.b16 %v1013, %v1013
    %v1046 = vpack.c.b16 %v1014, %v1014
    %v1047 = vpack.c.b16 %v1015, %v1015
    %v1048 = vpack.c.b16 %v1016, %v1016
    %v1049 = vpack.c.b16 %v1017, %v1017
    %v1050 = vpack.c.b16 %v1018, %v1018
    %v1051 = vpack.c.b16 %v1019, %v1019
    %v1052 = vpack.c.b16 %v1020, %v1020
    %v1053 = vpack.c.b16 %v1021, %v1021
    %v1054 = vpack.c.b16 %v1022, %v1022
    %v1055 = vpack.c.b16 %v1023, %v1023
    %v1056 = vpack.c.b16 %v1024, %v1024
    %v1057 = vpack.c.b16 %v1025, %v1025
    %v1058 = vpack.c.b16 %v1026, %v1026
    %v1059 = vpack.c.b16 %v1027, %v1027
    %v1060 = vpack.c.b16 %v1028, %v1028
    %v1061 = vpack.c.b16 %v1029, %v1029
    %v1062 = vpack.c.b16 %v1030, %v1030
    %v1063 = vpack.c.b16 %v1031, %v1031
    %1064 = vrot.lane.b32.xlu0 %v1032, 96
    %v1065 = vpop.permute.xlu0 %1064
    %1066 = vrot.lane.b32.xlu0 %v1033, 96
    %v1067 = vpop.permute.xlu0 %1066
    %1068 = vrot.lane.b32.xlu0 %v1034, 96
    %v1069 = vpop.permute.xlu0 %1068
    %1070 = vrot.lane.b32.xlu0 %v1035, 96
    %v1071 = vpop.permute.xlu0 %1070
    %1072 = vrot.lane.b32.xlu0 %v1036, 96
    %v1073 = vpop.permute.xlu0 %1072
    %1074 = vrot.lane.b32.xlu0 %v1037, 96
    %v1075 = vpop.permute.xlu0 %1074
    %1076 = vrot.lane.b32.xlu0 %v1038, 96
    %v1077 = vpop.permute.xlu0 %1076
    %1078 = vrot.lane.b32.xlu0 %v1039, 96
    %v1079 = vpop.permute.xlu0 %1078
    %1080 = vrot.lane.b32.xlu0 %v1040, 96
    %v1081 = vpop.permute.xlu0 %1080
    %1082 = vrot.lane.b32.xlu0 %v1041, 96
    %v1083 = vpop.permute.xlu0 %1082
    %1084 = vrot.lane.b32.xlu0 %v1042, 96
    %v1085 = vpop.permute.xlu0 %1084
    %1086 = vrot.lane.b32.xlu0 %v1043, 96
    %v1087 = vpop.permute.xlu0 %1086
    %1088 = vrot.lane.b32.xlu0 %v1044, 96
    %v1089 = vpop.permute.xlu0 %1088
    %1090 = vrot.lane.b32.xlu0 %v1045, 96
    %v1091 = vpop.permute.xlu0 %1090
    %1092 = vrot.lane.b32.xlu0 %v1046, 96
    %v1093 = vpop.permute.xlu0 %1092
    %1094 = vrot.lane.b32.xlu0 %v1047, 96
    %v1095 = vpop.permute.xlu0 %1094
    %1096 = vrot.lane.b32.xlu0 %v1048, 96
    %v1097 = vpop.permute.xlu0 %1096
    %1098 = vrot.lane.b32.xlu0 %v1049, 96
    %v1099 = vpop.permute.xlu0 %1098
    %1100 = vrot.lane.b32.xlu0 %v1050, 96
    %v1101 = vpop.permute.xlu0 %1100
    %1102 = vrot.lane.b32.xlu0 %v1051, 96
    %v1103 = vpop.permute.xlu0 %1102
    %1104 = vrot.lane.b32.xlu0 %v1052, 96
    %v1105 = vpop.permute.xlu0 %1104
    %1106 = vrot.lane.b32.xlu0 %v1053, 96
    %v1107 = vpop.permute.xlu0 %1106
    %1108 = vrot.lane.b32.xlu0 %v1054, 96
    %v1109 = vpop.permute.xlu0 %1108
    %1110 = vrot.lane.b32.xlu0 %v1055, 96
    %v1111 = vpop.permute.xlu0 %1110
    %1112 = vrot.lane.b32.xlu0 %v1056, 96
    %v1113 = vpop.permute.xlu0 %1112
    %1114 = vrot.lane.b32.xlu0 %v1057, 96
    %v1115 = vpop.permute.xlu0 %1114
    %1116 = vrot.lane.b32.xlu0 %v1058, 96
    %v1117 = vpop.permute.xlu0 %1116
    %1118 = vrot.lane.b32.xlu0 %v1059, 96
    %v1119 = vpop.permute.xlu0 %1118
    %1120 = vrot.lane.b32.xlu0 %v1060, 96
    %v1121 = vpop.permute.xlu0 %1120
    %1122 = vrot.lane.b32.xlu0 %v1061, 96
    %v1123 = vpop.permute.xlu0 %1122
    %1124 = vrot.lane.b32.xlu0 %v1062, 96
    %v1125 = vpop.permute.xlu0 %1124
    %1126 = vrot.lane.b32.xlu0 %v1063, 96
    %v1127 = vpop.permute.xlu0 %1126
    %1160 = vst.msk [vmem:[#allocation2 + $0x80] sm:$0xf] %vm829, %v1065
    %1161 = vst.msk [vmem:[#allocation2 + $0x84] sm:$0xf] %vm829, %v1067
    %1162 = vst.msk [vmem:[#allocation2 + $0x88] sm:$0xf] %vm829, %v1069
    %1163 = vst.msk [vmem:[#allocation2 + $0x8c] sm:$0xf] %vm829, %v1071
    %1164 = vst.msk [vmem:[#allocation2 + $0x90] sm:$0xf] %vm829, %v1073
    %1165 = vst.msk [vmem:[#allocation2 + $0x94] sm:$0xf] %vm829, %v1075
    %1166 = vst.msk [vmem:[#allocation2 + $0x98] sm:$0xf] %vm829, %v1077
    %1167 = vst.msk [vmem:[#allocation2 + $0x9c] sm:$0xf] %vm829, %v1079
    %1168 = vst.msk [vmem:[#allocation2 + $0xa0] sm:$0xf] %vm829, %v1081
    %1169 = vst.msk [vmem:[#allocation2 + $0xa4] sm:$0xf] %vm829, %v1083
    %1170 = vst.msk [vmem:[#allocation2 + $0xa8] sm:$0xf] %vm829, %v1085
    %1171 = vst.msk [vmem:[#allocation2 + $0xac] sm:$0xf] %vm829, %v1087
    %1172 = vst.msk [vmem:[#allocation2 + $0xb0] sm:$0xf] %vm829, %v1089
    %1173 = vst.msk [vmem:[#allocation2 + $0xb4] sm:$0xf] %vm829, %v1091
    %1174 = vst.msk [vmem:[#allocation2 + $0xb8] sm:$0xf] %vm829, %v1093
    %1175 = vst.msk [vmem:[#allocation2 + $0xbc] sm:$0xf] %vm829, %v1095
    %1176 = vst.msk [vmem:[#allocation2 + $0xc0] sm:$0xf] %vm829, %v1097
    %1177 = vst.msk [vmem:[#allocation2 + $0xc4] sm:$0xf] %vm829, %v1099
    %1178 = vst.msk [vmem:[#allocation2 + $0xc8] sm:$0xf] %vm829, %v1101
    %1179 = vst.msk [vmem:[#allocation2 + $0xcc] sm:$0xf] %vm829, %v1103
    %1180 = vst.msk [vmem:[#allocation2 + $0xd0] sm:$0xf] %vm829, %v1105
    %1181 = vst.msk [vmem:[#allocation2 + $0xd4] sm:$0xf] %vm829, %v1107
    %1182 = vst.msk [vmem:[#allocation2 + $0xd8] sm:$0xf] %vm829, %v1109
    %1183 = vst.msk [vmem:[#allocation2 + $0xdc] sm:$0xf] %vm829, %v1111
    %1184 = vst.msk [vmem:[#allocation2 + $0xe0] sm:$0xf] %vm829, %v1113
    %1185 = vst.msk [vmem:[#allocation2 + $0xe4] sm:$0xf] %vm829, %v1115
    %1186 = vst.msk [vmem:[#allocation2 + $0xe8] sm:$0xf] %vm829, %v1117
    %1187 = vst.msk [vmem:[#allocation2 + $0xec] sm:$0xf] %vm829, %v1119
    %1188 = vst.msk [vmem:[#allocation2 + $0xf0] sm:$0xf] %vm829, %v1121
    %1189 = vst.msk [vmem:[#allocation2 + $0xf4] sm:$0xf] %vm829, %v1123
    %1190 = vst.msk [vmem:[#allocation2 + $0xf8] sm:$0xf] %vm829, %v1125
    %1191 = vst.msk [vmem:[#allocation2 + $0xfc] sm:$0xf] %vm829, %v1127
    %v1192 = vld [vmem:[#allocation12] sm:$0x1]
    %v1193 = vld [vmem:[#allocation12 + $0x1] sm:$0x1]
    %v1194 = vlaneseq
    %v1195 = vshrl.u32 %v1194, 7
    %v1196 = vsub.s32 0, %v1195
    %v1197 = vrot.slane %v1192, %v1196
    %v1198 = vmul.f32 %v312, %v1197
    %v1199 = vmul.f32 %v317, %v1197
    %v1200 = vmul.f32 %v322, %v1197
    %v1201 = vmul.f32 %v327, %v1197
    %v1202 = vmul.f32 %v332, %v1197
    %v1203 = vmul.f32 %v337, %v1197
    %v1204 = vmul.f32 %v342, %v1197
    %v1205 = vmul.f32 %v347, %v1197
    %v1206 = vmul.f32 %v352, %v1197
    %v1207 = vmul.f32 %v357, %v1197
    %v1208 = vmul.f32 %v362, %v1197
    %v1209 = vmul.f32 %v367, %v1197
    %v1210 = vmul.f32 %v372, %v1197
    %v1211 = vmul.f32 %v377, %v1197
    %v1212 = vmul.f32 %v382, %v1197
    %v1213 = vmul.f32 %v387, %v1197
    %v1214 = vmul.f32 %v392, %v1197
    %v1215 = vmul.f32 %v397, %v1197
    %v1216 = vmul.f32 %v402, %v1197
    %v1217 = vmul.f32 %v407, %v1197
    %v1218 = vmul.f32 %v412, %v1197
    %v1219 = vmul.f32 %v417, %v1197
    %v1220 = vmul.f32 %v422, %v1197
    %v1221 = vmul.f32 %v427, %v1197
    %v1222 = vmul.f32 %v432, %v1197
    %v1223 = vmul.f32 %v437, %v1197
    %v1224 = vmul.f32 %v442, %v1197
    %v1225 = vmul.f32 %v447, %v1197
    %v1226 = vmul.f32 %v452, %v1197
    %v1227 = vmul.f32 %v457, %v1197
    %v1228 = vmul.f32 %v462, %v1197
    %v1229 = vmul.f32 %v467, %v1197
    %v1230 = vlaneseq
    %v1231 = vshrl.u32 %v1230, 7
    %v1232 = vsub.s32 0, %v1231
    %v1233 = vrot.slane %v1193, %v1232
    %v1234 = vmul.f32 %v507, %v1233
    %v1235 = vmul.f32 %v511, %v1233
    %v1236 = vmul.f32 %v515, %v1233
    %v1237 = vmul.f32 %v519, %v1233
    %v1238 = vmul.f32 %v523, %v1233
    %v1239 = vmul.f32 %v527, %v1233
    %v1240 = vmul.f32 %v531, %v1233
    %v1241 = vmul.f32 %v535, %v1233
    %v1242 = vmul.f32 %v539, %v1233
    %v1243 = vmul.f32 %v543, %v1233
    %v1244 = vmul.f32 %v547, %v1233
    %v1245 = vmul.f32 %v551, %v1233
    %v1246 = vmul.f32 %v555, %v1233
    %v1247 = vmul.f32 %v559, %v1233
    %v1248 = vmul.f32 %v563, %v1233
    %v1249 = vmul.f32 %v567, %v1233
    %v1250 = vmul.f32 %v571, %v1233
    %v1251 = vmul.f32 %v575, %v1233
    %v1252 = vmul.f32 %v579, %v1233
    %v1253 = vmul.f32 %v583, %v1233
    %v1254 = vmul.f32 %v587, %v1233
    %v1255 = vmul.f32 %v591, %v1233
    %v1256 = vmul.f32 %v595, %v1233
    %v1257 = vmul.f32 %v599, %v1233
    %v1258 = vmul.f32 %v603, %v1233
    %v1259 = vmul.f32 %v607, %v1233
    %v1260 = vmul.f32 %v611, %v1233
    %v1261 = vmul.f32 %v615, %v1233
    %v1262 = vmul.f32 %v619, %v1233
    %v1263 = vmul.f32 %v623, %v1233
    %v1264 = vmul.f32 %v627, %v1233
    %v1265 = vmul.f32 %v631, %v1233
    %v1266 = vadd.f32 %v1198, %v1234
    %v1267 = vadd.f32 %v1199, %v1235
    %v1268 = vadd.f32 %v1200, %v1236
    %v1269 = vadd.f32 %v1201, %v1237
    %v1270 = vadd.f32 %v1202, %v1238
    %v1271 = vadd.f32 %v1203, %v1239
    %v1272 = vadd.f32 %v1204, %v1240
    %v1273 = vadd.f32 %v1205, %v1241
    %v1274 = vadd.f32 %v1206, %v1242
    %v1275 = vadd.f32 %v1207, %v1243
    %v1276 = vadd.f32 %v1208, %v1244
    %v1277 = vadd.f32 %v1209, %v1245
    %v1278 = vadd.f32 %v1210, %v1246
    %v1279 = vadd.f32 %v1211, %v1247
    %v1280 = vadd.f32 %v1212, %v1248
    %v1281 = vadd.f32 %v1213, %v1249
    %v1282 = vadd.f32 %v1214, %v1250
    %v1283 = vadd.f32 %v1215, %v1251
    %v1284 = vadd.f32 %v1216, %v1252
    %v1285 = vadd.f32 %v1217, %v1253
    %v1286 = vadd.f32 %v1218, %v1254
    %v1287 = vadd.f32 %v1219, %v1255
    %v1288 = vadd.f32 %v1220, %v1256
    %v1289 = vadd.f32 %v1221, %v1257
    %v1290 = vadd.f32 %v1222, %v1258
    %v1291 = vadd.f32 %v1223, %v1259
    %v1292 = vadd.f32 %v1224, %v1260
    %v1293 = vadd.f32 %v1225, %v1261
    %v1294 = vadd.f32 %v1226, %v1262
    %v1295 = vadd.f32 %v1227, %v1263
    %v1296 = vadd.f32 %v1228, %v1264
    %v1297 = vadd.f32 %v1229, %v1265
    %v1298 = vpack.c.bf16 %v1267, %v1266
    %v1299 = vpack.c.bf16 %v1269, %v1268
    %v1300 = vpack.c.bf16 %v1271, %v1270
    %v1301 = vpack.c.bf16 %v1273, %v1272
    %v1302 = vpack.c.bf16 %v1275, %v1274
    %v1303 = vpack.c.bf16 %v1277, %v1276
    %v1304 = vpack.c.bf16 %v1279, %v1278
    %v1305 = vpack.c.bf16 %v1281, %v1280
    %v1306 = vpack.c.bf16 %v1283, %v1282
    %v1307 = vpack.c.bf16 %v1285, %v1284
    %v1308 = vpack.c.bf16 %v1287, %v1286
    %v1309 = vpack.c.bf16 %v1289, %v1288
    %v1310 = vpack.c.bf16 %v1291, %v1290
    %v1311 = vpack.c.bf16 %v1293, %v1292
    %v1312 = vpack.c.bf16 %v1295, %v1294
    %v1313 = vpack.c.bf16 %v1297, %v1296
    %v1330 = vunpack.c.l.b16 %v1298
    %v1331 = vunpack.c.h.b16 %v1298
    %v1332 = vunpack.c.l.b16 %v1299
    %v1333 = vunpack.c.h.b16 %v1299
    %v1334 = vunpack.c.l.b16 %v1300
    %v1335 = vunpack.c.h.b16 %v1300
    %v1336 = vunpack.c.l.b16 %v1301
    %v1337 = vunpack.c.h.b16 %v1301
    %v1338 = vunpack.c.l.b16 %v1302
    %v1339 = vunpack.c.h.b16 %v1302
    %v1340 = vunpack.c.l.b16 %v1303
    %v1341 = vunpack.c.h.b16 %v1303
    %v1342 = vunpack.c.l.b16 %v1304
    %v1343 = vunpack.c.h.b16 %v1304
    %v1344 = vunpack.c.l.b16 %v1305
    %v1345 = vunpack.c.h.b16 %v1305
    %v1346 = vunpack.c.l.b16 %v1306
    %v1347 = vunpack.c.h.b16 %v1306
    %v1348 = vunpack.c.l.b16 %v1307
    %v1349 = vunpack.c.h.b16 %v1307
    %v1350 = vunpack.c.l.b16 %v1308
    %v1351 = vunpack.c.h.b16 %v1308
    %v1352 = vunpack.c.l.b16 %v1309
    %v1353 = vunpack.c.h.b16 %v1309
    %v1354 = vunpack.c.l.b16 %v1310
    %v1355 = vunpack.c.h.b16 %v1310
    %v1356 = vunpack.c.l.b16 %v1311
    %v1357 = vunpack.c.h.b16 %v1311
    %v1358 = vunpack.c.l.b16 %v1312
    %v1359 = vunpack.c.h.b16 %v1312
    %v1360 = vunpack.c.l.b16 %v1313
    %v1361 = vunpack.c.h.b16 %v1313
    %v1362 = vpack.c.b16 %v1330, %v1330
    %v1363 = vpack.c.b16 %v1331, %v1331
    %v1364 = vpack.c.b16 %v1332, %v1332
    %v1365 = vpack.c.b16 %v1333, %v1333
    %v1366 = vpack.c.b16 %v1334, %v1334
    %v1367 = vpack.c.b16 %v1335, %v1335
    %v1368 = vpack.c.b16 %v1336, %v1336
    %v1369 = vpack.c.b16 %v1337, %v1337
    %v1370 = vpack.c.b16 %v1338, %v1338
    %v1371 = vpack.c.b16 %v1339, %v1339
    %v1372 = vpack.c.b16 %v1340, %v1340
    %v1373 = vpack.c.b16 %v1341, %v1341
    %v1374 = vpack.c.b16 %v1342, %v1342
    %v1375 = vpack.c.b16 %v1343, %v1343
    %v1376 = vpack.c.b16 %v1344, %v1344
    %v1377 = vpack.c.b16 %v1345, %v1345
    %v1378 = vpack.c.b16 %v1346, %v1346
    %v1379 = vpack.c.b16 %v1347, %v1347
    %v1380 = vpack.c.b16 %v1348, %v1348
    %v1381 = vpack.c.b16 %v1349, %v1349
    %v1382 = vpack.c.b16 %v1350, %v1350
    %v1383 = vpack.c.b16 %v1351, %v1351
    %v1384 = vpack.c.b16 %v1352, %v1352
    %v1385 = vpack.c.b16 %v1353, %v1353
    %v1386 = vpack.c.b16 %v1354, %v1354
    %v1387 = vpack.c.b16 %v1355, %v1355
    %v1388 = vpack.c.b16 %v1356, %v1356
    %v1389 = vpack.c.b16 %v1357, %v1357
    %v1390 = vpack.c.b16 %v1358, %v1358
    %v1391 = vpack.c.b16 %v1359, %v1359
    %v1392 = vpack.c.b16 %v1360, %v1360
    %v1393 = vpack.c.b16 %v1361, %v1361
    %1394 = vrot.lane.b32.xlu0 %v1362, 64
    %v1395 = vpop.permute.xlu0 %1394
    %1396 = vrot.lane.b32.xlu0 %v1363, 64
    %v1397 = vpop.permute.xlu0 %1396
    %1398 = vrot.lane.b32.xlu0 %v1364, 64
    %v1399 = vpop.permute.xlu0 %1398
    %1400 = vrot.lane.b32.xlu0 %v1365, 64
    %v1401 = vpop.permute.xlu0 %1400
    %1402 = vrot.lane.b32.xlu0 %v1366, 64
    %v1403 = vpop.permute.xlu0 %1402
    %1404 = vrot.lane.b32.xlu0 %v1367, 64
    %v1405 = vpop.permute.xlu0 %1404
    %1406 = vrot.lane.b32.xlu0 %v1368, 64
    %v1407 = vpop.permute.xlu0 %1406
    %1408 = vrot.lane.b32.xlu0 %v1369, 64
    %v1409 = vpop.permute.xlu0 %1408
    %1410 = vrot.lane.b32.xlu0 %v1370, 64
    %v1411 = vpop.permute.xlu0 %1410
    %1412 = vrot.lane.b32.xlu0 %v1371, 64
    %v1413 = vpop.permute.xlu0 %1412
    %1414 = vrot.lane.b32.xlu0 %v1372, 64
    %v1415 = vpop.permute.xlu0 %1414
    %1416 = vrot.lane.b32.xlu0 %v1373, 64
    %v1417 = vpop.permute.xlu0 %1416
    %1418 = vrot.lane.b32.xlu0 %v1374, 64
    %v1419 = vpop.permute.xlu0 %1418
    %1420 = vrot.lane.b32.xlu0 %v1375, 64
    %v1421 = vpop.permute.xlu0 %1420
    %1422 = vrot.lane.b32.xlu0 %v1376, 64
    %v1423 = vpop.permute.xlu0 %1422
    %1424 = vrot.lane.b32.xlu0 %v1377, 64
    %v1425 = vpop.permute.xlu0 %1424
    %1426 = vrot.lane.b32.xlu0 %v1378, 64
    %v1427 = vpop.permute.xlu0 %1426
    %1428 = vrot.lane.b32.xlu0 %v1379, 64
    %v1429 = vpop.permute.xlu0 %1428
    %1430 = vrot.lane.b32.xlu0 %v1380, 64
    %v1431 = vpop.permute.xlu0 %1430
    %1432 = vrot.lane.b32.xlu0 %v1381, 64
    %v1433 = vpop.permute.xlu0 %1432
    %1434 = vrot.lane.b32.xlu0 %v1382, 64
    %v1435 = vpop.permute.xlu0 %1434
    %1436 = vrot.lane.b32.xlu0 %v1383, 64
    %v1437 = vpop.permute.xlu0 %1436
    %1438 = vrot.lane.b32.xlu0 %v1384, 64
    %v1439 = vpop.permute.xlu0 %1438
    %1440 = vrot.lane.b32.xlu0 %v1385, 64
    %v1441 = vpop.permute.xlu0 %1440
    %1442 = vrot.lane.b32.xlu0 %v1386, 64
    %v1443 = vpop.permute.xlu0 %1442
    %1444 = vrot.lane.b32.xlu0 %v1387, 64
    %v1445 = vpop.permute.xlu0 %1444
    %1446 = vrot.lane.b32.xlu0 %v1388, 64
    %v1447 = vpop.permute.xlu0 %1446
    %1448 = vrot.lane.b32.xlu0 %v1389, 64
    %v1449 = vpop.permute.xlu0 %1448
    %1450 = vrot.lane.b32.xlu0 %v1390, 64
    %v1451 = vpop.permute.xlu0 %1450
    %1452 = vrot.lane.b32.xlu0 %v1391, 64
    %v1453 = vpop.permute.xlu0 %1452
    %1454 = vrot.lane.b32.xlu0 %v1392, 64
    %v1455 = vpop.permute.xlu0 %1454
    %1456 = vrot.lane.b32.xlu0 %v1393, 64
    %v1457 = vpop.permute.xlu0 %1456
    %1490 = vst.msk [vmem:[#allocation2 + $0x100] sm:$0xf] %vm829, %v1395
    %1491 = vst.msk [vmem:[#allocation2 + $0x104] sm:$0xf] %vm829, %v1397
    %1492 = vst.msk [vmem:[#allocation2 + $0x108] sm:$0xf] %vm829, %v1399
    %1493 = vst.msk [vmem:[#allocation2 + $0x10c] sm:$0xf] %vm829, %v1401
    %1494 = vst.msk [vmem:[#allocation2 + $0x110] sm:$0xf] %vm829, %v1403
    %1495 = vst.msk [vmem:[#allocation2 + $0x114] sm:$0xf] %vm829, %v1405
    %1496 = vst.msk [vmem:[#allocation2 + $0x118] sm:$0xf] %vm829, %v1407
    %1497 = vst.msk [vmem:[#allocation2 + $0x11c] sm:$0xf] %vm829, %v1409
    %1498 = vst.msk [vmem:[#allocation2 + $0x120] sm:$0xf] %vm829, %v1411
    %1499 = vst.msk [vmem:[#allocation2 + $0x124] sm:$0xf] %vm829, %v1413
    %1500 = vst.msk [vmem:[#allocation2 + $0x128] sm:$0xf] %vm829, %v1415
    %1501 = vst.msk [vmem:[#allocation2 + $0x12c] sm:$0xf] %vm829, %v1417
    %1502 = vst.msk [vmem:[#allocation2 + $0x130] sm:$0xf] %vm829, %v1419
    %1503 = vst.msk [vmem:[#allocation2 + $0x134] sm:$0xf] %vm829, %v1421
    %1504 = vst.msk [vmem:[#allocation2 + $0x138] sm:$0xf] %vm829, %v1423
    %1505 = vst.msk [vmem:[#allocation2 + $0x13c] sm:$0xf] %vm829, %v1425
    %1506 = vst.msk [vmem:[#allocation2 + $0x140] sm:$0xf] %vm829, %v1427
    %1507 = vst.msk [vmem:[#allocation2 + $0x144] sm:$0xf] %vm829, %v1429
    %1508 = vst.msk [vmem:[#allocation2 + $0x148] sm:$0xf] %vm829, %v1431
    %1509 = vst.msk [vmem:[#allocation2 + $0x14c] sm:$0xf] %vm829, %v1433
    %1510 = vst.msk [vmem:[#allocation2 + $0x150] sm:$0xf] %vm829, %v1435
    %1511 = vst.msk [vmem:[#allocation2 + $0x154] sm:$0xf] %vm829, %v1437
    %1512 = vst.msk [vmem:[#allocation2 + $0x158] sm:$0xf] %vm829, %v1439
    %1513 = vst.msk [vmem:[#allocation2 + $0x15c] sm:$0xf] %vm829, %v1441
    %1514 = vst.msk [vmem:[#allocation2 + $0x160] sm:$0xf] %vm829, %v1443
    %1515 = vst.msk [vmem:[#allocation2 + $0x164] sm:$0xf] %vm829, %v1445
    %1516 = vst.msk [vmem:[#allocation2 + $0x168] sm:$0xf] %vm829, %v1447
    %1517 = vst.msk [vmem:[#allocation2 + $0x16c] sm:$0xf] %vm829, %v1449
    %1518 = vst.msk [vmem:[#allocation2 + $0x170] sm:$0xf] %vm829, %v1451
    %1519 = vst.msk [vmem:[#allocation2 + $0x174] sm:$0xf] %vm829, %v1453
    %1520 = vst.msk [vmem:[#allocation2 + $0x178] sm:$0xf] %vm829, %v1455
    %1521 = vst.msk [vmem:[#allocation2 + $0x17c] sm:$0xf] %vm829, %v1457
    %v1522 = vld [vmem:[#allocation12] sm:$0x1]
    %v1523 = vld [vmem:[#allocation12 + $0x1] sm:$0x1]
    %v1524 = vlaneseq
    %v1525 = vshrl.u32 %v1524, 7
    %v1526 = vsub.s32 0, %v1525
    %v1527 = vrot.slane %v1522, %v1526
    %v1528 = vmul.f32 %v312, %v1527
    %v1529 = vmul.f32 %v317, %v1527
    %v1530 = vmul.f32 %v322, %v1527
    %v1531 = vmul.f32 %v327, %v1527
    %v1532 = vmul.f32 %v332, %v1527
    %v1533 = vmul.f32 %v337, %v1527
    %v1534 = vmul.f32 %v342, %v1527
    %v1535 = vmul.f32 %v347, %v1527
    %v1536 = vmul.f32 %v352, %v1527
    %v1537 = vmul.f32 %v357, %v1527
    %v1538 = vmul.f32 %v362, %v1527
    %v1539 = vmul.f32 %v367, %v1527
    %v1540 = vmul.f32 %v372, %v1527
    %v1541 = vmul.f32 %v377, %v1527
    %v1542 = vmul.f32 %v382, %v1527
    %v1543 = vmul.f32 %v387, %v1527
    %v1544 = vmul.f32 %v392, %v1527
    %v1545 = vmul.f32 %v397, %v1527
    %v1546 = vmul.f32 %v402, %v1527
    %v1547 = vmul.f32 %v407, %v1527
    %v1548 = vmul.f32 %v412, %v1527
    %v1549 = vmul.f32 %v417, %v1527
    %v1550 = vmul.f32 %v422, %v1527
    %v1551 = vmul.f32 %v427, %v1527
    %v1552 = vmul.f32 %v432, %v1527
    %v1553 = vmul.f32 %v437, %v1527
    %v1554 = vmul.f32 %v442, %v1527
    %v1555 = vmul.f32 %v447, %v1527
    %v1556 = vmul.f32 %v452, %v1527
    %v1557 = vmul.f32 %v457, %v1527
    %v1558 = vmul.f32 %v462, %v1527
    %v1559 = vmul.f32 %v467, %v1527
    %v1560 = vlaneseq
    %v1561 = vshrl.u32 %v1560, 7
    %v1562 = vsub.s32 0, %v1561
    %v1563 = vrot.slane %v1523, %v1562
    %v1564 = vmul.f32 %v507, %v1563
    %v1565 = vmul.f32 %v511, %v1563
    %v1566 = vmul.f32 %v515, %v1563
    %v1567 = vmul.f32 %v519, %v1563
    %v1568 = vmul.f32 %v523, %v1563
    %v1569 = vmul.f32 %v527, %v1563
    %v1570 = vmul.f32 %v531, %v1563
    %v1571 = vmul.f32 %v535, %v1563
    %v1572 = vmul.f32 %v539, %v1563
    %v1573 = vmul.f32 %v543, %v1563
    %v1574 = vmul.f32 %v547, %v1563
    %v1575 = vmul.f32 %v551, %v1563
    %v1576 = vmul.f32 %v555, %v1563
    %v1577 = vmul.f32 %v559, %v1563
    %v1578 = vmul.f32 %v563, %v1563
    %v1579 = vmul.f32 %v567, %v1563
    %v1580 = vmul.f32 %v571, %v1563
    %v1581 = vmul.f32 %v575, %v1563
    %v1582 = vmul.f32 %v579, %v1563
    %v1583 = vmul.f32 %v583, %v1563
    %v1584 = vmul.f32 %v587, %v1563
    %v1585 = vmul.f32 %v591, %v1563
    %v1586 = vmul.f32 %v595, %v1563
    %v1587 = vmul.f32 %v599, %v1563
    %v1588 = vmul.f32 %v603, %v1563
    %v1589 = vmul.f32 %v607, %v1563
    %v1590 = vmul.f32 %v611, %v1563
    %v1591 = vmul.f32 %v615, %v1563
    %v1592 = vmul.f32 %v619, %v1563
    %v1593 = vmul.f32 %v623, %v1563
    %v1594 = vmul.f32 %v627, %v1563
    %v1595 = vmul.f32 %v631, %v1563
    %v1596 = vadd.f32 %v1528, %v1564
    %v1597 = vadd.f32 %v1529, %v1565
    %v1598 = vadd.f32 %v1530, %v1566
    %v1599 = vadd.f32 %v1531, %v1567
    %v1600 = vadd.f32 %v1532, %v1568
    %v1601 = vadd.f32 %v1533, %v1569
    %v1602 = vadd.f32 %v1534, %v1570
    %v1603 = vadd.f32 %v1535, %v1571
    %v1604 = vadd.f32 %v1536, %v1572
    %v1605 = vadd.f32 %v1537, %v1573
    %v1606 = vadd.f32 %v1538, %v1574
    %v1607 = vadd.f32 %v1539, %v1575
    %v1608 = vadd.f32 %v1540, %v1576
    %v1609 = vadd.f32 %v1541, %v1577
    %v1610 = vadd.f32 %v1542, %v1578
    %v1611 = vadd.f32 %v1543, %v1579
    %v1612 = vadd.f32 %v1544, %v1580
    %v1613 = vadd.f32 %v1545, %v1581
    %v1614 = vadd.f32 %v1546, %v1582
    %v1615 = vadd.f32 %v1547, %v1583
    %v1616 = vadd.f32 %v1548, %v1584
    %v1617 = vadd.f32 %v1549, %v1585
    %v1618 = vadd.f32 %v1550, %v1586
    %v1619 = vadd.f32 %v1551, %v1587
    %v1620 = vadd.f32 %v1552, %v1588
    %v1621 = vadd.f32 %v1553, %v1589
    %v1622 = vadd.f32 %v1554, %v1590
    %v1623 = vadd.f32 %v1555, %v1591
    %v1624 = vadd.f32 %v1556, %v1592
    %v1625 = vadd.f32 %v1557, %v1593
    %v1626 = vadd.f32 %v1558, %v1594
    %v1627 = vadd.f32 %v1559, %v1595
    %v1628 = vpack.c.bf16 %v1597, %v1596
    %v1629 = vpack.c.bf16 %v1599, %v1598
    %v1630 = vpack.c.bf16 %v1601, %v1600
    %v1631 = vpack.c.bf16 %v1603, %v1602
    %v1632 = vpack.c.bf16 %v1605, %v1604
    %v1633 = vpack.c.bf16 %v1607, %v1606
    %v1634 = vpack.c.bf16 %v1609, %v1608
    %v1635 = vpack.c.bf16 %v1611, %v1610
    %v1636 = vpack.c.bf16 %v1613, %v1612
    %v1637 = vpack.c.bf16 %v1615, %v1614
    %v1638 = vpack.c.bf16 %v1617, %v1616
    %v1639 = vpack.c.bf16 %v1619, %v1618
    %v1640 = vpack.c.bf16 %v1621, %v1620
    %v1641 = vpack.c.bf16 %v1623, %v1622
    %v1642 = vpack.c.bf16 %v1625, %v1624
    %v1643 = vpack.c.bf16 %v1627, %v1626
    %v1660 = vunpack.c.l.b16 %v1628
    %v1661 = vunpack.c.h.b16 %v1628
    %v1662 = vunpack.c.l.b16 %v1629
    %v1663 = vunpack.c.h.b16 %v1629
    %v1664 = vunpack.c.l.b16 %v1630
    %v1665 = vunpack.c.h.b16 %v1630
    %v1666 = vunpack.c.l.b16 %v1631
    %v1667 = vunpack.c.h.b16 %v1631
    %v1668 = vunpack.c.l.b16 %v1632
    %v1669 = vunpack.c.h.b16 %v1632
    %v1670 = vunpack.c.l.b16 %v1633
    %v1671 = vunpack.c.h.b16 %v1633
    %v1672 = vunpack.c.l.b16 %v1634
    %v1673 = vunpack.c.h.b16 %v1634
    %v1674 = vunpack.c.l.b16 %v1635
    %v1675 = vunpack.c.h.b16 %v1635
    %v1676 = vunpack.c.l.b16 %v1636
    %v1677 = vunpack.c.h.b16 %v1636
    %v1678 = vunpack.c.l.b16 %v1637
    %v1679 = vunpack.c.h.b16 %v1637
    %v1680 = vunpack.c.l.b16 %v1638
    %v1681 = vunpack.c.h.b16 %v1638
    %v1682 = vunpack.c.l.b16 %v1639
    %v1683 = vunpack.c.h.b16 %v1639
    %v1684 = vunpack.c.l.b16 %v1640
    %v1685 = vunpack.c.h.b16 %v1640
    %v1686 = vunpack.c.l.b16 %v1641
    %v1687 = vunpack.c.h.b16 %v1641
    %v1688 = vunpack.c.l.b16 %v1642
    %v1689 = vunpack.c.h.b16 %v1642
    %v1690 = vunpack.c.l.b16 %v1643
    %v1691 = vunpack.c.h.b16 %v1643
    %v1692 = vpack.c.b16 %v1660, %v1660
    %v1693 = vpack.c.b16 %v1661, %v1661
    %v1694 = vpack.c.b16 %v1662, %v1662
    %v1695 = vpack.c.b16 %v1663, %v1663
    %v1696 = vpack.c.b16 %v1664, %v1664
    %v1697 = vpack.c.b16 %v1665, %v1665
    %v1698 = vpack.c.b16 %v1666, %v1666
    %v1699 = vpack.c.b16 %v1667, %v1667
    %v1700 = vpack.c.b16 %v1668, %v1668
    %v1701 = vpack.c.b16 %v1669, %v1669
    %v1702 = vpack.c.b16 %v1670, %v1670
    %v1703 = vpack.c.b16 %v1671, %v1671
    %v1704 = vpack.c.b16 %v1672, %v1672
    %v1705 = vpack.c.b16 %v1673, %v1673
    %v1706 = vpack.c.b16 %v1674, %v1674
    %v1707 = vpack.c.b16 %v1675, %v1675
    %v1708 = vpack.c.b16 %v1676, %v1676
    %v1709 = vpack.c.b16 %v1677, %v1677
    %v1710 = vpack.c.b16 %v1678, %v1678
    %v1711 = vpack.c.b16 %v1679, %v1679
    %v1712 = vpack.c.b16 %v1680, %v1680
    %v1713 = vpack.c.b16 %v1681, %v1681
    %v1714 = vpack.c.b16 %v1682, %v1682
    %v1715 = vpack.c.b16 %v1683, %v1683
    %v1716 = vpack.c.b16 %v1684, %v1684
    %v1717 = vpack.c.b16 %v1685, %v1685
    %v1718 = vpack.c.b16 %v1686, %v1686
    %v1719 = vpack.c.b16 %v1687, %v1687
    %v1720 = vpack.c.b16 %v1688, %v1688
    %v1721 = vpack.c.b16 %v1689, %v1689
    %v1722 = vpack.c.b16 %v1690, %v1690
    %v1723 = vpack.c.b16 %v1691, %v1691
    %1724 = vrot.lane.b32.xlu0 %v1692, 32
    %v1725 = vpop.permute.xlu0 %1724
    %1726 = vrot.lane.b32.xlu0 %v1693, 32
    %v1727 = vpop.permute.xlu0 %1726
    %1728 = vrot.lane.b32.xlu0 %v1694, 32
    %v1729 = vpop.permute.xlu0 %1728
    %1730 = vrot.lane.b32.xlu0 %v1695, 32
    %v1731 = vpop.permute.xlu0 %1730
    %1732 = vrot.lane.b32.xlu0 %v1696, 32
    %v1733 = vpop.permute.xlu0 %1732
    %1734 = vrot.lane.b32.xlu0 %v1697, 32
    %v1735 = vpop.permute.xlu0 %1734
    %1736 = vrot.lane.b32.xlu0 %v1698, 32
    %v1737 = vpop.permute.xlu0 %1736
    %1738 = vrot.lane.b32.xlu0 %v1699, 32
    %v1739 = vpop.permute.xlu0 %1738
    %1740 = vrot.lane.b32.xlu0 %v1700, 32
    %v1741 = vpop.permute.xlu0 %1740
    %1742 = vrot.lane.b32.xlu0 %v1701, 32
    %v1743 = vpop.permute.xlu0 %1742
    %1744 = vrot.lane.b32.xlu0 %v1702, 32
    %v1745 = vpop.permute.xlu0 %1744
    %1746 = vrot.lane.b32.xlu0 %v1703, 32
    %v1747 = vpop.permute.xlu0 %1746
    %1748 = vrot.lane.b32.xlu0 %v1704, 32
    %v1749 = vpop.permute.xlu0 %1748
    %1750 = vrot.lane.b32.xlu0 %v1705, 32
    %v1751 = vpop.permute.xlu0 %1750
    %1752 = vrot.lane.b32.xlu0 %v1706, 32
    %v1753 = vpop.permute.xlu0 %1752
    %1754 = vrot.lane.b32.xlu0 %v1707, 32
    %v1755 = vpop.permute.xlu0 %1754
    %1756 = vrot.lane.b32.xlu0 %v1708, 32
    %v1757 = vpop.permute.xlu0 %1756
    %1758 = vrot.lane.b32.xlu0 %v1709, 32
    %v1759 = vpop.permute.xlu0 %1758
    %1760 = vrot.lane.b32.xlu0 %v1710, 32
    %v1761 = vpop.permute.xlu0 %1760
    %1762 = vrot.lane.b32.xlu0 %v1711, 32
    %v1763 = vpop.permute.xlu0 %1762
    %1764 = vrot.lane.b32.xlu0 %v1712, 32
    %v1765 = vpop.permute.xlu0 %1764
    %1766 = vrot.lane.b32.xlu0 %v1713, 32
    %v1767 = vpop.permute.xlu0 %1766
    %1768 = vrot.lane.b32.xlu0 %v1714, 32
    %v1769 = vpop.permute.xlu0 %1768
    %1770 = vrot.lane.b32.xlu0 %v1715, 32
    %v1771 = vpop.permute.xlu0 %1770
    %1772 = vrot.lane.b32.xlu0 %v1716, 32
    %v1773 = vpop.permute.xlu0 %1772
    %1774 = vrot.lane.b32.xlu0 %v1717, 32
    %v1775 = vpop.permute.xlu0 %1774
    %1776 = vrot.lane.b32.xlu0 %v1718, 32
    %v1777 = vpop.permute.xlu0 %1776
    %1778 = vrot.lane.b32.xlu0 %v1719, 32
    %v1779 = vpop.permute.xlu0 %1778
    %1780 = vrot.lane.b32.xlu0 %v1720, 32
    %v1781 = vpop.permute.xlu0 %1780
    %1782 = vrot.lane.b32.xlu0 %v1721, 32
    %v1783 = vpop.permute.xlu0 %1782
    %1784 = vrot.lane.b32.xlu0 %v1722, 32
    %v1785 = vpop.permute.xlu0 %1784
    %1786 = vrot.lane.b32.xlu0 %v1723, 32
    %v1787 = vpop.permute.xlu0 %1786
    %1820 = vst.msk [vmem:[#allocation2 + $0x180] sm:$0xf] %vm829, %v1725
    %1821 = vst.msk [vmem:[#allocation2 + $0x184] sm:$0xf] %vm829, %v1727
    %1822 = vst.msk [vmem:[#allocation2 + $0x188] sm:$0xf] %vm829, %v1729
    %1823 = vst.msk [vmem:[#allocation2 + $0x18c] sm:$0xf] %vm829, %v1731
    %1824 = vst.msk [vmem:[#allocation2 + $0x190] sm:$0xf] %vm829, %v1733
    %1825 = vst.msk [vmem:[#allocation2 + $0x194] sm:$0xf] %vm829, %v1735
    %1826 = vst.msk [vmem:[#allocation2 + $0x198] sm:$0xf] %vm829, %v1737
    %1827 = vst.msk [vmem:[#allocation2 + $0x19c] sm:$0xf] %vm829, %v1739
    %1828 = vst.msk [vmem:[#allocation2 + $0x1a0] sm:$0xf] %vm829, %v1741
    %1829 = vst.msk [vmem:[#allocation2 + $0x1a4] sm:$0xf] %vm829, %v1743
    %1830 = vst.msk [vmem:[#allocation2 + $0x1a8] sm:$0xf] %vm829, %v1745
    %1831 = vst.msk [vmem:[#allocation2 + $0x1ac] sm:$0xf] %vm829, %v1747
    %1832 = vst.msk [vmem:[#allocation2 + $0x1b0] sm:$0xf] %vm829, %v1749
    %1833 = vst.msk [vmem:[#allocation2 + $0x1b4] sm:$0xf] %vm829, %v1751
    %1834 = vst.msk [vmem:[#allocation2 + $0x1b8] sm:$0xf] %vm829, %v1753
    %1835 = vst.msk [vmem:[#allocation2 + $0x1bc] sm:$0xf] %vm829, %v1755
    %1836 = vst.msk [vmem:[#allocation2 + $0x1c0] sm:$0xf] %vm829, %v1757
    %1837 = vst.msk [vmem:[#allocation2 + $0x1c4] sm:$0xf] %vm829, %v1759
    %1838 = vst.msk [vmem:[#allocation2 + $0x1c8] sm:$0xf] %vm829, %v1761
    %1839 = vst.msk [vmem:[#allocation2 + $0x1cc] sm:$0xf] %vm829, %v1763
    %1840 = vst.msk [vmem:[#allocation2 + $0x1d0] sm:$0xf] %vm829, %v1765
    %1841 = vst.msk [vmem:[#allocation2 + $0x1d4] sm:$0xf] %vm829, %v1767
    %1842 = vst.msk [vmem:[#allocation2 + $0x1d8] sm:$0xf] %vm829, %v1769
    %1843 = vst.msk [vmem:[#allocation2 + $0x1dc] sm:$0xf] %vm829, %v1771
    %1844 = vst.msk [vmem:[#allocation2 + $0x1e0] sm:$0xf] %vm829, %v1773
    %1845 = vst.msk [vmem:[#allocation2 + $0x1e4] sm:$0xf] %vm829, %v1775
    %1846 = vst.msk [vmem:[#allocation2 + $0x1e8] sm:$0xf] %vm829, %v1777
    %1847 = vst.msk [vmem:[#allocation2 + $0x1ec] sm:$0xf] %vm829, %v1779
    %1848 = vst.msk [vmem:[#allocation2 + $0x1f0] sm:$0xf] %vm829, %v1781
    %1849 = vst.msk [vmem:[#allocation2 + $0x1f4] sm:$0xf] %vm829, %v1783
    %1850 = vst.msk [vmem:[#allocation2 + $0x1f8] sm:$0xf] %vm829, %v1785
    %1851 = vst.msk [vmem:[#allocation2 + $0x1fc] sm:$0xf] %vm829, %v1787
    %v1852 = vld [vmem:[#allocation12 + $0x2] sm:$0x1]
    %v1853 = vld [vmem:[#allocation12 + $0x3] sm:$0x1]
    %v1854 = vlaneseq
    %v1855 = vshrl.u32 %v1854, 7
    %v1856 = vsub.s32 0, %v1855
    %v1857 = vrot.slane %v1852, %v1856
    %v1858 = vmul.f32 %v312, %v1857
    %v1859 = vmul.f32 %v317, %v1857
    %v1860 = vmul.f32 %v322, %v1857
    %v1861 = vmul.f32 %v327, %v1857
    %v1862 = vmul.f32 %v332, %v1857
    %v1863 = vmul.f32 %v337, %v1857
    %v1864 = vmul.f32 %v342, %v1857
    %v1865 = vmul.f32 %v347, %v1857
    %v1866 = vmul.f32 %v352, %v1857
    %v1867 = vmul.f32 %v357, %v1857
    %v1868 = vmul.f32 %v362, %v1857
    %v1869 = vmul.f32 %v367, %v1857
    %v1870 = vmul.f32 %v372, %v1857
    %v1871 = vmul.f32 %v377, %v1857
    %v1872 = vmul.f32 %v382, %v1857
    %v1873 = vmul.f32 %v387, %v1857
    %v1874 = vmul.f32 %v392, %v1857
    %v1875 = vmul.f32 %v397, %v1857
    %v1876 = vmul.f32 %v402, %v1857
    %v1877 = vmul.f32 %v407, %v1857
    %v1878 = vmul.f32 %v412, %v1857
    %v1879 = vmul.f32 %v417, %v1857
    %v1880 = vmul.f32 %v422, %v1857
    %v1881 = vmul.f32 %v427, %v1857
    %v1882 = vmul.f32 %v432, %v1857
    %v1883 = vmul.f32 %v437, %v1857
    %v1884 = vmul.f32 %v442, %v1857
    %v1885 = vmul.f32 %v447, %v1857
    %v1886 = vmul.f32 %v452, %v1857
    %v1887 = vmul.f32 %v457, %v1857
    %v1888 = vmul.f32 %v462, %v1857
    %v1889 = vmul.f32 %v467, %v1857
    %v1890 = vlaneseq
    %v1891 = vshrl.u32 %v1890, 7
    %v1892 = vsub.s32 0, %v1891
    %v1893 = vrot.slane %v1853, %v1892
    %v1894 = vmul.f32 %v507, %v1893
    %v1895 = vmul.f32 %v511, %v1893
    %v1896 = vmul.f32 %v515, %v1893
    %v1897 = vmul.f32 %v519, %v1893
    %v1898 = vmul.f32 %v523, %v1893
    %v1899 = vmul.f32 %v527, %v1893
    %v1900 = vmul.f32 %v531, %v1893
    %v1901 = vmul.f32 %v535, %v1893
    %v1902 = vmul.f32 %v539, %v1893
    %v1903 = vmul.f32 %v543, %v1893
    %v1904 = vmul.f32 %v547, %v1893
    %v1905 = vmul.f32 %v551, %v1893
    %v1906 = vmul.f32 %v555, %v1893
    %v1907 = vmul.f32 %v559, %v1893
    %v1908 = vmul.f32 %v563, %v1893
    %v1909 = vmul.f32 %v567, %v1893
    %v1910 = vmul.f32 %v571, %v1893
    %v1911 = vmul.f32 %v575, %v1893
    %v1912 = vmul.f32 %v579, %v1893
    %v1913 = vmul.f32 %v583, %v1893
    %v1914 = vmul.f32 %v587, %v1893
    %v1915 = vmul.f32 %v591, %v1893
    %v1916 = vmul.f32 %v595, %v1893
    %v1917 = vmul.f32 %v599, %v1893
    %v1918 = vmul.f32 %v603, %v1893
    %v1919 = vmul.f32 %v607, %v1893
    %v1920 = vmul.f32 %v611, %v1893
    %v1921 = vmul.f32 %v615, %v1893
    %v1922 = vmul.f32 %v619, %v1893
    %v1923 = vmul.f32 %v623, %v1893
    %v1924 = vmul.f32 %v627, %v1893
    %v1925 = vmul.f32 %v631, %v1893
    %v1926 = vadd.f32 %v1858, %v1894
    %v1927 = vadd.f32 %v1859, %v1895
    %v1928 = vadd.f32 %v1860, %v1896
    %v1929 = vadd.f32 %v1861, %v1897
    %v1930 = vadd.f32 %v1862, %v1898
    %v1931 = vadd.f32 %v1863, %v1899
    %v1932 = vadd.f32 %v1864, %v1900
    %v1933 = vadd.f32 %v1865, %v1901
    %v1934 = vadd.f32 %v1866, %v1902
    %v1935 = vadd.f32 %v1867, %v1903
    %v1936 = vadd.f32 %v1868, %v1904
    %v1937 = vadd.f32 %v1869, %v1905
    %v1938 = vadd.f32 %v1870, %v1906
    %v1939 = vadd.f32 %v1871, %v1907
    %v1940 = vadd.f32 %v1872, %v1908
    %v1941 = vadd.f32 %v1873, %v1909
    %v1942 = vadd.f32 %v1874, %v1910
    %v1943 = vadd.f32 %v1875, %v1911
    %v1944 = vadd.f32 %v1876, %v1912
    %v1945 = vadd.f32 %v1877, %v1913
    %v1946 = vadd.f32 %v1878, %v1914
    %v1947 = vadd.f32 %v1879, %v1915
    %v1948 = vadd.f32 %v1880, %v1916
    %v1949 = vadd.f32 %v1881, %v1917
    %v1950 = vadd.f32 %v1882, %v1918
    %v1951 = vadd.f32 %v1883, %v1919
    %v1952 = vadd.f32 %v1884, %v1920
    %v1953 = vadd.f32 %v1885, %v1921
    %v1954 = vadd.f32 %v1886, %v1922
    %v1955 = vadd.f32 %v1887, %v1923
    %v1956 = vadd.f32 %v1888, %v1924
    %v1957 = vadd.f32 %v1889, %v1925
    %v1958 = vpack.c.bf16 %v1927, %v1926
    %v1959 = vpack.c.bf16 %v1929, %v1928
    %v1960 = vpack.c.bf16 %v1931, %v1930
    %v1961 = vpack.c.bf16 %v1933, %v1932
    %v1962 = vpack.c.bf16 %v1935, %v1934
    %v1963 = vpack.c.bf16 %v1937, %v1936
    %v1964 = vpack.c.bf16 %v1939, %v1938
    %v1965 = vpack.c.bf16 %v1941, %v1940
    %v1966 = vpack.c.bf16 %v1943, %v1942
    %v1967 = vpack.c.bf16 %v1945, %v1944
    %v1968 = vpack.c.bf16 %v1947, %v1946
    %v1969 = vpack.c.bf16 %v1949, %v1948
    %v1970 = vpack.c.bf16 %v1951, %v1950
    %v1971 = vpack.c.bf16 %v1953, %v1952
    %v1972 = vpack.c.bf16 %v1955, %v1954
    %v1973 = vpack.c.bf16 %v1957, %v1956
    %v1990 = vunpack.c.l.b16 %v1958
    %v1991 = vunpack.c.h.b16 %v1958
    %v1992 = vunpack.c.l.b16 %v1959
    %v1993 = vunpack.c.h.b16 %v1959
    %v1994 = vunpack.c.l.b16 %v1960
    %v1995 = vunpack.c.h.b16 %v1960
    %v1996 = vunpack.c.l.b16 %v1961
    %v1997 = vunpack.c.h.b16 %v1961
    %v1998 = vunpack.c.l.b16 %v1962
    %v1999 = vunpack.c.h.b16 %v1962
    %v2000 = vunpack.c.l.b16 %v1963
    %v2001 = vunpack.c.h.b16 %v1963
    %v2002 = vunpack.c.l.b16 %v1964
    %v2003 = vunpack.c.h.b16 %v1964
    %v2004 = vunpack.c.l.b16 %v1965
    %v2005 = vunpack.c.h.b16 %v1965
    %v2006 = vunpack.c.l.b16 %v1966
    %v2007 = vunpack.c.h.b16 %v1966
    %v2008 = vunpack.c.l.b16 %v1967
    %v2009 = vunpack.c.h.b16 %v1967
    %v2010 = vunpack.c.l.b16 %v1968
    %v2011 = vunpack.c.h.b16 %v1968
    %v2012 = vunpack.c.l.b16 %v1969
    %v2013 = vunpack.c.h.b16 %v1969
    %v2014 = vunpack.c.l.b16 %v1970
    %v2015 = vunpack.c.h.b16 %v1970
    %v2016 = vunpack.c.l.b16 %v1971
    %v2017 = vunpack.c.h.b16 %v1971
    %v2018 = vunpack.c.l.b16 %v1972
    %v2019 = vunpack.c.h.b16 %v1972
    %v2020 = vunpack.c.l.b16 %v1973
    %v2021 = vunpack.c.h.b16 %v1973
    %v2022 = vpack.c.b16 %v1990, %v1990
    %v2023 = vpack.c.b16 %v1991, %v1991
    %v2024 = vpack.c.b16 %v1992, %v1992
    %v2025 = vpack.c.b16 %v1993, %v1993
    %v2026 = vpack.c.b16 %v1994, %v1994
    %v2027 = vpack.c.b16 %v1995, %v1995
    %v2028 = vpack.c.b16 %v1996, %v1996
    %v2029 = vpack.c.b16 %v1997, %v1997
    %v2030 = vpack.c.b16 %v1998, %v1998
    %v2031 = vpack.c.b16 %v1999, %v1999
    %v2032 = vpack.c.b16 %v2000, %v2000
    %v2033 = vpack.c.b16 %v2001, %v2001
    %v2034 = vpack.c.b16 %v2002, %v2002
    %v2035 = vpack.c.b16 %v2003, %v2003
    %v2036 = vpack.c.b16 %v2004, %v2004
    %v2037 = vpack.c.b16 %v2005, %v2005
    %v2038 = vpack.c.b16 %v2006, %v2006
    %v2039 = vpack.c.b16 %v2007, %v2007
    %v2040 = vpack.c.b16 %v2008, %v2008
    %v2041 = vpack.c.b16 %v2009, %v2009
    %v2042 = vpack.c.b16 %v2010, %v2010
    %v2043 = vpack.c.b16 %v2011, %v2011
    %v2044 = vpack.c.b16 %v2012, %v2012
    %v2045 = vpack.c.b16 %v2013, %v2013
    %v2046 = vpack.c.b16 %v2014, %v2014
    %v2047 = vpack.c.b16 %v2015, %v2015
    %v2048 = vpack.c.b16 %v2016, %v2016
    %v2049 = vpack.c.b16 %v2017, %v2017
    %v2050 = vpack.c.b16 %v2018, %v2018
    %v2051 = vpack.c.b16 %v2019, %v2019
    %v2052 = vpack.c.b16 %v2020, %v2020
    %v2053 = vpack.c.b16 %v2021, %v2021
    %2086 = vst.msk [vmem:[#allocation2 + $0x200] sm:$0xf] %vm829, %v2022
    %2087 = vst.msk [vmem:[#allocation2 + $0x204] sm:$0xf] %vm829, %v2023
    %2088 = vst.msk [vmem:[#allocation2 + $0x208] sm:$0xf] %vm829, %v2024
    %2089 = vst.msk [vmem:[#allocation2 + $0x20c] sm:$0xf] %vm829, %v2025
    %2090 = vst.msk [vmem:[#allocation2 + $0x210] sm:$0xf] %vm829, %v2026
    %2091 = vst.msk [vmem:[#allocation2 + $0x214] sm:$0xf] %vm829, %v2027
    %2092 = vst.msk [vmem:[#allocation2 + $0x218] sm:$0xf] %vm829, %v2028
    %2093 = vst.msk [vmem:[#allocation2 + $0x21c] sm:$0xf] %vm829, %v2029
    %2094 = vst.msk [vmem:[#allocation2 + $0x220] sm:$0xf] %vm829, %v2030
    %2095 = vst.msk [vmem:[#allocation2 + $0x224] sm:$0xf] %vm829, %v2031
    %2096 = vst.msk [vmem:[#allocation2 + $0x228] sm:$0xf] %vm829, %v2032
    %2097 = vst.msk [vmem:[#allocation2 + $0x22c] sm:$0xf] %vm829, %v2033
    %2098 = vst.msk [vmem:[#allocation2 + $0x230] sm:$0xf] %vm829, %v2034
    %2099 = vst.msk [vmem:[#allocation2 + $0x234] sm:$0xf] %vm829, %v2035
    %2100 = vst.msk [vmem:[#allocation2 + $0x238] sm:$0xf] %vm829, %v2036
    %2101 = vst.msk [vmem:[#allocation2 + $0x23c] sm:$0xf] %vm829, %v2037
    %2102 = vst.msk [vmem:[#allocation2 + $0x240] sm:$0xf] %vm829, %v2038
    %2103 = vst.msk [vmem:[#allocation2 + $0x244] sm:$0xf] %vm829, %v2039
    %2104 = vst.msk [vmem:[#allocation2 + $0x248] sm:$0xf] %vm829, %v2040
    %2105 = vst.msk [vmem:[#allocation2 + $0x24c] sm:$0xf] %vm829, %v2041
    %2106 = vst.msk [vmem:[#allocation2 + $0x250] sm:$0xf] %vm829, %v2042
    %2107 = vst.msk [vmem:[#allocation2 + $0x254] sm:$0xf] %vm829, %v2043
    %2108 = vst.msk [vmem:[#allocation2 + $0x258] sm:$0xf] %vm829, %v2044
    %2109 = vst.msk [vmem:[#allocation2 + $0x25c] sm:$0xf] %vm829, %v2045
    %2110 = vst.msk [vmem:[#allocation2 + $0x260] sm:$0xf] %vm829, %v2046
    %2111 = vst.msk [vmem:[#allocation2 + $0x264] sm:$0xf] %vm829, %v2047
    %2112 = vst.msk [vmem:[#allocation2 + $0x268] sm:$0xf] %vm829, %v2048
    %2113 = vst.msk [vmem:[#allocation2 + $0x26c] sm:$0xf] %vm829, %v2049
    %2114 = vst.msk [vmem:[#allocation2 + $0x270] sm:$0xf] %vm829, %v2050
    %2115 = vst.msk [vmem:[#allocation2 + $0x274] sm:$0xf] %vm829, %v2051
    %2116 = vst.msk [vmem:[#allocation2 + $0x278] sm:$0xf] %vm829, %v2052
    %2117 = vst.msk [vmem:[#allocation2 + $0x27c] sm:$0xf] %vm829, %v2053
    %v2118 = vld [vmem:[#allocation12 + $0x2] sm:$0x1]
    %v2119 = vld [vmem:[#allocation12 + $0x3] sm:$0x1]
    %v2120 = vlaneseq
    %v2121 = vshrl.u32 %v2120, 7
    %v2122 = vsub.s32 0, %v2121
    %v2123 = vrot.slane %v2118, %v2122
    %v2124 = vmul.f32 %v312, %v2123
    %v2125 = vmul.f32 %v317, %v2123
    %v2126 = vmul.f32 %v322, %v2123
    %v2127 = vmul.f32 %v327, %v2123
    %v2128 = vmul.f32 %v332, %v2123
    %v2129 = vmul.f32 %v337, %v2123
    %v2130 = vmul.f32 %v342, %v2123
    %v2131 = vmul.f32 %v347, %v2123
    %v2132 = vmul.f32 %v352, %v2123
    %v2133 = vmul.f32 %v357, %v2123
    %v2134 = vmul.f32 %v362, %v2123
    %v2135 = vmul.f32 %v367, %v2123
    %v2136 = vmul.f32 %v372, %v2123
    %v2137 = vmul.f32 %v377, %v2123
    %v2138 = vmul.f32 %v382, %v2123
    %v2139 = vmul.f32 %v387, %v2123
    %v2140 = vmul.f32 %v392, %v2123
    %v2141 = vmul.f32 %v397, %v2123
    %v2142 = vmul.f32 %v402, %v2123
    %v2143 = vmul.f32 %v407, %v2123
    %v2144 = vmul.f32 %v412, %v2123
    %v2145 = vmul.f32 %v417, %v2123
    %v2146 = vmul.f32 %v422, %v2123
    %v2147 = vmul.f32 %v427, %v2123
    %v2148 = vmul.f32 %v432, %v2123
    %v2149 = vmul.f32 %v437, %v2123
    %v2150 = vmul.f32 %v442, %v2123
    %v2151 = vmul.f32 %v447, %v2123
    %v2152 = vmul.f32 %v452, %v2123
    %v2153 = vmul.f32 %v457, %v2123
    %v2154 = vmul.f32 %v462, %v2123
    %v2155 = vmul.f32 %v467, %v2123
    %v2156 = vlaneseq
    %v2157 = vshrl.u32 %v2156, 7
    %v2158 = vsub.s32 0, %v2157
    %v2159 = vrot.slane %v2119, %v2158
    %v2160 = vmul.f32 %v507, %v2159
    %v2161 = vmul.f32 %v511, %v2159
    %v2162 = vmul.f32 %v515, %v2159
    %v2163 = vmul.f32 %v519, %v2159
    %v2164 = vmul.f32 %v523, %v2159
    %v2165 = vmul.f32 %v527, %v2159
    %v2166 = vmul.f32 %v531, %v2159
    %v2167 = vmul.f32 %v535, %v2159
    %v2168 = vmul.f32 %v539, %v2159
    %v2169 = vmul.f32 %v543, %v2159
    %v2170 = vmul.f32 %v547, %v2159
    %v2171 = vmul.f32 %v551, %v2159
    %v2172 = vmul.f32 %v555, %v2159
    %v2173 = vmul.f32 %v559, %v2159
    %v2174 = vmul.f32 %v563, %v2159
    %v2175 = vmul.f32 %v567, %v2159
    %v2176 = vmul.f32 %v571, %v2159
    %v2177 = vmul.f32 %v575, %v2159
    %v2178 = vmul.f32 %v579, %v2159
    %v2179 = vmul.f32 %v583, %v2159
    %v2180 = vmul.f32 %v587, %v2159
    %v2181 = vmul.f32 %v591, %v2159
    %v2182 = vmul.f32 %v595, %v2159
    %v2183 = vmul.f32 %v599, %v2159
    %v2184 = vmul.f32 %v603, %v2159
    %v2185 = vmul.f32 %v607, %v2159
    %v2186 = vmul.f32 %v611, %v2159
    %v2187 = vmul.f32 %v615, %v2159
    %v2188 = vmul.f32 %v619, %v2159
    %v2189 = vmul.f32 %v623, %v2159
    %v2190 = vmul.f32 %v627, %v2159
    %v2191 = vmul.f32 %v631, %v2159
    %v2192 = vadd.f32 %v2124, %v2160
    %v2193 = vadd.f32 %v2125, %v2161
    %v2194 = vadd.f32 %v2126, %v2162
    %v2195 = vadd.f32 %v2127, %v2163
    %v2196 = vadd.f32 %v2128, %v2164
    %v2197 = vadd.f32 %v2129, %v2165
    %v2198 = vadd.f32 %v2130, %v2166
    %v2199 = vadd.f32 %v2131, %v2167
    %v2200 = vadd.f32 %v2132, %v2168
    %v2201 = vadd.f32 %v2133, %v2169
    %v2202 = vadd.f32 %v2134, %v2170
    %v2203 = vadd.f32 %v2135, %v2171
    %v2204 = vadd.f32 %v2136, %v2172
    %v2205 = vadd.f32 %v2137, %v2173
    %v2206 = vadd.f32 %v2138, %v2174
    %v2207 = vadd.f32 %v2139, %v2175
    %v2208 = vadd.f32 %v2140, %v2176
    %v2209 = vadd.f32 %v2141, %v2177
    %v2210 = vadd.f32 %v2142, %v2178
    %v2211 = vadd.f32 %v2143, %v2179
    %v2212 = vadd.f32 %v2144, %v2180
    %v2213 = vadd.f32 %v2145, %v2181
    %v2214 = vadd.f32 %v2146, %v2182
    %v2215 = vadd.f32 %v2147, %v2183
    %v2216 = vadd.f32 %v2148, %v2184
    %v2217 = vadd.f32 %v2149, %v2185
    %v2218 = vadd.f32 %v2150, %v2186
    %v2219 = vadd.f32 %v2151, %v2187
    %v2220 = vadd.f32 %v2152, %v2188
    %v2221 = vadd.f32 %v2153, %v2189
    %v2222 = vadd.f32 %v2154, %v2190
    %v2223 = vadd.f32 %v2155, %v2191
    %v2224 = vpack.c.bf16 %v2193, %v2192
    %v2225 = vpack.c.bf16 %v2195, %v2194
    %v2226 = vpack.c.bf16 %v2197, %v2196
    %v2227 = vpack.c.bf16 %v2199, %v2198
    %v2228 = vpack.c.bf16 %v2201, %v2200
    %v2229 = vpack.c.bf16 %v2203, %v2202
    %v2230 = vpack.c.bf16 %v2205, %v2204
    %v2231 = vpack.c.bf16 %v2207, %v2206
    %v2232 = vpack.c.bf16 %v2209, %v2208
    %v2233 = vpack.c.bf16 %v2211, %v2210
    %v2234 = vpack.c.bf16 %v2213, %v2212
    %v2235 = vpack.c.bf16 %v2215, %v2214
    %v2236 = vpack.c.bf16 %v2217, %v2216
    %v2237 = vpack.c.bf16 %v2219, %v2218
    %v2238 = vpack.c.bf16 %v2221, %v2220
    %v2239 = vpack.c.bf16 %v2223, %v2222
    %v2256 = vunpack.c.l.b16 %v2224
    %v2257 = vunpack.c.h.b16 %v2224
    %v2258 = vunpack.c.l.b16 %v2225
    %v2259 = vunpack.c.h.b16 %v2225
    %v2260 = vunpack.c.l.b16 %v2226
    %v2261 = vunpack.c.h.b16 %v2226
    %v2262 = vunpack.c.l.b16 %v2227
    %v2263 = vunpack.c.h.b16 %v2227
    %v2264 = vunpack.c.l.b16 %v2228
    %v2265 = vunpack.c.h.b16 %v2228
    %v2266 = vunpack.c.l.b16 %v2229
    %v2267 = vunpack.c.h.b16 %v2229
    %v2268 = vunpack.c.l.b16 %v2230
    %v2269 = vunpack.c.h.b16 %v2230
    %v2270 = vunpack.c.l.b16 %v2231
    %v2271 = vunpack.c.h.b16 %v2231
    %v2272 = vunpack.c.l.b16 %v2232
    %v2273 = vunpack.c.h.b16 %v2232
    %v2274 = vunpack.c.l.b16 %v2233
    %v2275 = vunpack.c.h.b16 %v2233
    %v2276 = vunpack.c.l.b16 %v2234
    %v2277 = vunpack.c.h.b16 %v2234
    %v2278 = vunpack.c.l.b16 %v2235
    %v2279 = vunpack.c.h.b16 %v2235
    %v2280 = vunpack.c.l.b16 %v2236
    %v2281 = vunpack.c.h.b16 %v2236
    %v2282 = vunpack.c.l.b16 %v2237
    %v2283 = vunpack.c.h.b16 %v2237
    %v2284 = vunpack.c.l.b16 %v2238
    %v2285 = vunpack.c.h.b16 %v2238
    %v2286 = vunpack.c.l.b16 %v2239
    %v2287 = vunpack.c.h.b16 %v2239
    %v2288 = vpack.c.b16 %v2256, %v2256
    %v2289 = vpack.c.b16 %v2257, %v2257
    %v2290 = vpack.c.b16 %v2258, %v2258
    %v2291 = vpack.c.b16 %v2259, %v2259
    %v2292 = vpack.c.b16 %v2260, %v2260
    %v2293 = vpack.c.b16 %v2261, %v2261
    %v2294 = vpack.c.b16 %v2262, %v2262
    %v2295 = vpack.c.b16 %v2263, %v2263
    %v2296 = vpack.c.b16 %v2264, %v2264
    %v2297 = vpack.c.b16 %v2265, %v2265
    %v2298 = vpack.c.b16 %v2266, %v2266
    %v2299 = vpack.c.b16 %v2267, %v2267
    %v2300 = vpack.c.b16 %v2268, %v2268
    %v2301 = vpack.c.b16 %v2269, %v2269
    %v2302 = vpack.c.b16 %v2270, %v2270
    %v2303 = vpack.c.b16 %v2271, %v2271
    %v2304 = vpack.c.b16 %v2272, %v2272
    %v2305 = vpack.c.b16 %v2273, %v2273
    %v2306 = vpack.c.b16 %v2274, %v2274
    %v2307 = vpack.c.b16 %v2275, %v2275
    %v2308 = vpack.c.b16 %v2276, %v2276
    %v2309 = vpack.c.b16 %v2277, %v2277
    %v2310 = vpack.c.b16 %v2278, %v2278
    %v2311 = vpack.c.b16 %v2279, %v2279
    %v2312 = vpack.c.b16 %v2280, %v2280
    %v2313 = vpack.c.b16 %v2281, %v2281
    %v2314 = vpack.c.b16 %v2282, %v2282
    %v2315 = vpack.c.b16 %v2283, %v2283
    %v2316 = vpack.c.b16 %v2284, %v2284
    %v2317 = vpack.c.b16 %v2285, %v2285
    %v2318 = vpack.c.b16 %v2286, %v2286
    %v2319 = vpack.c.b16 %v2287, %v2287
    %2320 = vrot.lane.b32.xlu0 %v2288, 96
    %v2321 = vpop.permute.xlu0 %2320
    %2322 = vrot.lane.b32.xlu0 %v2289, 96
    %v2323 = vpop.permute.xlu0 %2322
    %2324 = vrot.lane.b32.xlu0 %v2290, 96
    %v2325 = vpop.permute.xlu0 %2324
    %2326 = vrot.lane.b32.xlu0 %v2291, 96
    %v2327 = vpop.permute.xlu0 %2326
    %2328 = vrot.lane.b32.xlu0 %v2292, 96
    %v2329 = vpop.permute.xlu0 %2328
    %2330 = vrot.lane.b32.xlu0 %v2293, 96
    %v2331 = vpop.permute.xlu0 %2330
    %2332 = vrot.lane.b32.xlu0 %v2294, 96
    %v2333 = vpop.permute.xlu0 %2332
    %2334 = vrot.lane.b32.xlu0 %v2295, 96
    %v2335 = vpop.permute.xlu0 %2334
    %2336 = vrot.lane.b32.xlu0 %v2296, 96
    %v2337 = vpop.permute.xlu0 %2336
    %2338 = vrot.lane.b32.xlu0 %v2297, 96
    %v2339 = vpop.permute.xlu0 %2338
    %2340 = vrot.lane.b32.xlu0 %v2298, 96
    %v2341 = vpop.permute.xlu0 %2340
    %2342 = vrot.lane.b32.xlu0 %v2299, 96
    %v2343 = vpop.permute.xlu0 %2342
    %2344 = vrot.lane.b32.xlu0 %v2300, 96
    %v2345 = vpop.permute.xlu0 %2344
    %2346 = vrot.lane.b32.xlu0 %v2301, 96
    %v2347 = vpop.permute.xlu0 %2346
    %2348 = vrot.lane.b32.xlu0 %v2302, 96
    %v2349 = vpop.permute.xlu0 %2348
    %2350 = vrot.lane.b32.xlu0 %v2303, 96
    %v2351 = vpop.permute.xlu0 %2350
    %2352 = vrot.lane.b32.xlu0 %v2304, 96
    %v2353 = vpop.permute.xlu0 %2352
    %2354 = vrot.lane.b32.xlu0 %v2305, 96
    %v2355 = vpop.permute.xlu0 %2354
    %2356 = vrot.lane.b32.xlu0 %v2306, 96
    %v2357 = vpop.permute.xlu0 %2356
    %2358 = vrot.lane.b32.xlu0 %v2307, 96
    %v2359 = vpop.permute.xlu0 %2358
    %2360 = vrot.lane.b32.xlu0 %v2308, 96
    %v2361 = vpop.permute.xlu0 %2360
    %2362 = vrot.lane.b32.xlu0 %v2309, 96
    %v2363 = vpop.permute.xlu0 %2362
    %2364 = vrot.lane.b32.xlu0 %v2310, 96
    %v2365 = vpop.permute.xlu0 %2364
    %2366 = vrot.lane.b32.xlu0 %v2311, 96
    %v2367 = vpop.permute.xlu0 %2366
    %2368 = vrot.lane.b32.xlu0 %v2312, 96
    %v2369 = vpop.permute.xlu0 %2368
    %2370 = vrot.lane.b32.xlu0 %v2313, 96
    %v2371 = vpop.permute.xlu0 %2370
    %2372 = vrot.lane.b32.xlu0 %v2314, 96
    %v2373 = vpop.permute.xlu0 %2372
    %2374 = vrot.lane.b32.xlu0 %v2315, 96
    %v2375 = vpop.permute.xlu0 %2374
    %2376 = vrot.lane.b32.xlu0 %v2316, 96
    %v2377 = vpop.permute.xlu0 %2376
    %2378 = vrot.lane.b32.xlu0 %v2317, 96
    %v2379 = vpop.permute.xlu0 %2378
    %2380 = vrot.lane.b32.xlu0 %v2318, 96
    %v2381 = vpop.permute.xlu0 %2380
    %2382 = vrot.lane.b32.xlu0 %v2319, 96
    %v2383 = vpop.permute.xlu0 %2382
    %2416 = vst.msk [vmem:[#allocation2 + $0x280] sm:$0xf] %vm829, %v2321
    %2417 = vst.msk [vmem:[#allocation2 + $0x284] sm:$0xf] %vm829, %v2323
    %2418 = vst.msk [vmem:[#allocation2 + $0x288] sm:$0xf] %vm829, %v2325
    %2419 = vst.msk [vmem:[#allocation2 + $0x28c] sm:$0xf] %vm829, %v2327
    %2420 = vst.msk [vmem:[#allocation2 + $0x290] sm:$0xf] %vm829, %v2329
    %2421 = vst.msk [vmem:[#allocation2 + $0x294] sm:$0xf] %vm829, %v2331
    %2422 = vst.msk [vmem:[#allocation2 + $0x298] sm:$0xf] %vm829, %v2333
    %2423 = vst.msk [vmem:[#allocation2 + $0x29c] sm:$0xf] %vm829, %v2335
    %2424 = vst.msk [vmem:[#allocation2 + $0x2a0] sm:$0xf] %vm829, %v2337
    %2425 = vst.msk [vmem:[#allocation2 + $0x2a4] sm:$0xf] %vm829, %v2339
    %2426 = vst.msk [vmem:[#allocation2 + $0x2a8] sm:$0xf] %vm829, %v2341
    %2427 = vst.msk [vmem:[#allocation2 + $0x2ac] sm:$0xf] %vm829, %v2343
    %2428 = vst.msk [vmem:[#allocation2 + $0x2b0] sm:$0xf] %vm829, %v2345
    %2429 = vst.msk [vmem:[#allocation2 + $0x2b4] sm:$0xf] %vm829, %v2347
    %2430 = vst.msk [vmem:[#allocation2 + $0x2b8] sm:$0xf] %vm829, %v2349
    %2431 = vst.msk [vmem:[#allocation2 + $0x2bc] sm:$0xf] %vm829, %v2351
    %2432 = vst.msk [vmem:[#allocation2 + $0x2c0] sm:$0xf] %vm829, %v2353
    %2433 = vst.msk [vmem:[#allocation2 + $0x2c4] sm:$0xf] %vm829, %v2355
    %2434 = vst.msk [vmem:[#allocation2 + $0x2c8] sm:$0xf] %vm829, %v2357
    %2435 = vst.msk [vmem:[#allocation2 + $0x2cc] sm:$0xf] %vm829, %v2359
    %2436 = vst.msk [vmem:[#allocation2 + $0x2d0] sm:$0xf] %vm829, %v2361
    %2437 = vst.msk [vmem:[#allocation2 + $0x2d4] sm:$0xf] %vm829, %v2363
    %2438 = vst.msk [vmem:[#allocation2 + $0x2d8] sm:$0xf] %vm829, %v2365
    %2439 = vst.msk [vmem:[#allocation2 + $0x2dc] sm:$0xf] %vm829, %v2367
    %2440 = vst.msk [vmem:[#allocation2 + $0x2e0] sm:$0xf] %vm829, %v2369
    %2441 = vst.msk [vmem:[#allocation2 + $0x2e4] sm:$0xf] %vm829, %v2371
    %2442 = vst.msk [vmem:[#allocation2 + $0x2e8] sm:$0xf] %vm829, %v2373
    %2443 = vst.msk [vmem:[#allocation2 + $0x2ec] sm:$0xf] %vm829, %v2375
    %2444 = vst.msk [vmem:[#allocation2 + $0x2f0] sm:$0xf] %vm829, %v2377
    %2445 = vst.msk [vmem:[#allocation2 + $0x2f4] sm:$0xf] %vm829, %v2379
    %2446 = vst.msk [vmem:[#allocation2 + $0x2f8] sm:$0xf] %vm829, %v2381
    %2447 = vst.msk [vmem:[#allocation2 + $0x2fc] sm:$0xf] %vm829, %v2383
    %v2448 = vld [vmem:[#allocation12 + $0x2] sm:$0x1]
    %v2449 = vld [vmem:[#allocation12 + $0x3] sm:$0x1]
    %v2450 = vlaneseq
    %v2451 = vshrl.u32 %v2450, 7
    %v2452 = vsub.s32 0, %v2451
    %v2453 = vrot.slane %v2448, %v2452
    %v2454 = vmul.f32 %v312, %v2453
    %v2455 = vmul.f32 %v317, %v2453
    %v2456 = vmul.f32 %v322, %v2453
    %v2457 = vmul.f32 %v327, %v2453
    %v2458 = vmul.f32 %v332, %v2453
    %v2459 = vmul.f32 %v337, %v2453
    %v2460 = vmul.f32 %v342, %v2453
    %v2461 = vmul.f32 %v347, %v2453
    %v2462 = vmul.f32 %v352, %v2453
    %v2463 = vmul.f32 %v357, %v2453
    %v2464 = vmul.f32 %v362, %v2453
    %v2465 = vmul.f32 %v367, %v2453
    %v2466 = vmul.f32 %v372, %v2453
    %v2467 = vmul.f32 %v377, %v2453
    %v2468 = vmul.f32 %v382, %v2453
    %v2469 = vmul.f32 %v387, %v2453
    %v2470 = vmul.f32 %v392, %v2453
    %v2471 = vmul.f32 %v397, %v2453
    %v2472 = vmul.f32 %v402, %v2453
    %v2473 = vmul.f32 %v407, %v2453
    %v2474 = vmul.f32 %v412, %v2453
    %v2475 = vmul.f32 %v417, %v2453
    %v2476 = vmul.f32 %v422, %v2453
    %v2477 = vmul.f32 %v427, %v2453
    %v2478 = vmul.f32 %v432, %v2453
    %v2479 = vmul.f32 %v437, %v2453
    %v2480 = vmul.f32 %v442, %v2453
    %v2481 = vmul.f32 %v447, %v2453
    %v2482 = vmul.f32 %v452, %v2453
    %v2483 = vmul.f32 %v457, %v2453
    %v2484 = vmul.f32 %v462, %v2453
    %v2485 = vmul.f32 %v467, %v2453
    %v2486 = vlaneseq
    %v2487 = vshrl.u32 %v2486, 7
    %v2488 = vsub.s32 0, %v2487
    %v2489 = vrot.slane %v2449, %v2488
    %v2490 = vmul.f32 %v507, %v2489
    %v2491 = vmul.f32 %v511, %v2489
    %v2492 = vmul.f32 %v515, %v2489
    %v2493 = vmul.f32 %v519, %v2489
    %v2494 = vmul.f32 %v523, %v2489
    %v2495 = vmul.f32 %v527, %v2489
    %v2496 = vmul.f32 %v531, %v2489
    %v2497 = vmul.f32 %v535, %v2489
    %v2498 = vmul.f32 %v539, %v2489
    %v2499 = vmul.f32 %v543, %v2489
    %v2500 = vmul.f32 %v547, %v2489
    %v2501 = vmul.f32 %v551, %v2489
    %v2502 = vmul.f32 %v555, %v2489
    %v2503 = vmul.f32 %v559, %v2489
    %v2504 = vmul.f32 %v563, %v2489
    %v2505 = vmul.f32 %v567, %v2489
    %v2506 = vmul.f32 %v571, %v2489
    %v2507 = vmul.f32 %v575, %v2489
    %v2508 = vmul.f32 %v579, %v2489
    %v2509 = vmul.f32 %v583, %v2489
    %v2510 = vmul.f32 %v587, %v2489
    %v2511 = vmul.f32 %v591, %v2489
    %v2512 = vmul.f32 %v595, %v2489
    %v2513 = vmul.f32 %v599, %v2489
    %v2514 = vmul.f32 %v603, %v2489
    %v2515 = vmul.f32 %v607, %v2489
    %v2516 = vmul.f32 %v611, %v2489
    %v2517 = vmul.f32 %v615, %v2489
    %v2518 = vmul.f32 %v619, %v2489
    %v2519 = vmul.f32 %v623, %v2489
    %v2520 = vmul.f32 %v627, %v2489
    %v2521 = vmul.f32 %v631, %v2489
    %v2522 = vadd.f32 %v2454, %v2490
    %v2523 = vadd.f32 %v2455, %v2491
    %v2524 = vadd.f32 %v2456, %v2492
    %v2525 = vadd.f32 %v2457, %v2493
    %v2526 = vadd.f32 %v2458, %v2494
    %v2527 = vadd.f32 %v2459, %v2495
    %v2528 = vadd.f32 %v2460, %v2496
    %v2529 = vadd.f32 %v2461, %v2497
    %v2530 = vadd.f32 %v2462, %v2498
    %v2531 = vadd.f32 %v2463, %v2499
    %v2532 = vadd.f32 %v2464, %v2500
    %v2533 = vadd.f32 %v2465, %v2501
    %v2534 = vadd.f32 %v2466, %v2502
    %v2535 = vadd.f32 %v2467, %v2503
    %v2536 = vadd.f32 %v2468, %v2504
    %v2537 = vadd.f32 %v2469, %v2505
    %v2538 = vadd.f32 %v2470, %v2506
    %v2539 = vadd.f32 %v2471, %v2507
    %v2540 = vadd.f32 %v2472, %v2508
    %v2541 = vadd.f32 %v2473, %v2509
    %v2542 = vadd.f32 %v2474, %v2510
    %v2543 = vadd.f32 %v2475, %v2511
    %v2544 = vadd.f32 %v2476, %v2512
    %v2545 = vadd.f32 %v2477, %v2513
    %v2546 = vadd.f32 %v2478, %v2514
    %v2547 = vadd.f32 %v2479, %v2515
    %v2548 = vadd.f32 %v2480, %v2516
    %v2549 = vadd.f32 %v2481, %v2517
    %v2550 = vadd.f32 %v2482, %v2518
    %v2551 = vadd.f32 %v2483, %v2519
    %v2552 = vadd.f32 %v2484, %v2520
    %v2553 = vadd.f32 %v2485, %v2521
    %v2554 = vpack.c.bf16 %v2523, %v2522
    %v2555 = vpack.c.bf16 %v2525, %v2524
    %v2556 = vpack.c.bf16 %v2527, %v2526
    %v2557 = vpack.c.bf16 %v2529, %v2528
    %v2558 = vpack.c.bf16 %v2531, %v2530
    %v2559 = vpack.c.bf16 %v2533, %v2532
    %v2560 = vpack.c.bf16 %v2535, %v2534
    %v2561 = vpack.c.bf16 %v2537, %v2536
    %v2562 = vpack.c.bf16 %v2539, %v2538
    %v2563 = vpack.c.bf16 %v2541, %v2540
    %v2564 = vpack.c.bf16 %v2543, %v2542
    %v2565 = vpack.c.bf16 %v2545, %v2544
    %v2566 = vpack.c.bf16 %v2547, %v2546
    %v2567 = vpack.c.bf16 %v2549, %v2548
    %v2568 = vpack.c.bf16 %v2551, %v2550
    %v2569 = vpack.c.bf16 %v2553, %v2552
    %v2586 = vunpack.c.l.b16 %v2554
    %v2587 = vunpack.c.h.b16 %v2554
    %v2588 = vunpack.c.l.b16 %v2555
    %v2589 = vunpack.c.h.b16 %v2555
    %v2590 = vunpack.c.l.b16 %v2556
    %v2591 = vunpack.c.h.b16 %v2556
    %v2592 = vunpack.c.l.b16 %v2557
    %v2593 = vunpack.c.h.b16 %v2557
    %v2594 = vunpack.c.l.b16 %v2558
    %v2595 = vunpack.c.h.b16 %v2558
    %v2596 = vunpack.c.l.b16 %v2559
    %v2597 = vunpack.c.h.b16 %v2559
    %v2598 = vunpack.c.l.b16 %v2560
    %v2599 = vunpack.c.h.b16 %v2560
    %v2600 = vunpack.c.l.b16 %v2561
    %v2601 = vunpack.c.h.b16 %v2561
    %v2602 = vunpack.c.l.b16 %v2562
    %v2603 = vunpack.c.h.b16 %v2562
    %v2604 = vunpack.c.l.b16 %v2563
    %v2605 = vunpack.c.h.b16 %v2563
    %v2606 = vunpack.c.l.b16 %v2564
    %v2607 = vunpack.c.h.b16 %v2564
    %v2608 = vunpack.c.l.b16 %v2565
    %v2609 = vunpack.c.h.b16 %v2565
    %v2610 = vunpack.c.l.b16 %v2566
    %v2611 = vunpack.c.h.b16 %v2566
    %v2612 = vunpack.c.l.b16 %v2567
    %v2613 = vunpack.c.h.b16 %v2567
    %v2614 = vunpack.c.l.b16 %v2568
    %v2615 = vunpack.c.h.b16 %v2568
    %v2616 = vunpack.c.l.b16 %v2569
    %v2617 = vunpack.c.h.b16 %v2569
    %v2618 = vpack.c.b16 %v2586, %v2586
    %v2619 = vpack.c.b16 %v2587, %v2587
    %v2620 = vpack.c.b16 %v2588, %v2588
    %v2621 = vpack.c.b16 %v2589, %v2589
    %v2622 = vpack.c.b16 %v2590, %v2590
    %v2623 = vpack.c.b16 %v2591, %v2591
    %v2624 = vpack.c.b16 %v2592, %v2592
    %v2625 = vpack.c.b16 %v2593, %v2593
    %v2626 = vpack.c.b16 %v2594, %v2594
    %v2627 = vpack.c.b16 %v2595, %v2595
    %v2628 = vpack.c.b16 %v2596, %v2596
    %v2629 = vpack.c.b16 %v2597, %v2597
    %v2630 = vpack.c.b16 %v2598, %v2598
    %v2631 = vpack.c.b16 %v2599, %v2599
    %v2632 = vpack.c.b16 %v2600, %v2600
    %v2633 = vpack.c.b16 %v2601, %v2601
    %v2634 = vpack.c.b16 %v2602, %v2602
    %v2635 = vpack.c.b16 %v2603, %v2603
    %v2636 = vpack.c.b16 %v2604, %v2604
    %v2637 = vpack.c.b16 %v2605, %v2605
    %v2638 = vpack.c.b16 %v2606, %v2606
    %v2639 = vpack.c.b16 %v2607, %v2607
    %v2640 = vpack.c.b16 %v2608, %v2608
    %v2641 = vpack.c.b16 %v2609, %v2609
    %v2642 = vpack.c.b16 %v2610, %v2610
    %v2643 = vpack.c.b16 %v2611, %v2611
    %v2644 = vpack.c.b16 %v2612, %v2612
    %v2645 = vpack.c.b16 %v2613, %v2613
    %v2646 = vpack.c.b16 %v2614, %v2614
    %v2647 = vpack.c.b16 %v2615, %v2615
    %v2648 = vpack.c.b16 %v2616, %v2616
    %v2649 = vpack.c.b16 %v2617, %v2617
    %2650 = vrot.lane.b32.xlu0 %v2618, 64
    %v2651 = vpop.permute.xlu0 %2650
    %2652 = vrot.lane.b32.xlu0 %v2619, 64
    %v2653 = vpop.permute.xlu0 %2652
    %2654 = vrot.lane.b32.xlu0 %v2620, 64
    %v2655 = vpop.permute.xlu0 %2654
    %2656 = vrot.lane.b32.xlu0 %v2621, 64
    %v2657 = vpop.permute.xlu0 %2656
    %2658 = vrot.lane.b32.xlu0 %v2622, 64
    %v2659 = vpop.permute.xlu0 %2658
    %2660 = vrot.lane.b32.xlu0 %v2623, 64
    %v2661 = vpop.permute.xlu0 %2660
    %2662 = vrot.lane.b32.xlu0 %v2624, 64
    %v2663 = vpop.permute.xlu0 %2662
    %2664 = vrot.lane.b32.xlu0 %v2625, 64
    %v2665 = vpop.permute.xlu0 %2664
    %2666 = vrot.lane.b32.xlu0 %v2626, 64
    %v2667 = vpop.permute.xlu0 %2666
    %2668 = vrot.lane.b32.xlu0 %v2627, 64
    %v2669 = vpop.permute.xlu0 %2668
    %2670 = vrot.lane.b32.xlu0 %v2628, 64
    %v2671 = vpop.permute.xlu0 %2670
    %2672 = vrot.lane.b32.xlu0 %v2629, 64
    %v2673 = vpop.permute.xlu0 %2672
    %2674 = vrot.lane.b32.xlu0 %v2630, 64
    %v2675 = vpop.permute.xlu0 %2674
    %2676 = vrot.lane.b32.xlu0 %v2631, 64
    %v2677 = vpop.permute.xlu0 %2676
    %2678 = vrot.lane.b32.xlu0 %v2632, 64
    %v2679 = vpop.permute.xlu0 %2678
    %2680 = vrot.lane.b32.xlu0 %v2633, 64
    %v2681 = vpop.permute.xlu0 %2680
    %2682 = vrot.lane.b32.xlu0 %v2634, 64
    %v2683 = vpop.permute.xlu0 %2682
    %2684 = vrot.lane.b32.xlu0 %v2635, 64
    %v2685 = vpop.permute.xlu0 %2684
    %2686 = vrot.lane.b32.xlu0 %v2636, 64
    %v2687 = vpop.permute.xlu0 %2686
    %2688 = vrot.lane.b32.xlu0 %v2637, 64
    %v2689 = vpop.permute.xlu0 %2688
    %2690 = vrot.lane.b32.xlu0 %v2638, 64
    %v2691 = vpop.permute.xlu0 %2690
    %2692 = vrot.lane.b32.xlu0 %v2639, 64
    %v2693 = vpop.permute.xlu0 %2692
    %2694 = vrot.lane.b32.xlu0 %v2640, 64
    %v2695 = vpop.permute.xlu0 %2694
    %2696 = vrot.lane.b32.xlu0 %v2641, 64
    %v2697 = vpop.permute.xlu0 %2696
    %2698 = vrot.lane.b32.xlu0 %v2642, 64
    %v2699 = vpop.permute.xlu0 %2698
    %2700 = vrot.lane.b32.xlu0 %v2643, 64
    %v2701 = vpop.permute.xlu0 %2700
    %2702 = vrot.lane.b32.xlu0 %v2644, 64
    %v2703 = vpop.permute.xlu0 %2702
    %2704 = vrot.lane.b32.xlu0 %v2645, 64
    %v2705 = vpop.permute.xlu0 %2704
    %2706 = vrot.lane.b32.xlu0 %v2646, 64
    %v2707 = vpop.permute.xlu0 %2706
    %2708 = vrot.lane.b32.xlu0 %v2647, 64
    %v2709 = vpop.permute.xlu0 %2708
    %2710 = vrot.lane.b32.xlu0 %v2648, 64
    %v2711 = vpop.permute.xlu0 %2710
    %2712 = vrot.lane.b32.xlu0 %v2649, 64
    %v2713 = vpop.permute.xlu0 %2712
    %2746 = vst.msk [vmem:[#allocation2 + $0x300] sm:$0xf] %vm829, %v2651
    %2747 = vst.msk [vmem:[#allocation2 + $0x304] sm:$0xf] %vm829, %v2653
    %2748 = vst.msk [vmem:[#allocation2 + $0x308] sm:$0xf] %vm829, %v2655
    %2749 = vst.msk [vmem:[#allocation2 + $0x30c] sm:$0xf] %vm829, %v2657
    %2750 = vst.msk [vmem:[#allocation2 + $0x310] sm:$0xf] %vm829, %v2659
    %2751 = vst.msk [vmem:[#allocation2 + $0x314] sm:$0xf] %vm829, %v2661
    %2752 = vst.msk [vmem:[#allocation2 + $0x318] sm:$0xf] %vm829, %v2663
    %2753 = vst.msk [vmem:[#allocation2 + $0x31c] sm:$0xf] %vm829, %v2665
    %2754 = vst.msk [vmem:[#allocation2 + $0x320] sm:$0xf] %vm829, %v2667
    %2755 = vst.msk [vmem:[#allocation2 + $0x324] sm:$0xf] %vm829, %v2669
    %2756 = vst.msk [vmem:[#allocation2 + $0x328] sm:$0xf] %vm829, %v2671
    %2757 = vst.msk [vmem:[#allocation2 + $0x32c] sm:$0xf] %vm829, %v2673
    %2758 = vst.msk [vmem:[#allocation2 + $0x330] sm:$0xf] %vm829, %v2675
    %2759 = vst.msk [vmem:[#allocation2 + $0x334] sm:$0xf] %vm829, %v2677
    %2760 = vst.msk [vmem:[#allocation2 + $0x338] sm:$0xf] %vm829, %v2679
    %2761 = vst.msk [vmem:[#allocation2 + $0x33c] sm:$0xf] %vm829, %v2681
    %2762 = vst.msk [vmem:[#allocation2 + $0x340] sm:$0xf] %vm829, %v2683
    %2763 = vst.msk [vmem:[#allocation2 + $0x344] sm:$0xf] %vm829, %v2685
    %2764 = vst.msk [vmem:[#allocation2 + $0x348] sm:$0xf] %vm829, %v2687
    %2765 = vst.msk [vmem:[#allocation2 + $0x34c] sm:$0xf] %vm829, %v2689
    %2766 = vst.msk [vmem:[#allocation2 + $0x350] sm:$0xf] %vm829, %v2691
    %2767 = vst.msk [vmem:[#allocation2 + $0x354] sm:$0xf] %vm829, %v2693
    %2768 = vst.msk [vmem:[#allocation2 + $0x358] sm:$0xf] %vm829, %v2695
    %2769 = vst.msk [vmem:[#allocation2 + $0x35c] sm:$0xf] %vm829, %v2697
    %2770 = vst.msk [vmem:[#allocation2 + $0x360] sm:$0xf] %vm829, %v2699
    %2771 = vst.msk [vmem:[#allocation2 + $0x364] sm:$0xf] %vm829, %v2701
    %2772 = vst.msk [vmem:[#allocation2 + $0x368] sm:$0xf] %vm829, %v2703
    %2773 = vst.msk [vmem:[#allocation2 + $0x36c] sm:$0xf] %vm829, %v2705
    %2774 = vst.msk [vmem:[#allocation2 + $0x370] sm:$0xf] %vm829, %v2707
    %2775 = vst.msk [vmem:[#allocation2 + $0x374] sm:$0xf] %vm829, %v2709
    %2776 = vst.msk [vmem:[#allocation2 + $0x378] sm:$0xf] %vm829, %v2711
    %2777 = vst.msk [vmem:[#allocation2 + $0x37c] sm:$0xf] %vm829, %v2713
    %v2778 = vld [vmem:[%s9] sm:$0xff]
    %v2779 = vld [vmem:[%s9 + $0x8] sm:$0xff]
    %v2780 = vld [vmem:[%s9 + $0x10] sm:$0xff]
    %v2781 = vld [vmem:[%s9 + $0x18] sm:$0xff]
    %v2782 = vld [vmem:[%s9 + $0x20] sm:$0xff]
    %v2783 = vld [vmem:[%s9 + $0x28] sm:$0xff]
    %v2784 = vld [vmem:[%s9 + $0x30] sm:$0xff]
    %v2785 = vld [vmem:[%s9 + $0x38] sm:$0xff]
    %v2786 = vld [vmem:[%s9 + $0x40] sm:$0xff]
    %v2787 = vld [vmem:[%s9 + $0x48] sm:$0xff]
    %v2788 = vld [vmem:[%s9 + $0x50] sm:$0xff]
    %v2789 = vld [vmem:[%s9 + $0x58] sm:$0xff]
    %v2790 = vld [vmem:[%s9 + $0x60] sm:$0xff]
    %v2791 = vld [vmem:[%s9 + $0x68] sm:$0xff]
    %v2792 = vld [vmem:[%s9 + $0x70] sm:$0xff]
    %v2793 = vld [vmem:[%s9 + $0x78] sm:$0xff]
    %v2794 = vld [vmem:[%s9 + $0x80] sm:$0xff]
    %v2795 = vld [vmem:[%s9 + $0x88] sm:$0xff]
    %v2796 = vld [vmem:[%s9 + $0x90] sm:$0xff]
    %v2797 = vld [vmem:[%s9 + $0x98] sm:$0xff]
    %v2798 = vld [vmem:[%s9 + $0xa0] sm:$0xff]
    %v2799 = vld [vmem:[%s9 + $0xa8] sm:$0xff]
    %v2800 = vld [vmem:[%s9 + $0xb0] sm:$0xff]
    %v2801 = vld [vmem:[%s9 + $0xb8] sm:$0xff]
    %v2802 = vld [vmem:[%s9 + $0xc0] sm:$0xff]
    %v2803 = vld [vmem:[%s9 + $0xc8] sm:$0xff]
    %v2804 = vld [vmem:[%s9 + $0xd0] sm:$0xff]
    %v2805 = vld [vmem:[%s9 + $0xd8] sm:$0xff]
    %v2806 = vld [vmem:[%s9 + $0xe0] sm:$0xff]
    %v2807 = vld [vmem:[%s9 + $0xe8] sm:$0xff]
    %v2808 = vld [vmem:[%s9 + $0xf0] sm:$0xff]
    %v2809 = vld [vmem:[%s9 + $0xf8] sm:$0xff]
    %v2810 = vld [vmem:[%s9 + $0x100] sm:$0xff]
    %v2811 = vld [vmem:[%s9 + $0x108] sm:$0xff]
    %v2812 = vld [vmem:[%s9 + $0x110] sm:$0xff]
    %v2813 = vld [vmem:[%s9 + $0x118] sm:$0xff]
    %v2814 = vld [vmem:[%s9 + $0x120] sm:$0xff]
    %v2815 = vld [vmem:[%s9 + $0x128] sm:$0xff]
    %v2816 = vld [vmem:[%s9 + $0x130] sm:$0xff]
    %v2817 = vld [vmem:[%s9 + $0x138] sm:$0xff]
    %v2818 = vld [vmem:[%s9 + $0x140] sm:$0xff]
    %v2819 = vld [vmem:[%s9 + $0x148] sm:$0xff]
    %v2820 = vld [vmem:[%s9 + $0x150] sm:$0xff]
    %v2821 = vld [vmem:[%s9 + $0x158] sm:$0xff]
    %v2822 = vld [vmem:[%s9 + $0x160] sm:$0xff]
    %v2823 = vld [vmem:[%s9 + $0x168] sm:$0xff]
    %v2824 = vld [vmem:[%s9 + $0x170] sm:$0xff]
    %v2825 = vld [vmem:[%s9 + $0x178] sm:$0xff]
    %v2826 = vld [vmem:[%s9 + $0x180] sm:$0xff]
    %v2827 = vld [vmem:[%s9 + $0x188] sm:$0xff]
    %v2828 = vld [vmem:[%s9 + $0x190] sm:$0xff]
    %v2829 = vld [vmem:[%s9 + $0x198] sm:$0xff]
    %v2830 = vld [vmem:[%s9 + $0x1a0] sm:$0xff]
    %v2831 = vld [vmem:[%s9 + $0x1a8] sm:$0xff]
    %v2832 = vld [vmem:[%s9 + $0x1b0] sm:$0xff]
    %v2833 = vld [vmem:[%s9 + $0x1b8] sm:$0xff]
    %v2834 = vld [vmem:[%s9 + $0x1c0] sm:$0xff]
    %v2835 = vld [vmem:[%s9 + $0x1c8] sm:$0xff]
    %v2836 = vld [vmem:[%s9 + $0x1d0] sm:$0xff]
    %v2837 = vld [vmem:[%s9 + $0x1d8] sm:$0xff]
    %v2838 = vld [vmem:[%s9 + $0x1e0] sm:$0xff]
    %v2839 = vld [vmem:[%s9 + $0x1e8] sm:$0xff]
    %v2840 = vld [vmem:[%s9 + $0x1f0] sm:$0xff]
    %v2841 = vld [vmem:[%s9 + $0x1f8] sm:$0xff]
    %v2842 = vld [vmem:[%s9 + $0x200] sm:$0xff]
    %v2843 = vld [vmem:[%s9 + $0x208] sm:$0xff]
    %v2844 = vld [vmem:[%s9 + $0x210] sm:$0xff]
    %v2845 = vld [vmem:[%s9 + $0x218] sm:$0xff]
    %v2846 = vld [vmem:[%s9 + $0x220] sm:$0xff]
    %v2847 = vld [vmem:[%s9 + $0x228] sm:$0xff]
    %v2848 = vld [vmem:[%s9 + $0x230] sm:$0xff]
    %v2849 = vld [vmem:[%s9 + $0x238] sm:$0xff]
    %v2850 = vld [vmem:[%s9 + $0x240] sm:$0xff]
    %v2851 = vld [vmem:[%s9 + $0x248] sm:$0xff]
    %v2852 = vld [vmem:[%s9 + $0x250] sm:$0xff]
    %v2853 = vld [vmem:[%s9 + $0x258] sm:$0xff]
    %v2854 = vld [vmem:[%s9 + $0x260] sm:$0xff]
    %v2855 = vld [vmem:[%s9 + $0x268] sm:$0xff]
    %v2856 = vld [vmem:[%s9 + $0x270] sm:$0xff]
    %v2857 = vld [vmem:[%s9 + $0x278] sm:$0xff]
    %v2858 = vld [vmem:[%s9 + $0x280] sm:$0xff]
    %v2859 = vld [vmem:[%s9 + $0x288] sm:$0xff]
    %v2860 = vld [vmem:[%s9 + $0x290] sm:$0xff]
    %v2861 = vld [vmem:[%s9 + $0x298] sm:$0xff]
    %v2862 = vld [vmem:[%s9 + $0x2a0] sm:$0xff]
    %v2863 = vld [vmem:[%s9 + $0x2a8] sm:$0xff]
    %v2864 = vld [vmem:[%s9 + $0x2b0] sm:$0xff]
    %v2865 = vld [vmem:[%s9 + $0x2b8] sm:$0xff]
    %v2866 = vld [vmem:[%s9 + $0x2c0] sm:$0xff]
    %v2867 = vld [vmem:[%s9 + $0x2c8] sm:$0xff]
    %v2868 = vld [vmem:[%s9 + $0x2d0] sm:$0xff]
    %v2869 = vld [vmem:[%s9 + $0x2d8] sm:$0xff]
    %v2870 = vld [vmem:[%s9 + $0x2e0] sm:$0xff]
    %v2871 = vld [vmem:[%s9 + $0x2e8] sm:$0xff]
    %v2872 = vld [vmem:[%s9 + $0x2f0] sm:$0xff]
    %v2873 = vld [vmem:[%s9 + $0x2f8] sm:$0xff]
    %v2874 = vld [vmem:[%s9 + $0x300] sm:$0xff]
    %v2875 = vld [vmem:[%s9 + $0x308] sm:$0xff]
    %v2876 = vld [vmem:[%s9 + $0x310] sm:$0xff]
    %v2877 = vld [vmem:[%s9 + $0x318] sm:$0xff]
    %v2878 = vld [vmem:[%s9 + $0x320] sm:$0xff]
    %v2879 = vld [vmem:[%s9 + $0x328] sm:$0xff]
    %v2880 = vld [vmem:[%s9 + $0x330] sm:$0xff]
    %v2881 = vld [vmem:[%s9 + $0x338] sm:$0xff]
    %v2882 = vld [vmem:[%s9 + $0x340] sm:$0xff]
    %v2883 = vld [vmem:[%s9 + $0x348] sm:$0xff]
    %v2884 = vld [vmem:[%s9 + $0x350] sm:$0xff]
    %v2885 = vld [vmem:[%s9 + $0x358] sm:$0xff]
    %v2886 = vld [vmem:[%s9 + $0x360] sm:$0xff]
    %v2887 = vld [vmem:[%s9 + $0x368] sm:$0xff]
    %v2888 = vld [vmem:[%s9 + $0x370] sm:$0xff]
    %v2889 = vld [vmem:[%s9 + $0x378] sm:$0xff]
    %v2890 = vld [vmem:[#allocation2] sm:$0xf]
    %v2891 = vld [vmem:[#allocation2 + $0x4] sm:$0xf]
    %v2892 = vld [vmem:[#allocation2 + $0x8] sm:$0xf]
    %v2893 = vld [vmem:[#allocation2 + $0xc] sm:$0xf]
    %v2894 = vld [vmem:[#allocation2 + $0x10] sm:$0xf]
    %v2895 = vld [vmem:[#allocation2 + $0x14] sm:$0xf]
    %v2896 = vld [vmem:[#allocation2 + $0x18] sm:$0xf]
    %v2897 = vld [vmem:[#allocation2 + $0x1c] sm:$0xf]
    %v2898 = vld [vmem:[#allocation2 + $0x20] sm:$0xf]
    %v2899 = vld [vmem:[#allocation2 + $0x24] sm:$0xf]
    %v2900 = vld [vmem:[#allocation2 + $0x28] sm:$0xf]
    %v2901 = vld [vmem:[#allocation2 + $0x2c] sm:$0xf]
    %v2902 = vld [vmem:[#allocation2 + $0x30] sm:$0xf]
    %v2903 = vld [vmem:[#allocation2 + $0x34] sm:$0xf]
    %v2904 = vld [vmem:[#allocation2 + $0x38] sm:$0xf]
    %v2905 = vld [vmem:[#allocation2 + $0x3c] sm:$0xf]
    %v2906 = vld [vmem:[#allocation2 + $0x40] sm:$0xf]
    %v2907 = vld [vmem:[#allocation2 + $0x44] sm:$0xf]
    %v2908 = vld [vmem:[#allocation2 + $0x48] sm:$0xf]
    %v2909 = vld [vmem:[#allocation2 + $0x4c] sm:$0xf]
    %v2910 = vld [vmem:[#allocation2 + $0x50] sm:$0xf]
    %v2911 = vld [vmem:[#allocation2 + $0x54] sm:$0xf]
    %v2912 = vld [vmem:[#allocation2 + $0x58] sm:$0xf]
    %v2913 = vld [vmem:[#allocation2 + $0x5c] sm:$0xf]
    %v2914 = vld [vmem:[#allocation2 + $0x60] sm:$0xf]
    %v2915 = vld [vmem:[#allocation2 + $0x64] sm:$0xf]
    %v2916 = vld [vmem:[#allocation2 + $0x68] sm:$0xf]
    %v2917 = vld [vmem:[#allocation2 + $0x6c] sm:$0xf]
    %v2918 = vld [vmem:[#allocation2 + $0x70] sm:$0xf]
    %v2919 = vld [vmem:[#allocation2 + $0x74] sm:$0xf]
    %v2920 = vld [vmem:[#allocation2 + $0x78] sm:$0xf]
    %v2921 = vld [vmem:[#allocation2 + $0x7c] sm:$0xf]
    %v2922 = vld [vmem:[#allocation2 + $0x80] sm:$0xf]
    %v2923 = vld [vmem:[#allocation2 + $0x84] sm:$0xf]
    %v2924 = vld [vmem:[#allocation2 + $0x88] sm:$0xf]
    %v2925 = vld [vmem:[#allocation2 + $0x8c] sm:$0xf]
    %v2926 = vld [vmem:[#allocation2 + $0x90] sm:$0xf]
    %v2927 = vld [vmem:[#allocation2 + $0x94] sm:$0xf]
    %v2928 = vld [vmem:[#allocation2 + $0x98] sm:$0xf]
    %v2929 = vld [vmem:[#allocation2 + $0x9c] sm:$0xf]
    %v2930 = vld [vmem:[#allocation2 + $0xa0] sm:$0xf]
    %v2931 = vld [vmem:[#allocation2 + $0xa4] sm:$0xf]
    %v2932 = vld [vmem:[#allocation2 + $0xa8] sm:$0xf]
    %v2933 = vld [vmem:[#allocation2 + $0xac] sm:$0xf]
    %v2934 = vld [vmem:[#allocation2 + $0xb0] sm:$0xf]
    %v2935 = vld [vmem:[#allocation2 + $0xb4] sm:$0xf]
    %v2936 = vld [vmem:[#allocation2 + $0xb8] sm:$0xf]
    %v2937 = vld [vmem:[#allocation2 + $0xbc] sm:$0xf]
    %v2938 = vld [vmem:[#allocation2 + $0xc0] sm:$0xf]
    %v2939 = vld [vmem:[#allocation2 + $0xc4] sm:$0xf]
    %v2940 = vld [vmem:[#allocation2 + $0xc8] sm:$0xf]
    %v2941 = vld [vmem:[#allocation2 + $0xcc] sm:$0xf]
    %v2942 = vld [vmem:[#allocation2 + $0xd0] sm:$0xf]
    %v2943 = vld [vmem:[#allocation2 + $0xd4] sm:$0xf]
    %v2944 = vld [vmem:[#allocation2 + $0xd8] sm:$0xf]
    %v2945 = vld [vmem:[#allocation2 + $0xdc] sm:$0xf]
    %v2946 = vld [vmem:[#allocation2 + $0xe0] sm:$0xf]
    %v2947 = vld [vmem:[#allocation2 + $0xe4] sm:$0xf]
    %v2948 = vld [vmem:[#allocation2 + $0xe8] sm:$0xf]
    %v2949 = vld [vmem:[#allocation2 + $0xec] sm:$0xf]
    %v2950 = vld [vmem:[#allocation2 + $0xf0] sm:$0xf]
    %v2951 = vld [vmem:[#allocation2 + $0xf4] sm:$0xf]
    %v2952 = vld [vmem:[#allocation2 + $0xf8] sm:$0xf]
    %v2953 = vld [vmem:[#allocation2 + $0xfc] sm:$0xf]
    %v2954 = vld [vmem:[#allocation2 + $0x100] sm:$0xf]
    %v2955 = vld [vmem:[#allocation2 + $0x104] sm:$0xf]
    %v2956 = vld [vmem:[#allocation2 + $0x108] sm:$0xf]
    %v2957 = vld [vmem:[#allocation2 + $0x10c] sm:$0xf]
    %v2958 = vld [vmem:[#allocation2 + $0x110] sm:$0xf]
    %v2959 = vld [vmem:[#allocation2 + $0x114] sm:$0xf]
    %v2960 = vld [vmem:[#allocation2 + $0x118] sm:$0xf]
    %v2961 = vld [vmem:[#allocation2 + $0x11c] sm:$0xf]
    %v2962 = vld [vmem:[#allocation2 + $0x120] sm:$0xf]
    %v2963 = vld [vmem:[#allocation2 + $0x124] sm:$0xf]
    %v2964 = vld [vmem:[#allocation2 + $0x128] sm:$0xf]
    %v2965 = vld [vmem:[#allocation2 + $0x12c] sm:$0xf]
    %v2966 = vld [vmem:[#allocation2 + $0x130] sm:$0xf]
    %v2967 = vld [vmem:[#allocation2 + $0x134] sm:$0xf]
    %v2968 = vld [vmem:[#allocation2 + $0x138] sm:$0xf]
    %v2969 = vld [vmem:[#allocation2 + $0x13c] sm:$0xf]
    %v2970 = vld [vmem:[#allocation2 + $0x140] sm:$0xf]
    %v2971 = vld [vmem:[#allocation2 + $0x144] sm:$0xf]
    %v2972 = vld [vmem:[#allocation2 + $0x148] sm:$0xf]
    %v2973 = vld [vmem:[#allocation2 + $0x14c] sm:$0xf]
    %v2974 = vld [vmem:[#allocation2 + $0x150] sm:$0xf]
    %v2975 = vld [vmem:[#allocation2 + $0x154] sm:$0xf]
    %v2976 = vld [vmem:[#allocation2 + $0x158] sm:$0xf]
    %v2977 = vld [vmem:[#allocation2 + $0x15c] sm:$0xf]
    %v2978 = vld [vmem:[#allocation2 + $0x160] sm:$0xf]
    %v2979 = vld [vmem:[#allocation2 + $0x164] sm:$0xf]
    %v2980 = vld [vmem:[#allocation2 + $0x168] sm:$0xf]
    %v2981 = vld [vmem:[#allocation2 + $0x16c] sm:$0xf]
    %v2982 = vld [vmem:[#allocation2 + $0x170] sm:$0xf]
    %v2983 = vld [vmem:[#allocation2 + $0x174] sm:$0xf]
    %v2984 = vld [vmem:[#allocation2 + $0x178] sm:$0xf]
    %v2985 = vld [vmem:[#allocation2 + $0x17c] sm:$0xf]
    %v2986 = vld [vmem:[#allocation2 + $0x180] sm:$0xf]
    %v2987 = vld [vmem:[#allocation2 + $0x184] sm:$0xf]
    %v2988 = vld [vmem:[#allocation2 + $0x188] sm:$0xf]
    %v2989 = vld [vmem:[#allocation2 + $0x18c] sm:$0xf]
    %v2990 = vld [vmem:[#allocation2 + $0x190] sm:$0xf]
    %v2991 = vld [vmem:[#allocation2 + $0x194] sm:$0xf]
    %v2992 = vld [vmem:[#allocation2 + $0x198] sm:$0xf]
    %v2993 = vld [vmem:[#allocation2 + $0x19c] sm:$0xf]
    %v2994 = vld [vmem:[#allocation2 + $0x1a0] sm:$0xf]
    %v2995 = vld [vmem:[#allocation2 + $0x1a4] sm:$0xf]
    %v2996 = vld [vmem:[#allocation2 + $0x1a8] sm:$0xf]
    %v2997 = vld [vmem:[#allocation2 + $0x1ac] sm:$0xf]
    %v2998 = vld [vmem:[#allocation2 + $0x1b0] sm:$0xf]
    %v2999 = vld [vmem:[#allocation2 + $0x1b4] sm:$0xf]
    %v3000 = vld [vmem:[#allocation2 + $0x1b8] sm:$0xf]
    %v3001 = vld [vmem:[#allocation2 + $0x1bc] sm:$0xf]
    %v3002 = vld [vmem:[#allocation2 + $0x1c0] sm:$0xf]
    %v3003 = vld [vmem:[#allocation2 + $0x1c4] sm:$0xf]
    %v3004 = vld [vmem:[#allocation2 + $0x1c8] sm:$0xf]
    %v3005 = vld [vmem:[#allocation2 + $0x1cc] sm:$0xf]
    %v3006 = vld [vmem:[#allocation2 + $0x1d0] sm:$0xf]
    %v3007 = vld [vmem:[#allocation2 + $0x1d4] sm:$0xf]
    %v3008 = vld [vmem:[#allocation2 + $0x1d8] sm:$0xf]
    %v3009 = vld [vmem:[#allocation2 + $0x1dc] sm:$0xf]
    %v3010 = vld [vmem:[#allocation2 + $0x1e0] sm:$0xf]
    %v3011 = vld [vmem:[#allocation2 + $0x1e4] sm:$0xf]
    %v3012 = vld [vmem:[#allocation2 + $0x1e8] sm:$0xf]
    %v3013 = vld [vmem:[#allocation2 + $0x1ec] sm:$0xf]
    %v3014 = vld [vmem:[#allocation2 + $0x1f0] sm:$0xf]
    %v3015 = vld [vmem:[#allocation2 + $0x1f4] sm:$0xf]
    %v3016 = vld [vmem:[#allocation2 + $0x1f8] sm:$0xf]
    %v3017 = vld [vmem:[#allocation2 + $0x1fc] sm:$0xf]
    %v3018 = vld [vmem:[#allocation2 + $0x200] sm:$0xf]
    %v3019 = vld [vmem:[#allocation2 + $0x204] sm:$0xf]
    %v3020 = vld [vmem:[#allocation2 + $0x208] sm:$0xf]
    %v3021 = vld [vmem:[#allocation2 + $0x20c] sm:$0xf]
    %v3022 = vld [vmem:[#allocation2 + $0x210] sm:$0xf]
    %v3023 = vld [vmem:[#allocation2 + $0x214] sm:$0xf]
    %v3024 = vld [vmem:[#allocation2 + $0x218] sm:$0xf]
    %v3025 = vld [vmem:[#allocation2 + $0x21c] sm:$0xf]
    %v3026 = vld [vmem:[#allocation2 + $0x220] sm:$0xf]
    %v3027 = vld [vmem:[#allocation2 + $0x224] sm:$0xf]
    %v3028 = vld [vmem:[#allocation2 + $0x228] sm:$0xf]
    %v3029 = vld [vmem:[#allocation2 + $0x22c] sm:$0xf]
    %v3030 = vld [vmem:[#allocation2 + $0x230] sm:$0xf]
    %v3031 = vld [vmem:[#allocation2 + $0x234] sm:$0xf]
    %v3032 = vld [vmem:[#allocation2 + $0x238] sm:$0xf]
    %v3033 = vld [vmem:[#allocation2 + $0x23c] sm:$0xf]
    %v3034 = vld [vmem:[#allocation2 + $0x240] sm:$0xf]
    %v3035 = vld [vmem:[#allocation2 + $0x244] sm:$0xf]
    %v3036 = vld [vmem:[#allocation2 + $0x248] sm:$0xf]
    %v3037 = vld [vmem:[#allocation2 + $0x24c] sm:$0xf]
    %v3038 = vld [vmem:[#allocation2 + $0x250] sm:$0xf]
    %v3039 = vld [vmem:[#allocation2 + $0x254] sm:$0xf]
    %v3040 = vld [vmem:[#allocation2 + $0x258] sm:$0xf]
    %v3041 = vld [vmem:[#allocation2 + $0x25c] sm:$0xf]
    %v3042 = vld [vmem:[#allocation2 + $0x260] sm:$0xf]
    %v3043 = vld [vmem:[#allocation2 + $0x264] sm:$0xf]
    %v3044 = vld [vmem:[#allocation2 + $0x268] sm:$0xf]
    %v3045 = vld [vmem:[#allocation2 + $0x26c] sm:$0xf]
    %v3046 = vld [vmem:[#allocation2 + $0x270] sm:$0xf]
    %v3047 = vld [vmem:[#allocation2 + $0x274] sm:$0xf]
    %v3048 = vld [vmem:[#allocation2 + $0x278] sm:$0xf]
    %v3049 = vld [vmem:[#allocation2 + $0x27c] sm:$0xf]
    %v3050 = vld [vmem:[#allocation2 + $0x280] sm:$0xf]
    %v3051 = vld [vmem:[#allocation2 + $0x284] sm:$0xf]
    %v3052 = vld [vmem:[#allocation2 + $0x288] sm:$0xf]
    %v3053 = vld [vmem:[#allocation2 + $0x28c] sm:$0xf]
    %v3054 = vld [vmem:[#allocation2 + $0x290] sm:$0xf]
    %v3055 = vld [vmem:[#allocation2 + $0x294] sm:$0xf]
    %v3056 = vld [vmem:[#allocation2 + $0x298] sm:$0xf]
    %v3057 = vld [vmem:[#allocation2 + $0x29c] sm:$0xf]
    %v3058 = vld [vmem:[#allocation2 + $0x2a0] sm:$0xf]
    %v3059 = vld [vmem:[#allocation2 + $0x2a4] sm:$0xf]
    %v3060 = vld [vmem:[#allocation2 + $0x2a8] sm:$0xf]
    %v3061 = vld [vmem:[#allocation2 + $0x2ac] sm:$0xf]
    %v3062 = vld [vmem:[#allocation2 + $0x2b0] sm:$0xf]
    %v3063 = vld [vmem:[#allocation2 + $0x2b4] sm:$0xf]
    %v3064 = vld [vmem:[#allocation2 + $0x2b8] sm:$0xf]
    %v3065 = vld [vmem:[#allocation2 + $0x2bc] sm:$0xf]
    %v3066 = vld [vmem:[#allocation2 + $0x2c0] sm:$0xf]
    %v3067 = vld [vmem:[#allocation2 + $0x2c4] sm:$0xf]
    %v3068 = vld [vmem:[#allocation2 + $0x2c8] sm:$0xf]
    %v3069 = vld [vmem:[#allocation2 + $0x2cc] sm:$0xf]
    %v3070 = vld [vmem:[#allocation2 + $0x2d0] sm:$0xf]
    %v3071 = vld [vmem:[#allocation2 + $0x2d4] sm:$0xf]
    %v3072 = vld [vmem:[#allocation2 + $0x2d8] sm:$0xf]
    %v3073 = vld [vmem:[#allocation2 + $0x2dc] sm:$0xf]
    %v3074 = vld [vmem:[#allocation2 + $0x2e0] sm:$0xf]
    %v3075 = vld [vmem:[#allocation2 + $0x2e4] sm:$0xf]
    %v3076 = vld [vmem:[#allocation2 + $0x2e8] sm:$0xf]
    %v3077 = vld [vmem:[#allocation2 + $0x2ec] sm:$0xf]
    %v3078 = vld [vmem:[#allocation2 + $0x2f0] sm:$0xf]
    %v3079 = vld [vmem:[#allocation2 + $0x2f4] sm:$0xf]
    %v3080 = vld [vmem:[#allocation2 + $0x2f8] sm:$0xf]
    %v3081 = vld [vmem:[#allocation2 + $0x2fc] sm:$0xf]
    %v3082 = vld [vmem:[#allocation2 + $0x300] sm:$0xf]
    %v3083 = vld [vmem:[#allocation2 + $0x304] sm:$0xf]
    %v3084 = vld [vmem:[#allocation2 + $0x308] sm:$0xf]
    %v3085 = vld [vmem:[#allocation2 + $0x30c] sm:$0xf]
    %v3086 = vld [vmem:[#allocation2 + $0x310] sm:$0xf]
    %v3087 = vld [vmem:[#allocation2 + $0x314] sm:$0xf]
    %v3088 = vld [vmem:[#allocation2 + $0x318] sm:$0xf]
    %v3089 = vld [vmem:[#allocation2 + $0x31c] sm:$0xf]
    %v3090 = vld [vmem:[#allocation2 + $0x320] sm:$0xf]
    %v3091 = vld [vmem:[#allocation2 + $0x324] sm:$0xf]
    %v3092 = vld [vmem:[#allocation2 + $0x328] sm:$0xf]
    %v3093 = vld [vmem:[#allocation2 + $0x32c] sm:$0xf]
    %v3094 = vld [vmem:[#allocation2 + $0x330] sm:$0xf]
    %v3095 = vld [vmem:[#allocation2 + $0x334] sm:$0xf]
    %v3096 = vld [vmem:[#allocation2 + $0x338] sm:$0xf]
    %v3097 = vld [vmem:[#allocation2 + $0x33c] sm:$0xf]
    %v3098 = vld [vmem:[#allocation2 + $0x340] sm:$0xf]
    %v3099 = vld [vmem:[#allocation2 + $0x344] sm:$0xf]
    %v3100 = vld [vmem:[#allocation2 + $0x348] sm:$0xf]
    %v3101 = vld [vmem:[#allocation2 + $0x34c] sm:$0xf]
    %v3102 = vld [vmem:[#allocation2 + $0x350] sm:$0xf]
    %v3103 = vld [vmem:[#allocation2 + $0x354] sm:$0xf]
    %v3104 = vld [vmem:[#allocation2 + $0x358] sm:$0xf]
    %v3105 = vld [vmem:[#allocation2 + $0x35c] sm:$0xf]
    %v3106 = vld [vmem:[#allocation2 + $0x360] sm:$0xf]
    %v3107 = vld [vmem:[#allocation2 + $0x364] sm:$0xf]
    %v3108 = vld [vmem:[#allocation2 + $0x368] sm:$0xf]
    %v3109 = vld [vmem:[#allocation2 + $0x36c] sm:$0xf]
    %v3110 = vld [vmem:[#allocation2 + $0x370] sm:$0xf]
    %v3111 = vld [vmem:[#allocation2 + $0x374] sm:$0xf]
    %v3112 = vld [vmem:[#allocation2 + $0x378] sm:$0xf]
    %v3113 = vld [vmem:[#allocation2 + $0x37c] sm:$0xf]
    %v3114 = vld [vmem:[%s7] sm:$0x1]
    %v3116 = vlaneseq
    %v3117 = vshrl.u32 %v3116, 7
    %v3118 = vsub.s32 0, %v3117
    %v3119 = vrot.slane %v3114, %v3118
    %v3233 = vunpack.c.l.b16 %v2778
    %v3234 = vunpack.c.h.b16 %v2778
    %v3235 = vunpack.c.l.b16 %v2779
    %v3236 = vunpack.c.h.b16 %v2779
    %v3237 = vunpack.c.l.b16 %v2780
    %v3238 = vunpack.c.h.b16 %v2780
    %v3239 = vunpack.c.l.b16 %v2781
    %v3240 = vunpack.c.h.b16 %v2781
    %v3241 = vunpack.c.l.b16 %v2782
    %v3242 = vunpack.c.h.b16 %v2782
    %v3243 = vunpack.c.l.b16 %v2783
    %v3244 = vunpack.c.h.b16 %v2783
    %v3245 = vunpack.c.l.b16 %v2784
    %v3246 = vunpack.c.h.b16 %v2784
    %v3247 = vunpack.c.l.b16 %v2785
    %v3248 = vunpack.c.h.b16 %v2785
    %v3249 = vunpack.c.l.b16 %v2786
    %v3250 = vunpack.c.h.b16 %v2786
    %v3251 = vunpack.c.l.b16 %v2787
    %v3252 = vunpack.c.h.b16 %v2787
    %v3253 = vunpack.c.l.b16 %v2788
    %v3254 = vunpack.c.h.b16 %v2788
    %v3255 = vunpack.c.l.b16 %v2789
    %v3256 = vunpack.c.h.b16 %v2789
    %v3257 = vunpack.c.l.b16 %v2790
    %v3258 = vunpack.c.h.b16 %v2790
    %v3259 = vunpack.c.l.b16 %v2791
    %v3260 = vunpack.c.h.b16 %v2791
    %v3261 = vunpack.c.l.b16 %v2792
    %v3262 = vunpack.c.h.b16 %v2792
    %v3263 = vunpack.c.l.b16 %v2793
    %v3264 = vunpack.c.h.b16 %v2793
    %v3265 = vunpack.c.l.b16 %v2794
    %v3266 = vunpack.c.h.b16 %v2794
    %v3267 = vunpack.c.l.b16 %v2795
    %v3268 = vunpack.c.h.b16 %v2795
    %v3269 = vunpack.c.l.b16 %v2796
    %v3270 = vunpack.c.h.b16 %v2796
    %v3271 = vunpack.c.l.b16 %v2797
    %v3272 = vunpack.c.h.b16 %v2797
    %v3273 = vunpack.c.l.b16 %v2798
    %v3274 = vunpack.c.h.b16 %v2798
    %v3275 = vunpack.c.l.b16 %v2799
    %v3276 = vunpack.c.h.b16 %v2799
    %v3277 = vunpack.c.l.b16 %v2800
    %v3278 = vunpack.c.h.b16 %v2800
    %v3279 = vunpack.c.l.b16 %v2801
    %v3280 = vunpack.c.h.b16 %v2801
    %v3281 = vunpack.c.l.b16 %v2802
    %v3282 = vunpack.c.h.b16 %v2802
    %v3283 = vunpack.c.l.b16 %v2803
    %v3284 = vunpack.c.h.b16 %v2803
    %v3285 = vunpack.c.l.b16 %v2804
    %v3286 = vunpack.c.h.b16 %v2804
    %v3287 = vunpack.c.l.b16 %v2805
    %v3288 = vunpack.c.h.b16 %v2805
    %v3289 = vunpack.c.l.b16 %v2806
    %v3290 = vunpack.c.h.b16 %v2806
    %v3291 = vunpack.c.l.b16 %v2807
    %v3292 = vunpack.c.h.b16 %v2807
    %v3293 = vunpack.c.l.b16 %v2808
    %v3294 = vunpack.c.h.b16 %v2808
    %v3295 = vunpack.c.l.b16 %v2809
    %v3296 = vunpack.c.h.b16 %v2809
    %v3297 = vunpack.c.l.b16 %v2810
    %v3298 = vunpack.c.h.b16 %v2810
    %v3299 = vunpack.c.l.b16 %v2811
    %v3300 = vunpack.c.h.b16 %v2811
    %v3301 = vunpack.c.l.b16 %v2812
    %v3302 = vunpack.c.h.b16 %v2812
    %v3303 = vunpack.c.l.b16 %v2813
    %v3304 = vunpack.c.h.b16 %v2813
    %v3305 = vunpack.c.l.b16 %v2814
    %v3306 = vunpack.c.h.b16 %v2814
    %v3307 = vunpack.c.l.b16 %v2815
    %v3308 = vunpack.c.h.b16 %v2815
    %v3309 = vunpack.c.l.b16 %v2816
    %v3310 = vunpack.c.h.b16 %v2816
    %v3311 = vunpack.c.l.b16 %v2817
    %v3312 = vunpack.c.h.b16 %v2817
    %v3313 = vunpack.c.l.b16 %v2818
    %v3314 = vunpack.c.h.b16 %v2818
    %v3315 = vunpack.c.l.b16 %v2819
    %v3316 = vunpack.c.h.b16 %v2819
    %v3317 = vunpack.c.l.b16 %v2820
    %v3318 = vunpack.c.h.b16 %v2820
    %v3319 = vunpack.c.l.b16 %v2821
    %v3320 = vunpack.c.h.b16 %v2821
    %v3321 = vunpack.c.l.b16 %v2822
    %v3322 = vunpack.c.h.b16 %v2822
    %v3323 = vunpack.c.l.b16 %v2823
    %v3324 = vunpack.c.h.b16 %v2823
    %v3325 = vunpack.c.l.b16 %v2824
    %v3326 = vunpack.c.h.b16 %v2824
    %v3327 = vunpack.c.l.b16 %v2825
    %v3328 = vunpack.c.h.b16 %v2825
    %v3329 = vunpack.c.l.b16 %v2826
    %v3330 = vunpack.c.h.b16 %v2826
    %v3331 = vunpack.c.l.b16 %v2827
    %v3332 = vunpack.c.h.b16 %v2827
    %v3333 = vunpack.c.l.b16 %v2828
    %v3334 = vunpack.c.h.b16 %v2828
    %v3335 = vunpack.c.l.b16 %v2829
    %v3336 = vunpack.c.h.b16 %v2829
    %v3337 = vunpack.c.l.b16 %v2830
    %v3338 = vunpack.c.h.b16 %v2830
    %v3339 = vunpack.c.l.b16 %v2831
    %v3340 = vunpack.c.h.b16 %v2831
    %v3341 = vunpack.c.l.b16 %v2832
    %v3342 = vunpack.c.h.b16 %v2832
    %v3343 = vunpack.c.l.b16 %v2833
    %v3344 = vunpack.c.h.b16 %v2833
    %v3345 = vunpack.c.l.b16 %v2834
    %v3346 = vunpack.c.h.b16 %v2834
    %v3347 = vunpack.c.l.b16 %v2835
    %v3348 = vunpack.c.h.b16 %v2835
    %v3349 = vunpack.c.l.b16 %v2836
    %v3350 = vunpack.c.h.b16 %v2836
    %v3351 = vunpack.c.l.b16 %v2837
    %v3352 = vunpack.c.h.b16 %v2837
    %v3353 = vunpack.c.l.b16 %v2838
    %v3354 = vunpack.c.h.b16 %v2838
    %v3355 = vunpack.c.l.b16 %v2839
    %v3356 = vunpack.c.h.b16 %v2839
    %v3357 = vunpack.c.l.b16 %v2840
    %v3358 = vunpack.c.h.b16 %v2840
    %v3359 = vunpack.c.l.b16 %v2841
    %v3360 = vunpack.c.h.b16 %v2841
    %v3361 = vunpack.c.l.b16 %v2842
    %v3362 = vunpack.c.h.b16 %v2842
    %v3363 = vunpack.c.l.b16 %v2843
    %v3364 = vunpack.c.h.b16 %v2843
    %v3365 = vunpack.c.l.b16 %v2844
    %v3366 = vunpack.c.h.b16 %v2844
    %v3367 = vunpack.c.l.b16 %v2845
    %v3368 = vunpack.c.h.b16 %v2845
    %v3369 = vunpack.c.l.b16 %v2846
    %v3370 = vunpack.c.h.b16 %v2846
    %v3371 = vunpack.c.l.b16 %v2847
    %v3372 = vunpack.c.h.b16 %v2847
    %v3373 = vunpack.c.l.b16 %v2848
    %v3374 = vunpack.c.h.b16 %v2848
    %v3375 = vunpack.c.l.b16 %v2849
    %v3376 = vunpack.c.h.b16 %v2849
    %v3377 = vunpack.c.l.b16 %v2850
    %v3378 = vunpack.c.h.b16 %v2850
    %v3379 = vunpack.c.l.b16 %v2851
    %v3380 = vunpack.c.h.b16 %v2851
    %v3381 = vunpack.c.l.b16 %v2852
    %v3382 = vunpack.c.h.b16 %v2852
    %v3383 = vunpack.c.l.b16 %v2853
    %v3384 = vunpack.c.h.b16 %v2853
    %v3385 = vunpack.c.l.b16 %v2854
    %v3386 = vunpack.c.h.b16 %v2854
    %v3387 = vunpack.c.l.b16 %v2855
    %v3388 = vunpack.c.h.b16 %v2855
    %v3389 = vunpack.c.l.b16 %v2856
    %v3390 = vunpack.c.h.b16 %v2856
    %v3391 = vunpack.c.l.b16 %v2857
    %v3392 = vunpack.c.h.b16 %v2857
    %v3393 = vunpack.c.l.b16 %v2858
    %v3394 = vunpack.c.h.b16 %v2858
    %v3395 = vunpack.c.l.b16 %v2859
    %v3396 = vunpack.c.h.b16 %v2859
    %v3397 = vunpack.c.l.b16 %v2860
    %v3398 = vunpack.c.h.b16 %v2860
    %v3399 = vunpack.c.l.b16 %v2861
    %v3400 = vunpack.c.h.b16 %v2861
    %v3401 = vunpack.c.l.b16 %v2862
    %v3402 = vunpack.c.h.b16 %v2862
    %v3403 = vunpack.c.l.b16 %v2863
    %v3404 = vunpack.c.h.b16 %v2863
    %v3405 = vunpack.c.l.b16 %v2864
    %v3406 = vunpack.c.h.b16 %v2864
    %v3407 = vunpack.c.l.b16 %v2865
    %v3408 = vunpack.c.h.b16 %v2865
    %v3409 = vunpack.c.l.b16 %v2866
    %v3410 = vunpack.c.h.b16 %v2866
    %v3411 = vunpack.c.l.b16 %v2867
    %v3412 = vunpack.c.h.b16 %v2867
    %v3413 = vunpack.c.l.b16 %v2868
    %v3414 = vunpack.c.h.b16 %v2868
    %v3415 = vunpack.c.l.b16 %v2869
    %v3416 = vunpack.c.h.b16 %v2869
    %v3417 = vunpack.c.l.b16 %v2870
    %v3418 = vunpack.c.h.b16 %v2870
    %v3419 = vunpack.c.l.b16 %v2871
    %v3420 = vunpack.c.h.b16 %v2871
    %v3421 = vunpack.c.l.b16 %v2872
    %v3422 = vunpack.c.h.b16 %v2872
    %v3423 = vunpack.c.l.b16 %v2873
    %v3424 = vunpack.c.h.b16 %v2873
    %v3425 = vunpack.c.l.b16 %v2874
    %v3426 = vunpack.c.h.b16 %v2874
    %v3427 = vunpack.c.l.b16 %v2875
    %v3428 = vunpack.c.h.b16 %v2875
    %v3429 = vunpack.c.l.b16 %v2876
    %v3430 = vunpack.c.h.b16 %v2876
    %v3431 = vunpack.c.l.b16 %v2877
    %v3432 = vunpack.c.h.b16 %v2877
    %v3433 = vunpack.c.l.b16 %v2878
    %v3434 = vunpack.c.h.b16 %v2878
    %v3435 = vunpack.c.l.b16 %v2879
    %v3436 = vunpack.c.h.b16 %v2879
    %v3437 = vunpack.c.l.b16 %v2880
    %v3438 = vunpack.c.h.b16 %v2880
    %v3439 = vunpack.c.l.b16 %v2881
    %v3440 = vunpack.c.h.b16 %v2881
    %v3441 = vunpack.c.l.b16 %v2882
    %v3442 = vunpack.c.h.b16 %v2882
    %v3443 = vunpack.c.l.b16 %v2883
    %v3444 = vunpack.c.h.b16 %v2883
    %v3445 = vunpack.c.l.b16 %v2884
    %v3446 = vunpack.c.h.b16 %v2884
    %v3447 = vunpack.c.l.b16 %v2885
    %v3448 = vunpack.c.h.b16 %v2885
    %v3449 = vunpack.c.l.b16 %v2886
    %v3450 = vunpack.c.h.b16 %v2886
    %v3451 = vunpack.c.l.b16 %v2887
    %v3452 = vunpack.c.h.b16 %v2887
    %v3453 = vunpack.c.l.b16 %v2888
    %v3454 = vunpack.c.h.b16 %v2888
    %v3455 = vunpack.c.l.b16 %v2889
    %v3456 = vunpack.c.h.b16 %v2889
    %v3457 = vpack.c.b16 %v3247, %v3233
    %v3458 = vpack.c.b16 %v3248, %v3234
    %v3459 = vpack.c.b16 %v3249, %v3235
    %v3460 = vpack.c.b16 %v3250, %v3236
    %v3461 = vpack.c.b16 %v3251, %v3237
    %v3462 = vpack.c.b16 %v3252, %v3238
    %v3463 = vpack.c.b16 %v3253, %v3239
    %v3464 = vpack.c.b16 %v3254, %v3240
    %v3465 = vpack.c.b16 %v3255, %v3241
    %v3466 = vpack.c.b16 %v3256, %v3242
    %v3467 = vpack.c.b16 %v3257, %v3243
    %v3468 = vpack.c.b16 %v3258, %v3244
    %v3469 = vpack.c.b16 %v3259, %v3245
    %v3470 = vpack.c.b16 %v3260, %v3246
    %v3471 = vpack.c.b16 %v3275, %v3261
    %v3472 = vpack.c.b16 %v3276, %v3262
    %v3473 = vpack.c.b16 %v3277, %v3263
    %v3474 = vpack.c.b16 %v3278, %v3264
    %v3475 = vpack.c.b16 %v3279, %v3265
    %v3476 = vpack.c.b16 %v3280, %v3266
    %v3477 = vpack.c.b16 %v3281, %v3267
    %v3478 = vpack.c.b16 %v3282, %v3268
    %v3479 = vpack.c.b16 %v3283, %v3269
    %v3480 = vpack.c.b16 %v3284, %v3270
    %v3481 = vpack.c.b16 %v3285, %v3271
    %v3482 = vpack.c.b16 %v3286, %v3272
    %v3483 = vpack.c.b16 %v3287, %v3273
    %v3484 = vpack.c.b16 %v3288, %v3274
    %v3485 = vpack.c.b16 %v3303, %v3289
    %v3486 = vpack.c.b16 %v3304, %v3290
    %v3487 = vpack.c.b16 %v3305, %v3291
    %v3488 = vpack.c.b16 %v3306, %v3292
    %v3489 = vpack.c.b16 %v3307, %v3293
    %v3490 = vpack.c.b16 %v3308, %v3294
    %v3491 = vpack.c.b16 %v3309, %v3295
    %v3492 = vpack.c.b16 %v3310, %v3296
    %v3493 = vpack.c.b16 %v3311, %v3297
    %v3494 = vpack.c.b16 %v3312, %v3298
    %v3495 = vpack.c.b16 %v3313, %v3299
    %v3496 = vpack.c.b16 %v3314, %v3300
    %v3497 = vpack.c.b16 %v3315, %v3301
    %v3498 = vpack.c.b16 %v3316, %v3302
    %v3499 = vpack.c.b16 %v3331, %v3317
    %v3500 = vpack.c.b16 %v3332, %v3318
    %v3501 = vpack.c.b16 %v3333, %v3319
    %v3502 = vpack.c.b16 %v3334, %v3320
    %v3503 = vpack.c.b16 %v3335, %v3321
    %v3504 = vpack.c.b16 %v3336, %v3322
    %v3505 = vpack.c.b16 %v3337, %v3323
    %v3506 = vpack.c.b16 %v3338, %v3324
    %v3507 = vpack.c.b16 %v3339, %v3325
    %v3508 = vpack.c.b16 %v3340, %v3326
    %v3509 = vpack.c.b16 %v3341, %v3327
    %v3510 = vpack.c.b16 %v3342, %v3328
    %v3511 = vpack.c.b16 %v3343, %v3329
    %v3512 = vpack.c.b16 %v3344, %v3330
    %v3513 = vpack.c.b16 %v3359, %v3345
    %v3514 = vpack.c.b16 %v3360, %v3346
    %v3515 = vpack.c.b16 %v3361, %v3347
    %v3516 = vpack.c.b16 %v3362, %v3348
    %v3517 = vpack.c.b16 %v3363, %v3349
    %v3518 = vpack.c.b16 %v3364, %v3350
    %v3519 = vpack.c.b16 %v3365, %v3351
    %v3520 = vpack.c.b16 %v3366, %v3352
    %v3521 = vpack.c.b16 %v3367, %v3353
    %v3522 = vpack.c.b16 %v3368, %v3354
    %v3523 = vpack.c.b16 %v3369, %v3355
    %v3524 = vpack.c.b16 %v3370, %v3356
    %v3525 = vpack.c.b16 %v3371, %v3357
    %v3526 = vpack.c.b16 %v3372, %v3358
    %v3527 = vpack.c.b16 %v3387, %v3373
    %v3528 = vpack.c.b16 %v3388, %v3374
    %v3529 = vpack.c.b16 %v3389, %v3375
    %v3530 = vpack.c.b16 %v3390, %v3376
    %v3531 = vpack.c.b16 %v3391, %v3377
    %v3532 = vpack.c.b16 %v3392, %v3378
    %v3533 = vpack.c.b16 %v3393, %v3379
    %v3534 = vpack.c.b16 %v3394, %v3380
    %v3535 = vpack.c.b16 %v3395, %v3381
    %v3536 = vpack.c.b16 %v3396, %v3382
    %v3537 = vpack.c.b16 %v3397, %v3383
    %v3538 = vpack.c.b16 %v3398, %v3384
    %v3539 = vpack.c.b16 %v3399, %v3385
    %v3540 = vpack.c.b16 %v3400, %v3386
    %v3541 = vpack.c.b16 %v3415, %v3401
    %v3542 = vpack.c.b16 %v3416, %v3402
    %v3543 = vpack.c.b16 %v3417, %v3403
    %v3544 = vpack.c.b16 %v3418, %v3404
    %v3545 = vpack.c.b16 %v3419, %v3405
    %v3546 = vpack.c.b16 %v3420, %v3406
    %v3547 = vpack.c.b16 %v3421, %v3407
    %v3548 = vpack.c.b16 %v3422, %v3408
    %v3549 = vpack.c.b16 %v3423, %v3409
    %v3550 = vpack.c.b16 %v3424, %v3410
    %v3551 = vpack.c.b16 %v3425, %v3411
    %v3552 = vpack.c.b16 %v3426, %v3412
    %v3553 = vpack.c.b16 %v3427, %v3413
    %v3554 = vpack.c.b16 %v3428, %v3414
    %v3555 = vpack.c.b16 %v3443, %v3429
    %v3556 = vpack.c.b16 %v3444, %v3430
    %v3557 = vpack.c.b16 %v3445, %v3431
    %v3558 = vpack.c.b16 %v3446, %v3432
    %v3559 = vpack.c.b16 %v3447, %v3433
    %v3560 = vpack.c.b16 %v3448, %v3434
    %v3561 = vpack.c.b16 %v3449, %v3435
    %v3562 = vpack.c.b16 %v3450, %v3436
    %v3563 = vpack.c.b16 %v3451, %v3437
    %v3564 = vpack.c.b16 %v3452, %v3438
    %v3565 = vpack.c.b16 %v3453, %v3439
    %v3566 = vpack.c.b16 %v3454, %v3440
    %v3567 = vpack.c.b16 %v3455, %v3441
    %v3568 = vpack.c.b16 %v3456, %v3442
    %v3905 = vunpack.c.l.b16 %v2890
    %v3906 = vunpack.c.l.b16 %v2891
    %v3907 = vunpack.c.l.b16 %v2892
    %v3908 = vunpack.c.l.b16 %v2893
    %v3909 = vunpack.c.l.b16 %v2894
    %v3910 = vunpack.c.l.b16 %v2895
    %v3911 = vunpack.c.l.b16 %v2896
    %v3912 = vunpack.c.l.b16 %v2897
    %v3913 = vunpack.c.l.b16 %v2898
    %v3914 = vunpack.c.l.b16 %v2899
    %v3915 = vunpack.c.l.b16 %v2900
    %v3916 = vunpack.c.l.b16 %v2901
    %v3917 = vunpack.c.l.b16 %v2902
    %v3918 = vunpack.c.l.b16 %v2903
    %v3919 = vunpack.c.l.b16 %v2904
    %v3920 = vunpack.c.l.b16 %v2905
    %v3921 = vunpack.c.l.b16 %v2906
    %v3922 = vunpack.c.l.b16 %v2907
    %v3923 = vunpack.c.l.b16 %v2908
    %v3924 = vunpack.c.l.b16 %v2909
    %v3925 = vunpack.c.l.b16 %v2910
    %v3926 = vunpack.c.l.b16 %v2911
    %v3927 = vunpack.c.l.b16 %v2912
    %v3928 = vunpack.c.l.b16 %v2913
    %v3929 = vunpack.c.l.b16 %v2914
    %v3930 = vunpack.c.l.b16 %v2915
    %v3931 = vunpack.c.l.b16 %v2916
    %v3932 = vunpack.c.l.b16 %v2917
    %v3933 = vunpack.c.l.b16 %v2918
    %v3934 = vunpack.c.l.b16 %v2919
    %v3935 = vunpack.c.l.b16 %v2920
    %v3936 = vunpack.c.l.b16 %v2921
    %v3937 = vunpack.c.l.b16 %v2922
    %v3938 = vunpack.c.l.b16 %v2923
    %v3939 = vunpack.c.l.b16 %v2924
    %v3940 = vunpack.c.l.b16 %v2925
    %v3941 = vunpack.c.l.b16 %v2926
    %v3942 = vunpack.c.l.b16 %v2927
    %v3943 = vunpack.c.l.b16 %v2928
    %v3944 = vunpack.c.l.b16 %v2929
    %v3945 = vunpack.c.l.b16 %v2930
    %v3946 = vunpack.c.l.b16 %v2931
    %v3947 = vunpack.c.l.b16 %v2932
    %v3948 = vunpack.c.l.b16 %v2933
    %v3949 = vunpack.c.l.b16 %v2934
    %v3950 = vunpack.c.l.b16 %v2935
    %v3951 = vunpack.c.l.b16 %v2936
    %v3952 = vunpack.c.l.b16 %v2937
    %v3953 = vunpack.c.l.b16 %v2938
    %v3954 = vunpack.c.l.b16 %v2939
    %v3955 = vunpack.c.l.b16 %v2940
    %v3956 = vunpack.c.l.b16 %v2941
    %v3957 = vunpack.c.l.b16 %v2942
    %v3958 = vunpack.c.l.b16 %v2943
    %v3959 = vunpack.c.l.b16 %v2944
    %v3960 = vunpack.c.l.b16 %v2945
    %v3961 = vunpack.c.l.b16 %v2946
    %v3962 = vunpack.c.l.b16 %v2947
    %v3963 = vunpack.c.l.b16 %v2948
    %v3964 = vunpack.c.l.b16 %v2949
    %v3965 = vunpack.c.l.b16 %v2950
    %v3966 = vunpack.c.l.b16 %v2951
    %v3967 = vunpack.c.l.b16 %v2952
    %v3968 = vunpack.c.l.b16 %v2953
    %v3969 = vunpack.c.l.b16 %v2954
    %v3970 = vunpack.c.l.b16 %v2955
    %v3971 = vunpack.c.l.b16 %v2956
    %v3972 = vunpack.c.l.b16 %v2957
    %v3973 = vunpack.c.l.b16 %v2958
    %v3974 = vunpack.c.l.b16 %v2959
    %v3975 = vunpack.c.l.b16 %v2960
    %v3976 = vunpack.c.l.b16 %v2961
    %v3977 = vunpack.c.l.b16 %v2962
    %v3978 = vunpack.c.l.b16 %v2963
    %v3979 = vunpack.c.l.b16 %v2964
    %v3980 = vunpack.c.l.b16 %v2965
    %v3981 = vunpack.c.l.b16 %v2966
    %v3982 = vunpack.c.l.b16 %v2967
    %v3983 = vunpack.c.l.b16 %v2968
    %v3984 = vunpack.c.l.b16 %v2969
    %v3985 = vunpack.c.l.b16 %v2970
    %v3986 = vunpack.c.l.b16 %v2971
    %v3987 = vunpack.c.l.b16 %v2972
    %v3988 = vunpack.c.l.b16 %v2973
    %v3989 = vunpack.c.l.b16 %v2974
    %v3990 = vunpack.c.l.b16 %v2975
    %v3991 = vunpack.c.l.b16 %v2976
    %v3992 = vunpack.c.l.b16 %v2977
    %v3993 = vunpack.c.l.b16 %v2978
    %v3994 = vunpack.c.l.b16 %v2979
    %v3995 = vunpack.c.l.b16 %v2980
    %v3996 = vunpack.c.l.b16 %v2981
    %v3997 = vunpack.c.l.b16 %v2982
    %v3998 = vunpack.c.l.b16 %v2983
    %v3999 = vunpack.c.l.b16 %v2984
    %v4000 = vunpack.c.l.b16 %v2985
    %v4001 = vunpack.c.l.b16 %v2986
    %v4002 = vunpack.c.l.b16 %v2987
    %v4003 = vunpack.c.l.b16 %v2988
    %v4004 = vunpack.c.l.b16 %v2989
    %v4005 = vunpack.c.l.b16 %v2990
    %v4006 = vunpack.c.l.b16 %v2991
    %v4007 = vunpack.c.l.b16 %v2992
    %v4008 = vunpack.c.l.b16 %v2993
    %v4009 = vunpack.c.l.b16 %v2994
    %v4010 = vunpack.c.l.b16 %v2995
    %v4011 = vunpack.c.l.b16 %v2996
    %v4012 = vunpack.c.l.b16 %v2997
    %v4013 = vunpack.c.l.b16 %v2998
    %v4014 = vunpack.c.l.b16 %v2999
    %v4015 = vunpack.c.l.b16 %v3000
    %v4016 = vunpack.c.l.b16 %v3001
    %v4017 = vunpack.c.l.b16 %v3002
    %v4018 = vunpack.c.l.b16 %v3003
    %v4019 = vunpack.c.l.b16 %v3004
    %v4020 = vunpack.c.l.b16 %v3005
    %v4021 = vunpack.c.l.b16 %v3006
    %v4022 = vunpack.c.l.b16 %v3007
    %v4023 = vunpack.c.l.b16 %v3008
    %v4024 = vunpack.c.l.b16 %v3009
    %v4025 = vunpack.c.l.b16 %v3010
    %v4026 = vunpack.c.l.b16 %v3011
    %v4027 = vunpack.c.l.b16 %v3012
    %v4028 = vunpack.c.l.b16 %v3013
    %v4029 = vunpack.c.l.b16 %v3014
    %v4030 = vunpack.c.l.b16 %v3015
    %v4031 = vunpack.c.l.b16 %v3016
    %v4032 = vunpack.c.l.b16 %v3017
    %v4033 = vunpack.c.l.b16 %v3018
    %v4034 = vunpack.c.l.b16 %v3019
    %v4035 = vunpack.c.l.b16 %v3020
    %v4036 = vunpack.c.l.b16 %v3021
    %v4037 = vunpack.c.l.b16 %v3022
    %v4038 = vunpack.c.l.b16 %v3023
    %v4039 = vunpack.c.l.b16 %v3024
    %v4040 = vunpack.c.l.b16 %v3025
    %v4041 = vunpack.c.l.b16 %v3026
    %v4042 = vunpack.c.l.b16 %v3027
    %v4043 = vunpack.c.l.b16 %v3028
    %v4044 = vunpack.c.l.b16 %v3029
    %v4045 = vunpack.c.l.b16 %v3030
    %v4046 = vunpack.c.l.b16 %v3031
    %v4047 = vunpack.c.l.b16 %v3032
    %v4048 = vunpack.c.l.b16 %v3033
    %v4049 = vunpack.c.l.b16 %v3034
    %v4050 = vunpack.c.l.b16 %v3035
    %v4051 = vunpack.c.l.b16 %v3036
    %v4052 = vunpack.c.l.b16 %v3037
    %v4053 = vunpack.c.l.b16 %v3038
    %v4054 = vunpack.c.l.b16 %v3039
    %v4055 = vunpack.c.l.b16 %v3040
    %v4056 = vunpack.c.l.b16 %v3041
    %v4057 = vunpack.c.l.b16 %v3042
    %v4058 = vunpack.c.l.b16 %v3043
    %v4059 = vunpack.c.l.b16 %v3044
    %v4060 = vunpack.c.l.b16 %v3045
    %v4061 = vunpack.c.l.b16 %v3046
    %v4062 = vunpack.c.l.b16 %v3047
    %v4063 = vunpack.c.l.b16 %v3048
    %v4064 = vunpack.c.l.b16 %v3049
    %v4065 = vunpack.c.l.b16 %v3050
    %v4066 = vunpack.c.l.b16 %v3051
    %v4067 = vunpack.c.l.b16 %v3052
    %v4068 = vunpack.c.l.b16 %v3053
    %v4069 = vunpack.c.l.b16 %v3054
    %v4070 = vunpack.c.l.b16 %v3055
    %v4071 = vunpack.c.l.b16 %v3056
    %v4072 = vunpack.c.l.b16 %v3057
    %v4073 = vunpack.c.l.b16 %v3058
    %v4074 = vunpack.c.l.b16 %v3059
    %v4075 = vunpack.c.l.b16 %v3060
    %v4076 = vunpack.c.l.b16 %v3061
    %v4077 = vunpack.c.l.b16 %v3062
    %v4078 = vunpack.c.l.b16 %v3063
    %v4079 = vunpack.c.l.b16 %v3064
    %v4080 = vunpack.c.l.b16 %v3065
    %v4081 = vunpack.c.l.b16 %v3066
    %v4082 = vunpack.c.l.b16 %v3067
    %v4083 = vunpack.c.l.b16 %v3068
    %v4084 = vunpack.c.l.b16 %v3069
    %v4085 = vunpack.c.l.b16 %v3070
    %v4086 = vunpack.c.l.b16 %v3071
    %v4087 = vunpack.c.l.b16 %v3072
    %v4088 = vunpack.c.l.b16 %v3073
    %v4089 = vunpack.c.l.b16 %v3074
    %v4090 = vunpack.c.l.b16 %v3075
    %v4091 = vunpack.c.l.b16 %v3076
    %v4092 = vunpack.c.l.b16 %v3077
    %v4093 = vunpack.c.l.b16 %v3078
    %v4094 = vunpack.c.l.b16 %v3079
    %v4095 = vunpack.c.l.b16 %v3080
    %v4096 = vunpack.c.l.b16 %v3081
    %v4097 = vunpack.c.l.b16 %v3082
    %v4098 = vunpack.c.l.b16 %v3083
    %v4099 = vunpack.c.l.b16 %v3084
    %v4100 = vunpack.c.l.b16 %v3085
    %v4101 = vunpack.c.l.b16 %v3086
    %v4102 = vunpack.c.l.b16 %v3087
    %v4103 = vunpack.c.l.b16 %v3088
    %v4104 = vunpack.c.l.b16 %v3089
    %v4105 = vunpack.c.l.b16 %v3090
    %v4106 = vunpack.c.l.b16 %v3091
    %v4107 = vunpack.c.l.b16 %v3092
    %v4108 = vunpack.c.l.b16 %v3093
    %v4109 = vunpack.c.l.b16 %v3094
    %v4110 = vunpack.c.l.b16 %v3095
    %v4111 = vunpack.c.l.b16 %v3096
    %v4112 = vunpack.c.l.b16 %v3097
    %v4113 = vunpack.c.l.b16 %v3098
    %v4114 = vunpack.c.l.b16 %v3099
    %v4115 = vunpack.c.l.b16 %v3100
    %v4116 = vunpack.c.l.b16 %v3101
    %v4117 = vunpack.c.l.b16 %v3102
    %v4118 = vunpack.c.l.b16 %v3103
    %v4119 = vunpack.c.l.b16 %v3104
    %v4120 = vunpack.c.l.b16 %v3105
    %v4121 = vunpack.c.l.b16 %v3106
    %v4122 = vunpack.c.l.b16 %v3107
    %v4123 = vunpack.c.l.b16 %v3108
    %v4124 = vunpack.c.l.b16 %v3109
    %v4125 = vunpack.c.l.b16 %v3110
    %v4126 = vunpack.c.l.b16 %v3111
    %v4127 = vunpack.c.l.b16 %v3112
    %v4128 = vunpack.c.l.b16 %v3113
    %v4129 = vpack.c.b16 %v3906, %v3905
    %v4130 = vpack.c.b16 %v3908, %v3907
    %v4131 = vpack.c.b16 %v3910, %v3909
    %v4132 = vpack.c.b16 %v3912, %v3911
    %v4133 = vpack.c.b16 %v3914, %v3913
    %v4134 = vpack.c.b16 %v3916, %v3915
    %v4135 = vpack.c.b16 %v3918, %v3917
    %v4136 = vpack.c.b16 %v3920, %v3919
    %v4137 = vpack.c.b16 %v3922, %v3921
    %v4138 = vpack.c.b16 %v3924, %v3923
    %v4139 = vpack.c.b16 %v3926, %v3925
    %v4140 = vpack.c.b16 %v3928, %v3927
    %v4141 = vpack.c.b16 %v3930, %v3929
    %v4142 = vpack.c.b16 %v3932, %v3931
    %v4143 = vpack.c.b16 %v3934, %v3933
    %v4144 = vpack.c.b16 %v3936, %v3935
    %v4145 = vpack.c.b16 %v3938, %v3937
    %v4146 = vpack.c.b16 %v3940, %v3939
    %v4147 = vpack.c.b16 %v3942, %v3941
    %v4148 = vpack.c.b16 %v3944, %v3943
    %v4149 = vpack.c.b16 %v3946, %v3945
    %v4150 = vpack.c.b16 %v3948, %v3947
    %v4151 = vpack.c.b16 %v3950, %v3949
    %v4152 = vpack.c.b16 %v3952, %v3951
    %v4153 = vpack.c.b16 %v3954, %v3953
    %v4154 = vpack.c.b16 %v3956, %v3955
    %v4155 = vpack.c.b16 %v3958, %v3957
    %v4156 = vpack.c.b16 %v3960, %v3959
    %v4157 = vpack.c.b16 %v3962, %v3961
    %v4158 = vpack.c.b16 %v3964, %v3963
    %v4159 = vpack.c.b16 %v3966, %v3965
    %v4160 = vpack.c.b16 %v3968, %v3967
    %v4161 = vpack.c.b16 %v3970, %v3969
    %v4162 = vpack.c.b16 %v3972, %v3971
    %v4163 = vpack.c.b16 %v3974, %v3973
    %v4164 = vpack.c.b16 %v3976, %v3975
    %v4165 = vpack.c.b16 %v3978, %v3977
    %v4166 = vpack.c.b16 %v3980, %v3979
    %v4167 = vpack.c.b16 %v3982, %v3981
    %v4168 = vpack.c.b16 %v3984, %v3983
    %v4169 = vpack.c.b16 %v3986, %v3985
    %v4170 = vpack.c.b16 %v3988, %v3987
    %v4171 = vpack.c.b16 %v3990, %v3989
    %v4172 = vpack.c.b16 %v3992, %v3991
    %v4173 = vpack.c.b16 %v3994, %v3993
    %v4174 = vpack.c.b16 %v3996, %v3995
    %v4175 = vpack.c.b16 %v3998, %v3997
    %v4176 = vpack.c.b16 %v4000, %v3999
    %v4177 = vpack.c.b16 %v4002, %v4001
    %v4178 = vpack.c.b16 %v4004, %v4003
    %v4179 = vpack.c.b16 %v4006, %v4005
    %v4180 = vpack.c.b16 %v4008, %v4007
    %v4181 = vpack.c.b16 %v4010, %v4009
    %v4182 = vpack.c.b16 %v4012, %v4011
    %v4183 = vpack.c.b16 %v4014, %v4013
    %v4184 = vpack.c.b16 %v4016, %v4015
    %v4185 = vpack.c.b16 %v4018, %v4017
    %v4186 = vpack.c.b16 %v4020, %v4019
    %v4187 = vpack.c.b16 %v4022, %v4021
    %v4188 = vpack.c.b16 %v4024, %v4023
    %v4189 = vpack.c.b16 %v4026, %v4025
    %v4190 = vpack.c.b16 %v4028, %v4027
    %v4191 = vpack.c.b16 %v4030, %v4029
    %v4192 = vpack.c.b16 %v4032, %v4031
    %v4193 = vpack.c.b16 %v4034, %v4033
    %v4194 = vpack.c.b16 %v4036, %v4035
    %v4195 = vpack.c.b16 %v4038, %v4037
    %v4196 = vpack.c.b16 %v4040, %v4039
    %v4197 = vpack.c.b16 %v4042, %v4041
    %v4198 = vpack.c.b16 %v4044, %v4043
    %v4199 = vpack.c.b16 %v4046, %v4045
    %v4200 = vpack.c.b16 %v4048, %v4047
    %v4201 = vpack.c.b16 %v4050, %v4049
    %v4202 = vpack.c.b16 %v4052, %v4051
    %v4203 = vpack.c.b16 %v4054, %v4053
    %v4204 = vpack.c.b16 %v4056, %v4055
    %v4205 = vpack.c.b16 %v4058, %v4057
    %v4206 = vpack.c.b16 %v4060, %v4059
    %v4207 = vpack.c.b16 %v4062, %v4061
    %v4208 = vpack.c.b16 %v4064, %v4063
    %v4209 = vpack.c.b16 %v4066, %v4065
    %v4210 = vpack.c.b16 %v4068, %v4067
    %v4211 = vpack.c.b16 %v4070, %v4069
    %v4212 = vpack.c.b16 %v4072, %v4071
    %v4213 = vpack.c.b16 %v4074, %v4073
    %v4214 = vpack.c.b16 %v4076, %v4075
    %v4215 = vpack.c.b16 %v4078, %v4077
    %v4216 = vpack.c.b16 %v4080, %v4079
    %v4217 = vpack.c.b16 %v4082, %v4081
    %v4218 = vpack.c.b16 %v4084, %v4083
    %v4219 = vpack.c.b16 %v4086, %v4085
    %v4220 = vpack.c.b16 %v4088, %v4087
    %v4221 = vpack.c.b16 %v4090, %v4089
    %v4222 = vpack.c.b16 %v4092, %v4091
    %v4223 = vpack.c.b16 %v4094, %v4093
    %v4224 = vpack.c.b16 %v4096, %v4095
    %v4225 = vpack.c.b16 %v4098, %v4097
    %v4226 = vpack.c.b16 %v4100, %v4099
    %v4227 = vpack.c.b16 %v4102, %v4101
    %v4228 = vpack.c.b16 %v4104, %v4103
    %v4229 = vpack.c.b16 %v4106, %v4105
    %v4230 = vpack.c.b16 %v4108, %v4107
    %v4231 = vpack.c.b16 %v4110, %v4109
    %v4232 = vpack.c.b16 %v4112, %v4111
    %v4233 = vpack.c.b16 %v4114, %v4113
    %v4234 = vpack.c.b16 %v4116, %v4115
    %v4235 = vpack.c.b16 %v4118, %v4117
    %v4236 = vpack.c.b16 %v4120, %v4119
    %v4237 = vpack.c.b16 %v4122, %v4121
    %v4238 = vpack.c.b16 %v4124, %v4123
    %v4239 = vpack.c.b16 %v4126, %v4125
    %v4240 = vpack.c.b16 %v4128, %v4127
    %4353 = vmatprep.subr.bf16.mxu0 0
    %4354 = vmatpush1.bf16.msra.mxu0 %v4136
    %4355 = vmatprep.subr.bf16.mxu0 0
    %4356 = vmatpush1.bf16.msra.mxu0 %v4135
    %4357 = vmatprep.subr.bf16.mxu0 0
    %4358 = vmatpush1.bf16.msra.mxu0 %v4134
    %4359 = vmatprep.subr.bf16.mxu0 0
    %4360 = vmatpush1.bf16.msra.mxu0 %v4133
    %4361 = vmatprep.subr.bf16.mxu0 0
    %4362 = vmatpush1.bf16.msra.mxu0 %v4132
    %4363 = vmatprep.subr.bf16.mxu0 0
    %4364 = vmatpush1.bf16.msra.mxu0 %v4131
    %4365 = vmatprep.subr.bf16.mxu0 0
    %4366 = vmatpush1.bf16.msra.mxu0 %v4130
    %4367 = vmatprep.subr.bf16.mxu0 0
    %4368 = vmatpush1.bf16.msra.mxu0 %v4129
    %4369 = vmatprep.subr.bf16.mxu0 0
    %4370 = vmatpush2.bf16.msra.mxu0 %v4144
    %4371 = vmatprep.subr.bf16.mxu0 0
    %4372 = vmatpush2.bf16.msra.mxu0 %v4143
    %4373 = vmatprep.subr.bf16.mxu0 0
    %4374 = vmatpush2.bf16.msra.mxu0 %v4142
    %4375 = vmatprep.subr.bf16.mxu0 0
    %4376 = vmatpush2.bf16.msra.mxu0 %v4141
    %4377 = vmatprep.subr.bf16.mxu0 0
    %4378 = vmatpush2.bf16.msra.mxu0 %v4140
    %4379 = vmatprep.subr.bf16.mxu0 0
    %4380 = vmatpush2.bf16.msra.mxu0 %v4139
    %4381 = vmatprep.subr.bf16.mxu0 0
    %4382 = vmatpush2.bf16.msra.mxu0 %v4138
    %4383 = vmatprep.subr.bf16.mxu0 0
    %4384 = vmatpush2.bf16.msra.mxu0 %v4137
    %4385 = vmatprep.mubr.bf16.mxu0 %v3458
    %4386 = vmatmul.mubr.bf16.gmra.mxu0 %v3457
    %v4387 = vpop.f32.mrf.mxu0
    %v4388 = vadd.f32 %v3119, %v4387
    %v4389 = vpop.f32.mrf.mxu0
    %v4390 = vpop.f32.mrf.mxu0
    %v4391 = vadd.f32 %v3119, %v4390
    %v4392 = vpop.f32.mrf.mxu0
    %4393 = vmatprep.mubr.bf16.mxu0 %v3472
    %4394 = vmatmul.mubr.bf16.gmra.mxu0 %v3471
    %v4395 = vpop.f32.mrf.mxu0
    %v4396 = vadd.f32 %v3119, %v4395
    %v4397 = vpop.f32.mrf.mxu0
    %v4398 = vpop.f32.mrf.mxu0
    %v4399 = vadd.f32 %v3119, %v4398
    %v4400 = vpop.f32.mrf.mxu0
    %4401 = vmatprep.mubr.bf16.mxu0 %v3486
    %4402 = vmatmul.mubr.bf16.gmra.mxu0 %v3485
    %v4403 = vpop.f32.mrf.mxu0
    %v4404 = vadd.f32 %v3119, %v4403
    %v4405 = vpop.f32.mrf.mxu0
    %v4406 = vpop.f32.mrf.mxu0
    %v4407 = vadd.f32 %v3119, %v4406
    %v4408 = vpop.f32.mrf.mxu0
    %4409 = vmatprep.mubr.bf16.mxu0 %v3500
    %4410 = vmatmul.mubr.bf16.gmra.mxu0 %v3499
    %v4411 = vpop.f32.mrf.mxu0
    %v4412 = vadd.f32 %v3119, %v4411
    %v4413 = vpop.f32.mrf.mxu0
    %v4414 = vpop.f32.mrf.mxu0
    %v4415 = vadd.f32 %v3119, %v4414
    %v4416 = vpop.f32.mrf.mxu0
    %4417 = vmatprep.mubr.bf16.mxu0 %v3514
    %4418 = vmatmul.mubr.bf16.gmra.mxu0 %v3513
    %v4419 = vpop.f32.mrf.mxu0
    %v4420 = vadd.f32 %v3119, %v4419
    %v4421 = vpop.f32.mrf.mxu0
    %v4422 = vpop.f32.mrf.mxu0
    %v4423 = vadd.f32 %v3119, %v4422
    %v4424 = vpop.f32.mrf.mxu0
    %4425 = vmatprep.mubr.bf16.mxu0 %v3528
    %4426 = vmatmul.mubr.bf16.gmra.mxu0 %v3527
    %v4427 = vpop.f32.mrf.mxu0
    %v4428 = vadd.f32 %v3119, %v4427
    %v4429 = vpop.f32.mrf.mxu0
    %v4430 = vpop.f32.mrf.mxu0
    %v4431 = vadd.f32 %v3119, %v4430
    %v4432 = vpop.f32.mrf.mxu0
    %4433 = vmatprep.mubr.bf16.mxu0 %v3542
    %4434 = vmatmul.mubr.bf16.gmra.mxu0 %v3541
    %v4435 = vpop.f32.mrf.mxu0
    %v4436 = vadd.f32 %v3119, %v4435
    %v4437 = vpop.f32.mrf.mxu0
    %v4438 = vpop.f32.mrf.mxu0
    %v4439 = vadd.f32 %v3119, %v4438
    %v4440 = vpop.f32.mrf.mxu0
    %4441 = vmatprep.mubr.bf16.mxu0 %v3556
    %4442 = vmatmul.mubr.bf16.gmra.mxu0 %v3555
    %v4443 = vpop.f32.mrf.mxu0
    %v4444 = vadd.f32 %v3119, %v4443
    %v4445 = vpop.f32.mrf.mxu0
    %v4446 = vpop.f32.mrf.mxu0
    %v4447 = vadd.f32 %v3119, %v4446
    %v4448 = vpop.f32.mrf.mxu0
    %4449 = vdwg.mxu0
    %4450 = vmatprep.subr.bf16.mxu0 0
    %4451 = vmatpush1.bf16.msra.mxu0 %v4152
    %4452 = vmatprep.subr.bf16.mxu0 0
    %4453 = vmatpush1.bf16.msra.mxu0 %v4151
    %4454 = vmatprep.subr.bf16.mxu0 0
    %4455 = vmatpush1.bf16.msra.mxu0 %v4150
    %4456 = vmatprep.subr.bf16.mxu0 0
    %4457 = vmatpush1.bf16.msra.mxu0 %v4149
    %4458 = vmatprep.subr.bf16.mxu0 0
    %4459 = vmatpush1.bf16.msra.mxu0 %v4148
    %4460 = vmatprep.subr.bf16.mxu0 0
    %4461 = vmatpush1.bf16.msra.mxu0 %v4147
    %4462 = vmatprep.subr.bf16.mxu0 0
    %4463 = vmatpush1.bf16.msra.mxu0 %v4146
    %4464 = vmatprep.subr.bf16.mxu0 0
    %4465 = vmatpush1.bf16.msra.mxu0 %v4145
    %4466 = vmatprep.subr.bf16.mxu0 0
    %4467 = vmatpush2.bf16.msra.mxu0 %v4160
    %4468 = vmatprep.subr.bf16.mxu0 0
    %4469 = vmatpush2.bf16.msra.mxu0 %v4159
    %4470 = vmatprep.subr.bf16.mxu0 0
    %4471 = vmatpush2.bf16.msra.mxu0 %v4158
    %4472 = vmatprep.subr.bf16.mxu0 0
    %4473 = vmatpush2.bf16.msra.mxu0 %v4157
    %4474 = vmatprep.subr.bf16.mxu0 0
    %4475 = vmatpush2.bf16.msra.mxu0 %v4156
    %4476 = vmatprep.subr.bf16.mxu0 0
    %4477 = vmatpush2.bf16.msra.mxu0 %v4155
    %4478 = vmatprep.subr.bf16.mxu0 0
    %4479 = vmatpush2.bf16.msra.mxu0 %v4154
    %4480 = vmatprep.subr.bf16.mxu0 0
    %4481 = vmatpush2.bf16.msra.mxu0 %v4153
    %4482 = vmatprep.mubr.bf16.mxu0 %v3460
    %4483 = vmatmul.mubr.bf16.gmra.mxu0 %v3459
    %v4484 = vpop.f32.mrf.mxu0
    %v4485 = vadd.f32 %v4388, %v4484
    %v4486 = vpop.f32.mrf.mxu0
    %v4487 = vpop.f32.mrf.mxu0
    %v4488 = vadd.f32 %v4391, %v4487
    %v4489 = vpop.f32.mrf.mxu0
    %4490 = vmatprep.mubr.bf16.mxu0 %v3474
    %4491 = vmatmul.mubr.bf16.gmra.mxu0 %v3473
    %v4492 = vpop.f32.mrf.mxu0
    %v4493 = vadd.f32 %v4396, %v4492
    %v4494 = vpop.f32.mrf.mxu0
    %v4495 = vpop.f32.mrf.mxu0
    %v4496 = vadd.f32 %v4399, %v4495
    %v4497 = vpop.f32.mrf.mxu0
    %4498 = vmatprep.mubr.bf16.mxu0 %v3488
    %4499 = vmatmul.mubr.bf16.gmra.mxu0 %v3487
    %v4500 = vpop.f32.mrf.mxu0
    %v4501 = vadd.f32 %v4404, %v4500
    %v4502 = vpop.f32.mrf.mxu0
    %v4503 = vpop.f32.mrf.mxu0
    %v4504 = vadd.f32 %v4407, %v4503
    %v4505 = vpop.f32.mrf.mxu0
    %4506 = vmatprep.mubr.bf16.mxu0 %v3502
    %4507 = vmatmul.mubr.bf16.gmra.mxu0 %v3501
    %v4508 = vpop.f32.mrf.mxu0
    %v4509 = vadd.f32 %v4412, %v4508
    %v4510 = vpop.f32.mrf.mxu0
    %v4511 = vpop.f32.mrf.mxu0
    %v4512 = vadd.f32 %v4415, %v4511
    %v4513 = vpop.f32.mrf.mxu0
    %4514 = vmatprep.mubr.bf16.mxu0 %v3516
    %4515 = vmatmul.mubr.bf16.gmra.mxu0 %v3515
    %v4516 = vpop.f32.mrf.mxu0
    %v4517 = vadd.f32 %v4420, %v4516
    %v4518 = vpop.f32.mrf.mxu0
    %v4519 = vpop.f32.mrf.mxu0
    %v4520 = vadd.f32 %v4423, %v4519
    %v4521 = vpop.f32.mrf.mxu0
    %4522 = vmatprep.mubr.bf16.mxu0 %v3530
    %4523 = vmatmul.mubr.bf16.gmra.mxu0 %v3529
    %v4524 = vpop.f32.mrf.mxu0
    %v4525 = vadd.f32 %v4428, %v4524
    %v4526 = vpop.f32.mrf.mxu0
    %v4527 = vpop.f32.mrf.mxu0
    %v4528 = vadd.f32 %v4431, %v4527
    %v4529 = vpop.f32.mrf.mxu0
    %4530 = vmatprep.mubr.bf16.mxu0 %v3544
    %4531 = vmatmul.mubr.bf16.gmra.mxu0 %v3543
    %v4532 = vpop.f32.mrf.mxu0
    %v4533 = vadd.f32 %v4436, %v4532
    %v4534 = vpop.f32.mrf.mxu0
    %v4535 = vpop.f32.mrf.mxu0
    %v4536 = vadd.f32 %v4439, %v4535
    %v4537 = vpop.f32.mrf.mxu0
    %4538 = vmatprep.mubr.bf16.mxu0 %v3558
    %4539 = vmatmul.mubr.bf16.gmra.mxu0 %v3557
    %v4540 = vpop.f32.mrf.mxu0
    %v4541 = vadd.f32 %v4444, %v4540
    %v4542 = vpop.f32.mrf.mxu0
    %v4543 = vpop.f32.mrf.mxu0
    %v4544 = vadd.f32 %v4447, %v4543
    %v4545 = vpop.f32.mrf.mxu0
    %4546 = vdwg.mxu0
    %4547 = vmatprep.subr.bf16.mxu0 0
    %4548 = vmatpush1.bf16.msra.mxu0 %v4168
    %4549 = vmatprep.subr.bf16.mxu0 0
    %4550 = vmatpush1.bf16.msra.mxu0 %v4167
    %4551 = vmatprep.subr.bf16.mxu0 0
    %4552 = vmatpush1.bf16.msra.mxu0 %v4166
    %4553 = vmatprep.subr.bf16.mxu0 0
    %4554 = vmatpush1.bf16.msra.mxu0 %v4165
    %4555 = vmatprep.subr.bf16.mxu0 0
    %4556 = vmatpush1.bf16.msra.mxu0 %v4164
    %4557 = vmatprep.subr.bf16.mxu0 0
    %4558 = vmatpush1.bf16.msra.mxu0 %v4163
    %4559 = vmatprep.subr.bf16.mxu0 0
    %4560 = vmatpush1.bf16.msra.mxu0 %v4162
    %4561 = vmatprep.subr.bf16.mxu0 0
    %4562 = vmatpush1.bf16.msra.mxu0 %v4161
    %4563 = vmatprep.subr.bf16.mxu0 0
    %4564 = vmatpush2.bf16.msra.mxu0 %v4176
    %4565 = vmatprep.subr.bf16.mxu0 0
    %4566 = vmatpush2.bf16.msra.mxu0 %v4175
    %4567 = vmatprep.subr.bf16.mxu0 0
    %4568 = vmatpush2.bf16.msra.mxu0 %v4174
    %4569 = vmatprep.subr.bf16.mxu0 0
    %4570 = vmatpush2.bf16.msra.mxu0 %v4173
    %4571 = vmatprep.subr.bf16.mxu0 0
    %4572 = vmatpush2.bf16.msra.mxu0 %v4172
    %4573 = vmatprep.subr.bf16.mxu0 0
    %4574 = vmatpush2.bf16.msra.mxu0 %v4171
    %4575 = vmatprep.subr.bf16.mxu0 0
    %4576 = vmatpush2.bf16.msra.mxu0 %v4170
    %4577 = vmatprep.subr.bf16.mxu0 0
    %4578 = vmatpush2.bf16.msra.mxu0 %v4169
    %4579 = vmatprep.mubr.bf16.mxu0 %v3462
    %4580 = vmatmul.mubr.bf16.gmra.mxu0 %v3461
    %v4581 = vpop.f32.mrf.mxu0
    %v4582 = vadd.f32 %v4485, %v4581
    %v4583 = vpop.f32.mrf.mxu0
    %v4584 = vpop.f32.mrf.mxu0
    %v4585 = vadd.f32 %v4488, %v4584
    %v4586 = vpop.f32.mrf.mxu0
    %4587 = vmatprep.mubr.bf16.mxu0 %v3476
    %4588 = vmatmul.mubr.bf16.gmra.mxu0 %v3475
    %v4589 = vpop.f32.mrf.mxu0
    %v4590 = vadd.f32 %v4493, %v4589
    %v4591 = vpop.f32.mrf.mxu0
    %v4592 = vpop.f32.mrf.mxu0
    %v4593 = vadd.f32 %v4496, %v4592
    %v4594 = vpop.f32.mrf.mxu0
    %4595 = vmatprep.mubr.bf16.mxu0 %v3490
    %4596 = vmatmul.mubr.bf16.gmra.mxu0 %v3489
    %v4597 = vpop.f32.mrf.mxu0
    %v4598 = vadd.f32 %v4501, %v4597
    %v4599 = vpop.f32.mrf.mxu0
    %v4600 = vpop.f32.mrf.mxu0
    %v4601 = vadd.f32 %v4504, %v4600
    %v4602 = vpop.f32.mrf.mxu0
    %4603 = vmatprep.mubr.bf16.mxu0 %v3504
    %4604 = vmatmul.mubr.bf16.gmra.mxu0 %v3503
    %v4605 = vpop.f32.mrf.mxu0
    %v4606 = vadd.f32 %v4509, %v4605
    %v4607 = vpop.f32.mrf.mxu0
    %v4608 = vpop.f32.mrf.mxu0
    %v4609 = vadd.f32 %v4512, %v4608
    %v4610 = vpop.f32.mrf.mxu0
    %4611 = vmatprep.mubr.bf16.mxu0 %v3518
    %4612 = vmatmul.mubr.bf16.gmra.mxu0 %v3517
    %v4613 = vpop.f32.mrf.mxu0
    %v4614 = vadd.f32 %v4517, %v4613
    %v4615 = vpop.f32.mrf.mxu0
    %v4616 = vpop.f32.mrf.mxu0
    %v4617 = vadd.f32 %v4520, %v4616
    %v4618 = vpop.f32.mrf.mxu0
    %4619 = vmatprep.mubr.bf16.mxu0 %v3532
    %4620 = vmatmul.mubr.bf16.gmra.mxu0 %v3531
    %v4621 = vpop.f32.mrf.mxu0
    %v4622 = vadd.f32 %v4525, %v4621
    %v4623 = vpop.f32.mrf.mxu0
    %v4624 = vpop.f32.mrf.mxu0
    %v4625 = vadd.f32 %v4528, %v4624
    %v4626 = vpop.f32.mrf.mxu0
    %4627 = vmatprep.mubr.bf16.mxu0 %v3546
    %4628 = vmatmul.mubr.bf16.gmra.mxu0 %v3545
    %v4629 = vpop.f32.mrf.mxu0
    %v4630 = vadd.f32 %v4533, %v4629
    %v4631 = vpop.f32.mrf.mxu0
    %v4632 = vpop.f32.mrf.mxu0
    %v4633 = vadd.f32 %v4536, %v4632
    %v4634 = vpop.f32.mrf.mxu0
    %4635 = vmatprep.mubr.bf16.mxu0 %v3560
    %4636 = vmatmul.mubr.bf16.gmra.mxu0 %v3559
    %v4637 = vpop.f32.mrf.mxu0
    %v4638 = vadd.f32 %v4541, %v4637
    %v4639 = vpop.f32.mrf.mxu0
    %v4640 = vpop.f32.mrf.mxu0
    %v4641 = vadd.f32 %v4544, %v4640
    %v4642 = vpop.f32.mrf.mxu0
    %4643 = vdwg.mxu0
    %4644 = vmatprep.subr.bf16.mxu0 0
    %4645 = vmatpush1.bf16.msra.mxu0 %v4184
    %4646 = vmatprep.subr.bf16.mxu0 0
    %4647 = vmatpush1.bf16.msra.mxu0 %v4183
    %4648 = vmatprep.subr.bf16.mxu0 0
    %4649 = vmatpush1.bf16.msra.mxu0 %v4182
    %4650 = vmatprep.subr.bf16.mxu0 0
    %4651 = vmatpush1.bf16.msra.mxu0 %v4181
    %4652 = vmatprep.subr.bf16.mxu0 0
    %4653 = vmatpush1.bf16.msra.mxu0 %v4180
    %4654 = vmatprep.subr.bf16.mxu0 0
    %4655 = vmatpush1.bf16.msra.mxu0 %v4179
    %4656 = vmatprep.subr.bf16.mxu0 0
    %4657 = vmatpush1.bf16.msra.mxu0 %v4178
    %4658 = vmatprep.subr.bf16.mxu0 0
    %4659 = vmatpush1.bf16.msra.mxu0 %v4177
    %4660 = vmatprep.subr.bf16.mxu0 0
    %4661 = vmatpush2.bf16.msra.mxu0 %v4192
    %4662 = vmatprep.subr.bf16.mxu0 0
    %4663 = vmatpush2.bf16.msra.mxu0 %v4191
    %4664 = vmatprep.subr.bf16.mxu0 0
    %4665 = vmatpush2.bf16.msra.mxu0 %v4190
    %4666 = vmatprep.subr.bf16.mxu0 0
    %4667 = vmatpush2.bf16.msra.mxu0 %v4189
    %4668 = vmatprep.subr.bf16.mxu0 0
    %4669 = vmatpush2.bf16.msra.mxu0 %v4188
    %4670 = vmatprep.subr.bf16.mxu0 0
    %4671 = vmatpush2.bf16.msra.mxu0 %v4187
    %4672 = vmatprep.subr.bf16.mxu0 0
    %4673 = vmatpush2.bf16.msra.mxu0 %v4186
    %4674 = vmatprep.subr.bf16.mxu0 0
    %4675 = vmatpush2.bf16.msra.mxu0 %v4185
    %4676 = vmatprep.mubr.bf16.mxu0 %v3464
    %4677 = vmatmul.mubr.bf16.gmra.mxu0 %v3463
    %v4678 = vpop.f32.mrf.mxu0
    %v4679 = vadd.f32 %v4582, %v4678
    %v4680 = vpop.f32.mrf.mxu0
    %v4681 = vpop.f32.mrf.mxu0
    %v4682 = vadd.f32 %v4585, %v4681
    %v4683 = vpop.f32.mrf.mxu0
    %4684 = vmatprep.mubr.bf16.mxu0 %v3478
    %4685 = vmatmul.mubr.bf16.gmra.mxu0 %v3477
    %v4686 = vpop.f32.mrf.mxu0
    %v4687 = vadd.f32 %v4590, %v4686
    %v4688 = vpop.f32.mrf.mxu0
    %v4689 = vpop.f32.mrf.mxu0
    %v4690 = vadd.f32 %v4593, %v4689
    %v4691 = vpop.f32.mrf.mxu0
    %4692 = vmatprep.mubr.bf16.mxu0 %v3492
    %4693 = vmatmul.mubr.bf16.gmra.mxu0 %v3491
    %v4694 = vpop.f32.mrf.mxu0
    %v4695 = vadd.f32 %v4598, %v4694
    %v4696 = vpop.f32.mrf.mxu0
    %v4697 = vpop.f32.mrf.mxu0
    %v4698 = vadd.f32 %v4601, %v4697
    %v4699 = vpop.f32.mrf.mxu0
    %4700 = vmatprep.mubr.bf16.mxu0 %v3506
    %4701 = vmatmul.mubr.bf16.gmra.mxu0 %v3505
    %v4702 = vpop.f32.mrf.mxu0
    %v4703 = vadd.f32 %v4606, %v4702
    %v4704 = vpop.f32.mrf.mxu0
    %v4705 = vpop.f32.mrf.mxu0
    %v4706 = vadd.f32 %v4609, %v4705
    %v4707 = vpop.f32.mrf.mxu0
    %4708 = vmatprep.mubr.bf16.mxu0 %v3520
    %4709 = vmatmul.mubr.bf16.gmra.mxu0 %v3519
    %v4710 = vpop.f32.mrf.mxu0
    %v4711 = vadd.f32 %v4614, %v4710
    %v4712 = vpop.f32.mrf.mxu0
    %v4713 = vpop.f32.mrf.mxu0
    %v4714 = vadd.f32 %v4617, %v4713
    %v4715 = vpop.f32.mrf.mxu0
    %4716 = vmatprep.mubr.bf16.mxu0 %v3534
    %4717 = vmatmul.mubr.bf16.gmra.mxu0 %v3533
    %v4718 = vpop.f32.mrf.mxu0
    %v4719 = vadd.f32 %v4622, %v4718
    %v4720 = vpop.f32.mrf.mxu0
    %v4721 = vpop.f32.mrf.mxu0
    %v4722 = vadd.f32 %v4625, %v4721
    %v4723 = vpop.f32.mrf.mxu0
    %4724 = vmatprep.mubr.bf16.mxu0 %v3548
    %4725 = vmatmul.mubr.bf16.gmra.mxu0 %v3547
    %v4726 = vpop.f32.mrf.mxu0
    %v4727 = vadd.f32 %v4630, %v4726
    %v4728 = vpop.f32.mrf.mxu0
    %v4729 = vpop.f32.mrf.mxu0
    %v4730 = vadd.f32 %v4633, %v4729
    %v4731 = vpop.f32.mrf.mxu0
    %4732 = vmatprep.mubr.bf16.mxu0 %v3562
    %4733 = vmatmul.mubr.bf16.gmra.mxu0 %v3561
    %v4734 = vpop.f32.mrf.mxu0
    %v4735 = vadd.f32 %v4638, %v4734
    %v4736 = vpop.f32.mrf.mxu0
    %v4737 = vpop.f32.mrf.mxu0
    %v4738 = vadd.f32 %v4641, %v4737
    %v4739 = vpop.f32.mrf.mxu0
    %4740 = vdwg.mxu0
    %4741 = vmatprep.subr.bf16.mxu0 0
    %4742 = vmatpush1.bf16.msra.mxu0 %v4200
    %4743 = vmatprep.subr.bf16.mxu0 0
    %4744 = vmatpush1.bf16.msra.mxu0 %v4199
    %4745 = vmatprep.subr.bf16.mxu0 0
    %4746 = vmatpush1.bf16.msra.mxu0 %v4198
    %4747 = vmatprep.subr.bf16.mxu0 0
    %4748 = vmatpush1.bf16.msra.mxu0 %v4197
    %4749 = vmatprep.subr.bf16.mxu0 0
    %4750 = vmatpush1.bf16.msra.mxu0 %v4196
    %4751 = vmatprep.subr.bf16.mxu0 0
    %4752 = vmatpush1.bf16.msra.mxu0 %v4195
    %4753 = vmatprep.subr.bf16.mxu0 0
    %4754 = vmatpush1.bf16.msra.mxu0 %v4194
    %4755 = vmatprep.subr.bf16.mxu0 0
    %4756 = vmatpush1.bf16.msra.mxu0 %v4193
    %4757 = vmatprep.subr.bf16.mxu0 0
    %4758 = vmatpush2.bf16.msra.mxu0 %v4208
    %4759 = vmatprep.subr.bf16.mxu0 0
    %4760 = vmatpush2.bf16.msra.mxu0 %v4207
    %4761 = vmatprep.subr.bf16.mxu0 0
    %4762 = vmatpush2.bf16.msra.mxu0 %v4206
    %4763 = vmatprep.subr.bf16.mxu0 0
    %4764 = vmatpush2.bf16.msra.mxu0 %v4205
    %4765 = vmatprep.subr.bf16.mxu0 0
    %4766 = vmatpush2.bf16.msra.mxu0 %v4204
    %4767 = vmatprep.subr.bf16.mxu0 0
    %4768 = vmatpush2.bf16.msra.mxu0 %v4203
    %4769 = vmatprep.subr.bf16.mxu0 0
    %4770 = vmatpush2.bf16.msra.mxu0 %v4202
    %4771 = vmatprep.subr.bf16.mxu0 0
    %4772 = vmatpush2.bf16.msra.mxu0 %v4201
    %4773 = vmatprep.mubr.bf16.mxu0 %v3466
    %4774 = vmatmul.mubr.bf16.gmra.mxu0 %v3465
    %v4775 = vpop.f32.mrf.mxu0
    %v4776 = vadd.f32 %v4679, %v4775
    %v4777 = vpop.f32.mrf.mxu0
    %v4778 = vpop.f32.mrf.mxu0
    %v4779 = vadd.f32 %v4682, %v4778
    %v4780 = vpop.f32.mrf.mxu0
    %4781 = vmatprep.mubr.bf16.mxu0 %v3480
    %4782 = vmatmul.mubr.bf16.gmra.mxu0 %v3479
    %v4783 = vpop.f32.mrf.mxu0
    %v4784 = vadd.f32 %v4687, %v4783
    %v4785 = vpop.f32.mrf.mxu0
    %v4786 = vpop.f32.mrf.mxu0
    %v4787 = vadd.f32 %v4690, %v4786
    %v4788 = vpop.f32.mrf.mxu0
    %4789 = vmatprep.mubr.bf16.mxu0 %v3494
    %4790 = vmatmul.mubr.bf16.gmra.mxu0 %v3493
    %v4791 = vpop.f32.mrf.mxu0
    %v4792 = vadd.f32 %v4695, %v4791
    %v4793 = vpop.f32.mrf.mxu0
    %v4794 = vpop.f32.mrf.mxu0
    %v4795 = vadd.f32 %v4698, %v4794
    %v4796 = vpop.f32.mrf.mxu0
    %4797 = vmatprep.mubr.bf16.mxu0 %v3508
    %4798 = vmatmul.mubr.bf16.gmra.mxu0 %v3507
    %v4799 = vpop.f32.mrf.mxu0
    %v4800 = vadd.f32 %v4703, %v4799
    %v4801 = vpop.f32.mrf.mxu0
    %v4802 = vpop.f32.mrf.mxu0
    %v4803 = vadd.f32 %v4706, %v4802
    %v4804 = vpop.f32.mrf.mxu0
    %4805 = vmatprep.mubr.bf16.mxu0 %v3522
    %4806 = vmatmul.mubr.bf16.gmra.mxu0 %v3521
    %v4807 = vpop.f32.mrf.mxu0
    %v4808 = vadd.f32 %v4711, %v4807
    %v4809 = vpop.f32.mrf.mxu0
    %v4810 = vpop.f32.mrf.mxu0
    %v4811 = vadd.f32 %v4714, %v4810
    %v4812 = vpop.f32.mrf.mxu0
    %4813 = vmatprep.mubr.bf16.mxu0 %v3536
    %4814 = vmatmul.mubr.bf16.gmra.mxu0 %v3535
    %v4815 = vpop.f32.mrf.mxu0
    %v4816 = vadd.f32 %v4719, %v4815
    %v4817 = vpop.f32.mrf.mxu0
    %v4818 = vpop.f32.mrf.mxu0
    %v4819 = vadd.f32 %v4722, %v4818
    %v4820 = vpop.f32.mrf.mxu0
    %4821 = vmatprep.mubr.bf16.mxu0 %v3550
    %4822 = vmatmul.mubr.bf16.gmra.mxu0 %v3549
    %v4823 = vpop.f32.mrf.mxu0
    %v4824 = vadd.f32 %v4727, %v4823
    %v4825 = vpop.f32.mrf.mxu0
    %v4826 = vpop.f32.mrf.mxu0
    %v4827 = vadd.f32 %v4730, %v4826
    %v4828 = vpop.f32.mrf.mxu0
    %4829 = vmatprep.mubr.bf16.mxu0 %v3564
    %4830 = vmatmul.mubr.bf16.gmra.mxu0 %v3563
    %v4831 = vpop.f32.mrf.mxu0
    %v4832 = vadd.f32 %v4735, %v4831
    %v4833 = vpop.f32.mrf.mxu0
    %v4834 = vpop.f32.mrf.mxu0
    %v4835 = vadd.f32 %v4738, %v4834
    %v4836 = vpop.f32.mrf.mxu0
    %4837 = vdwg.mxu0
    %4838 = vmatprep.subr.bf16.mxu0 0
    %4839 = vmatpush1.bf16.msra.mxu0 %v4216
    %4840 = vmatprep.subr.bf16.mxu0 0
    %4841 = vmatpush1.bf16.msra.mxu0 %v4215
    %4842 = vmatprep.subr.bf16.mxu0 0
    %4843 = vmatpush1.bf16.msra.mxu0 %v4214
    %4844 = vmatprep.subr.bf16.mxu0 0
    %4845 = vmatpush1.bf16.msra.mxu0 %v4213
    %4846 = vmatprep.subr.bf16.mxu0 0
    %4847 = vmatpush1.bf16.msra.mxu0 %v4212
    %4848 = vmatprep.subr.bf16.mxu0 0
    %4849 = vmatpush1.bf16.msra.mxu0 %v4211
    %4850 = vmatprep.subr.bf16.mxu0 0
    %4851 = vmatpush1.bf16.msra.mxu0 %v4210
    %4852 = vmatprep.subr.bf16.mxu0 0
    %4853 = vmatpush1.bf16.msra.mxu0 %v4209
    %4854 = vmatprep.subr.bf16.mxu0 0
    %4855 = vmatpush2.bf16.msra.mxu0 %v4224
    %4856 = vmatprep.subr.bf16.mxu0 0
    %4857 = vmatpush2.bf16.msra.mxu0 %v4223
    %4858 = vmatprep.subr.bf16.mxu0 0
    %4859 = vmatpush2.bf16.msra.mxu0 %v4222
    %4860 = vmatprep.subr.bf16.mxu0 0
    %4861 = vmatpush2.bf16.msra.mxu0 %v4221
    %4862 = vmatprep.subr.bf16.mxu0 0
    %4863 = vmatpush2.bf16.msra.mxu0 %v4220
    %4864 = vmatprep.subr.bf16.mxu0 0
    %4865 = vmatpush2.bf16.msra.mxu0 %v4219
    %4866 = vmatprep.subr.bf16.mxu0 0
    %4867 = vmatpush2.bf16.msra.mxu0 %v4218
    %4868 = vmatprep.subr.bf16.mxu0 0
    %4869 = vmatpush2.bf16.msra.mxu0 %v4217
    %4870 = vmatprep.mubr.bf16.mxu0 %v3468
    %4871 = vmatmul.mubr.bf16.gmra.mxu0 %v3467
    %v4872 = vpop.f32.mrf.mxu0
    %v4873 = vadd.f32 %v4776, %v4872
    %v4874 = vpop.f32.mrf.mxu0
    %v4875 = vpop.f32.mrf.mxu0
    %v4876 = vadd.f32 %v4779, %v4875
    %v4877 = vpop.f32.mrf.mxu0
    %4878 = vmatprep.mubr.bf16.mxu0 %v3482
    %4879 = vmatmul.mubr.bf16.gmra.mxu0 %v3481
    %v4880 = vpop.f32.mrf.mxu0
    %v4881 = vadd.f32 %v4784, %v4880
    %v4882 = vpop.f32.mrf.mxu0
    %v4883 = vpop.f32.mrf.mxu0
    %v4884 = vadd.f32 %v4787, %v4883
    %v4885 = vpop.f32.mrf.mxu0
    %4886 = vmatprep.mubr.bf16.mxu0 %v3496
    %4887 = vmatmul.mubr.bf16.gmra.mxu0 %v3495
    %v4888 = vpop.f32.mrf.mxu0
    %v4889 = vadd.f32 %v4792, %v4888
    %v4890 = vpop.f32.mrf.mxu0
    %v4891 = vpop.f32.mrf.mxu0
    %v4892 = vadd.f32 %v4795, %v4891
    %v4893 = vpop.f32.mrf.mxu0
    %4894 = vmatprep.mubr.bf16.mxu0 %v3510
    %4895 = vmatmul.mubr.bf16.gmra.mxu0 %v3509
    %v4896 = vpop.f32.mrf.mxu0
    %v4897 = vadd.f32 %v4800, %v4896
    %v4898 = vpop.f32.mrf.mxu0
    %v4899 = vpop.f32.mrf.mxu0
    %v4900 = vadd.f32 %v4803, %v4899
    %v4901 = vpop.f32.mrf.mxu0
    %4902 = vmatprep.mubr.bf16.mxu0 %v3524
    %4903 = vmatmul.mubr.bf16.gmra.mxu0 %v3523
    %v4904 = vpop.f32.mrf.mxu0
    %v4905 = vadd.f32 %v4808, %v4904
    %v4906 = vpop.f32.mrf.mxu0
    %v4907 = vpop.f32.mrf.mxu0
    %v4908 = vadd.f32 %v4811, %v4907
    %v4909 = vpop.f32.mrf.mxu0
    %4910 = vmatprep.mubr.bf16.mxu0 %v3538
    %4911 = vmatmul.mubr.bf16.gmra.mxu0 %v3537
    %v4912 = vpop.f32.mrf.mxu0
    %v4913 = vadd.f32 %v4816, %v4912
    %v4914 = vpop.f32.mrf.mxu0
    %v4915 = vpop.f32.mrf.mxu0
    %v4916 = vadd.f32 %v4819, %v4915
    %v4917 = vpop.f32.mrf.mxu0
    %4918 = vmatprep.mubr.bf16.mxu0 %v3552
    %4919 = vmatmul.mubr.bf16.gmra.mxu0 %v3551
    %v4920 = vpop.f32.mrf.mxu0
    %v4921 = vadd.f32 %v4824, %v4920
    %v4922 = vpop.f32.mrf.mxu0
    %v4923 = vpop.f32.mrf.mxu0
    %v4924 = vadd.f32 %v4827, %v4923
    %v4925 = vpop.f32.mrf.mxu0
    %4926 = vmatprep.mubr.bf16.mxu0 %v3566
    %4927 = vmatmul.mubr.bf16.gmra.mxu0 %v3565
    %v4928 = vpop.f32.mrf.mxu0
    %v4929 = vadd.f32 %v4832, %v4928
    %v4930 = vpop.f32.mrf.mxu0
    %v4931 = vpop.f32.mrf.mxu0
    %v4932 = vadd.f32 %v4835, %v4931
    %v4933 = vpop.f32.mrf.mxu0
    %4934 = vdwg.mxu0
    %4935 = vmatprep.subr.bf16.mxu0 0
    %4936 = vmatpush1.bf16.msra.mxu0 %v4232
    %4937 = vmatprep.subr.bf16.mxu0 0
    %4938 = vmatpush1.bf16.msra.mxu0 %v4231
    %4939 = vmatprep.subr.bf16.mxu0 0
    %4940 = vmatpush1.bf16.msra.mxu0 %v4230
    %4941 = vmatprep.subr.bf16.mxu0 0
    %4942 = vmatpush1.bf16.msra.mxu0 %v4229
    %4943 = vmatprep.subr.bf16.mxu0 0
    %4944 = vmatpush1.bf16.msra.mxu0 %v4228
    %4945 = vmatprep.subr.bf16.mxu0 0
    %4946 = vmatpush1.bf16.msra.mxu0 %v4227
    %4947 = vmatprep.subr.bf16.mxu0 0
    %4948 = vmatpush1.bf16.msra.mxu0 %v4226
    %4949 = vmatprep.subr.bf16.mxu0 0
    %4950 = vmatpush1.bf16.msra.mxu0 %v4225
    %4951 = vmatprep.subr.bf16.mxu0 0
    %4952 = vmatpush2.bf16.msra.mxu0 %v4240
    %4953 = vmatprep.subr.bf16.mxu0 0
    %4954 = vmatpush2.bf16.msra.mxu0 %v4239
    %4955 = vmatprep.subr.bf16.mxu0 0
    %4956 = vmatpush2.bf16.msra.mxu0 %v4238
    %4957 = vmatprep.subr.bf16.mxu0 0
    %4958 = vmatpush2.bf16.msra.mxu0 %v4237
    %4959 = vmatprep.subr.bf16.mxu0 0
    %4960 = vmatpush2.bf16.msra.mxu0 %v4236
    %4961 = vmatprep.subr.bf16.mxu0 0
    %4962 = vmatpush2.bf16.msra.mxu0 %v4235
    %4963 = vmatprep.subr.bf16.mxu0 0
    %4964 = vmatpush2.bf16.msra.mxu0 %v4234
    %4965 = vmatprep.subr.bf16.mxu0 0
    %4966 = vmatpush2.bf16.msra.mxu0 %v4233
    %4967 = vmatprep.mubr.bf16.mxu0 %v3470
    %4968 = vmatmul.mubr.bf16.gmra.mxu0 %v3469
    %v4969 = vpop.f32.mrf.mxu0
    %v4970 = vadd.f32 %v4873, %v4969
    %v4971 = vpop.f32.mrf.mxu0
    %v4972 = vpop.f32.mrf.mxu0
    %v4973 = vadd.f32 %v4876, %v4972
    %v4974 = vpop.f32.mrf.mxu0
    %4975 = vmatprep.mubr.bf16.mxu0 %v3484
    %4976 = vmatmul.mubr.bf16.gmra.mxu0 %v3483
    %v4977 = vpop.f32.mrf.mxu0
    %v4978 = vadd.f32 %v4881, %v4977
    %v4979 = vpop.f32.mrf.mxu0
    %v4980 = vpop.f32.mrf.mxu0
    %v4981 = vadd.f32 %v4884, %v4980
    %v4982 = vpop.f32.mrf.mxu0
    %4983 = vmatprep.mubr.bf16.mxu0 %v3498
    %4984 = vmatmul.mubr.bf16.gmra.mxu0 %v3497
    %v4985 = vpop.f32.mrf.mxu0
    %v4986 = vadd.f32 %v4889, %v4985
    %v4987 = vpop.f32.mrf.mxu0
    %v4988 = vpop.f32.mrf.mxu0
    %v4989 = vadd.f32 %v4892, %v4988
    %v4990 = vpop.f32.mrf.mxu0
    %4991 = vmatprep.mubr.bf16.mxu0 %v3512
    %4992 = vmatmul.mubr.bf16.gmra.mxu0 %v3511
    %v4993 = vpop.f32.mrf.mxu0
    %v4994 = vadd.f32 %v4897, %v4993
    %v4995 = vpop.f32.mrf.mxu0
    %v4996 = vpop.f32.mrf.mxu0
    %v4997 = vadd.f32 %v4900, %v4996
    %v4998 = vpop.f32.mrf.mxu0
    %4999 = vmatprep.mubr.bf16.mxu0 %v3526
    %5000 = vmatmul.mubr.bf16.gmra.mxu0 %v3525
    %v5001 = vpop.f32.mrf.mxu0
    %v5002 = vadd.f32 %v4905, %v5001
    %v5003 = vpop.f32.mrf.mxu0
    %v5004 = vpop.f32.mrf.mxu0
    %v5005 = vadd.f32 %v4908, %v5004
    %v5006 = vpop.f32.mrf.mxu0
    %5007 = vmatprep.mubr.bf16.mxu0 %v3540
    %5008 = vmatmul.mubr.bf16.gmra.mxu0 %v3539
    %v5009 = vpop.f32.mrf.mxu0
    %v5010 = vadd.f32 %v4913, %v5009
    %v5011 = vpop.f32.mrf.mxu0
    %v5012 = vpop.f32.mrf.mxu0
    %v5013 = vadd.f32 %v4916, %v5012
    %v5014 = vpop.f32.mrf.mxu0
    %5015 = vmatprep.mubr.bf16.mxu0 %v3554
    %5016 = vmatmul.mubr.bf16.gmra.mxu0 %v3553
    %v5017 = vpop.f32.mrf.mxu0
    %v5018 = vadd.f32 %v4921, %v5017
    %v5019 = vpop.f32.mrf.mxu0
    %v5020 = vpop.f32.mrf.mxu0
    %v5021 = vadd.f32 %v4924, %v5020
    %v5022 = vpop.f32.mrf.mxu0
    %5023 = vmatprep.mubr.bf16.mxu0 %v3568
    %5024 = vmatmul.mubr.bf16.gmra.mxu0 %v3567
    %v5025 = vpop.f32.mrf.mxu0
    %v5026 = vadd.f32 %v4929, %v5025
    %v5027 = vpop.f32.mrf.mxu0
    %v5028 = vpop.f32.mrf.mxu0
    %v5029 = vadd.f32 %v4932, %v5028
    %v5030 = vpop.f32.mrf.mxu0
    %5031 = vdwg.mxu0
    %vm5032 = vcmp.ge.f32.partialorder %v4970, 0.0
    %vm5033 = vcmp.ge.f32.partialorder %v4973, 0.0
    %vm5034 = vcmp.ge.f32.partialorder %v4978, 0.0
    %vm5035 = vcmp.ge.f32.partialorder %v4981, 0.0
    %vm5036 = vcmp.ge.f32.partialorder %v4986, 0.0
    %vm5037 = vcmp.ge.f32.partialorder %v4989, 0.0
    %vm5038 = vcmp.ge.f32.partialorder %v4994, 0.0
    %vm5039 = vcmp.ge.f32.partialorder %v4997, 0.0
    %vm5040 = vcmp.ge.f32.partialorder %v5002, 0.0
    %vm5041 = vcmp.ge.f32.partialorder %v5005, 0.0
    %vm5042 = vcmp.ge.f32.partialorder %v5010, 0.0
    %vm5043 = vcmp.ge.f32.partialorder %v5013, 0.0
    %vm5044 = vcmp.ge.f32.partialorder %v5018, 0.0
    %vm5045 = vcmp.ge.f32.partialorder %v5021, 0.0
    %vm5046 = vcmp.ge.f32.partialorder %v5026, 0.0
    %vm5047 = vcmp.ge.f32.partialorder %v5029, 0.0
    %v5048 = vmul.f32 %v4970, 0.1
    %v5049 = vmul.f32 %v4973, 0.1
    %v5050 = vmul.f32 %v4978, 0.1
    %v5051 = vmul.f32 %v4981, 0.1
    %v5052 = vmul.f32 %v4986, 0.1
    %v5053 = vmul.f32 %v4989, 0.1
    %v5054 = vmul.f32 %v4994, 0.1
    %v5055 = vmul.f32 %v4997, 0.1
    %v5056 = vmul.f32 %v5002, 0.1
    %v5057 = vmul.f32 %v5005, 0.1
    %v5058 = vmul.f32 %v5010, 0.1
    %v5059 = vmul.f32 %v5013, 0.1
    %v5060 = vmul.f32 %v5018, 0.1
    %v5061 = vmul.f32 %v5021, 0.1
    %v5062 = vmul.f32 %v5026, 0.1
    %v5063 = vmul.f32 %v5029, 0.1
    %v5064 = vsel %vm5032, %v4970, %v5048
    %v5065 = vsel %vm5033, %v4973, %v5049
    %v5066 = vsel %vm5034, %v4978, %v5050
    %v5067 = vsel %vm5035, %v4981, %v5051
    %v5068 = vsel %vm5036, %v4986, %v5052
    %v5069 = vsel %vm5037, %v4989, %v5053
    %v5070 = vsel %vm5038, %v4994, %v5054
    %v5071 = vsel %vm5039, %v4997, %v5055
    %v5072 = vsel %vm5040, %v5002, %v5056
    %v5073 = vsel %vm5041, %v5005, %v5057
    %v5074 = vsel %vm5042, %v5010, %v5058
    %v5075 = vsel %vm5043, %v5013, %v5059
    %v5076 = vsel %vm5044, %v5018, %v5060
    %v5077 = vsel %vm5045, %v5021, %v5061
    %v5078 = vsel %vm5046, %v5026, %v5062
    %v5079 = vsel %vm5047, %v5029, %v5063
    %v5080 = vpack.c.bf16 %v5065, %v5064
    %v5081 = vpack.c.bf16 %v5067, %v5066
    %v5082 = vpack.c.bf16 %v5069, %v5068
    %v5083 = vpack.c.bf16 %v5071, %v5070
    %v5084 = vpack.c.bf16 %v5073, %v5072
    %v5085 = vpack.c.bf16 %v5075, %v5074
    %v5086 = vpack.c.bf16 %v5077, %v5076
    %v5087 = vpack.c.bf16 %v5079, %v5078
    %v5088 = vld [vmem:[#allocation14] sm:$0xff]
    %v5089 = vld [vmem:[#allocation14 + $0x8] sm:$0xf]
    %v5090 = vld [vmem:[#allocation14 + $0xc] sm:$0xff]
    %v5091 = vld [vmem:[#allocation14 + $0x14] sm:$0xf]
    %v5092 = vld [vmem:[#allocation14 + $0x18] sm:$0xff]
    %v5093 = vld [vmem:[#allocation14 + $0x20] sm:$0xf]
    %v5094 = vld [vmem:[#allocation14 + $0x24] sm:$0xff]
    %v5095 = vld [vmem:[#allocation14 + $0x2c] sm:$0xf]
    %v5104 = vunpack.c.l.b16 %v5088
    %v5105 = vunpack.c.h.b16 %v5088
    %v5106 = vunpack.c.l.b16 %v5089
    %v5107 = vunpack.c.l.b16 %v5090
    %v5108 = vunpack.c.h.b16 %v5090
    %v5109 = vunpack.c.l.b16 %v5091
    %v5110 = vunpack.c.l.b16 %v5092
    %v5111 = vunpack.c.h.b16 %v5092
    %v5112 = vunpack.c.l.b16 %v5093
    %v5113 = vunpack.c.l.b16 %v5094
    %v5114 = vunpack.c.h.b16 %v5094
    %v5115 = vunpack.c.l.b16 %v5095
    %v5116 = vpack.c.b16 %v5107, %v5104
    %v5117 = vpack.c.b16 %v5108, %v5105
    %v5118 = vpack.c.b16 %v5109, %v5106
    %v5119 = vpack.c.b16 %v5113, %v5110
    %v5120 = vpack.c.b16 %v5114, %v5111
    %v5121 = vpack.c.b16 %v5115, %v5112
    %vm5128 = vcmask 261120
    %v5130 = vsel %vm5128, %v5080, 0
    %v5133 = vsel %vm5128, %v5081, 0
    %v5136 = vsel %vm5128, %v5082, 0
    %v5139 = vsel %vm5128, %v5083, 0
    %v5142 = vsel %vm5128, %v5084, 0
    %v5145 = vsel %vm5128, %v5085, 0
    %v5148 = vsel %vm5128, %v5086, 0
    %v5151 = vsel %vm5128, %v5087, 0
    %5153 = vmatprep.subr.bf16.mxu0 0
    %5154 = vmatpush1.bf16.msra.mxu0 0
    %5155 = vmatprep.subr.bf16.mxu0 0
    %5156 = vmatpush1.bf16.msra.mxu0 0
    %5157 = vmatprep.subr.bf16.mxu0 0
    %5158 = vmatpush1.bf16.msra.mxu0 0
    %5159 = vmatprep.subr.bf16.mxu0 0
    %5160 = vmatpush1.bf16.msra.mxu0 0
    %5161 = vmatprep.subr.bf16.mxu0 0
    %5162 = vmatpush1.bf16.msra.mxu0 0
    %5163 = vmatprep.subr.bf16.mxu0 0
    %5164 = vmatpush1.bf16.msra.mxu0 0
    %5165 = vmatprep.subr.bf16.mxu0 %v5120
    %5166 = vmatpush1.bf16.msra.mxu0 %v5119
    %5167 = vmatprep.subr.bf16.mxu0 %v5117
    %5168 = vmatpush1.bf16.msra.mxu0 %v5116
    %5169 = vmatprep.subr.bf16.mxu0 0
    %5170 = vmatpush2.bf16.msra.mxu0 0
    %5171 = vmatprep.subr.bf16.mxu0 0
    %5172 = vmatpush2.bf16.msra.mxu0 0
    %5173 = vmatprep.subr.bf16.mxu0 0
    %5174 = vmatpush2.bf16.msra.mxu0 0
    %5175 = vmatprep.subr.bf16.mxu0 0
    %5176 = vmatpush2.bf16.msra.mxu0 0
    %5177 = vmatprep.subr.bf16.mxu0 0
    %5178 = vmatpush2.bf16.msra.mxu0 0
    %5179 = vmatprep.subr.bf16.mxu0 0
    %5180 = vmatpush2.bf16.msra.mxu0 0
    %5181 = vmatprep.subr.bf16.mxu0 0
    %5182 = vmatpush2.bf16.msra.mxu0 0
    %5183 = vmatprep.subr.bf16.mxu0 0
    %5184 = vmatpush2.bf16.msra.mxu0 0
    %5185 = vmatprep.mubr.bf16.mxu0 0
    %5186 = vmatmul.mubr.bf16.gmra.mxu0 %v5130
    %v5187 = vpop.f32.mrf.mxu0
    %v5188 = vadd.f32 0.0, %v5187
    %v5189 = vpop.f32.mrf.mxu0
    %v5190 = vadd.f32 0.0, %v5189
    %v5191 = vpop.f32.mrf.mxu0
    %v5192 = vadd.f32 0.0, %v5191
    %v5193 = vpop.f32.mrf.mxu0
    %v5194 = vadd.f32 0.0, %v5193
    %5195 = vmatprep.mubr.bf16.mxu0 0
    %5196 = vmatmul.mubr.bf16.gmra.mxu0 %v5133
    %v5197 = vpop.f32.mrf.mxu0
    %v5198 = vadd.f32 0.0, %v5197
    %v5199 = vpop.f32.mrf.mxu0
    %v5200 = vadd.f32 0.0, %v5199
    %v5201 = vpop.f32.mrf.mxu0
    %v5202 = vadd.f32 0.0, %v5201
    %v5203 = vpop.f32.mrf.mxu0
    %v5204 = vadd.f32 0.0, %v5203
    %5205 = vmatprep.mubr.bf16.mxu0 0
    %5206 = vmatmul.mubr.bf16.gmra.mxu0 %v5136
    %v5207 = vpop.f32.mrf.mxu0
    %v5208 = vadd.f32 0.0, %v5207
    %v5209 = vpop.f32.mrf.mxu0
    %v5210 = vadd.f32 0.0, %v5209
    %v5211 = vpop.f32.mrf.mxu0
    %v5212 = vadd.f32 0.0, %v5211
    %v5213 = vpop.f32.mrf.mxu0
    %v5214 = vadd.f32 0.0, %v5213
    %5215 = vmatprep.mubr.bf16.mxu0 0
    %5216 = vmatmul.mubr.bf16.gmra.mxu0 %v5139
    %v5217 = vpop.f32.mrf.mxu0
    %v5218 = vadd.f32 0.0, %v5217
    %v5219 = vpop.f32.mrf.mxu0
    %v5220 = vadd.f32 0.0, %v5219
    %v5221 = vpop.f32.mrf.mxu0
    %v5222 = vadd.f32 0.0, %v5221
    %v5223 = vpop.f32.mrf.mxu0
    %v5224 = vadd.f32 0.0, %v5223
    %5225 = vmatprep.mubr.bf16.mxu0 0
    %5226 = vmatmul.mubr.bf16.gmra.mxu0 %v5142
    %v5227 = vpop.f32.mrf.mxu0
    %v5228 = vadd.f32 0.0, %v5227
    %v5229 = vpop.f32.mrf.mxu0
    %v5230 = vadd.f32 0.0, %v5229
    %v5231 = vpop.f32.mrf.mxu0
    %v5232 = vadd.f32 0.0, %v5231
    %v5233 = vpop.f32.mrf.mxu0
    %v5234 = vadd.f32 0.0, %v5233
    %5235 = vmatprep.mubr.bf16.mxu0 0
    %5236 = vmatmul.mubr.bf16.gmra.mxu0 %v5145
    %v5237 = vpop.f32.mrf.mxu0
    %v5238 = vadd.f32 0.0, %v5237
    %v5239 = vpop.f32.mrf.mxu0
    %v5240 = vadd.f32 0.0, %v5239
    %v5241 = vpop.f32.mrf.mxu0
    %v5242 = vadd.f32 0.0, %v5241
    %v5243 = vpop.f32.mrf.mxu0
    %v5244 = vadd.f32 0.0, %v5243
    %5245 = vmatprep.mubr.bf16.mxu0 0
    %5246 = vmatmul.mubr.bf16.gmra.mxu0 %v5148
    %v5247 = vpop.f32.mrf.mxu0
    %v5248 = vadd.f32 0.0, %v5247
    %v5249 = vpop.f32.mrf.mxu0
    %v5250 = vadd.f32 0.0, %v5249
    %v5251 = vpop.f32.mrf.mxu0
    %v5252 = vadd.f32 0.0, %v5251
    %v5253 = vpop.f32.mrf.mxu0
    %v5254 = vadd.f32 0.0, %v5253
    %5255 = vmatprep.mubr.bf16.mxu0 0
    %5256 = vmatmul.mubr.bf16.gmra.mxu0 %v5151
    %v5257 = vpop.f32.mrf.mxu0
    %v5258 = vadd.f32 0.0, %v5257
    %v5259 = vpop.f32.mrf.mxu0
    %v5260 = vadd.f32 0.0, %v5259
    %v5261 = vpop.f32.mrf.mxu0
    %v5262 = vadd.f32 0.0, %v5261
    %v5263 = vpop.f32.mrf.mxu0
    %v5264 = vadd.f32 0.0, %v5263
    %5265 = vdwg.mxu0
    %5266 = vmatprep.subr.bf16.mxu0 0
    %5267 = vmatpush1.bf16.msra.mxu0 0
    %5268 = vmatprep.subr.bf16.mxu0 0
    %5269 = vmatpush1.bf16.msra.mxu0 0
    %5270 = vmatprep.subr.bf16.mxu0 0
    %5271 = vmatpush1.bf16.msra.mxu0 0
    %5272 = vmatprep.subr.bf16.mxu0 0
    %5273 = vmatpush1.bf16.msra.mxu0 0
    %5274 = vmatprep.subr.bf16.mxu0 0
    %5275 = vmatpush1.bf16.msra.mxu0 0
    %5276 = vmatprep.subr.bf16.mxu0 0
    %5277 = vmatpush1.bf16.msra.mxu0 0
    %5278 = vmatprep.subr.bf16.mxu0 0
    %5279 = vmatpush1.bf16.msra.mxu0 %v5121
    %5280 = vmatprep.subr.bf16.mxu0 0
    %5281 = vmatpush1.bf16.msra.mxu0 %v5118
    %5282 = vmatprep.subr.bf16.mxu0 0
    %5283 = vmatpush2.bf16.msra.mxu0 0
    %5284 = vmatprep.subr.bf16.mxu0 0
    %5285 = vmatpush2.bf16.msra.mxu0 0
    %5286 = vmatprep.subr.bf16.mxu0 0
    %5287 = vmatpush2.bf16.msra.mxu0 0
    %5288 = vmatprep.subr.bf16.mxu0 0
    %5289 = vmatpush2.bf16.msra.mxu0 0
    %5290 = vmatprep.subr.bf16.mxu0 0
    %5291 = vmatpush2.bf16.msra.mxu0 0
    %5292 = vmatprep.subr.bf16.mxu0 0
    %5293 = vmatpush2.bf16.msra.mxu0 0
    %5294 = vmatprep.subr.bf16.mxu0 0
    %5295 = vmatpush2.bf16.msra.mxu0 0
    %5296 = vmatprep.subr.bf16.mxu0 0
    %5297 = vmatpush2.bf16.msra.mxu0 0
    %5298 = vmatprep.mubr.bf16.mxu0 0
    %5299 = vmatmul.mubr.bf16.gmra.mxu0 %v5130
    %v5300 = vpop.f32.mrf.mxu0
    %v5301 = vadd.f32 0.0, %v5300
    %v5302 = vpop.f32.mrf.mxu0
    %v5303 = vpop.f32.mrf.mxu0
    %v5304 = vadd.f32 0.0, %v5303
    %v5305 = vpop.f32.mrf.mxu0
    %5306 = vmatprep.mubr.bf16.mxu0 0
    %5307 = vmatmul.mubr.bf16.gmra.mxu0 %v5133
    %v5308 = vpop.f32.mrf.mxu0
    %v5309 = vadd.f32 0.0, %v5308
    %v5310 = vpop.f32.mrf.mxu0
    %v5311 = vpop.f32.mrf.mxu0
    %v5312 = vadd.f32 0.0, %v5311
    %v5313 = vpop.f32.mrf.mxu0
    %5314 = vmatprep.mubr.bf16.mxu0 0
    %5315 = vmatmul.mubr.bf16.gmra.mxu0 %v5136
    %v5316 = vpop.f32.mrf.mxu0
    %v5317 = vadd.f32 0.0, %v5316
    %v5318 = vpop.f32.mrf.mxu0
    %v5319 = vpop.f32.mrf.mxu0
    %v5320 = vadd.f32 0.0, %v5319
    %v5321 = vpop.f32.mrf.mxu0
    %5322 = vmatprep.mubr.bf16.mxu0 0
    %5323 = vmatmul.mubr.bf16.gmra.mxu0 %v5139
    %v5324 = vpop.f32.mrf.mxu0
    %v5325 = vadd.f32 0.0, %v5324
    %v5326 = vpop.f32.mrf.mxu0
    %v5327 = vpop.f32.mrf.mxu0
    %v5328 = vadd.f32 0.0, %v5327
    %v5329 = vpop.f32.mrf.mxu0
    %5330 = vmatprep.mubr.bf16.mxu0 0
    %5331 = vmatmul.mubr.bf16.gmra.mxu0 %v5142
    %v5332 = vpop.f32.mrf.mxu0
    %v5333 = vadd.f32 0.0, %v5332
    %v5334 = vpop.f32.mrf.mxu0
    %v5335 = vpop.f32.mrf.mxu0
    %v5336 = vadd.f32 0.0, %v5335
    %v5337 = vpop.f32.mrf.mxu0
    %5338 = vmatprep.mubr.bf16.mxu0 0
    %5339 = vmatmul.mubr.bf16.gmra.mxu0 %v5145
    %v5340 = vpop.f32.mrf.mxu0
    %v5341 = vadd.f32 0.0, %v5340
    %v5342 = vpop.f32.mrf.mxu0
    %v5343 = vpop.f32.mrf.mxu0
    %v5344 = vadd.f32 0.0, %v5343
    %v5345 = vpop.f32.mrf.mxu0
    %5346 = vmatprep.mubr.bf16.mxu0 0
    %5347 = vmatmul.mubr.bf16.gmra.mxu0 %v5148
    %v5348 = vpop.f32.mrf.mxu0
    %v5349 = vadd.f32 0.0, %v5348
    %v5350 = vpop.f32.mrf.mxu0
    %v5351 = vpop.f32.mrf.mxu0
    %v5352 = vadd.f32 0.0, %v5351
    %v5353 = vpop.f32.mrf.mxu0
    %5354 = vmatprep.mubr.bf16.mxu0 0
    %5355 = vmatmul.mubr.bf16.gmra.mxu0 %v5151
    %v5356 = vpop.f32.mrf.mxu0
    %v5357 = vadd.f32 0.0, %v5356
    %v5358 = vpop.f32.mrf.mxu0
    %v5359 = vpop.f32.mrf.mxu0
    %v5360 = vadd.f32 0.0, %v5359
    %v5361 = vpop.f32.mrf.mxu0
    %5362 = vdwg.mxu0
    %v5363 = vpack.c.bf16 %v5192, %v5188
    %v5364 = vpack.c.bf16 %v5202, %v5198
    %v5365 = vpack.c.bf16 %v5212, %v5208
    %v5366 = vpack.c.bf16 %v5222, %v5218
    %v5367 = vpack.c.bf16 %v5232, %v5228
    %v5368 = vpack.c.bf16 %v5242, %v5238
    %v5369 = vpack.c.bf16 %v5252, %v5248
    %v5370 = vpack.c.bf16 %v5262, %v5258
    %v5379 = vunpack.c.l.b16 %v5363
    %v5380 = vunpack.c.h.b16 %v5363
    %v5381 = vunpack.c.l.b16 %v5364
    %v5382 = vunpack.c.h.b16 %v5364
    %v5383 = vunpack.c.l.b16 %v5365
    %v5384 = vunpack.c.h.b16 %v5365
    %v5385 = vunpack.c.l.b16 %v5366
    %v5386 = vunpack.c.h.b16 %v5366
    %v5387 = vunpack.c.l.b16 %v5367
    %v5388 = vunpack.c.h.b16 %v5367
    %v5389 = vunpack.c.l.b16 %v5368
    %v5390 = vunpack.c.h.b16 %v5368
    %v5391 = vunpack.c.l.b16 %v5369
    %v5392 = vunpack.c.h.b16 %v5369
    %v5393 = vunpack.c.l.b16 %v5370
    %v5394 = vunpack.c.h.b16 %v5370
    %v5395 = vpack.c.b16 %v5379, %v5379
    %v5396 = vpack.c.b16 %v5380, %v5380
    %v5397 = vpack.c.b16 %v5381, %v5381
    %v5398 = vpack.c.b16 %v5382, %v5382
    %v5399 = vpack.c.b16 %v5383, %v5383
    %v5400 = vpack.c.b16 %v5384, %v5384
    %v5401 = vpack.c.b16 %v5385, %v5385
    %v5402 = vpack.c.b16 %v5386, %v5386
    %v5403 = vpack.c.b16 %v5387, %v5387
    %v5404 = vpack.c.b16 %v5388, %v5388
    %v5405 = vpack.c.b16 %v5389, %v5389
    %v5406 = vpack.c.b16 %v5390, %v5390
    %v5407 = vpack.c.b16 %v5391, %v5391
    %v5408 = vpack.c.b16 %v5392, %v5392
    %v5409 = vpack.c.b16 %v5393, %v5393
    %v5410 = vpack.c.b16 %v5394, %v5394
    %vm5427 = vcmask 519168
    %5428 = vst.msk [vmem:[#allocation3] sm:$0xf] %vm5427, %v5395
    %5429 = vst.msk [vmem:[#allocation3 + $0x4] sm:$0xf] %vm5427, %v5396
    %5430 = vst.msk [vmem:[#allocation3 + $0x8] sm:$0xf] %vm5427, %v5397
    %5431 = vst.msk [vmem:[#allocation3 + $0xc] sm:$0xf] %vm5427, %v5398
    %5432 = vst.msk [vmem:[#allocation3 + $0x10] sm:$0xf] %vm5427, %v5399
    %5433 = vst.msk [vmem:[#allocation3 + $0x14] sm:$0xf] %vm5427, %v5400
    %5434 = vst.msk [vmem:[#allocation3 + $0x18] sm:$0xf] %vm5427, %v5401
    %5435 = vst.msk [vmem:[#allocation3 + $0x1c] sm:$0xf] %vm5427, %v5402
    %5436 = vst.msk [vmem:[#allocation3 + $0x20] sm:$0xf] %vm5427, %v5403
    %5437 = vst.msk [vmem:[#allocation3 + $0x24] sm:$0xf] %vm5427, %v5404
    %5438 = vst.msk [vmem:[#allocation3 + $0x28] sm:$0xf] %vm5427, %v5405
    %5439 = vst.msk [vmem:[#allocation3 + $0x2c] sm:$0xf] %vm5427, %v5406
    %5440 = vst.msk [vmem:[#allocation3 + $0x30] sm:$0xf] %vm5427, %v5407
    %5441 = vst.msk [vmem:[#allocation3 + $0x34] sm:$0xf] %vm5427, %v5408
    %5442 = vst.msk [vmem:[#allocation3 + $0x38] sm:$0xf] %vm5427, %v5409
    %5443 = vst.msk [vmem:[#allocation3 + $0x3c] sm:$0xf] %vm5427, %v5410
    %5444 = vrot.lane.b32.xlu0 %v5395, 64
    %v5445 = vpop.permute.xlu0 %5444
    %5446 = vrot.lane.b32.xlu0 %v5396, 64
    %v5447 = vpop.permute.xlu0 %5446
    %5448 = vrot.lane.b32.xlu0 %v5397, 64
    %v5449 = vpop.permute.xlu0 %5448
    %5450 = vrot.lane.b32.xlu0 %v5398, 64
    %v5451 = vpop.permute.xlu0 %5450
    %5452 = vrot.lane.b32.xlu0 %v5399, 64
    %v5453 = vpop.permute.xlu0 %5452
    %5454 = vrot.lane.b32.xlu0 %v5400, 64
    %v5455 = vpop.permute.xlu0 %5454
    %5456 = vrot.lane.b32.xlu0 %v5401, 64
    %v5457 = vpop.permute.xlu0 %5456
    %5458 = vrot.lane.b32.xlu0 %v5402, 64
    %v5459 = vpop.permute.xlu0 %5458
    %5460 = vrot.lane.b32.xlu0 %v5403, 64
    %v5461 = vpop.permute.xlu0 %5460
    %5462 = vrot.lane.b32.xlu0 %v5404, 64
    %v5463 = vpop.permute.xlu0 %5462
    %5464 = vrot.lane.b32.xlu0 %v5405, 64
    %v5465 = vpop.permute.xlu0 %5464
    %5466 = vrot.lane.b32.xlu0 %v5406, 64
    %v5467 = vpop.permute.xlu0 %5466
    %5468 = vrot.lane.b32.xlu0 %v5407, 64
    %v5469 = vpop.permute.xlu0 %5468
    %5470 = vrot.lane.b32.xlu0 %v5408, 64
    %v5471 = vpop.permute.xlu0 %5470
    %5472 = vrot.lane.b32.xlu0 %v5409, 64
    %v5473 = vpop.permute.xlu0 %5472
    %5474 = vrot.lane.b32.xlu0 %v5410, 64
    %v5475 = vpop.permute.xlu0 %5474
    %5492 = vst.msk [vmem:[#allocation3 + $0x40] sm:$0xf] %vm5427, %v5445
    %5493 = vst.msk [vmem:[#allocation3 + $0x44] sm:$0xf] %vm5427, %v5447
    %5494 = vst.msk [vmem:[#allocation3 + $0x48] sm:$0xf] %vm5427, %v5449
    %5495 = vst.msk [vmem:[#allocation3 + $0x4c] sm:$0xf] %vm5427, %v5451
    %5496 = vst.msk [vmem:[#allocation3 + $0x50] sm:$0xf] %vm5427, %v5453
    %5497 = vst.msk [vmem:[#allocation3 + $0x54] sm:$0xf] %vm5427, %v5455
    %5498 = vst.msk [vmem:[#allocation3 + $0x58] sm:$0xf] %vm5427, %v5457
    %5499 = vst.msk [vmem:[#allocation3 + $0x5c] sm:$0xf] %vm5427, %v5459
    %5500 = vst.msk [vmem:[#allocation3 + $0x60] sm:$0xf] %vm5427, %v5461
    %5501 = vst.msk [vmem:[#allocation3 + $0x64] sm:$0xf] %vm5427, %v5463
    %5502 = vst.msk [vmem:[#allocation3 + $0x68] sm:$0xf] %vm5427, %v5465
    %5503 = vst.msk [vmem:[#allocation3 + $0x6c] sm:$0xf] %vm5427, %v5467
    %5504 = vst.msk [vmem:[#allocation3 + $0x70] sm:$0xf] %vm5427, %v5469
    %5505 = vst.msk [vmem:[#allocation3 + $0x74] sm:$0xf] %vm5427, %v5471
    %5506 = vst.msk [vmem:[#allocation3 + $0x78] sm:$0xf] %vm5427, %v5473
    %5507 = vst.msk [vmem:[#allocation3 + $0x7c] sm:$0xf] %vm5427, %v5475
    %v5508 = vpack.c.bf16 %v5194, %v5190
    %v5509 = vpack.c.bf16 %v5204, %v5200
    %v5510 = vpack.c.bf16 %v5214, %v5210
    %v5511 = vpack.c.bf16 %v5224, %v5220
    %v5512 = vpack.c.bf16 %v5234, %v5230
    %v5513 = vpack.c.bf16 %v5244, %v5240
    %v5514 = vpack.c.bf16 %v5254, %v5250
    %v5515 = vpack.c.bf16 %v5264, %v5260
    %v5524 = vunpack.c.l.b16 %v5508
    %v5525 = vunpack.c.h.b16 %v5508
    %v5526 = vunpack.c.l.b16 %v5509
    %v5527 = vunpack.c.h.b16 %v5509
    %v5528 = vunpack.c.l.b16 %v5510
    %v5529 = vunpack.c.h.b16 %v5510
    %v5530 = vunpack.c.l.b16 %v5511
    %v5531 = vunpack.c.h.b16 %v5511
    %v5532 = vunpack.c.l.b16 %v5512
    %v5533 = vunpack.c.h.b16 %v5512
    %v5534 = vunpack.c.l.b16 %v5513
    %v5535 = vunpack.c.h.b16 %v5513
    %v5536 = vunpack.c.l.b16 %v5514
    %v5537 = vunpack.c.h.b16 %v5514
    %v5538 = vunpack.c.l.b16 %v5515
    %v5539 = vunpack.c.h.b16 %v5515
    %v5540 = vpack.c.b16 %v5524, %v5524
    %v5541 = vpack.c.b16 %v5525, %v5525
    %v5542 = vpack.c.b16 %v5526, %v5526
    %v5543 = vpack.c.b16 %v5527, %v5527
    %v5544 = vpack.c.b16 %v5528, %v5528
    %v5545 = vpack.c.b16 %v5529, %v5529
    %v5546 = vpack.c.b16 %v5530, %v5530
    %v5547 = vpack.c.b16 %v5531, %v5531
    %v5548 = vpack.c.b16 %v5532, %v5532
    %v5549 = vpack.c.b16 %v5533, %v5533
    %v5550 = vpack.c.b16 %v5534, %v5534
    %v5551 = vpack.c.b16 %v5535, %v5535
    %v5552 = vpack.c.b16 %v5536, %v5536
    %v5553 = vpack.c.b16 %v5537, %v5537
    %v5554 = vpack.c.b16 %v5538, %v5538
    %v5555 = vpack.c.b16 %v5539, %v5539
    %5572 = vst.msk [vmem:[#allocation3 + $0x80] sm:$0xf] %vm5427, %v5540
    %5573 = vst.msk [vmem:[#allocation3 + $0x84] sm:$0xf] %vm5427, %v5541
    %5574 = vst.msk [vmem:[#allocation3 + $0x88] sm:$0xf] %vm5427, %v5542
    %5575 = vst.msk [vmem:[#allocation3 + $0x8c] sm:$0xf] %vm5427, %v5543
    %5576 = vst.msk [vmem:[#allocation3 + $0x90] sm:$0xf] %vm5427, %v5544
    %5577 = vst.msk [vmem:[#allocation3 + $0x94] sm:$0xf] %vm5427, %v5545
    %5578 = vst.msk [vmem:[#allocation3 + $0x98] sm:$0xf] %vm5427, %v5546
    %5579 = vst.msk [vmem:[#allocation3 + $0x9c] sm:$0xf] %vm5427, %v5547
    %5580 = vst.msk [vmem:[#allocation3 + $0xa0] sm:$0xf] %vm5427, %v5548
    %5581 = vst.msk [vmem:[#allocation3 + $0xa4] sm:$0xf] %vm5427, %v5549
    %5582 = vst.msk [vmem:[#allocation3 + $0xa8] sm:$0xf] %vm5427, %v5550
    %5583 = vst.msk [vmem:[#allocation3 + $0xac] sm:$0xf] %vm5427, %v5551
    %5584 = vst.msk [vmem:[#allocation3 + $0xb0] sm:$0xf] %vm5427, %v5552
    %5585 = vst.msk [vmem:[#allocation3 + $0xb4] sm:$0xf] %vm5427, %v5553
    %5586 = vst.msk [vmem:[#allocation3 + $0xb8] sm:$0xf] %vm5427, %v5554
    %5587 = vst.msk [vmem:[#allocation3 + $0xbc] sm:$0xf] %vm5427, %v5555
    %5588 = vrot.lane.b32.xlu0 %v5540, 64
    %v5589 = vpop.permute.xlu0 %5588
    %5590 = vrot.lane.b32.xlu0 %v5541, 64
    %v5591 = vpop.permute.xlu0 %5590
    %5592 = vrot.lane.b32.xlu0 %v5542, 64
    %v5593 = vpop.permute.xlu0 %5592
    %5594 = vrot.lane.b32.xlu0 %v5543, 64
    %v5595 = vpop.permute.xlu0 %5594
    %5596 = vrot.lane.b32.xlu0 %v5544, 64
    %v5597 = vpop.permute.xlu0 %5596
    %5598 = vrot.lane.b32.xlu0 %v5545, 64
    %v5599 = vpop.permute.xlu0 %5598
    %5600 = vrot.lane.b32.xlu0 %v5546, 64
    %v5601 = vpop.permute.xlu0 %5600
    %5602 = vrot.lane.b32.xlu0 %v5547, 64
    %v5603 = vpop.permute.xlu0 %5602
    %5604 = vrot.lane.b32.xlu0 %v5548, 64
    %v5605 = vpop.permute.xlu0 %5604
    %5606 = vrot.lane.b32.xlu0 %v5549, 64
    %v5607 = vpop.permute.xlu0 %5606
    %5608 = vrot.lane.b32.xlu0 %v5550, 64
    %v5609 = vpop.permute.xlu0 %5608
    %5610 = vrot.lane.b32.xlu0 %v5551, 64
    %v5611 = vpop.permute.xlu0 %5610
    %5612 = vrot.lane.b32.xlu0 %v5552, 64
    %v5613 = vpop.permute.xlu0 %5612
    %5614 = vrot.lane.b32.xlu0 %v5553, 64
    %v5615 = vpop.permute.xlu0 %5614
    %5616 = vrot.lane.b32.xlu0 %v5554, 64
    %v5617 = vpop.permute.xlu0 %5616
    %5618 = vrot.lane.b32.xlu0 %v5555, 64
    %v5619 = vpop.permute.xlu0 %5618
    %5636 = vst.msk [vmem:[#allocation3 + $0xc0] sm:$0xf] %vm5427, %v5589
    %5637 = vst.msk [vmem:[#allocation3 + $0xc4] sm:$0xf] %vm5427, %v5591
    %5638 = vst.msk [vmem:[#allocation3 + $0xc8] sm:$0xf] %vm5427, %v5593
    %5639 = vst.msk [vmem:[#allocation3 + $0xcc] sm:$0xf] %vm5427, %v5595
    %5640 = vst.msk [vmem:[#allocation3 + $0xd0] sm:$0xf] %vm5427, %v5597
    %5641 = vst.msk [vmem:[#allocation3 + $0xd4] sm:$0xf] %vm5427, %v5599
    %5642 = vst.msk [vmem:[#allocation3 + $0xd8] sm:$0xf] %vm5427, %v5601
    %5643 = vst.msk [vmem:[#allocation3 + $0xdc] sm:$0xf] %vm5427, %v5603
    %5644 = vst.msk [vmem:[#allocation3 + $0xe0] sm:$0xf] %vm5427, %v5605
    %5645 = vst.msk [vmem:[#allocation3 + $0xe4] sm:$0xf] %vm5427, %v5607
    %5646 = vst.msk [vmem:[#allocation3 + $0xe8] sm:$0xf] %vm5427, %v5609
    %5647 = vst.msk [vmem:[#allocation3 + $0xec] sm:$0xf] %vm5427, %v5611
    %5648 = vst.msk [vmem:[#allocation3 + $0xf0] sm:$0xf] %vm5427, %v5613
    %5649 = vst.msk [vmem:[#allocation3 + $0xf4] sm:$0xf] %vm5427, %v5615
    %5650 = vst.msk [vmem:[#allocation3 + $0xf8] sm:$0xf] %vm5427, %v5617
    %5651 = vst.msk [vmem:[#allocation3 + $0xfc] sm:$0xf] %vm5427, %v5619
    %v5652 = vpack.c.bf16 %v5304, %v5301
    %v5653 = vpack.c.bf16 %v5312, %v5309
    %v5654 = vpack.c.bf16 %v5320, %v5317
    %v5655 = vpack.c.bf16 %v5328, %v5325
    %v5656 = vpack.c.bf16 %v5336, %v5333
    %v5657 = vpack.c.bf16 %v5344, %v5341
    %v5658 = vpack.c.bf16 %v5352, %v5349
    %v5659 = vpack.c.bf16 %v5360, %v5357
    %v5668 = vunpack.c.l.b16 %v5652
    %v5669 = vunpack.c.h.b16 %v5652
    %v5670 = vunpack.c.l.b16 %v5653
    %v5671 = vunpack.c.h.b16 %v5653
    %v5672 = vunpack.c.l.b16 %v5654
    %v5673 = vunpack.c.h.b16 %v5654
    %v5674 = vunpack.c.l.b16 %v5655
    %v5675 = vunpack.c.h.b16 %v5655
    %v5676 = vunpack.c.l.b16 %v5656
    %v5677 = vunpack.c.h.b16 %v5656
    %v5678 = vunpack.c.l.b16 %v5657
    %v5679 = vunpack.c.h.b16 %v5657
    %v5680 = vunpack.c.l.b16 %v5658
    %v5681 = vunpack.c.h.b16 %v5658
    %v5682 = vunpack.c.l.b16 %v5659
    %v5683 = vunpack.c.h.b16 %v5659
    %v5684 = vpack.c.b16 %v5668, %v5668
    %v5685 = vpack.c.b16 %v5669, %v5669
    %v5686 = vpack.c.b16 %v5670, %v5670
    %v5687 = vpack.c.b16 %v5671, %v5671
    %v5688 = vpack.c.b16 %v5672, %v5672
    %v5689 = vpack.c.b16 %v5673, %v5673
    %v5690 = vpack.c.b16 %v5674, %v5674
    %v5691 = vpack.c.b16 %v5675, %v5675
    %v5692 = vpack.c.b16 %v5676, %v5676
    %v5693 = vpack.c.b16 %v5677, %v5677
    %v5694 = vpack.c.b16 %v5678, %v5678
    %v5695 = vpack.c.b16 %v5679, %v5679
    %v5696 = vpack.c.b16 %v5680, %v5680
    %v5697 = vpack.c.b16 %v5681, %v5681
    %v5698 = vpack.c.b16 %v5682, %v5682
    %v5699 = vpack.c.b16 %v5683, %v5683
    %5716 = vst.msk [vmem:[#allocation3 + $0x100] sm:$0xf] %vm5427, %v5684
    %5717 = vst.msk [vmem:[#allocation3 + $0x104] sm:$0xf] %vm5427, %v5685
    %5718 = vst.msk [vmem:[#allocation3 + $0x108] sm:$0xf] %vm5427, %v5686
    %5719 = vst.msk [vmem:[#allocation3 + $0x10c] sm:$0xf] %vm5427, %v5687
    %5720 = vst.msk [vmem:[#allocation3 + $0x110] sm:$0xf] %vm5427, %v5688
    %5721 = vst.msk [vmem:[#allocation3 + $0x114] sm:$0xf] %vm5427, %v5689
    %5722 = vst.msk [vmem:[#allocation3 + $0x118] sm:$0xf] %vm5427, %v5690
    %5723 = vst.msk [vmem:[#allocation3 + $0x11c] sm:$0xf] %vm5427, %v5691
    %5724 = vst.msk [vmem:[#allocation3 + $0x120] sm:$0xf] %vm5427, %v5692
    %5725 = vst.msk [vmem:[#allocation3 + $0x124] sm:$0xf] %vm5427, %v5693
    %5726 = vst.msk [vmem:[#allocation3 + $0x128] sm:$0xf] %vm5427, %v5694
    %5727 = vst.msk [vmem:[#allocation3 + $0x12c] sm:$0xf] %vm5427, %v5695
    %5728 = vst.msk [vmem:[#allocation3 + $0x130] sm:$0xf] %vm5427, %v5696
    %5729 = vst.msk [vmem:[#allocation3 + $0x134] sm:$0xf] %vm5427, %v5697
    %5730 = vst.msk [vmem:[#allocation3 + $0x138] sm:$0xf] %vm5427, %v5698
    %5731 = vst.msk [vmem:[#allocation3 + $0x13c] sm:$0xf] %vm5427, %v5699
    %v5732 = vld [vmem:[%s15] sm:$0xff]
    %v5733 = vld [vmem:[%s15 + $0x8] sm:$0xff]
    %v5734 = vld [vmem:[%s15 + $0x10] sm:$0xf]
    %v5735 = vld [vmem:[%s15 + $0x14] sm:$0xff]
    %v5736 = vld [vmem:[%s15 + $0x1c] sm:$0xff]
    %v5737 = vld [vmem:[%s15 + $0x24] sm:$0xf]
    %v5738 = vld [vmem:[%s15 + $0x28] sm:$0xff]
    %v5739 = vld [vmem:[%s15 + $0x30] sm:$0xff]
    %v5740 = vld [vmem:[%s15 + $0x38] sm:$0xf]
    %v5741 = vld [vmem:[%s15 + $0x3c] sm:$0xff]
    %v5742 = vld [vmem:[%s15 + $0x44] sm:$0xff]
    %v5743 = vld [vmem:[%s15 + $0x4c] sm:$0xf]
    %v5744 = vld [vmem:[%s15 + $0x50] sm:$0xff]
    %v5745 = vld [vmem:[%s15 + $0x58] sm:$0xff]
    %v5746 = vld [vmem:[%s15 + $0x60] sm:$0xf]
    %v5747 = vld [vmem:[%s15 + $0x64] sm:$0xff]
    %v5748 = vld [vmem:[%s15 + $0x6c] sm:$0xff]
    %v5749 = vld [vmem:[%s15 + $0x74] sm:$0xf]
    %v5750 = vld [vmem:[%s15 + $0x78] sm:$0xff]
    %v5751 = vld [vmem:[%s15 + $0x80] sm:$0xff]
    %v5752 = vld [vmem:[%s15 + $0x88] sm:$0xf]
    %v5753 = vld [vmem:[%s15 + $0x8c] sm:$0xff]
    %v5754 = vld [vmem:[%s15 + $0x94] sm:$0xff]
    %v5755 = vld [vmem:[%s15 + $0x9c] sm:$0xf]
    %v5756 = vld [vmem:[#allocation3] sm:$0xf]
    %v5757 = vld [vmem:[#allocation3 + $0x4] sm:$0xf]
    %v5758 = vld [vmem:[#allocation3 + $0x8] sm:$0xf]
    %v5759 = vld [vmem:[#allocation3 + $0xc] sm:$0xf]
    %v5760 = vld [vmem:[#allocation3 + $0x10] sm:$0xf]
    %v5761 = vld [vmem:[#allocation3 + $0x14] sm:$0xf]
    %v5762 = vld [vmem:[#allocation3 + $0x18] sm:$0xf]
    %v5763 = vld [vmem:[#allocation3 + $0x1c] sm:$0xf]
    %v5764 = vld [vmem:[#allocation3 + $0x20] sm:$0xf]
    %v5765 = vld [vmem:[#allocation3 + $0x24] sm:$0xf]
    %v5766 = vld [vmem:[#allocation3 + $0x28] sm:$0xf]
    %v5767 = vld [vmem:[#allocation3 + $0x2c] sm:$0xf]
    %v5768 = vld [vmem:[#allocation3 + $0x30] sm:$0xf]
    %v5769 = vld [vmem:[#allocation3 + $0x34] sm:$0xf]
    %v5770 = vld [vmem:[#allocation3 + $0x38] sm:$0xf]
    %v5771 = vld [vmem:[#allocation3 + $0x3c] sm:$0xf]
    %v5772 = vld [vmem:[#allocation3 + $0x40] sm:$0xf]
    %v5773 = vld [vmem:[#allocation3 + $0x44] sm:$0xf]
    %v5774 = vld [vmem:[#allocation3 + $0x48] sm:$0xf]
    %v5775 = vld [vmem:[#allocation3 + $0x4c] sm:$0xf]
    %v5776 = vld [vmem:[#allocation3 + $0x50] sm:$0xf]
    %v5777 = vld [vmem:[#allocation3 + $0x54] sm:$0xf]
    %v5778 = vld [vmem:[#allocation3 + $0x58] sm:$0xf]
    %v5779 = vld [vmem:[#allocation3 + $0x5c] sm:$0xf]
    %v5780 = vld [vmem:[#allocation3 + $0x60] sm:$0xf]
    %v5781 = vld [vmem:[#allocation3 + $0x64] sm:$0xf]
    %v5782 = vld [vmem:[#allocation3 + $0x68] sm:$0xf]
    %v5783 = vld [vmem:[#allocation3 + $0x6c] sm:$0xf]
    %v5784 = vld [vmem:[#allocation3 + $0x70] sm:$0xf]
    %v5785 = vld [vmem:[#allocation3 + $0x74] sm:$0xf]
    %v5786 = vld [vmem:[#allocation3 + $0x78] sm:$0xf]
    %v5787 = vld [vmem:[#allocation3 + $0x7c] sm:$0xf]
    %v5788 = vld [vmem:[#allocation3 + $0x80] sm:$0xf]
    %v5789 = vld [vmem:[#allocation3 + $0x84] sm:$0xf]
    %v5790 = vld [vmem:[#allocation3 + $0x88] sm:$0xf]
    %v5791 = vld [vmem:[#allocation3 + $0x8c] sm:$0xf]
    %v5792 = vld [vmem:[#allocation3 + $0x90] sm:$0xf]
    %v5793 = vld [vmem:[#allocation3 + $0x94] sm:$0xf]
    %v5794 = vld [vmem:[#allocation3 + $0x98] sm:$0xf]
    %v5795 = vld [vmem:[#allocation3 + $0x9c] sm:$0xf]
    %v5796 = vld [vmem:[#allocation3 + $0xa0] sm:$0xf]
    %v5797 = vld [vmem:[#allocation3 + $0xa4] sm:$0xf]
    %v5798 = vld [vmem:[#allocation3 + $0xa8] sm:$0xf]
    %v5799 = vld [vmem:[#allocation3 + $0xac] sm:$0xf]
    %v5800 = vld [vmem:[#allocation3 + $0xb0] sm:$0xf]
    %v5801 = vld [vmem:[#allocation3 + $0xb4] sm:$0xf]
    %v5802 = vld [vmem:[#allocation3 + $0xb8] sm:$0xf]
    %v5803 = vld [vmem:[#allocation3 + $0xbc] sm:$0xf]
    %v5804 = vld [vmem:[#allocation3 + $0xc0] sm:$0xf]
    %v5805 = vld [vmem:[#allocation3 + $0xc4] sm:$0xf]
    %v5806 = vld [vmem:[#allocation3 + $0xc8] sm:$0xf]
    %v5807 = vld [vmem:[#allocation3 + $0xcc] sm:$0xf]
    %v5808 = vld [vmem:[#allocation3 + $0xd0] sm:$0xf]
    %v5809 = vld [vmem:[#allocation3 + $0xd4] sm:$0xf]
    %v5810 = vld [vmem:[#allocation3 + $0xd8] sm:$0xf]
    %v5811 = vld [vmem:[#allocation3 + $0xdc] sm:$0xf]
    %v5812 = vld [vmem:[#allocation3 + $0xe0] sm:$0xf]
    %v5813 = vld [vmem:[#allocation3 + $0xe4] sm:$0xf]
    %v5814 = vld [vmem:[#allocation3 + $0xe8] sm:$0xf]
    %v5815 = vld [vmem:[#allocation3 + $0xec] sm:$0xf]
    %v5816 = vld [vmem:[#allocation3 + $0xf0] sm:$0xf]
    %v5817 = vld [vmem:[#allocation3 + $0xf4] sm:$0xf]
    %v5818 = vld [vmem:[#allocation3 + $0xf8] sm:$0xf]
    %v5819 = vld [vmem:[#allocation3 + $0xfc] sm:$0xf]
    %v5820 = vld [vmem:[#allocation3 + $0x100] sm:$0xf]
    %v5821 = vld [vmem:[#allocation3 + $0x104] sm:$0xf]
    %v5822 = vld [vmem:[#allocation3 + $0x108] sm:$0xf]
    %v5823 = vld [vmem:[#allocation3 + $0x10c] sm:$0xf]
    %v5824 = vld [vmem:[#allocation3 + $0x110] sm:$0xf]
    %v5825 = vld [vmem:[#allocation3 + $0x114] sm:$0xf]
    %v5826 = vld [vmem:[#allocation3 + $0x118] sm:$0xf]
    %v5827 = vld [vmem:[#allocation3 + $0x11c] sm:$0xf]
    %v5828 = vld [vmem:[#allocation3 + $0x120] sm:$0xf]
    %v5829 = vld [vmem:[#allocation3 + $0x124] sm:$0xf]
    %v5830 = vld [vmem:[#allocation3 + $0x128] sm:$0xf]
    %v5831 = vld [vmem:[#allocation3 + $0x12c] sm:$0xf]
    %v5832 = vld [vmem:[#allocation3 + $0x130] sm:$0xf]
    %v5833 = vld [vmem:[#allocation3 + $0x134] sm:$0xf]
    %v5834 = vld [vmem:[#allocation3 + $0x138] sm:$0xf]
    %v5835 = vld [vmem:[#allocation3 + $0x13c] sm:$0xf]
    %v5836 = vld [vmem:[#allocation15] sm:$0x1]
    %v5838 = vlaneseq
    %v5839 = vshrl.u32 %v5838, 7
    %v5840 = vsub.s32 0, %v5839
    %v5841 = vrot.slane %v5836, %v5840
    %v5867 = vunpack.c.l.b16 %v5732
    %v5868 = vunpack.c.h.b16 %v5732
    %v5869 = vunpack.c.l.b16 %v5733
    %v5870 = vunpack.c.h.b16 %v5733
    %v5871 = vunpack.c.l.b16 %v5734
    %v5872 = vunpack.c.l.b16 %v5735
    %v5873 = vunpack.c.h.b16 %v5735
    %v5874 = vunpack.c.l.b16 %v5736
    %v5875 = vunpack.c.h.b16 %v5736
    %v5876 = vunpack.c.l.b16 %v5737
    %v5877 = vunpack.c.l.b16 %v5738
    %v5878 = vunpack.c.h.b16 %v5738
    %v5879 = vunpack.c.l.b16 %v5739
    %v5880 = vunpack.c.h.b16 %v5739
    %v5881 = vunpack.c.l.b16 %v5740
    %v5882 = vunpack.c.l.b16 %v5741
    %v5883 = vunpack.c.h.b16 %v5741
    %v5884 = vunpack.c.l.b16 %v5742
    %v5885 = vunpack.c.h.b16 %v5742
    %v5886 = vunpack.c.l.b16 %v5743
    %v5887 = vunpack.c.l.b16 %v5744
    %v5888 = vunpack.c.h.b16 %v5744
    %v5889 = vunpack.c.l.b16 %v5745
    %v5890 = vunpack.c.h.b16 %v5745
    %v5891 = vunpack.c.l.b16 %v5746
    %v5892 = vunpack.c.l.b16 %v5747
    %v5893 = vunpack.c.h.b16 %v5747
    %v5894 = vunpack.c.l.b16 %v5748
    %v5895 = vunpack.c.h.b16 %v5748
    %v5896 = vunpack.c.l.b16 %v5749
    %v5897 = vunpack.c.l.b16 %v5750
    %v5898 = vunpack.c.h.b16 %v5750
    %v5899 = vunpack.c.l.b16 %v5751
    %v5900 = vunpack.c.h.b16 %v5751
    %v5901 = vunpack.c.l.b16 %v5752
    %v5902 = vunpack.c.l.b16 %v5753
    %v5903 = vunpack.c.h.b16 %v5753
    %v5904 = vunpack.c.l.b16 %v5754
    %v5905 = vunpack.c.h.b16 %v5754
    %v5906 = vunpack.c.l.b16 %v5755
    %v5907 = vpack.c.b16 %v5872, %v5867
    %v5908 = vpack.c.b16 %v5873, %v5868
    %v5909 = vpack.c.b16 %v5874, %v5869
    %v5910 = vpack.c.b16 %v5875, %v5870
    %v5911 = vpack.c.b16 %v5876, %v5871
    %v5912 = vpack.c.b16 %v5882, %v5877
    %v5913 = vpack.c.b16 %v5883, %v5878
    %v5914 = vpack.c.b16 %v5884, %v5879
    %v5915 = vpack.c.b16 %v5885, %v5880
    %v5916 = vpack.c.b16 %v5886, %v5881
    %v5917 = vpack.c.b16 %v5892, %v5887
    %v5918 = vpack.c.b16 %v5893, %v5888
    %v5919 = vpack.c.b16 %v5894, %v5889
    %v5920 = vpack.c.b16 %v5895, %v5890
    %v5921 = vpack.c.b16 %v5896, %v5891
    %v5922 = vpack.c.b16 %v5902, %v5897
    %v5923 = vpack.c.b16 %v5903, %v5898
    %v5924 = vpack.c.b16 %v5904, %v5899
    %v5925 = vpack.c.b16 %v5905, %v5900
    %v5926 = vpack.c.b16 %v5906, %v5901
    %v6027 = vunpack.c.l.b16 %v5756
    %v6028 = vunpack.c.l.b16 %v5757
    %v6029 = vunpack.c.l.b16 %v5758
    %v6030 = vunpack.c.l.b16 %v5759
    %v6031 = vunpack.c.l.b16 %v5760
    %v6032 = vunpack.c.l.b16 %v5761
    %v6033 = vunpack.c.l.b16 %v5762
    %v6034 = vunpack.c.l.b16 %v5763
    %v6035 = vunpack.c.l.b16 %v5764
    %v6036 = vunpack.c.l.b16 %v5765
    %v6037 = vunpack.c.l.b16 %v5766
    %v6038 = vunpack.c.l.b16 %v5767
    %v6039 = vunpack.c.l.b16 %v5768
    %v6040 = vunpack.c.l.b16 %v5769
    %v6041 = vunpack.c.l.b16 %v5770
    %v6042 = vunpack.c.l.b16 %v5771
    %v6043 = vunpack.c.l.b16 %v5772
    %v6044 = vunpack.c.l.b16 %v5773
    %v6045 = vunpack.c.l.b16 %v5774
    %v6046 = vunpack.c.l.b16 %v5775
    %v6047 = vunpack.c.l.b16 %v5776
    %v6048 = vunpack.c.l.b16 %v5777
    %v6049 = vunpack.c.l.b16 %v5778
    %v6050 = vunpack.c.l.b16 %v5779
    %v6051 = vunpack.c.l.b16 %v5780
    %v6052 = vunpack.c.l.b16 %v5781
    %v6053 = vunpack.c.l.b16 %v5782
    %v6054 = vunpack.c.l.b16 %v5783
    %v6055 = vunpack.c.l.b16 %v5784
    %v6056 = vunpack.c.l.b16 %v5785
    %v6057 = vunpack.c.l.b16 %v5786
    %v6058 = vunpack.c.l.b16 %v5787
    %v6059 = vunpack.c.l.b16 %v5788
    %v6060 = vunpack.c.l.b16 %v5789
    %v6061 = vunpack.c.l.b16 %v5790
    %v6062 = vunpack.c.l.b16 %v5791
    %v6063 = vunpack.c.l.b16 %v5792
    %v6064 = vunpack.c.l.b16 %v5793
    %v6065 = vunpack.c.l.b16 %v5794
    %v6066 = vunpack.c.l.b16 %v5795
    %v6067 = vunpack.c.l.b16 %v5796
    %v6068 = vunpack.c.l.b16 %v5797
    %v6069 = vunpack.c.l.b16 %v5798
    %v6070 = vunpack.c.l.b16 %v5799
    %v6071 = vunpack.c.l.b16 %v5800
    %v6072 = vunpack.c.l.b16 %v5801
    %v6073 = vunpack.c.l.b16 %v5802
    %v6074 = vunpack.c.l.b16 %v5803
    %v6075 = vunpack.c.l.b16 %v5804
    %v6076 = vunpack.c.l.b16 %v5805
    %v6077 = vunpack.c.l.b16 %v5806
    %v6078 = vunpack.c.l.b16 %v5807
    %v6079 = vunpack.c.l.b16 %v5808
    %v6080 = vunpack.c.l.b16 %v5809
    %v6081 = vunpack.c.l.b16 %v5810
    %v6082 = vunpack.c.l.b16 %v5811
    %v6083 = vunpack.c.l.b16 %v5812
    %v6084 = vunpack.c.l.b16 %v5813
    %v6085 = vunpack.c.l.b16 %v5814
    %v6086 = vunpack.c.l.b16 %v5815
    %v6087 = vunpack.c.l.b16 %v5816
    %v6088 = vunpack.c.l.b16 %v5817
    %v6089 = vunpack.c.l.b16 %v5818
    %v6090 = vunpack.c.l.b16 %v5819
    %v6091 = vunpack.c.l.b16 %v5820
    %v6092 = vunpack.c.l.b16 %v5821
    %v6093 = vunpack.c.l.b16 %v5822
    %v6094 = vunpack.c.l.b16 %v5823
    %v6095 = vunpack.c.l.b16 %v5824
    %v6096 = vunpack.c.l.b16 %v5825
    %v6097 = vunpack.c.l.b16 %v5826
    %v6098 = vunpack.c.l.b16 %v5827
    %v6099 = vunpack.c.l.b16 %v5828
    %v6100 = vunpack.c.l.b16 %v5829
    %v6101 = vunpack.c.l.b16 %v5830
    %v6102 = vunpack.c.l.b16 %v5831
    %v6103 = vunpack.c.l.b16 %v5832
    %v6104 = vunpack.c.l.b16 %v5833
    %v6105 = vunpack.c.l.b16 %v5834
    %v6106 = vunpack.c.l.b16 %v5835
    %v6107 = vpack.c.b16 %v6028, %v6027
    %v6108 = vpack.c.b16 %v6030, %v6029
    %v6109 = vpack.c.b16 %v6032, %v6031
    %v6110 = vpack.c.b16 %v6034, %v6033
    %v6111 = vpack.c.b16 %v6036, %v6035
    %v6112 = vpack.c.b16 %v6038, %v6037
    %v6113 = vpack.c.b16 %v6040, %v6039
    %v6114 = vpack.c.b16 %v6042, %v6041
    %v6115 = vpack.c.b16 %v6044, %v6043
    %v6116 = vpack.c.b16 %v6046, %v6045
    %v6117 = vpack.c.b16 %v6048, %v6047
    %v6118 = vpack.c.b16 %v6050, %v6049
    %v6119 = vpack.c.b16 %v6052, %v6051
    %v6120 = vpack.c.b16 %v6054, %v6053
    %v6121 = vpack.c.b16 %v6056, %v6055
    %v6122 = vpack.c.b16 %v6058, %v6057
    %v6123 = vpack.c.b16 %v6060, %v6059
    %v6124 = vpack.c.b16 %v6062, %v6061
    %v6125 = vpack.c.b16 %v6064, %v6063
    %v6126 = vpack.c.b16 %v6066, %v6065
    %v6127 = vpack.c.b16 %v6068, %v6067
    %v6128 = vpack.c.b16 %v6070, %v6069
    %v6129 = vpack.c.b16 %v6072, %v6071
    %v6130 = vpack.c.b16 %v6074, %v6073
    %v6131 = vpack.c.b16 %v6076, %v6075
    %v6132 = vpack.c.b16 %v6078, %v6077
    %v6133 = vpack.c.b16 %v6080, %v6079
    %v6134 = vpack.c.b16 %v6082, %v6081
    %v6135 = vpack.c.b16 %v6084, %v6083
    %v6136 = vpack.c.b16 %v6086, %v6085
    %v6137 = vpack.c.b16 %v6088, %v6087
    %v6138 = vpack.c.b16 %v6090, %v6089
    %v6139 = vpack.c.b16 %v6092, %v6091
    %v6140 = vpack.c.b16 %v6094, %v6093
    %v6141 = vpack.c.b16 %v6096, %v6095
    %v6142 = vpack.c.b16 %v6098, %v6097
    %v6143 = vpack.c.b16 %v6100, %v6099
    %v6144 = vpack.c.b16 %v6102, %v6101
    %v6145 = vpack.c.b16 %v6104, %v6103
    %v6146 = vpack.c.b16 %v6106, %v6105
    %6187 = vmatprep.subr.bf16.mxu0 0
    %6188 = vmatpush1.bf16.msra.mxu0 %v6114
    %6189 = vmatprep.subr.bf16.mxu0 0
    %6190 = vmatpush1.bf16.msra.mxu0 %v6113
    %6191 = vmatprep.subr.bf16.mxu0 0
    %6192 = vmatpush1.bf16.msra.mxu0 %v6112
    %6193 = vmatprep.subr.bf16.mxu0 0
    %6194 = vmatpush1.bf16.msra.mxu0 %v6111
    %6195 = vmatprep.subr.bf16.mxu0 0
    %6196 = vmatpush1.bf16.msra.mxu0 %v6110
    %6197 = vmatprep.subr.bf16.mxu0 0
    %6198 = vmatpush1.bf16.msra.mxu0 %v6109
    %6199 = vmatprep.subr.bf16.mxu0 0
    %6200 = vmatpush1.bf16.msra.mxu0 %v6108
    %6201 = vmatprep.subr.bf16.mxu0 0
    %6202 = vmatpush1.bf16.msra.mxu0 %v6107
    %6203 = vmatprep.subr.bf16.mxu0 0
    %6204 = vmatpush2.bf16.msra.mxu0 %v6122
    %6205 = vmatprep.subr.bf16.mxu0 0
    %6206 = vmatpush2.bf16.msra.mxu0 %v6121
    %6207 = vmatprep.subr.bf16.mxu0 0
    %6208 = vmatpush2.bf16.msra.mxu0 %v6120
    %6209 = vmatprep.subr.bf16.mxu0 0
    %6210 = vmatpush2.bf16.msra.mxu0 %v6119
    %6211 = vmatprep.subr.bf16.mxu0 0
    %6212 = vmatpush2.bf16.msra.mxu0 %v6118
    %6213 = vmatprep.subr.bf16.mxu0 0
    %6214 = vmatpush2.bf16.msra.mxu0 %v6117
    %6215 = vmatprep.subr.bf16.mxu0 0
    %6216 = vmatpush2.bf16.msra.mxu0 %v6116
    %6217 = vmatprep.subr.bf16.mxu0 0
    %6218 = vmatpush2.bf16.msra.mxu0 %v6115
    %6219 = vmatprep.mubr.bf16.mxu0 %v5908
    %6220 = vmatmul.mubr.bf16.gmra.mxu0 %v5907
    %v6221 = vpop.f32.mrf.mxu0
    %v6222 = vadd.f32 %v5841, %v6221
    %v6223 = vpop.f32.mrf.mxu0
    %v6224 = vpop.f32.mrf.mxu0
    %v6225 = vadd.f32 %v5841, %v6224
    %v6226 = vpop.f32.mrf.mxu0
    %6227 = vmatprep.mubr.bf16.mxu0 %v5913
    %6228 = vmatmul.mubr.bf16.gmra.mxu0 %v5912
    %v6229 = vpop.f32.mrf.mxu0
    %v6230 = vadd.f32 %v5841, %v6229
    %v6231 = vpop.f32.mrf.mxu0
    %v6232 = vpop.f32.mrf.mxu0
    %v6233 = vadd.f32 %v5841, %v6232
    %v6234 = vpop.f32.mrf.mxu0
    %6235 = vmatprep.mubr.bf16.mxu0 %v5918
    %6236 = vmatmul.mubr.bf16.gmra.mxu0 %v5917
    %v6237 = vpop.f32.mrf.mxu0
    %v6238 = vadd.f32 %v5841, %v6237
    %v6239 = vpop.f32.mrf.mxu0
    %v6240 = vpop.f32.mrf.mxu0
    %v6241 = vadd.f32 %v5841, %v6240
    %v6242 = vpop.f32.mrf.mxu0
    %6243 = vmatprep.mubr.bf16.mxu0 %v5923
    %6244 = vmatmul.mubr.bf16.gmra.mxu0 %v5922
    %v6245 = vpop.f32.mrf.mxu0
    %v6246 = vadd.f32 %v5841, %v6245
    %v6247 = vpop.f32.mrf.mxu0
    %v6248 = vpop.f32.mrf.mxu0
    %v6249 = vadd.f32 %v5841, %v6248
    %v6250 = vpop.f32.mrf.mxu0
    %6251 = vdwg.mxu0
    %6252 = vmatprep.subr.bf16.mxu0 0
    %6253 = vmatpush1.bf16.msra.mxu0 %v6130
    %6254 = vmatprep.subr.bf16.mxu0 0
    %6255 = vmatpush1.bf16.msra.mxu0 %v6129
    %6256 = vmatprep.subr.bf16.mxu0 0
    %6257 = vmatpush1.bf16.msra.mxu0 %v6128
    %6258 = vmatprep.subr.bf16.mxu0 0
    %6259 = vmatpush1.bf16.msra.mxu0 %v6127
    %6260 = vmatprep.subr.bf16.mxu0 0
    %6261 = vmatpush1.bf16.msra.mxu0 %v6126
    %6262 = vmatprep.subr.bf16.mxu0 0
    %6263 = vmatpush1.bf16.msra.mxu0 %v6125
    %6264 = vmatprep.subr.bf16.mxu0 0
    %6265 = vmatpush1.bf16.msra.mxu0 %v6124
    %6266 = vmatprep.subr.bf16.mxu0 0
    %6267 = vmatpush1.bf16.msra.mxu0 %v6123
    %6268 = vmatprep.subr.bf16.mxu0 0
    %6269 = vmatpush2.bf16.msra.mxu0 %v6138
    %6270 = vmatprep.subr.bf16.mxu0 0
    %6271 = vmatpush2.bf16.msra.mxu0 %v6137
    %6272 = vmatprep.subr.bf16.mxu0 0
    %6273 = vmatpush2.bf16.msra.mxu0 %v6136
    %6274 = vmatprep.subr.bf16.mxu0 0
    %6275 = vmatpush2.bf16.msra.mxu0 %v6135
    %6276 = vmatprep.subr.bf16.mxu0 0
    %6277 = vmatpush2.bf16.msra.mxu0 %v6134
    %6278 = vmatprep.subr.bf16.mxu0 0
    %6279 = vmatpush2.bf16.msra.mxu0 %v6133
    %6280 = vmatprep.subr.bf16.mxu0 0
    %6281 = vmatpush2.bf16.msra.mxu0 %v6132
    %6282 = vmatprep.subr.bf16.mxu0 0
    %6283 = vmatpush2.bf16.msra.mxu0 %v6131
    %6284 = vmatprep.mubr.bf16.mxu0 %v5910
    %6285 = vmatmul.mubr.bf16.gmra.mxu0 %v5909
    %v6286 = vpop.f32.mrf.mxu0
    %v6287 = vadd.f32 %v6222, %v6286
    %v6288 = vpop.f32.mrf.mxu0
    %v6289 = vpop.f32.mrf.mxu0
    %v6290 = vadd.f32 %v6225, %v6289
    %v6291 = vpop.f32.mrf.mxu0
    %6292 = vmatprep.mubr.bf16.mxu0 %v5915
    %6293 = vmatmul.mubr.bf16.gmra.mxu0 %v5914
    %v6294 = vpop.f32.mrf.mxu0
    %v6295 = vadd.f32 %v6230, %v6294
    %v6296 = vpop.f32.mrf.mxu0
    %v6297 = vpop.f32.mrf.mxu0
    %v6298 = vadd.f32 %v6233, %v6297
    %v6299 = vpop.f32.mrf.mxu0
    %6300 = vmatprep.mubr.bf16.mxu0 %v5920
    %6301 = vmatmul.mubr.bf16.gmra.mxu0 %v5919
    %v6302 = vpop.f32.mrf.mxu0
    %v6303 = vadd.f32 %v6238, %v6302
    %v6304 = vpop.f32.mrf.mxu0
    %v6305 = vpop.f32.mrf.mxu0
    %v6306 = vadd.f32 %v6241, %v6305
    %v6307 = vpop.f32.mrf.mxu0
    %6308 = vmatprep.mubr.bf16.mxu0 %v5925
    %6309 = vmatmul.mubr.bf16.gmra.mxu0 %v5924
    %v6310 = vpop.f32.mrf.mxu0
    %v6311 = vadd.f32 %v6246, %v6310
    %v6312 = vpop.f32.mrf.mxu0
    %v6313 = vpop.f32.mrf.mxu0
    %v6314 = vadd.f32 %v6249, %v6313
    %v6315 = vpop.f32.mrf.mxu0
    %6316 = vdwg.mxu0
    %6317 = vmatprep.subr.bf16.mxu0 0
    %6318 = vmatpush1.bf16.msra.mxu0 %v6146
    %6319 = vmatprep.subr.bf16.mxu0 0
    %6320 = vmatpush1.bf16.msra.mxu0 %v6145
    %6321 = vmatprep.subr.bf16.mxu0 0
    %6322 = vmatpush1.bf16.msra.mxu0 %v6144
    %6323 = vmatprep.subr.bf16.mxu0 0
    %6324 = vmatpush1.bf16.msra.mxu0 %v6143
    %6325 = vmatprep.subr.bf16.mxu0 0
    %6326 = vmatpush1.bf16.msra.mxu0 %v6142
    %6327 = vmatprep.subr.bf16.mxu0 0
    %6328 = vmatpush1.bf16.msra.mxu0 %v6141
    %6329 = vmatprep.subr.bf16.mxu0 0
    %6330 = vmatpush1.bf16.msra.mxu0 %v6140
    %6331 = vmatprep.subr.bf16.mxu0 0
    %6332 = vmatpush1.bf16.msra.mxu0 %v6139
    %6333 = vmatprep.subr.bf16.mxu0 0
    %6334 = vmatpush2.bf16.msra.mxu0 0
    %6335 = vmatprep.subr.bf16.mxu0 0
    %6336 = vmatpush2.bf16.msra.mxu0 0
    %6337 = vmatprep.subr.bf16.mxu0 0
    %6338 = vmatpush2.bf16.msra.mxu0 0
    %6339 = vmatprep.subr.bf16.mxu0 0
    %6340 = vmatpush2.bf16.msra.mxu0 0
    %6341 = vmatprep.subr.bf16.mxu0 0
    %6342 = vmatpush2.bf16.msra.mxu0 0
    %6343 = vmatprep.subr.bf16.mxu0 0
    %6344 = vmatpush2.bf16.msra.mxu0 0
    %6345 = vmatprep.subr.bf16.mxu0 0
    %6346 = vmatpush2.bf16.msra.mxu0 0
    %6347 = vmatprep.subr.bf16.mxu0 0
    %6348 = vmatpush2.bf16.msra.mxu0 0
    %6349 = vmatprep.mubr.bf16.mxu0 0
    %6350 = vmatmul.mubr.bf16.gmra.mxu0 %v5911
    %v6351 = vpop.f32.mrf.mxu0
    %v6352 = vadd.f32 %v6287, %v6351
    %v6353 = vpop.f32.mrf.mxu0
    %v6354 = vpop.f32.mrf.mxu0
    %v6355 = vadd.f32 %v6290, %v6354
    %v6356 = vpop.f32.mrf.mxu0
    %6357 = vmatprep.mubr.bf16.mxu0 0
    %6358 = vmatmul.mubr.bf16.gmra.mxu0 %v5916
    %v6359 = vpop.f32.mrf.mxu0
    %v6360 = vadd.f32 %v6295, %v6359
    %v6361 = vpop.f32.mrf.mxu0
    %v6362 = vpop.f32.mrf.mxu0
    %v6363 = vadd.f32 %v6298, %v6362
    %v6364 = vpop.f32.mrf.mxu0
    %6365 = vmatprep.mubr.bf16.mxu0 0
    %6366 = vmatmul.mubr.bf16.gmra.mxu0 %v5921
    %v6367 = vpop.f32.mrf.mxu0
    %v6368 = vadd.f32 %v6303, %v6367
    %v6369 = vpop.f32.mrf.mxu0
    %v6370 = vpop.f32.mrf.mxu0
    %v6371 = vadd.f32 %v6306, %v6370
    %v6372 = vpop.f32.mrf.mxu0
    %6373 = vmatprep.mubr.bf16.mxu0 0
    %6374 = vmatmul.mubr.bf16.gmra.mxu0 %v5926
    %v6375 = vpop.f32.mrf.mxu0
    %v6376 = vadd.f32 %v6311, %v6375
    %v6377 = vpop.f32.mrf.mxu0
    %v6378 = vpop.f32.mrf.mxu0
    %v6379 = vadd.f32 %v6314, %v6378
    %v6380 = vpop.f32.mrf.mxu0
    %6381 = vdwg.mxu0
    %vm6382 = vcmp.ge.f32.partialorder %v6352, 0.0
    %vm6383 = vcmp.ge.f32.partialorder %v6355, 0.0
    %vm6384 = vcmp.ge.f32.partialorder %v6360, 0.0
    %vm6385 = vcmp.ge.f32.partialorder %v6363, 0.0
    %vm6386 = vcmp.ge.f32.partialorder %v6368, 0.0
    %vm6387 = vcmp.ge.f32.partialorder %v6371, 0.0
    %vm6388 = vcmp.ge.f32.partialorder %v6376, 0.0
    %vm6389 = vcmp.ge.f32.partialorder %v6379, 0.0
    %v6390 = vmul.f32 %v6352, 0.1
    %v6391 = vmul.f32 %v6355, 0.1
    %v6392 = vmul.f32 %v6360, 0.1
    %v6393 = vmul.f32 %v6363, 0.1
    %v6394 = vmul.f32 %v6368, 0.1
    %v6395 = vmul.f32 %v6371, 0.1
    %v6396 = vmul.f32 %v6376, 0.1
    %v6397 = vmul.f32 %v6379, 0.1
    %v6398 = vsel %vm6382, %v6352, %v6390
    %v6399 = vsel %vm6383, %v6355, %v6391
    %v6400 = vsel %vm6384, %v6360, %v6392
    %v6401 = vsel %vm6385, %v6363, %v6393
    %v6402 = vsel %vm6386, %v6368, %v6394
    %v6403 = vsel %vm6387, %v6371, %v6395
    %v6404 = vsel %vm6388, %v6376, %v6396
    %v6405 = vsel %vm6389, %v6379, %v6397
    %v6406 = vpack.c.bf16 %v6399, %v6398
    %v6407 = vpack.c.bf16 %v6401, %v6400
    %v6408 = vpack.c.bf16 %v6403, %v6402
    %v6409 = vpack.c.bf16 %v6405, %v6404
    %v6410 = vld [vmem:[%s17] sm:$0xff]
    %v6411 = vld [vmem:[%s17 + $0x8] sm:$0xf]
    %v6412 = vld [vmem:[%s17 + $0xc] sm:$0xff]
    %v6413 = vld [vmem:[%s17 + $0x14] sm:$0xf]
    %v6414 = vld [vmem:[%s17 + $0x18] sm:$0xff]
    %v6415 = vld [vmem:[%s17 + $0x20] sm:$0xf]
    %v6416 = vld [vmem:[%s17 + $0x24] sm:$0xff]
    %v6417 = vld [vmem:[%s17 + $0x2c] sm:$0xf]
    %v6418 = vld [vmem:[%s17 + $0x30] sm:$0xff]
    %v6419 = vld [vmem:[%s17 + $0x38] sm:$0xf]
    %v6420 = vld [vmem:[%s17 + $0x3c] sm:$0xff]
    %v6421 = vld [vmem:[%s17 + $0x44] sm:$0xf]
    %v6422 = vld [vmem:[%s17 + $0x48] sm:$0xff]
    %v6423 = vld [vmem:[%s17 + $0x50] sm:$0xf]
    %v6424 = vld [vmem:[%s17 + $0x54] sm:$0xff]
    %v6425 = vld [vmem:[%s17 + $0x5c] sm:$0xf]
    %v6442 = vunpack.c.l.b16 %v6410
    %v6443 = vunpack.c.h.b16 %v6410
    %v6444 = vunpack.c.l.b16 %v6411
    %v6445 = vunpack.c.l.b16 %v6412
    %v6446 = vunpack.c.h.b16 %v6412
    %v6447 = vunpack.c.l.b16 %v6413
    %v6448 = vunpack.c.l.b16 %v6414
    %v6449 = vunpack.c.h.b16 %v6414
    %v6450 = vunpack.c.l.b16 %v6415
    %v6451 = vunpack.c.l.b16 %v6416
    %v6452 = vunpack.c.h.b16 %v6416
    %v6453 = vunpack.c.l.b16 %v6417
    %v6454 = vunpack.c.l.b16 %v6418
    %v6455 = vunpack.c.h.b16 %v6418
    %v6456 = vunpack.c.l.b16 %v6419
    %v6457 = vunpack.c.l.b16 %v6420
    %v6458 = vunpack.c.h.b16 %v6420
    %v6459 = vunpack.c.l.b16 %v6421
    %v6460 = vunpack.c.l.b16 %v6422
    %v6461 = vunpack.c.h.b16 %v6422
    %v6462 = vunpack.c.l.b16 %v6423
    %v6463 = vunpack.c.l.b16 %v6424
    %v6464 = vunpack.c.h.b16 %v6424
    %v6465 = vunpack.c.l.b16 %v6425
    %v6466 = vpack.c.b16 %v6445, %v6442
    %v6467 = vpack.c.b16 %v6446, %v6443
    %v6468 = vpack.c.b16 %v6447, %v6444
    %v6469 = vpack.c.b16 %v6451, %v6448
    %v6470 = vpack.c.b16 %v6452, %v6449
    %v6471 = vpack.c.b16 %v6453, %v6450
    %v6472 = vpack.c.b16 %v6457, %v6454
    %v6473 = vpack.c.b16 %v6458, %v6455
    %v6474 = vpack.c.b16 %v6459, %v6456
    %v6475 = vpack.c.b16 %v6463, %v6460
    %v6476 = vpack.c.b16 %v6464, %v6461
    %v6477 = vpack.c.b16 %v6465, %v6462
    %vm6490 = vcmask 523264
    %v6492 = vsel %vm6490, %v6406, 0
    %v6495 = vsel %vm6490, %v6407, 0
    %v6498 = vsel %vm6490, %v6408, 0
    %v6501 = vsel %vm6490, %v6409, 0
    %6503 = vmatprep.subr.bf16.mxu0 0
    %6504 = vmatpush1.bf16.msra.mxu0 0
    %6505 = vmatprep.subr.bf16.mxu0 0
    %6506 = vmatpush1.bf16.msra.mxu0 0
    %6507 = vmatprep.subr.bf16.mxu0 0
    %6508 = vmatpush1.bf16.msra.mxu0 0
    %6509 = vmatprep.subr.bf16.mxu0 0
    %6510 = vmatpush1.bf16.msra.mxu0 0
    %6511 = vmatprep.subr.bf16.mxu0 %v6476
    %6512 = vmatpush1.bf16.msra.mxu0 %v6475
    %6513 = vmatprep.subr.bf16.mxu0 %v6473
    %6514 = vmatpush1.bf16.msra.mxu0 %v6472
    %6515 = vmatprep.subr.bf16.mxu0 %v6470
    %6516 = vmatpush1.bf16.msra.mxu0 %v6469
    %6517 = vmatprep.subr.bf16.mxu0 %v6467
    %6518 = vmatpush1.bf16.msra.mxu0 %v6466
    %6519 = vmatprep.subr.bf16.mxu0 0
    %6520 = vmatpush2.bf16.msra.mxu0 0
    %6521 = vmatprep.subr.bf16.mxu0 0
    %6522 = vmatpush2.bf16.msra.mxu0 0
    %6523 = vmatprep.subr.bf16.mxu0 0
    %6524 = vmatpush2.bf16.msra.mxu0 0
    %6525 = vmatprep.subr.bf16.mxu0 0
    %6526 = vmatpush2.bf16.msra.mxu0 0
    %6527 = vmatprep.subr.bf16.mxu0 0
    %6528 = vmatpush2.bf16.msra.mxu0 0
    %6529 = vmatprep.subr.bf16.mxu0 0
    %6530 = vmatpush2.bf16.msra.mxu0 0
    %6531 = vmatprep.subr.bf16.mxu0 0
    %6532 = vmatpush2.bf16.msra.mxu0 0
    %6533 = vmatprep.subr.bf16.mxu0 0
    %6534 = vmatpush2.bf16.msra.mxu0 0
    %6535 = vmatprep.mubr.bf16.mxu0 0
    %6536 = vmatmul.mubr.bf16.gmra.mxu0 %v6492
    %v6537 = vpop.f32.mrf.mxu0
    %v6538 = vadd.f32 0.0, %v6537
    %v6539 = vpop.f32.mrf.mxu0
    %v6540 = vadd.f32 0.0, %v6539
    %v6541 = vpop.f32.mrf.mxu0
    %v6542 = vadd.f32 0.0, %v6541
    %v6543 = vpop.f32.mrf.mxu0
    %v6544 = vadd.f32 0.0, %v6543
    %6545 = vmatprep.mubr.bf16.mxu0 0
    %6546 = vmatmul.mubr.bf16.gmra.mxu0 %v6495
    %v6547 = vpop.f32.mrf.mxu0
    %v6548 = vadd.f32 0.0, %v6547
    %v6549 = vpop.f32.mrf.mxu0
    %v6550 = vadd.f32 0.0, %v6549
    %v6551 = vpop.f32.mrf.mxu0
    %v6552 = vadd.f32 0.0, %v6551
    %v6553 = vpop.f32.mrf.mxu0
    %v6554 = vadd.f32 0.0, %v6553
    %6555 = vmatprep.mubr.bf16.mxu0 0
    %6556 = vmatmul.mubr.bf16.gmra.mxu0 %v6498
    %v6557 = vpop.f32.mrf.mxu0
    %v6558 = vadd.f32 0.0, %v6557
    %v6559 = vpop.f32.mrf.mxu0
    %v6560 = vadd.f32 0.0, %v6559
    %v6561 = vpop.f32.mrf.mxu0
    %v6562 = vadd.f32 0.0, %v6561
    %v6563 = vpop.f32.mrf.mxu0
    %v6564 = vadd.f32 0.0, %v6563
    %6565 = vmatprep.mubr.bf16.mxu0 0
    %6566 = vmatmul.mubr.bf16.gmra.mxu0 %v6501
    %v6567 = vpop.f32.mrf.mxu0
    %v6568 = vadd.f32 0.0, %v6567
    %v6569 = vpop.f32.mrf.mxu0
    %v6570 = vadd.f32 0.0, %v6569
    %v6571 = vpop.f32.mrf.mxu0
    %v6572 = vadd.f32 0.0, %v6571
    %v6573 = vpop.f32.mrf.mxu0
    %v6574 = vadd.f32 0.0, %v6573
    %6575 = vdwg.mxu0
    %6576 = vmatprep.subr.bf16.mxu0 0
    %6577 = vmatpush1.bf16.msra.mxu0 0
    %6578 = vmatprep.subr.bf16.mxu0 0
    %6579 = vmatpush1.bf16.msra.mxu0 0
    %6580 = vmatprep.subr.bf16.mxu0 0
    %6581 = vmatpush1.bf16.msra.mxu0 0
    %6582 = vmatprep.subr.bf16.mxu0 0
    %6583 = vmatpush1.bf16.msra.mxu0 0
    %6584 = vmatprep.subr.bf16.mxu0 0
    %6585 = vmatpush1.bf16.msra.mxu0 %v6477
    %6586 = vmatprep.subr.bf16.mxu0 0
    %6587 = vmatpush1.bf16.msra.mxu0 %v6474
    %6588 = vmatprep.subr.bf16.mxu0 0
    %6589 = vmatpush1.bf16.msra.mxu0 %v6471
    %6590 = vmatprep.subr.bf16.mxu0 0
    %6591 = vmatpush1.bf16.msra.mxu0 %v6468
    %6592 = vmatprep.subr.bf16.mxu0 0
    %6593 = vmatpush2.bf16.msra.mxu0 0
    %6594 = vmatprep.subr.bf16.mxu0 0
    %6595 = vmatpush2.bf16.msra.mxu0 0
    %6596 = vmatprep.subr.bf16.mxu0 0
    %6597 = vmatpush2.bf16.msra.mxu0 0
    %6598 = vmatprep.subr.bf16.mxu0 0
    %6599 = vmatpush2.bf16.msra.mxu0 0
    %6600 = vmatprep.subr.bf16.mxu0 0
    %6601 = vmatpush2.bf16.msra.mxu0 0
    %6602 = vmatprep.subr.bf16.mxu0 0
    %6603 = vmatpush2.bf16.msra.mxu0 0
    %6604 = vmatprep.subr.bf16.mxu0 0
    %6605 = vmatpush2.bf16.msra.mxu0 0
    %6606 = vmatprep.subr.bf16.mxu0 0
    %6607 = vmatpush2.bf16.msra.mxu0 0
    %6608 = vmatprep.mubr.bf16.mxu0 0
    %6609 = vmatmul.mubr.bf16.gmra.mxu0 %v6492
    %v6610 = vpop.f32.mrf.mxu0
    %v6611 = vadd.f32 0.0, %v6610
    %v6612 = vpop.f32.mrf.mxu0
    %v6613 = vpop.f32.mrf.mxu0
    %v6614 = vadd.f32 0.0, %v6613
    %v6615 = vpop.f32.mrf.mxu0
    %6616 = vmatprep.mubr.bf16.mxu0 0
    %6617 = vmatmul.mubr.bf16.gmra.mxu0 %v6495
    %v6618 = vpop.f32.mrf.mxu0
    %v6619 = vadd.f32 0.0, %v6618
    %v6620 = vpop.f32.mrf.mxu0
    %v6621 = vpop.f32.mrf.mxu0
    %v6622 = vadd.f32 0.0, %v6621
    %v6623 = vpop.f32.mrf.mxu0
    %6624 = vmatprep.mubr.bf16.mxu0 0
    %6625 = vmatmul.mubr.bf16.gmra.mxu0 %v6498
    %v6626 = vpop.f32.mrf.mxu0
    %v6627 = vadd.f32 0.0, %v6626
    %v6628 = vpop.f32.mrf.mxu0
    %v6629 = vpop.f32.mrf.mxu0
    %v6630 = vadd.f32 0.0, %v6629
    %v6631 = vpop.f32.mrf.mxu0
    %6632 = vmatprep.mubr.bf16.mxu0 0
    %6633 = vmatmul.mubr.bf16.gmra.mxu0 %v6501
    %v6634 = vpop.f32.mrf.mxu0
    %v6635 = vadd.f32 0.0, %v6634
    %v6636 = vpop.f32.mrf.mxu0
    %v6637 = vpop.f32.mrf.mxu0
    %v6638 = vadd.f32 0.0, %v6637
    %v6639 = vpop.f32.mrf.mxu0
    %6640 = vdwg.mxu0
    %v6641 = vpack.c.bf16 %v6542, %v6538
    %v6642 = vpack.c.bf16 %v6552, %v6548
    %v6643 = vpack.c.bf16 %v6562, %v6558
    %v6644 = vpack.c.bf16 %v6572, %v6568
    %v6649 = vunpack.c.l.b16 %v6641
    %v6650 = vunpack.c.h.b16 %v6641
    %v6651 = vunpack.c.l.b16 %v6642
    %v6652 = vunpack.c.h.b16 %v6642
    %v6653 = vunpack.c.l.b16 %v6643
    %v6654 = vunpack.c.h.b16 %v6643
    %v6655 = vunpack.c.l.b16 %v6644
    %v6656 = vunpack.c.h.b16 %v6644
    %v6657 = vpack.c.b16 %v6649, %v6649
    %v6658 = vpack.c.b16 %v6650, %v6650
    %v6659 = vpack.c.b16 %v6651, %v6651
    %v6660 = vpack.c.b16 %v6652, %v6652
    %v6661 = vpack.c.b16 %v6653, %v6653
    %v6662 = vpack.c.b16 %v6654, %v6654
    %v6663 = vpack.c.b16 %v6655, %v6655
    %v6664 = vpack.c.b16 %v6656, %v6656
    %6673 = vst [vmem:[#allocation4] sm:$0xf] %v6657
    %6674 = vst [vmem:[#allocation4 + $0x4] sm:$0xf] %v6658
    %6675 = vst [vmem:[#allocation4 + $0x8] sm:$0xf] %v6659
    %6676 = vst [vmem:[#allocation4 + $0xc] sm:$0xf] %v6660
    %6677 = vst [vmem:[#allocation4 + $0x10] sm:$0xf] %v6661
    %6678 = vst [vmem:[#allocation4 + $0x14] sm:$0xf] %v6662
    %6679 = vst [vmem:[#allocation4 + $0x18] sm:$0xf] %v6663
    %6680 = vst [vmem:[#allocation4 + $0x1c] sm:$0xf] %v6664
    %v6681 = vpack.c.bf16 %v6544, %v6540
    %v6682 = vpack.c.bf16 %v6554, %v6550
    %v6683 = vpack.c.bf16 %v6564, %v6560
    %v6684 = vpack.c.bf16 %v6574, %v6570
    %v6689 = vunpack.c.l.b16 %v6681
    %v6690 = vunpack.c.h.b16 %v6681
    %v6691 = vunpack.c.l.b16 %v6682
    %v6692 = vunpack.c.h.b16 %v6682
    %v6693 = vunpack.c.l.b16 %v6683
    %v6694 = vunpack.c.h.b16 %v6683
    %v6695 = vunpack.c.l.b16 %v6684
    %v6696 = vunpack.c.h.b16 %v6684
    %v6697 = vpack.c.b16 %v6689, %v6689
    %v6698 = vpack.c.b16 %v6690, %v6690
    %v6699 = vpack.c.b16 %v6691, %v6691
    %v6700 = vpack.c.b16 %v6692, %v6692
    %v6701 = vpack.c.b16 %v6693, %v6693
    %v6702 = vpack.c.b16 %v6694, %v6694
    %v6703 = vpack.c.b16 %v6695, %v6695
    %v6704 = vpack.c.b16 %v6696, %v6696
    %6713 = vst [vmem:[#allocation4 + $0x20] sm:$0xf] %v6697
    %6714 = vst [vmem:[#allocation4 + $0x24] sm:$0xf] %v6698
    %6715 = vst [vmem:[#allocation4 + $0x28] sm:$0xf] %v6699
    %6716 = vst [vmem:[#allocation4 + $0x2c] sm:$0xf] %v6700
    %6717 = vst [vmem:[#allocation4 + $0x30] sm:$0xf] %v6701
    %6718 = vst [vmem:[#allocation4 + $0x34] sm:$0xf] %v6702
    %6719 = vst [vmem:[#allocation4 + $0x38] sm:$0xf] %v6703
    %6720 = vst [vmem:[#allocation4 + $0x3c] sm:$0xf] %v6704
    %v6721 = vpack.c.bf16 %v6614, %v6611
    %v6722 = vpack.c.bf16 %v6622, %v6619
    %v6723 = vpack.c.bf16 %v6630, %v6627
    %v6724 = vpack.c.bf16 %v6638, %v6635
    %v6729 = vunpack.c.l.b16 %v6721
    %v6730 = vunpack.c.h.b16 %v6721
    %v6731 = vunpack.c.l.b16 %v6722
    %v6732 = vunpack.c.h.b16 %v6722
    %v6733 = vunpack.c.l.b16 %v6723
    %v6734 = vunpack.c.h.b16 %v6723
    %v6735 = vunpack.c.l.b16 %v6724
    %v6736 = vunpack.c.h.b16 %v6724
    %v6737 = vpack.c.b16 %v6729, %v6729
    %v6738 = vpack.c.b16 %v6730, %v6730
    %v6739 = vpack.c.b16 %v6731, %v6731
    %v6740 = vpack.c.b16 %v6732, %v6732
    %v6741 = vpack.c.b16 %v6733, %v6733
    %v6742 = vpack.c.b16 %v6734, %v6734
    %v6743 = vpack.c.b16 %v6735, %v6735
    %v6744 = vpack.c.b16 %v6736, %v6736
    %6753 = vst [vmem:[#allocation4 + $0x40] sm:$0xf] %v6737
    %6754 = vst [vmem:[#allocation4 + $0x44] sm:$0xf] %v6738
    %6755 = vst [vmem:[#allocation4 + $0x48] sm:$0xf] %v6739
    %6756 = vst [vmem:[#allocation4 + $0x4c] sm:$0xf] %v6740
    %6757 = vst [vmem:[#allocation4 + $0x50] sm:$0xf] %v6741
    %6758 = vst [vmem:[#allocation4 + $0x54] sm:$0xf] %v6742
    %6759 = vst [vmem:[#allocation4 + $0x58] sm:$0xf] %v6743
    %6760 = vst [vmem:[#allocation4 + $0x5c] sm:$0xf] %v6744
    %v6761 = vld [vmem:[%s21] sm:$0xff]
    %v6762 = vld [vmem:[%s21 + $0x8] sm:$0xff]
    %v6763 = vld [vmem:[%s21 + $0x10] sm:$0xff]
    %v6764 = vld [vmem:[%s21 + $0x18] sm:$0xff]
    %v6765 = vld [vmem:[#allocation4] sm:$0xf]
    %v6766 = vld [vmem:[#allocation4 + $0x4] sm:$0xf]
    %v6767 = vld [vmem:[#allocation4 + $0x8] sm:$0xf]
    %v6768 = vld [vmem:[#allocation4 + $0xc] sm:$0xf]
    %v6769 = vld [vmem:[#allocation4 + $0x10] sm:$0xf]
    %v6770 = vld [vmem:[#allocation4 + $0x14] sm:$0xf]
    %v6771 = vld [vmem:[#allocation4 + $0x18] sm:$0xf]
    %v6772 = vld [vmem:[#allocation4 + $0x1c] sm:$0xf]
    %v6773 = vld [vmem:[#allocation4 + $0x20] sm:$0xf]
    %v6774 = vld [vmem:[#allocation4 + $0x24] sm:$0xf]
    %v6775 = vld [vmem:[#allocation4 + $0x28] sm:$0xf]
    %v6776 = vld [vmem:[#allocation4 + $0x2c] sm:$0xf]
    %v6777 = vld [vmem:[#allocation4 + $0x30] sm:$0xf]
    %v6778 = vld [vmem:[#allocation4 + $0x34] sm:$0xf]
    %v6779 = vld [vmem:[#allocation4 + $0x38] sm:$0xf]
    %v6780 = vld [vmem:[#allocation4 + $0x3c] sm:$0xf]
    %v6781 = vld [vmem:[#allocation4 + $0x40] sm:$0xf]
    %v6782 = vld [vmem:[#allocation4 + $0x44] sm:$0xf]
    %v6783 = vld [vmem:[#allocation4 + $0x48] sm:$0xf]
    %v6784 = vld [vmem:[#allocation4 + $0x4c] sm:$0xf]
    %v6785 = vld [vmem:[#allocation4 + $0x50] sm:$0xf]
    %v6786 = vld [vmem:[#allocation4 + $0x54] sm:$0xf]
    %v6787 = vld [vmem:[#allocation4 + $0x58] sm:$0xf]
    %v6788 = vld [vmem:[#allocation4 + $0x5c] sm:$0xf]
    %v6789 = vld [vmem:[#allocation17] sm:$0x1]
    %v6791 = vlaneseq
    %v6792 = vshrl.u32 %v6791, 7
    %v6793 = vsub.s32 0, %v6792
    %v6794 = vrot.slane %v6789, %v6793
    %v6800 = vunpack.c.l.b16 %v6761
    %v6801 = vunpack.c.h.b16 %v6761
    %v6802 = vunpack.c.l.b16 %v6762
    %v6803 = vunpack.c.h.b16 %v6762
    %v6804 = vunpack.c.l.b16 %v6763
    %v6805 = vunpack.c.h.b16 %v6763
    %v6806 = vunpack.c.l.b16 %v6764
    %v6807 = vunpack.c.h.b16 %v6764
    %v6808 = vpack.c.b16 %v6802, %v6800
    %v6809 = vpack.c.b16 %v6803, %v6801
    %v6810 = vpack.c.b16 %v6806, %v6804
    %v6811 = vpack.c.b16 %v6807, %v6805
    %v6838 = vunpack.c.l.b16 %v6765
    %v6839 = vunpack.c.l.b16 %v6766
    %v6840 = vunpack.c.l.b16 %v6767
    %v6841 = vunpack.c.l.b16 %v6768
    %v6842 = vunpack.c.l.b16 %v6769
    %v6843 = vunpack.c.l.b16 %v6770
    %v6844 = vunpack.c.l.b16 %v6771
    %v6845 = vunpack.c.l.b16 %v6772
    %v6846 = vunpack.c.l.b16 %v6773
    %v6847 = vunpack.c.l.b16 %v6774
    %v6848 = vunpack.c.l.b16 %v6775
    %v6849 = vunpack.c.l.b16 %v6776
    %v6850 = vunpack.c.l.b16 %v6777
    %v6851 = vunpack.c.l.b16 %v6778
    %v6852 = vunpack.c.l.b16 %v6779
    %v6853 = vunpack.c.l.b16 %v6780
    %v6854 = vunpack.c.l.b16 %v6781
    %v6855 = vunpack.c.l.b16 %v6782
    %v6856 = vunpack.c.l.b16 %v6783
    %v6857 = vunpack.c.l.b16 %v6784
    %v6858 = vunpack.c.l.b16 %v6785
    %v6859 = vunpack.c.l.b16 %v6786
    %v6860 = vunpack.c.l.b16 %v6787
    %v6861 = vunpack.c.l.b16 %v6788
    %v6862 = vpack.c.b16 %v6839, %v6838
    %v6863 = vpack.c.b16 %v6841, %v6840
    %v6864 = vpack.c.b16 %v6843, %v6842
    %v6865 = vpack.c.b16 %v6845, %v6844
    %v6866 = vpack.c.b16 %v6847, %v6846
    %v6867 = vpack.c.b16 %v6849, %v6848
    %v6868 = vpack.c.b16 %v6851, %v6850
    %v6869 = vpack.c.b16 %v6853, %v6852
    %v6870 = vpack.c.b16 %v6855, %v6854
    %v6871 = vpack.c.b16 %v6857, %v6856
    %v6872 = vpack.c.b16 %v6859, %v6858
    %v6873 = vpack.c.b16 %v6861, %v6860
    %v6887 = vsel %vm6490, %v6809, 0
    %v6890 = vsel %vm6490, %v6811, 0
    %6892 = vmatprep.subr.bf16.mxu0 0
    %6893 = vmatpush1.bf16.msra.mxu0 %v6869
    %6894 = vmatprep.subr.bf16.mxu0 0
    %6895 = vmatpush1.bf16.msra.mxu0 %v6868
    %6896 = vmatprep.subr.bf16.mxu0 0
    %6897 = vmatpush1.bf16.msra.mxu0 %v6867
    %6898 = vmatprep.subr.bf16.mxu0 0
    %6899 = vmatpush1.bf16.msra.mxu0 %v6866
    %6900 = vmatprep.subr.bf16.mxu0 0
    %6901 = vmatpush1.bf16.msra.mxu0 %v6865
    %6902 = vmatprep.subr.bf16.mxu0 0
    %6903 = vmatpush1.bf16.msra.mxu0 %v6864
    %6904 = vmatprep.subr.bf16.mxu0 0
    %6905 = vmatpush1.bf16.msra.mxu0 %v6863
    %6906 = vmatprep.subr.bf16.mxu0 0
    %6907 = vmatpush1.bf16.msra.mxu0 %v6862
    %6908 = vmatprep.subr.bf16.mxu0 0
    %6909 = vmatpush2.bf16.msra.mxu0 0
    %6910 = vmatprep.subr.bf16.mxu0 0
    %6911 = vmatpush2.bf16.msra.mxu0 0
    %6912 = vmatprep.subr.bf16.mxu0 0
    %6913 = vmatpush2.bf16.msra.mxu0 0
    %6914 = vmatprep.subr.bf16.mxu0 0
    %6915 = vmatpush2.bf16.msra.mxu0 0
    %6916 = vmatprep.subr.bf16.mxu0 0
    %6917 = vmatpush2.bf16.msra.mxu0 %v6873
    %6918 = vmatprep.subr.bf16.mxu0 0
    %6919 = vmatpush2.bf16.msra.mxu0 %v6872
    %6920 = vmatprep.subr.bf16.mxu0 0
    %6921 = vmatpush2.bf16.msra.mxu0 %v6871
    %6922 = vmatprep.subr.bf16.mxu0 0
    %6923 = vmatpush2.bf16.msra.mxu0 %v6870
    %6924 = vmatprep.mubr.bf16.mxu0 %v6887
    %6925 = vmatmul.mubr.bf16.gmra.mxu0 %v6808
    %v6926 = vpop.f32.mrf.mxu0
    %v6927 = vadd.f32 %v6794, %v6926
    %v6928 = vpop.f32.mrf.mxu0
    %v6929 = vpop.f32.mrf.mxu0
    %v6930 = vadd.f32 %v6794, %v6929
    %v6931 = vpop.f32.mrf.mxu0
    %6932 = vmatprep.mubr.bf16.mxu0 %v6890
    %6933 = vmatmul.mubr.bf16.gmra.mxu0 %v6810
    %v6934 = vpop.f32.mrf.mxu0
    %v6935 = vadd.f32 %v6794, %v6934
    %v6936 = vpop.f32.mrf.mxu0
    %v6937 = vpop.f32.mrf.mxu0
    %v6938 = vadd.f32 %v6794, %v6937
    %v6939 = vpop.f32.mrf.mxu0
    %6940 = vdwg.mxu0
    %vm6941 = vcmp.ge.f32.partialorder %v6927, 0.0
    %vm6942 = vcmp.ge.f32.partialorder %v6930, 0.0
    %vm6943 = vcmp.ge.f32.partialorder %v6935, 0.0
    %vm6944 = vcmp.ge.f32.partialorder %v6938, 0.0
    %v6945 = vmul.f32 %v6927, 0.1
    %v6946 = vmul.f32 %v6930, 0.1
    %v6947 = vmul.f32 %v6935, 0.1
    %v6948 = vmul.f32 %v6938, 0.1
    %v6949 = vsel %vm6941, %v6927, %v6945
    %v6950 = vsel %vm6942, %v6930, %v6946
    %v6951 = vsel %vm6943, %v6935, %v6947
    %v6952 = vsel %vm6944, %v6938, %v6948
    %v6953 = vld [vmem:[%s23] sm:$0xf]
    %v6954 = vld [vmem:[%s23 + $0x4] sm:$0xf]
    %v6955 = vld [vmem:[%s23 + $0x8] sm:$0x1]
    %v6956 = vpack.c.bf16 %v6950, %v6949
    %v6957 = vpack.c.bf16 %v6952, %v6951
    %v6961 = vunpack.c.l.b16 %v6953
    %v6962 = vunpack.c.l.b16 %v6954
    %v6963 = vunpack.c.l.b16 %v6955
    %v6964 = vpack.c.b16 %v6962, %v6961
    %v6965 = vpack.c.b16 %v6963, %v6963
    %v6967 = vsel %vm5128, %v6964, 0
    %v6970 = vsel %vm5128, %v6965, 0
    %6972 = vmatprep.subr.bf16.mxu0 0
    %6973 = vmatpush1.bf16.msra.mxu0 0
    %6974 = vmatprep.subr.bf16.mxu0 0
    %6975 = vmatpush1.bf16.msra.mxu0 0
    %6976 = vmatprep.subr.bf16.mxu0 0
    %6977 = vmatpush1.bf16.msra.mxu0 0
    %6978 = vmatprep.subr.bf16.mxu0 0
    %6979 = vmatpush1.bf16.msra.mxu0 0
    %6980 = vmatprep.subr.bf16.mxu0 0
    %6981 = vmatpush1.bf16.msra.mxu0 0
    %6982 = vmatprep.subr.bf16.mxu0 0
    %6983 = vmatpush1.bf16.msra.mxu0 0
    %6984 = vmatprep.subr.bf16.mxu0 0
    %6985 = vmatpush1.bf16.msra.mxu0 %v6957
    %6986 = vmatprep.subr.bf16.mxu0 0
    %6987 = vmatpush1.bf16.msra.mxu0 %v6956
    %6988 = vmatprep.subr.bf16.mxu0 0
    %6989 = vmatpush2.bf16.msra.mxu0 0
    %6990 = vmatprep.subr.bf16.mxu0 0
    %6991 = vmatpush2.bf16.msra.mxu0 0
    %6992 = vmatprep.subr.bf16.mxu0 0
    %6993 = vmatpush2.bf16.msra.mxu0 0
    %6994 = vmatprep.subr.bf16.mxu0 0
    %6995 = vmatpush2.bf16.msra.mxu0 0
    %6996 = vmatprep.subr.bf16.mxu0 0
    %6997 = vmatpush2.bf16.msra.mxu0 0
    %6998 = vmatprep.subr.bf16.mxu0 0
    %6999 = vmatpush2.bf16.msra.mxu0 0
    %7000 = vmatprep.subr.bf16.mxu0 0
    %7001 = vmatpush2.bf16.msra.mxu0 0
    %7002 = vmatprep.subr.bf16.mxu0 0
    %7003 = vmatpush2.bf16.msra.mxu0 0
    %7004 = vmatprep.mubr.bf16.mxu0 0
    %7005 = vmatmul.mubr.bf16.gmra.mxu0 %v6967
    %v7006 = vpop.f32.mrf.mxu0
    %v7007 = vadd.f32 0.0, %v7006
    %v7008 = vpop.f32.mrf.mxu0
    %v7009 = vpop.f32.mrf.mxu0
    %v7010 = vadd.f32 0.0, %v7009
    %v7011 = vpop.f32.mrf.mxu0
    %7012 = vmatprep.mubr.bf16.mxu0 0
    %7013 = vmatmul.mubr.bf16.gmra.mxu0 %v6970
    %v7014 = vpop.f32.mrf.mxu0
    %v7015 = vadd.f32 0.0, %v7014
    %v7016 = vpop.f32.mrf.mxu0
    %v7017 = vpop.f32.mrf.mxu0
    %v7018 = vpop.f32.mrf.mxu0
    %7019 = vdwg.mxu0
    %v7020 = vpack.c.bf16 %v7015, %v7015
    %v7021 = vld [vmem:[%s25] sm:$0xf]
    %v7022 = vld [vmem:[%s25 + $0x4] sm:$0xf]
    %v7023 = vld [vmem:[%s25 + $0x8] sm:$0xf]
    %v7024 = vld [vmem:[%s25 + $0xc] sm:$0xf]
    %v7025 = vld [vmem:[%s25 + $0x10] sm:$0xf]
    %v7026 = vld [vmem:[%s25 + $0x14] sm:$0xf]
    %v7027 = vld [vmem:[%s25 + $0x18] sm:$0xf]
    %v7028 = vld [vmem:[%s25 + $0x1c] sm:$0xf]
    %v7029 = vld [vmem:[%s25 + $0x20] sm:$0xf]
    %v7030 = vld [vmem:[%s25 + $0x24] sm:$0xf]
    %v7031 = vld [vmem:[%s25 + $0x28] sm:$0xf]
    %v7032 = vld [vmem:[%s25 + $0x2c] sm:$0xf]
    %v7033 = vld [vmem:[%s25 + $0x30] sm:$0xf]
    %v7034 = vld [vmem:[%s25 + $0x34] sm:$0xf]
    %v7035 = vld [vmem:[%s25 + $0x38] sm:$0xf]
    %v7036 = vld [vmem:[%s25 + $0x3c] sm:$0xf]
    %v7037 = vld [vmem:[#allocation18] sm:$0x1]
    %v7039 = vlaneseq
    %v7040 = vshrl.u32 %v7039, 7
    %v7041 = vsub.s32 0, %v7040
    %v7042 = vrot.slane %v7037, %v7041
    %v7060 = vunpack.c.l.b16 %v7021
    %v7061 = vunpack.c.l.b16 %v7022
    %v7062 = vunpack.c.l.b16 %v7023
    %v7063 = vunpack.c.l.b16 %v7024
    %v7064 = vunpack.c.l.b16 %v7025
    %v7065 = vunpack.c.l.b16 %v7026
    %v7066 = vunpack.c.l.b16 %v7027
    %v7067 = vunpack.c.l.b16 %v7028
    %v7068 = vunpack.c.l.b16 %v7029
    %v7069 = vunpack.c.l.b16 %v7030
    %v7070 = vunpack.c.l.b16 %v7031
    %v7071 = vunpack.c.l.b16 %v7032
    %v7072 = vunpack.c.l.b16 %v7033
    %v7073 = vunpack.c.l.b16 %v7034
    %v7074 = vunpack.c.l.b16 %v7035
    %v7075 = vunpack.c.l.b16 %v7036
    %v7076 = vpack.c.b16 %v7061, %v7060
    %v7077 = vpack.c.b16 %v7063, %v7062
    %v7078 = vpack.c.b16 %v7065, %v7064
    %v7079 = vpack.c.b16 %v7067, %v7066
    %v7080 = vpack.c.b16 %v7069, %v7068
    %v7081 = vpack.c.b16 %v7071, %v7070
    %v7082 = vpack.c.b16 %v7073, %v7072
    %v7083 = vpack.c.b16 %v7075, %v7074
    %7092 = vmatprep.subr.bf16.mxu0 0
    %7093 = vmatpush1.bf16.msra.mxu0 %v7083
    %7094 = vmatprep.subr.bf16.mxu0 0
    %7095 = vmatpush1.bf16.msra.mxu0 %v7082
    %7096 = vmatprep.subr.bf16.mxu0 0
    %7097 = vmatpush1.bf16.msra.mxu0 %v7081
    %7098 = vmatprep.subr.bf16.mxu0 0
    %7099 = vmatpush1.bf16.msra.mxu0 %v7080
    %7100 = vmatprep.subr.bf16.mxu0 0
    %7101 = vmatpush1.bf16.msra.mxu0 %v7079
    %7102 = vmatprep.subr.bf16.mxu0 0
    %7103 = vmatpush1.bf16.msra.mxu0 %v7078
    %7104 = vmatprep.subr.bf16.mxu0 0
    %7105 = vmatpush1.bf16.msra.mxu0 %v7077
    %7106 = vmatprep.subr.bf16.mxu0 0
    %7107 = vmatpush1.bf16.msra.mxu0 %v7076
    %7108 = vmatprep.subr.bf16.mxu0 0
    %7109 = vmatpush2.bf16.msra.mxu0 0
    %7110 = vmatprep.subr.bf16.mxu0 0
    %7111 = vmatpush2.bf16.msra.mxu0 0
    %7112 = vmatprep.subr.bf16.mxu0 0
    %7113 = vmatpush2.bf16.msra.mxu0 0
    %7114 = vmatprep.subr.bf16.mxu0 0
    %7115 = vmatpush2.bf16.msra.mxu0 0
    %7116 = vmatprep.subr.bf16.mxu0 0
    %7117 = vmatpush2.bf16.msra.mxu0 0
    %7118 = vmatprep.subr.bf16.mxu0 0
    %7119 = vmatpush2.bf16.msra.mxu0 0
    %7120 = vmatprep.subr.bf16.mxu0 0
    %7121 = vmatpush2.bf16.msra.mxu0 0
    %7122 = vmatprep.subr.bf16.mxu0 0
    %7123 = vmatpush2.bf16.msra.mxu0 0
    %7124 = vmatprep.mubr.bf16.mxu0 0
    %7125 = vmatmul.mubr.bf16.gmra.mxu0 %v7020
    %v7126 = vpop.f32.mrf.mxu0
    %v7127 = vadd.f32 %v7042, %v7126
    %v7128 = vpop.f32.mrf.mxu0
    %v7129 = vpop.f32.mrf.mxu0
    %v7130 = vpop.f32.mrf.mxu0
    %7131 = vdwg.mxu0
    %v7132 = vmax.f32 %v7127, 0.0
    %v7133 = vpack.c.bf16 %v7132, %v7132
    %v7134 = vld [vmem:[#allocation20] sm:$0xf]
    %v7135 = vld [vmem:[#allocation20 + $0x4] sm:$0xf]
    %v7136 = vld [vmem:[#allocation20 + $0x8] sm:$0xf]
    %v7137 = vld [vmem:[#allocation20 + $0xc] sm:$0xf]
    %v7138 = vld [vmem:[#allocation20 + $0x10] sm:$0xf]
    %v7139 = vld [vmem:[#allocation20 + $0x14] sm:$0xf]
    %v7140 = vld [vmem:[#allocation20 + $0x18] sm:$0xf]
    %v7141 = vld [vmem:[#allocation20 + $0x1c] sm:$0xf]
    %v7142 = vld [vmem:[#allocation21] sm:$0x1]
    %v7144 = vlaneseq
    %v7145 = vshrl.u32 %v7144, 7
    %v7146 = vsub.s32 0, %v7145
    %v7147 = vrot.slane %v7142, %v7146
    %v7157 = vunpack.c.l.b16 %v7134
    %v7158 = vunpack.c.l.b16 %v7135
    %v7159 = vunpack.c.l.b16 %v7136
    %v7160 = vunpack.c.l.b16 %v7137
    %v7161 = vunpack.c.l.b16 %v7138
    %v7162 = vunpack.c.l.b16 %v7139
    %v7163 = vunpack.c.l.b16 %v7140
    %v7164 = vunpack.c.l.b16 %v7141
    %v7165 = vpack.c.b16 %v7158, %v7157
    %v7166 = vpack.c.b16 %v7160, %v7159
    %v7167 = vpack.c.b16 %v7162, %v7161
    %v7168 = vpack.c.b16 %v7164, %v7163
    %v7174 = vsel %vm6490, %v7133, 0
    %7176 = vmatprep.subr.bf16.mxu0 0
    %7177 = vmatpush1.bf16.msra.mxu0 0
    %7178 = vmatprep.subr.bf16.mxu0 0
    %7179 = vmatpush1.bf16.msra.mxu0 0
    %7180 = vmatprep.subr.bf16.mxu0 0
    %7181 = vmatpush1.bf16.msra.mxu0 0
    %7182 = vmatprep.subr.bf16.mxu0 0
    %7183 = vmatpush1.bf16.msra.mxu0 0
    %7184 = vmatprep.subr.bf16.mxu0 0
    %7185 = vmatpush1.bf16.msra.mxu0 %v7168
    %7186 = vmatprep.subr.bf16.mxu0 0
    %7187 = vmatpush1.bf16.msra.mxu0 %v7167
    %7188 = vmatprep.subr.bf16.mxu0 0
    %7189 = vmatpush1.bf16.msra.mxu0 %v7166
    %7190 = vmatprep.subr.bf16.mxu0 0
    %7191 = vmatpush1.bf16.msra.mxu0 %v7165
    %7192 = vmatprep.subr.bf16.mxu0 0
    %7193 = vmatpush2.bf16.msra.mxu0 0
    %7194 = vmatprep.subr.bf16.mxu0 0
    %7195 = vmatpush2.bf16.msra.mxu0 0
    %7196 = vmatprep.subr.bf16.mxu0 0
    %7197 = vmatpush2.bf16.msra.mxu0 0
    %7198 = vmatprep.subr.bf16.mxu0 0
    %7199 = vmatpush2.bf16.msra.mxu0 0
    %7200 = vmatprep.subr.bf16.mxu0 0
    %7201 = vmatpush2.bf16.msra.mxu0 0
    %7202 = vmatprep.subr.bf16.mxu0 0
    %7203 = vmatpush2.bf16.msra.mxu0 0
    %7204 = vmatprep.subr.bf16.mxu0 0
    %7205 = vmatpush2.bf16.msra.mxu0 0
    %7206 = vmatprep.subr.bf16.mxu0 0
    %7207 = vmatpush2.bf16.msra.mxu0 0
    %7208 = vmatprep.mubr.bf16.mxu0 0
    %7209 = vmatmul.mubr.bf16.gmra.mxu0 %v7174
    %v7210 = vpop.f32.mrf.mxu0
    %v7211 = vadd.f32 %v7147, %v7210
    %v7212 = vpop.f32.mrf.mxu0
    %v7213 = vpop.f32.mrf.mxu0
    %v7214 = vpop.f32.mrf.mxu0
    %7215 = vdwg.mxu0
    %v7216 = vxor.u32 %v7211, 2147483648
    %v7217 = vmul.f32 %v7216, 1.442695
    %v7218 = vpow.pop %v7217
    %v7219 = vadd.f32 %v7218, 1.0
    %v7220 = vrcp.pop %v7219
    %v7221 = vmul.f32 1.0, %v7220
    %v7222 = vmul.f32 %v7007, %v7221
    %v7223 = vpack.c.bf16 %v7222, %v7222
    %7224 = vst [vmem:[#allocation5] sm:$0x1] %v7223
    %v7226 = vrot.slane %v7221, 6
    %v7228 = vmul.f32 %v7007, %v7226
    %v7229 = vpack.c.bf16 %v7228, %v7228
    %v7232 = vunpack.c.l.s4 1966171168
    %v7233 = vunpack.c.0.s8 %v7232
    %v7234 = vlaneseq
    %v7235 = vshrl.u32 %v7234, 7
    %v7236 = vsub.s32 %v7233, %v7235
    %v7237 = vrot.slane %v7229, %v7236
    %v7238 = vcombine.high %v7237, %v7237
    %v7240 = vunpack.c.l.s4 1966171168
    %v7241 = vunpack.c.0.s8 %v7240
    %v7242 = vlaneseq
    %v7243 = vshrl.u32 %v7242, 7
    %v7244 = vsub.s32 %v7241, %v7243
    %v7245 = vrot.slane %v7238, %v7244
    %7247 = vst [vmem:[#allocation5 + $0x1] sm:$0x1] %v7245
    %v7248 = vrot.slane %v7221, 4
    %v7250 = vmul.f32 %v7007, %v7248
    %v7251 = vpack.c.bf16 %v7250, %v7250
    %v7254 = vunpack.c.l.s4 1966171168
    %v7255 = vunpack.c.0.s8 %v7254
    %v7256 = vlaneseq
    %v7257 = vshrl.u32 %v7256, 7
    %v7258 = vsub.s32 %v7255, %v7257
    %v7259 = vrot.slane %v7251, %v7258
    %v7261 = vunpack.c.l.s4 1966171168
    %v7262 = vunpack.c.0.s8 %v7261
    %v7263 = vlaneseq
    %v7264 = vshrl.u32 %v7263, 7
    %v7265 = vsub.s32 %v7262, %v7264
    %v7266 = vrot.slane %v7259, %v7265
    %v7267 = vcombine.high %v7266, %v7266
    %7269 = vst [vmem:[#allocation5 + $0x2] sm:$0x1] %v7267
    %v7270 = vrot.slane %v7221, 2
    %v7272 = vmul.f32 %v7007, %v7270
    %v7273 = vpack.c.bf16 %v7272, %v7272
    %v7276 = vunpack.c.l.s4 1966171168
    %v7277 = vunpack.c.0.s8 %v7276
    %v7278 = vlaneseq
    %v7279 = vshrl.u32 %v7278, 7
    %v7280 = vsub.s32 %v7277, %v7279
    %v7281 = vrot.slane %v7273, %v7280
    %v7282 = vcombine.high %v7281, %v7281
    %v7284 = vunpack.c.l.s4 1966171168
    %v7285 = vunpack.c.0.s8 %v7284
    %v7286 = vlaneseq
    %v7287 = vshrl.u32 %v7286, 7
    %v7288 = vsub.s32 %v7285, %v7287
    %v7289 = vrot.slane %v7282, %v7288
    %v7290 = vcombine.high %v7289, %v7289
    %7292 = vst [vmem:[#allocation5 + $0x3] sm:$0x1] %v7290
    %v7293 = vmul.f32 %v7010, %v7221
    %v7294 = vpack.c.bf16 %v7293, %v7293
    %7295 = vst [vmem:[#allocation5 + $0x4] sm:$0x1] %v7294
    %v7296 = vmul.f32 %v7010, %v7226
    %v7297 = vpack.c.bf16 %v7296, %v7296
    %v7300 = vunpack.c.l.s4 1966171168
    %v7301 = vunpack.c.0.s8 %v7300
    %v7302 = vlaneseq
    %v7303 = vshrl.u32 %v7302, 7
    %v7304 = vsub.s32 %v7301, %v7303
    %v7305 = vrot.slane %v7297, %v7304
    %v7306 = vcombine.high %v7305, %v7305
    %v7308 = vunpack.c.l.s4 1966171168
    %v7309 = vunpack.c.0.s8 %v7308
    %v7310 = vlaneseq
    %v7311 = vshrl.u32 %v7310, 7
    %v7312 = vsub.s32 %v7309, %v7311
    %v7313 = vrot.slane %v7306, %v7312
    %7315 = vst [vmem:[#allocation5 + $0x5] sm:$0x1] %v7313
    %v7316 = vmul.f32 %v7010, %v7248
    %v7317 = vpack.c.bf16 %v7316, %v7316
    %v7320 = vunpack.c.l.s4 1966171168
    %v7321 = vunpack.c.0.s8 %v7320
    %v7322 = vlaneseq
    %v7323 = vshrl.u32 %v7322, 7
    %v7324 = vsub.s32 %v7321, %v7323
    %v7325 = vrot.slane %v7317, %v7324
    %v7327 = vunpack.c.l.s4 1966171168
    %v7328 = vunpack.c.0.s8 %v7327
    %v7329 = vlaneseq
    %v7330 = vshrl.u32 %v7329, 7
    %v7331 = vsub.s32 %v7328, %v7330
    %v7332 = vrot.slane %v7325, %v7331
    %v7333 = vcombine.high %v7332, %v7332
    %7335 = vst [vmem:[#allocation5 + $0x6] sm:$0x1] %v7333
    %v7336 = vmul.f32 %v7010, %v7270
    %v7337 = vpack.c.bf16 %v7336, %v7336
    %v7340 = vunpack.c.l.s4 1966171168
    %v7341 = vunpack.c.0.s8 %v7340
    %v7342 = vlaneseq
    %v7343 = vshrl.u32 %v7342, 7
    %v7344 = vsub.s32 %v7341, %v7343
    %v7345 = vrot.slane %v7337, %v7344
    %v7346 = vcombine.high %v7345, %v7345
    %v7348 = vunpack.c.l.s4 1966171168
    %v7349 = vunpack.c.0.s8 %v7348
    %v7350 = vlaneseq
    %v7351 = vshrl.u32 %v7350, 7
    %v7352 = vsub.s32 %v7349, %v7351
    %v7353 = vrot.slane %v7346, %v7352
    %v7354 = vcombine.high %v7353, %v7353
    %7356 = vst [vmem:[#allocation5 + $0x7] sm:$0x1] %v7354
    %v7357 = vld [vmem:[#allocation5] sm:$0xff]
    %v7358 = vld [vmem:[%s33] sm:$0xf]
    %v7359 = vld [vmem:[%s33 + $0x4] sm:$0xf]
    %v7360 = vld [vmem:[%s33 + $0x8] sm:$0xf]
    %v7361 = vld [vmem:[%s33 + $0xc] sm:$0xf]
    %v7362 = vld [vmem:[%s33 + $0x10] sm:$0xf]
    %v7363 = vld [vmem:[%s33 + $0x14] sm:$0xf]
    %v7364 = vld [vmem:[%s33 + $0x18] sm:$0xf]
    %v7365 = vld [vmem:[%s33 + $0x1c] sm:$0xf]
    %v7366 = vld [vmem:[%s33 + $0x20] sm:$0xf]
    %v7367 = vld [vmem:[%s33 + $0x24] sm:$0xf]
    %v7368 = vld [vmem:[%s33 + $0x28] sm:$0xf]
    %v7369 = vld [vmem:[%s33 + $0x2c] sm:$0xf]
    %v7370 = vld [vmem:[%s33 + $0x30] sm:$0xf]
    %v7371 = vld [vmem:[%s33 + $0x34] sm:$0xf]
    %v7372 = vld [vmem:[%s33 + $0x38] sm:$0xf]
    %v7373 = vld [vmem:[%s33 + $0x3c] sm:$0xf]
    %v7374 = vld [vmem:[%s33 + $0x40] sm:$0xf]
    %v7375 = vld [vmem:[%s33 + $0x44] sm:$0xf]
    %v7376 = vld [vmem:[%s33 + $0x48] sm:$0xf]
    %v7377 = vld [vmem:[%s33 + $0x4c] sm:$0xf]
    %v7378 = vld [vmem:[%s33 + $0x50] sm:$0xf]
    %v7379 = vld [vmem:[%s33 + $0x54] sm:$0xf]
    %v7380 = vld [vmem:[%s33 + $0x58] sm:$0xf]
    %v7381 = vld [vmem:[%s33 + $0x5c] sm:$0xf]
    %v7382 = vld [vmem:[%s33 + $0x60] sm:$0xf]
    %v7383 = vld [vmem:[%s33 + $0x64] sm:$0xf]
    %v7384 = vld [vmem:[%s33 + $0x68] sm:$0xf]
    %v7385 = vld [vmem:[%s33 + $0x6c] sm:$0xf]
    %v7386 = vld [vmem:[%s33 + $0x70] sm:$0xf]
    %v7387 = vld [vmem:[%s33 + $0x74] sm:$0xf]
    %v7388 = vld [vmem:[%s33 + $0x78] sm:$0xf]
    %v7389 = vld [vmem:[%s33 + $0x7c] sm:$0xf]
    %v7390 = vld [vmem:[%s33 + $0x80] sm:$0xf]
    %v7391 = vld [vmem:[%s33 + $0x84] sm:$0xf]
    %v7392 = vld [vmem:[%s33 + $0x88] sm:$0xf]
    %v7393 = vld [vmem:[%s33 + $0x8c] sm:$0xf]
    %v7394 = vld [vmem:[%s33 + $0x90] sm:$0xf]
    %v7395 = vld [vmem:[%s33 + $0x94] sm:$0xf]
    %v7396 = vld [vmem:[%s33 + $0x98] sm:$0xf]
    %v7397 = vld [vmem:[%s33 + $0x9c] sm:$0xf]
    %v7398 = vld [vmem:[%s33 + $0xa0] sm:$0xf]
    %v7399 = vld [vmem:[%s33 + $0xa4] sm:$0xf]
    %v7400 = vld [vmem:[%s33 + $0xa8] sm:$0xf]
    %v7401 = vld [vmem:[%s33 + $0xac] sm:$0xf]
    %v7402 = vld [vmem:[%s33 + $0xb0] sm:$0xf]
    %v7403 = vld [vmem:[%s33 + $0xb4] sm:$0xf]
    %v7404 = vld [vmem:[%s33 + $0xb8] sm:$0xf]
    %v7405 = vld [vmem:[%s33 + $0xbc] sm:$0xf]
    %v7406 = vld [vmem:[%s33 + $0xc0] sm:$0xf]
    %v7407 = vld [vmem:[%s33 + $0xc4] sm:$0xf]
    %v7408 = vld [vmem:[%s33 + $0xc8] sm:$0xf]
    %v7409 = vld [vmem:[%s33 + $0xcc] sm:$0xf]
    %v7410 = vld [vmem:[%s33 + $0xd0] sm:$0xf]
    %v7411 = vld [vmem:[%s33 + $0xd4] sm:$0xf]
    %v7412 = vld [vmem:[%s33 + $0xd8] sm:$0xf]
    %v7413 = vld [vmem:[%s33 + $0xdc] sm:$0xf]
    %v7414 = vld [vmem:[%s33 + $0xe0] sm:$0xf]
    %v7415 = vld [vmem:[%s33 + $0xe4] sm:$0xf]
    %v7416 = vld [vmem:[%s33 + $0xe8] sm:$0xf]
    %v7417 = vld [vmem:[%s33 + $0xec] sm:$0xf]
    %v7418 = vld [vmem:[%s33 + $0xf0] sm:$0xf]
    %v7419 = vld [vmem:[%s33 + $0xf4] sm:$0xf]
    %v7420 = vld [vmem:[%s33 + $0xf8] sm:$0xf]
    %v7421 = vld [vmem:[%s33 + $0xfc] sm:$0xf]
    %v7422 = vld [vmem:[%s33 + $0x100] sm:$0xf]
    %v7423 = vld [vmem:[%s33 + $0x104] sm:$0xf]
    %v7424 = vld [vmem:[%s33 + $0x108] sm:$0xf]
    %v7425 = vld [vmem:[%s33 + $0x10c] sm:$0xf]
    %v7426 = vld [vmem:[%s33 + $0x110] sm:$0xf]
    %v7427 = vld [vmem:[%s33 + $0x114] sm:$0xf]
    %v7428 = vld [vmem:[%s33 + $0x118] sm:$0xf]
    %v7429 = vld [vmem:[%s33 + $0x11c] sm:$0xf]
    %v7430 = vld [vmem:[%s33 + $0x120] sm:$0xf]
    %v7431 = vld [vmem:[%s33 + $0x124] sm:$0xf]
    %v7432 = vld [vmem:[%s33 + $0x128] sm:$0xf]
    %v7433 = vld [vmem:[%s33 + $0x12c] sm:$0xf]
    %v7434 = vld [vmem:[%s33 + $0x130] sm:$0xf]
    %v7435 = vld [vmem:[%s33 + $0x134] sm:$0xf]
    %v7436 = vld [vmem:[%s33 + $0x138] sm:$0xf]
    %v7437 = vld [vmem:[%s33 + $0x13c] sm:$0xf]
    %v7438 = vld [vmem:[%s33 + $0x140] sm:$0xf]
    %v7439 = vld [vmem:[%s33 + $0x144] sm:$0xf]
    %v7440 = vld [vmem:[%s33 + $0x148] sm:$0xf]
    %v7441 = vld [vmem:[%s33 + $0x14c] sm:$0xf]
    %v7442 = vld [vmem:[%s33 + $0x150] sm:$0xf]
    %v7443 = vld [vmem:[%s33 + $0x154] sm:$0xf]
    %v7444 = vld [vmem:[%s33 + $0x158] sm:$0xf]
    %v7445 = vld [vmem:[%s33 + $0x15c] sm:$0xf]
    %v7446 = vld [vmem:[%s33 + $0x160] sm:$0xf]
    %v7447 = vld [vmem:[%s33 + $0x164] sm:$0xf]
    %v7448 = vld [vmem:[%s33 + $0x168] sm:$0xf]
    %v7449 = vld [vmem:[%s33 + $0x16c] sm:$0xf]
    %v7450 = vld [vmem:[%s33 + $0x170] sm:$0xf]
    %v7451 = vld [vmem:[%s33 + $0x174] sm:$0xf]
    %v7452 = vld [vmem:[%s33 + $0x178] sm:$0xf]
    %v7453 = vld [vmem:[%s33 + $0x17c] sm:$0xf]
    %v7454 = vld [vmem:[%s33 + $0x180] sm:$0xf]
    %v7455 = vld [vmem:[%s33 + $0x184] sm:$0xf]
    %v7456 = vld [vmem:[%s33 + $0x188] sm:$0xf]
    %v7457 = vld [vmem:[%s33 + $0x18c] sm:$0xf]
    %v7458 = vld [vmem:[%s33 + $0x190] sm:$0xf]
    %v7459 = vld [vmem:[%s33 + $0x194] sm:$0xf]
    %v7460 = vld [vmem:[%s33 + $0x198] sm:$0xf]
    %v7461 = vld [vmem:[%s33 + $0x19c] sm:$0xf]
    %v7462 = vld [vmem:[%s33 + $0x1a0] sm:$0xf]
    %v7463 = vld [vmem:[%s33 + $0x1a4] sm:$0xf]
    %v7464 = vld [vmem:[%s33 + $0x1a8] sm:$0xf]
    %v7465 = vld [vmem:[%s33 + $0x1ac] sm:$0xf]
    %v7466 = vld [vmem:[%s33 + $0x1b0] sm:$0xf]
    %v7467 = vld [vmem:[%s33 + $0x1b4] sm:$0xf]
    %v7468 = vld [vmem:[%s33 + $0x1b8] sm:$0xf]
    %v7469 = vld [vmem:[%s33 + $0x1bc] sm:$0xf]
    %v7470 = vld [vmem:[%s33 + $0x1c0] sm:$0xf]
    %v7471 = vld [vmem:[%s33 + $0x1c4] sm:$0xf]
    %v7472 = vld [vmem:[%s33 + $0x1c8] sm:$0xf]
    %v7473 = vld [vmem:[%s33 + $0x1cc] sm:$0xf]
    %v7474 = vld [vmem:[%s33 + $0x1d0] sm:$0xf]
    %v7475 = vld [vmem:[%s33 + $0x1d4] sm:$0xf]
    %v7476 = vld [vmem:[%s33 + $0x1d8] sm:$0xf]
    %v7477 = vld [vmem:[%s33 + $0x1dc] sm:$0xf]
    %v7478 = vld [vmem:[%s33 + $0x1e0] sm:$0xf]
    %v7479 = vld [vmem:[%s33 + $0x1e4] sm:$0xf]
    %v7480 = vld [vmem:[%s33 + $0x1e8] sm:$0xf]
    %v7481 = vld [vmem:[%s33 + $0x1ec] sm:$0xf]
    %v7482 = vld [vmem:[%s33 + $0x1f0] sm:$0xf]
    %v7483 = vld [vmem:[%s33 + $0x1f4] sm:$0xf]
    %v7484 = vld [vmem:[%s33 + $0x1f8] sm:$0xf]
    %v7485 = vld [vmem:[%s33 + $0x1fc] sm:$0xf]
    %v7486 = vld [vmem:[#allocation23] sm:$0x1]
    %v7488 = vlaneseq
    %v7489 = vshrl.u32 %v7488, 7
    %v7490 = vsub.s32 0, %v7489
    %v7491 = vrot.slane %v7486, %v7490
    %v7494 = vcombine.high %v7357, %v7357
    %v7496 = vunpack.c.l.s4 1966171168
    %v7497 = vunpack.c.0.s8 %v7496
    %v7498 = vlaneseq
    %v7499 = vshrl.u32 %v7498, 7
    %v7500 = vsub.s32 %v7497, %v7499
    %v7501 = vrot.slane %v7357, %v7500
    %v7503 = vunpack.c.l.s4 1966171168
    %v7504 = vunpack.c.0.s8 %v7503
    %v7505 = vlaneseq
    %v7506 = vshrl.u32 %v7505, 7
    %v7507 = vsub.s32 %v7504, %v7506
    %v7508 = vrot.slane %v7494, %v7507
    %v7509 = vcombine.high %v7501, %v7501
    %v7510 = vcombine.high %v7508, %v7508
    %v7512 = vunpack.c.l.s4 1966171168
    %v7513 = vunpack.c.0.s8 %v7512
    %v7514 = vlaneseq
    %v7515 = vshrl.u32 %v7514, 7
    %v7516 = vsub.s32 %v7513, %v7515
    %v7517 = vrot.slane %v7501, %v7516
    %v7519 = vunpack.c.l.s4 1966171168
    %v7520 = vunpack.c.0.s8 %v7519
    %v7521 = vlaneseq
    %v7522 = vshrl.u32 %v7521, 7
    %v7523 = vsub.s32 %v7520, %v7522
    %v7524 = vrot.slane %v7508, %v7523
    %v7526 = vunpack.c.l.s4 1966171168
    %v7527 = vunpack.c.0.s8 %v7526
    %v7528 = vlaneseq
    %v7529 = vshrl.u32 %v7528, 7
    %v7530 = vsub.s32 %v7527, %v7529
    %v7531 = vrot.slane %v7509, %v7530
    %v7533 = vunpack.c.l.s4 1966171168
    %v7534 = vunpack.c.0.s8 %v7533
    %v7535 = vlaneseq
    %v7536 = vshrl.u32 %v7535, 7
    %v7537 = vsub.s32 %v7534, %v7536
    %v7538 = vrot.slane %v7510, %v7537
    %v7539 = vcombine.high %v7517, %v7517
    %v7540 = vcombine.high %v7524, %v7524
    %v7541 = vcombine.high %v7531, %v7531
    %v7542 = vcombine.high %v7538, %v7538
    %v7679 = vunpack.c.l.b16 %v7358
    %v7680 = vunpack.c.l.b16 %v7359
    %v7681 = vunpack.c.l.b16 %v7360
    %v7682 = vunpack.c.l.b16 %v7361
    %v7683 = vunpack.c.l.b16 %v7362
    %v7684 = vunpack.c.l.b16 %v7363
    %v7685 = vunpack.c.l.b16 %v7364
    %v7686 = vunpack.c.l.b16 %v7365
    %v7687 = vunpack.c.l.b16 %v7366
    %v7688 = vunpack.c.l.b16 %v7367
    %v7689 = vunpack.c.l.b16 %v7368
    %v7690 = vunpack.c.l.b16 %v7369
    %v7691 = vunpack.c.l.b16 %v7370
    %v7692 = vunpack.c.l.b16 %v7371
    %v7693 = vunpack.c.l.b16 %v7372
    %v7694 = vunpack.c.l.b16 %v7373
    %v7695 = vunpack.c.l.b16 %v7374
    %v7696 = vunpack.c.l.b16 %v7375
    %v7697 = vunpack.c.l.b16 %v7376
    %v7698 = vunpack.c.l.b16 %v7377
    %v7699 = vunpack.c.l.b16 %v7378
    %v7700 = vunpack.c.l.b16 %v7379
    %v7701 = vunpack.c.l.b16 %v7380
    %v7702 = vunpack.c.l.b16 %v7381
    %v7703 = vunpack.c.l.b16 %v7382
    %v7704 = vunpack.c.l.b16 %v7383
    %v7705 = vunpack.c.l.b16 %v7384
    %v7706 = vunpack.c.l.b16 %v7385
    %v7707 = vunpack.c.l.b16 %v7386
    %v7708 = vunpack.c.l.b16 %v7387
    %v7709 = vunpack.c.l.b16 %v7388
    %v7710 = vunpack.c.l.b16 %v7389
    %v7711 = vunpack.c.l.b16 %v7390
    %v7712 = vunpack.c.l.b16 %v7391
    %v7713 = vunpack.c.l.b16 %v7392
    %v7714 = vunpack.c.l.b16 %v7393
    %v7715 = vunpack.c.l.b16 %v7394
    %v7716 = vunpack.c.l.b16 %v7395
    %v7717 = vunpack.c.l.b16 %v7396
    %v7718 = vunpack.c.l.b16 %v7397
    %v7719 = vunpack.c.l.b16 %v7398
    %v7720 = vunpack.c.l.b16 %v7399
    %v7721 = vunpack.c.l.b16 %v7400
    %v7722 = vunpack.c.l.b16 %v7401
    %v7723 = vunpack.c.l.b16 %v7402
    %v7724 = vunpack.c.l.b16 %v7403
    %v7725 = vunpack.c.l.b16 %v7404
    %v7726 = vunpack.c.l.b16 %v7405
    %v7727 = vunpack.c.l.b16 %v7406
    %v7728 = vunpack.c.l.b16 %v7407
    %v7729 = vunpack.c.l.b16 %v7408
    %v7730 = vunpack.c.l.b16 %v7409
    %v7731 = vunpack.c.l.b16 %v7410
    %v7732 = vunpack.c.l.b16 %v7411
    %v7733 = vunpack.c.l.b16 %v7412
    %v7734 = vunpack.c.l.b16 %v7413
    %v7735 = vunpack.c.l.b16 %v7414
    %v7736 = vunpack.c.l.b16 %v7415
    %v7737 = vunpack.c.l.b16 %v7416
    %v7738 = vunpack.c.l.b16 %v7417
    %v7739 = vunpack.c.l.b16 %v7418
    %v7740 = vunpack.c.l.b16 %v7419
    %v7741 = vunpack.c.l.b16 %v7420
    %v7742 = vunpack.c.l.b16 %v7421
    %v7743 = vunpack.c.l.b16 %v7422
    %v7744 = vunpack.c.l.b16 %v7423
    %v7745 = vunpack.c.l.b16 %v7424
    %v7746 = vunpack.c.l.b16 %v7425
    %v7747 = vunpack.c.l.b16 %v7426
    %v7748 = vunpack.c.l.b16 %v7427
    %v7749 = vunpack.c.l.b16 %v7428
    %v7750 = vunpack.c.l.b16 %v7429
    %v7751 = vunpack.c.l.b16 %v7430
    %v7752 = vunpack.c.l.b16 %v7431
    %v7753 = vunpack.c.l.b16 %v7432
    %v7754 = vunpack.c.l.b16 %v7433
    %v7755 = vunpack.c.l.b16 %v7434
    %v7756 = vunpack.c.l.b16 %v7435
    %v7757 = vunpack.c.l.b16 %v7436
    %v7758 = vunpack.c.l.b16 %v7437
    %v7759 = vunpack.c.l.b16 %v7438
    %v7760 = vunpack.c.l.b16 %v7439
    %v7761 = vunpack.c.l.b16 %v7440
    %v7762 = vunpack.c.l.b16 %v7441
    %v7763 = vunpack.c.l.b16 %v7442
    %v7764 = vunpack.c.l.b16 %v7443
    %v7765 = vunpack.c.l.b16 %v7444
    %v7766 = vunpack.c.l.b16 %v7445
    %v7767 = vunpack.c.l.b16 %v7446
    %v7768 = vunpack.c.l.b16 %v7447
    %v7769 = vunpack.c.l.b16 %v7448
    %v7770 = vunpack.c.l.b16 %v7449
    %v7771 = vunpack.c.l.b16 %v7450
    %v7772 = vunpack.c.l.b16 %v7451
    %v7773 = vunpack.c.l.b16 %v7452
    %v7774 = vunpack.c.l.b16 %v7453
    %v7775 = vunpack.c.l.b16 %v7454
    %v7776 = vunpack.c.l.b16 %v7455
    %v7777 = vunpack.c.l.b16 %v7456
    %v7778 = vunpack.c.l.b16 %v7457
    %v7779 = vunpack.c.l.b16 %v7458
    %v7780 = vunpack.c.l.b16 %v7459
    %v7781 = vunpack.c.l.b16 %v7460
    %v7782 = vunpack.c.l.b16 %v7461
    %v7783 = vunpack.c.l.b16 %v7462
    %v7784 = vunpack.c.l.b16 %v7463
    %v7785 = vunpack.c.l.b16 %v7464
    %v7786 = vunpack.c.l.b16 %v7465
    %v7787 = vunpack.c.l.b16 %v7466
    %v7788 = vunpack.c.l.b16 %v7467
    %v7789 = vunpack.c.l.b16 %v7468
    %v7790 = vunpack.c.l.b16 %v7469
    %v7791 = vunpack.c.l.b16 %v7470
    %v7792 = vunpack.c.l.b16 %v7471
    %v7793 = vunpack.c.l.b16 %v7472
    %v7794 = vunpack.c.l.b16 %v7473
    %v7795 = vunpack.c.l.b16 %v7474
    %v7796 = vunpack.c.l.b16 %v7475
    %v7797 = vunpack.c.l.b16 %v7476
    %v7798 = vunpack.c.l.b16 %v7477
    %v7799 = vunpack.c.l.b16 %v7478
    %v7800 = vunpack.c.l.b16 %v7479
    %v7801 = vunpack.c.l.b16 %v7480
    %v7802 = vunpack.c.l.b16 %v7481
    %v7803 = vunpack.c.l.b16 %v7482
    %v7804 = vunpack.c.l.b16 %v7483
    %v7805 = vunpack.c.l.b16 %v7484
    %v7806 = vunpack.c.l.b16 %v7485
    %v7807 = vpack.c.b16 %v7680, %v7679
    %v7808 = vpack.c.b16 %v7682, %v7681
    %v7809 = vpack.c.b16 %v7684, %v7683
    %v7810 = vpack.c.b16 %v7686, %v7685
    %v7811 = vpack.c.b16 %v7688, %v7687
    %v7812 = vpack.c.b16 %v7690, %v7689
    %v7813 = vpack.c.b16 %v7692, %v7691
    %v7814 = vpack.c.b16 %v7694, %v7693
    %v7815 = vpack.c.b16 %v7696, %v7695
    %v7816 = vpack.c.b16 %v7698, %v7697
    %v7817 = vpack.c.b16 %v7700, %v7699
    %v7818 = vpack.c.b16 %v7702, %v7701
    %v7819 = vpack.c.b16 %v7704, %v7703
    %v7820 = vpack.c.b16 %v7706, %v7705
    %v7821 = vpack.c.b16 %v7708, %v7707
    %v7822 = vpack.c.b16 %v7710, %v7709
    %v7823 = vpack.c.b16 %v7712, %v7711
    %v7824 = vpack.c.b16 %v7714, %v7713
    %v7825 = vpack.c.b16 %v7716, %v7715
    %v7826 = vpack.c.b16 %v7718, %v7717
    %v7827 = vpack.c.b16 %v7720, %v7719
    %v7828 = vpack.c.b16 %v7722, %v7721
    %v7829 = vpack.c.b16 %v7724, %v7723
    %v7830 = vpack.c.b16 %v7726, %v7725
    %v7831 = vpack.c.b16 %v7728, %v7727
    %v7832 = vpack.c.b16 %v7730, %v7729
    %v7833 = vpack.c.b16 %v7732, %v7731
    %v7834 = vpack.c.b16 %v7734, %v7733
    %v7835 = vpack.c.b16 %v7736, %v7735
    %v7836 = vpack.c.b16 %v7738, %v7737
    %v7837 = vpack.c.b16 %v7740, %v7739
    %v7838 = vpack.c.b16 %v7742, %v7741
    %v7839 = vpack.c.b16 %v7744, %v7743
    %v7840 = vpack.c.b16 %v7746, %v7745
    %v7841 = vpack.c.b16 %v7748, %v7747
    %v7842 = vpack.c.b16 %v7750, %v7749
    %v7843 = vpack.c.b16 %v7752, %v7751
    %v7844 = vpack.c.b16 %v7754, %v7753
    %v7845 = vpack.c.b16 %v7756, %v7755
    %v7846 = vpack.c.b16 %v7758, %v7757
    %v7847 = vpack.c.b16 %v7760, %v7759
    %v7848 = vpack.c.b16 %v7762, %v7761
    %v7849 = vpack.c.b16 %v7764, %v7763
    %v7850 = vpack.c.b16 %v7766, %v7765
    %v7851 = vpack.c.b16 %v7768, %v7767
    %v7852 = vpack.c.b16 %v7770, %v7769
    %v7853 = vpack.c.b16 %v7772, %v7771
    %v7854 = vpack.c.b16 %v7774, %v7773
    %v7855 = vpack.c.b16 %v7776, %v7775
    %v7856 = vpack.c.b16 %v7778, %v7777
    %v7857 = vpack.c.b16 %v7780, %v7779
    %v7858 = vpack.c.b16 %v7782, %v7781
    %v7859 = vpack.c.b16 %v7784, %v7783
    %v7860 = vpack.c.b16 %v7786, %v7785
    %v7861 = vpack.c.b16 %v7788, %v7787
    %v7862 = vpack.c.b16 %v7790, %v7789
    %v7863 = vpack.c.b16 %v7792, %v7791
    %v7864 = vpack.c.b16 %v7794, %v7793
    %v7865 = vpack.c.b16 %v7796, %v7795
    %v7866 = vpack.c.b16 %v7798, %v7797
    %v7867 = vpack.c.b16 %v7800, %v7799
    %v7868 = vpack.c.b16 %v7802, %v7801
    %v7869 = vpack.c.b16 %v7804, %v7803
    %v7870 = vpack.c.b16 %v7806, %v7805
    %7935 = vmatprep.subr.bf16.mxu0 0
    %7936 = vmatpush1.bf16.msra.mxu0 %v7814
    %7937 = vmatprep.subr.bf16.mxu0 0
    %7938 = vmatpush1.bf16.msra.mxu0 %v7813
    %7939 = vmatprep.subr.bf16.mxu0 0
    %7940 = vmatpush1.bf16.msra.mxu0 %v7812
    %7941 = vmatprep.subr.bf16.mxu0 0
    %7942 = vmatpush1.bf16.msra.mxu0 %v7811
    %7943 = vmatprep.subr.bf16.mxu0 0
    %7944 = vmatpush1.bf16.msra.mxu0 %v7810
    %7945 = vmatprep.subr.bf16.mxu0 0
    %7946 = vmatpush1.bf16.msra.mxu0 %v7809
    %7947 = vmatprep.subr.bf16.mxu0 0
    %7948 = vmatpush1.bf16.msra.mxu0 %v7808
    %7949 = vmatprep.subr.bf16.mxu0 0
    %7950 = vmatpush1.bf16.msra.mxu0 %v7807
    %7951 = vmatprep.subr.bf16.mxu0 0
    %7952 = vmatpush2.bf16.msra.mxu0 %v7822
    %7953 = vmatprep.subr.bf16.mxu0 0
    %7954 = vmatpush2.bf16.msra.mxu0 %v7821
    %7955 = vmatprep.subr.bf16.mxu0 0
    %7956 = vmatpush2.bf16.msra.mxu0 %v7820
    %7957 = vmatprep.subr.bf16.mxu0 0
    %7958 = vmatpush2.bf16.msra.mxu0 %v7819
    %7959 = vmatprep.subr.bf16.mxu0 0
    %7960 = vmatpush2.bf16.msra.mxu0 %v7818
    %7961 = vmatprep.subr.bf16.mxu0 0
    %7962 = vmatpush2.bf16.msra.mxu0 %v7817
    %7963 = vmatprep.subr.bf16.mxu0 0
    %7964 = vmatpush2.bf16.msra.mxu0 %v7816
    %7965 = vmatprep.subr.bf16.mxu0 0
    %7966 = vmatpush2.bf16.msra.mxu0 %v7815
    %7967 = vmatprep.mubr.bf16.mxu0 %v7531
    %7968 = vmatmul.mubr.bf16.gmra.mxu0 %v7517
    %v7969 = vpop.f32.mrf.mxu0
    %v7970 = vadd.f32 %v7491, %v7969
    %v7971 = vpop.f32.mrf.mxu0
    %v7972 = vpop.f32.mrf.mxu0
    %v7973 = vpop.f32.mrf.mxu0
    %7974 = vdwg.mxu0
    %7975 = vmatprep.subr.bf16.mxu0 0
    %7976 = vmatpush1.bf16.msra.mxu0 %v7830
    %7977 = vmatprep.subr.bf16.mxu0 0
    %7978 = vmatpush1.bf16.msra.mxu0 %v7829
    %7979 = vmatprep.subr.bf16.mxu0 0
    %7980 = vmatpush1.bf16.msra.mxu0 %v7828
    %7981 = vmatprep.subr.bf16.mxu0 0
    %7982 = vmatpush1.bf16.msra.mxu0 %v7827
    %7983 = vmatprep.subr.bf16.mxu0 0
    %7984 = vmatpush1.bf16.msra.mxu0 %v7826
    %7985 = vmatprep.subr.bf16.mxu0 0
    %7986 = vmatpush1.bf16.msra.mxu0 %v7825
    %7987 = vmatprep.subr.bf16.mxu0 0
    %7988 = vmatpush1.bf16.msra.mxu0 %v7824
    %7989 = vmatprep.subr.bf16.mxu0 0
    %7990 = vmatpush1.bf16.msra.mxu0 %v7823
    %7991 = vmatprep.subr.bf16.mxu0 0
    %7992 = vmatpush2.bf16.msra.mxu0 %v7838
    %7993 = vmatprep.subr.bf16.mxu0 0
    %7994 = vmatpush2.bf16.msra.mxu0 %v7837
    %7995 = vmatprep.subr.bf16.mxu0 0
    %7996 = vmatpush2.bf16.msra.mxu0 %v7836
    %7997 = vmatprep.subr.bf16.mxu0 0
    %7998 = vmatpush2.bf16.msra.mxu0 %v7835
    %7999 = vmatprep.subr.bf16.mxu0 0
    %8000 = vmatpush2.bf16.msra.mxu0 %v7834
    %8001 = vmatprep.subr.bf16.mxu0 0
    %8002 = vmatpush2.bf16.msra.mxu0 %v7833
    %8003 = vmatprep.subr.bf16.mxu0 0
    %8004 = vmatpush2.bf16.msra.mxu0 %v7832
    %8005 = vmatprep.subr.bf16.mxu0 0
    %8006 = vmatpush2.bf16.msra.mxu0 %v7831
    %8007 = vmatprep.mubr.bf16.mxu0 %v7541
    %8008 = vmatmul.mubr.bf16.gmra.mxu0 %v7539
    %v8009 = vpop.f32.mrf.mxu0
    %v8010 = vadd.f32 %v7970, %v8009
    %v8011 = vpop.f32.mrf.mxu0
    %v8012 = vpop.f32.mrf.mxu0
    %v8013 = vpop.f32.mrf.mxu0
    %8014 = vdwg.mxu0
    %8015 = vmatprep.subr.bf16.mxu0 0
    %8016 = vmatpush1.bf16.msra.mxu0 %v7846
    %8017 = vmatprep.subr.bf16.mxu0 0
    %8018 = vmatpush1.bf16.msra.mxu0 %v7845
    %8019 = vmatprep.subr.bf16.mxu0 0
    %8020 = vmatpush1.bf16.msra.mxu0 %v7844
    %8021 = vmatprep.subr.bf16.mxu0 0
    %8022 = vmatpush1.bf16.msra.mxu0 %v7843
    %8023 = vmatprep.subr.bf16.mxu0 0
    %8024 = vmatpush1.bf16.msra.mxu0 %v7842
    %8025 = vmatprep.subr.bf16.mxu0 0
    %8026 = vmatpush1.bf16.msra.mxu0 %v7841
    %8027 = vmatprep.subr.bf16.mxu0 0
    %8028 = vmatpush1.bf16.msra.mxu0 %v7840
    %8029 = vmatprep.subr.bf16.mxu0 0
    %8030 = vmatpush1.bf16.msra.mxu0 %v7839
    %8031 = vmatprep.subr.bf16.mxu0 0
    %8032 = vmatpush2.bf16.msra.mxu0 %v7854
    %8033 = vmatprep.subr.bf16.mxu0 0
    %8034 = vmatpush2.bf16.msra.mxu0 %v7853
    %8035 = vmatprep.subr.bf16.mxu0 0
    %8036 = vmatpush2.bf16.msra.mxu0 %v7852
    %8037 = vmatprep.subr.bf16.mxu0 0
    %8038 = vmatpush2.bf16.msra.mxu0 %v7851
    %8039 = vmatprep.subr.bf16.mxu0 0
    %8040 = vmatpush2.bf16.msra.mxu0 %v7850
    %8041 = vmatprep.subr.bf16.mxu0 0
    %8042 = vmatpush2.bf16.msra.mxu0 %v7849
    %8043 = vmatprep.subr.bf16.mxu0 0
    %8044 = vmatpush2.bf16.msra.mxu0 %v7848
    %8045 = vmatprep.subr.bf16.mxu0 0
    %8046 = vmatpush2.bf16.msra.mxu0 %v7847
    %8047 = vmatprep.mubr.bf16.mxu0 %v7538
    %8048 = vmatmul.mubr.bf16.gmra.mxu0 %v7524
    %v8049 = vpop.f32.mrf.mxu0
    %v8050 = vadd.f32 %v8010, %v8049
    %v8051 = vpop.f32.mrf.mxu0
    %v8052 = vpop.f32.mrf.mxu0
    %v8053 = vpop.f32.mrf.mxu0
    %8054 = vdwg.mxu0
    %8055 = vmatprep.subr.bf16.mxu0 0
    %8056 = vmatpush1.bf16.msra.mxu0 %v7862
    %8057 = vmatprep.subr.bf16.mxu0 0
    %8058 = vmatpush1.bf16.msra.mxu0 %v7861
    %8059 = vmatprep.subr.bf16.mxu0 0
    %8060 = vmatpush1.bf16.msra.mxu0 %v7860
    %8061 = vmatprep.subr.bf16.mxu0 0
    %8062 = vmatpush1.bf16.msra.mxu0 %v7859
    %8063 = vmatprep.subr.bf16.mxu0 0
    %8064 = vmatpush1.bf16.msra.mxu0 %v7858
    %8065 = vmatprep.subr.bf16.mxu0 0
    %8066 = vmatpush1.bf16.msra.mxu0 %v7857
    %8067 = vmatprep.subr.bf16.mxu0 0
    %8068 = vmatpush1.bf16.msra.mxu0 %v7856
    %8069 = vmatprep.subr.bf16.mxu0 0
    %8070 = vmatpush1.bf16.msra.mxu0 %v7855
    %8071 = vmatprep.subr.bf16.mxu0 0
    %8072 = vmatpush2.bf16.msra.mxu0 %v7870
    %8073 = vmatprep.subr.bf16.mxu0 0
    %8074 = vmatpush2.bf16.msra.mxu0 %v7869
    %8075 = vmatprep.subr.bf16.mxu0 0
    %8076 = vmatpush2.bf16.msra.mxu0 %v7868
    %8077 = vmatprep.subr.bf16.mxu0 0
    %8078 = vmatpush2.bf16.msra.mxu0 %v7867
    %8079 = vmatprep.subr.bf16.mxu0 0
    %8080 = vmatpush2.bf16.msra.mxu0 %v7866
    %8081 = vmatprep.subr.bf16.mxu0 0
    %8082 = vmatpush2.bf16.msra.mxu0 %v7865
    %8083 = vmatprep.subr.bf16.mxu0 0
    %8084 = vmatpush2.bf16.msra.mxu0 %v7864
    %8085 = vmatprep.subr.bf16.mxu0 0
    %8086 = vmatpush2.bf16.msra.mxu0 %v7863
    %8087 = vmatprep.mubr.bf16.mxu0 %v7542
    %8088 = vmatmul.mubr.bf16.gmra.mxu0 %v7540
    %v8089 = vpop.f32.mrf.mxu0
    %v8090 = vadd.f32 %v8050, %v8089
    %v8091 = vpop.f32.mrf.mxu0
    %v8092 = vpop.f32.mrf.mxu0
    %v8093 = vpop.f32.mrf.mxu0
    %8094 = vdwg.mxu0
    %vm8095 = vcmask 517120
    %8096 = vst.msk [vmem:[%s63] sm:$0x3] %vm8095, %v8090
    %v8097 = vld [vmem:[#allocation10] sm:$0x3]
    %v8098 = vmul.f32 %v8090, 0.5
    %v8099 = vmul.f32 %v8098, 1.442695
    %v8100 = vpow.pop %v8099
    %8102 = vrot.lane.b32.xlu0 %v8100, 96
    %v8103 = vpop.permute.xlu0 %8102
    %v8105 = vmul.f32 %v8097, %v8103
    %v8106 = vadd.f32 %v8090, %v8105
    %v8107 = vpack.c.bf16 %v8106, %v8106
    %v8108 = vld [vmem:[%s37] sm:$0xff]
    %v8109 = vld [vmem:[%s37 + $0x8] sm:$0xff]
    %v8110 = vld [vmem:[%s37 + $0x10] sm:$0xff]
    %v8111 = vld [vmem:[%s37 + $0x18] sm:$0xff]
    %v8112 = vld [vmem:[%s37 + $0x20] sm:$0xff]
    %v8113 = vld [vmem:[%s37 + $0x28] sm:$0xff]
    %v8114 = vld [vmem:[%s37 + $0x30] sm:$0xff]
    %v8115 = vld [vmem:[%s37 + $0x38] sm:$0xff]
    %v8116 = vld [vmem:[%s37 + $0x40] sm:$0xff]
    %v8117 = vld [vmem:[%s37 + $0x48] sm:$0xff]
    %v8118 = vld [vmem:[%s37 + $0x50] sm:$0xff]
    %v8119 = vld [vmem:[%s37 + $0x58] sm:$0xff]
    %v8120 = vld [vmem:[%s37 + $0x60] sm:$0xff]
    %v8121 = vld [vmem:[%s37 + $0x68] sm:$0xff]
    %v8122 = vld [vmem:[%s37 + $0x70] sm:$0xff]
    %v8123 = vld [vmem:[%s37 + $0x78] sm:$0xff]
    %v8124 = vld [vmem:[#allocation24] sm:$0xff]
    %v8126 = vlaneseq
    %v8127 = vshrl.u32 %v8126, 7
    %v8128 = vsub.s32 0, %v8127
    %v8129 = vrot.slane %v8124, %v8128
    %v8130 = vlaneseq
    %v8131 = vshrl.u32 %v8130, 7
    %v8132 = vsub.s32 1, %v8131
    %v8133 = vrot.slane %v8124, %v8132
    %v8134 = vlaneseq
    %v8135 = vshrl.u32 %v8134, 7
    %v8136 = vsub.s32 2, %v8135
    %v8137 = vrot.slane %v8124, %v8136
    %v8138 = vlaneseq
    %v8139 = vshrl.u32 %v8138, 7
    %v8140 = vsub.s32 3, %v8139
    %v8141 = vrot.slane %v8124, %v8140
    %v8142 = vlaneseq
    %v8143 = vshrl.u32 %v8142, 7
    %v8144 = vsub.s32 4, %v8143
    %v8145 = vrot.slane %v8124, %v8144
    %v8146 = vlaneseq
    %v8147 = vshrl.u32 %v8146, 7
    %v8148 = vsub.s32 5, %v8147
    %v8149 = vrot.slane %v8124, %v8148
    %v8150 = vlaneseq
    %v8151 = vshrl.u32 %v8150, 7
    %v8152 = vsub.s32 6, %v8151
    %v8153 = vrot.slane %v8124, %v8152
    %v8154 = vlaneseq
    %v8155 = vshrl.u32 %v8154, 7
    %v8156 = vsub.s32 7, %v8155
    %v8157 = vrot.slane %v8124, %v8156
    %v8182 = vunpack.c.l.b16 %v8108
    %v8183 = vunpack.c.h.b16 %v8108
    %v8184 = vunpack.c.l.b16 %v8109
    %v8185 = vunpack.c.h.b16 %v8109
    %v8186 = vunpack.c.l.b16 %v8110
    %v8187 = vunpack.c.h.b16 %v8110
    %v8188 = vunpack.c.l.b16 %v8111
    %v8189 = vunpack.c.h.b16 %v8111
    %v8190 = vunpack.c.l.b16 %v8112
    %v8191 = vunpack.c.h.b16 %v8112
    %v8192 = vunpack.c.l.b16 %v8113
    %v8193 = vunpack.c.h.b16 %v8113
    %v8194 = vunpack.c.l.b16 %v8114
    %v8195 = vunpack.c.h.b16 %v8114
    %v8196 = vunpack.c.l.b16 %v8115
    %v8197 = vunpack.c.h.b16 %v8115
    %v8198 = vunpack.c.l.b16 %v8116
    %v8199 = vunpack.c.h.b16 %v8116
    %v8200 = vunpack.c.l.b16 %v8117
    %v8201 = vunpack.c.h.b16 %v8117
    %v8202 = vunpack.c.l.b16 %v8118
    %v8203 = vunpack.c.h.b16 %v8118
    %v8204 = vunpack.c.l.b16 %v8119
    %v8205 = vunpack.c.h.b16 %v8119
    %v8206 = vunpack.c.l.b16 %v8120
    %v8207 = vunpack.c.h.b16 %v8120
    %v8208 = vunpack.c.l.b16 %v8121
    %v8209 = vunpack.c.h.b16 %v8121
    %v8210 = vunpack.c.l.b16 %v8122
    %v8211 = vunpack.c.h.b16 %v8122
    %v8212 = vunpack.c.l.b16 %v8123
    %v8213 = vunpack.c.h.b16 %v8123
    %v8214 = vpack.c.b16 %v8190, %v8182
    %v8215 = vpack.c.b16 %v8191, %v8183
    %v8216 = vpack.c.b16 %v8192, %v8184
    %v8217 = vpack.c.b16 %v8193, %v8185
    %v8218 = vpack.c.b16 %v8194, %v8186
    %v8219 = vpack.c.b16 %v8195, %v8187
    %v8220 = vpack.c.b16 %v8196, %v8188
    %v8221 = vpack.c.b16 %v8197, %v8189
    %v8222 = vpack.c.b16 %v8206, %v8198
    %v8223 = vpack.c.b16 %v8207, %v8199
    %v8224 = vpack.c.b16 %v8208, %v8200
    %v8225 = vpack.c.b16 %v8209, %v8201
    %v8226 = vpack.c.b16 %v8210, %v8202
    %v8227 = vpack.c.b16 %v8211, %v8203
    %v8228 = vpack.c.b16 %v8212, %v8204
    %v8229 = vpack.c.b16 %v8213, %v8205
    %v8247 = vsel %vm5128, %v8107, 0
    %8249 = vmatprep.subr.bf16.mxu0 0
    %8250 = vmatpush1.bf16.msra.mxu0 0
    %8251 = vmatprep.subr.bf16.mxu0 0
    %8252 = vmatpush1.bf16.msra.mxu0 0
    %8253 = vmatprep.subr.bf16.mxu0 0
    %8254 = vmatpush1.bf16.msra.mxu0 0
    %8255 = vmatprep.subr.bf16.mxu0 0
    %8256 = vmatpush1.bf16.msra.mxu0 0
    %8257 = vmatprep.subr.bf16.mxu0 0
    %8258 = vmatpush1.bf16.msra.mxu0 0
    %8259 = vmatprep.subr.bf16.mxu0 0
    %8260 = vmatpush1.bf16.msra.mxu0 0
    %8261 = vmatprep.subr.bf16.mxu0 %v8223
    %8262 = vmatpush1.bf16.msra.mxu0 %v8222
    %8263 = vmatprep.subr.bf16.mxu0 %v8215
    %8264 = vmatpush1.bf16.msra.mxu0 %v8214
    %8265 = vmatprep.subr.bf16.mxu0 0
    %8266 = vmatpush2.bf16.msra.mxu0 0
    %8267 = vmatprep.subr.bf16.mxu0 0
    %8268 = vmatpush2.bf16.msra.mxu0 0
    %8269 = vmatprep.subr.bf16.mxu0 0
    %8270 = vmatpush2.bf16.msra.mxu0 0
    %8271 = vmatprep.subr.bf16.mxu0 0
    %8272 = vmatpush2.bf16.msra.mxu0 0
    %8273 = vmatprep.subr.bf16.mxu0 0
    %8274 = vmatpush2.bf16.msra.mxu0 0
    %8275 = vmatprep.subr.bf16.mxu0 0
    %8276 = vmatpush2.bf16.msra.mxu0 0
    %8277 = vmatprep.subr.bf16.mxu0 0
    %8278 = vmatpush2.bf16.msra.mxu0 0
    %8279 = vmatprep.subr.bf16.mxu0 0
    %8280 = vmatpush2.bf16.msra.mxu0 0
    %8281 = vmatprep.mubr.bf16.mxu0 0
    %8282 = vmatmul.mubr.bf16.gmra.mxu0 %v8247
    %v8283 = vpop.f32.mrf.mxu0
    %v8284 = vadd.f32 %v8129, %v8283
    %v8285 = vpop.f32.mrf.mxu0
    %v8286 = vadd.f32 %v8133, %v8285
    %v8287 = vpop.f32.mrf.mxu0
    %v8288 = vpop.f32.mrf.mxu0
    %8289 = vdwg.mxu0
    %8290 = vmatprep.subr.bf16.mxu0 0
    %8291 = vmatpush1.bf16.msra.mxu0 0
    %8292 = vmatprep.subr.bf16.mxu0 0
    %8293 = vmatpush1.bf16.msra.mxu0 0
    %8294 = vmatprep.subr.bf16.mxu0 0
    %8295 = vmatpush1.bf16.msra.mxu0 0
    %8296 = vmatprep.subr.bf16.mxu0 0
    %8297 = vmatpush1.bf16.msra.mxu0 0
    %8298 = vmatprep.subr.bf16.mxu0 0
    %8299 = vmatpush1.bf16.msra.mxu0 0
    %8300 = vmatprep.subr.bf16.mxu0 0
    %8301 = vmatpush1.bf16.msra.mxu0 0
    %8302 = vmatprep.subr.bf16.mxu0 %v8225
    %8303 = vmatpush1.bf16.msra.mxu0 %v8224
    %8304 = vmatprep.subr.bf16.mxu0 %v8217
    %8305 = vmatpush1.bf16.msra.mxu0 %v8216
    %8306 = vmatprep.subr.bf16.mxu0 0
    %8307 = vmatpush2.bf16.msra.mxu0 0
    %8308 = vmatprep.subr.bf16.mxu0 0
    %8309 = vmatpush2.bf16.msra.mxu0 0
    %8310 = vmatprep.subr.bf16.mxu0 0
    %8311 = vmatpush2.bf16.msra.mxu0 0
    %8312 = vmatprep.subr.bf16.mxu0 0
    %8313 = vmatpush2.bf16.msra.mxu0 0
    %8314 = vmatprep.subr.bf16.mxu0 0
    %8315 = vmatpush2.bf16.msra.mxu0 0
    %8316 = vmatprep.subr.bf16.mxu0 0
    %8317 = vmatpush2.bf16.msra.mxu0 0
    %8318 = vmatprep.subr.bf16.mxu0 0
    %8319 = vmatpush2.bf16.msra.mxu0 0
    %8320 = vmatprep.subr.bf16.mxu0 0
    %8321 = vmatpush2.bf16.msra.mxu0 0
    %8322 = vmatprep.mubr.bf16.mxu0 0
    %8323 = vmatmul.mubr.bf16.gmra.mxu0 %v8247
    %v8324 = vpop.f32.mrf.mxu0
    %v8325 = vadd.f32 %v8137, %v8324
    %v8326 = vpop.f32.mrf.mxu0
    %v8327 = vadd.f32 %v8141, %v8326
    %v8328 = vpop.f32.mrf.mxu0
    %v8329 = vpop.f32.mrf.mxu0
    %8330 = vdwg.mxu0
    %8331 = vmatprep.subr.bf16.mxu0 0
    %8332 = vmatpush1.bf16.msra.mxu0 0
    %8333 = vmatprep.subr.bf16.mxu0 0
    %8334 = vmatpush1.bf16.msra.mxu0 0
    %8335 = vmatprep.subr.bf16.mxu0 0
    %8336 = vmatpush1.bf16.msra.mxu0 0
    %8337 = vmatprep.subr.bf16.mxu0 0
    %8338 = vmatpush1.bf16.msra.mxu0 0
    %8339 = vmatprep.subr.bf16.mxu0 0
    %8340 = vmatpush1.bf16.msra.mxu0 0
    %8341 = vmatprep.subr.bf16.mxu0 0
    %8342 = vmatpush1.bf16.msra.mxu0 0
    %8343 = vmatprep.subr.bf16.mxu0 %v8227
    %8344 = vmatpush1.bf16.msra.mxu0 %v8226
    %8345 = vmatprep.subr.bf16.mxu0 %v8219
    %8346 = vmatpush1.bf16.msra.mxu0 %v8218
    %8347 = vmatprep.subr.bf16.mxu0 0
    %8348 = vmatpush2.bf16.msra.mxu0 0
    %8349 = vmatprep.subr.bf16.mxu0 0
    %8350 = vmatpush2.bf16.msra.mxu0 0
    %8351 = vmatprep.subr.bf16.mxu0 0
    %8352 = vmatpush2.bf16.msra.mxu0 0
    %8353 = vmatprep.subr.bf16.mxu0 0
    %8354 = vmatpush2.bf16.msra.mxu0 0
    %8355 = vmatprep.subr.bf16.mxu0 0
    %8356 = vmatpush2.bf16.msra.mxu0 0
    %8357 = vmatprep.subr.bf16.mxu0 0
    %8358 = vmatpush2.bf16.msra.mxu0 0
    %8359 = vmatprep.subr.bf16.mxu0 0
    %8360 = vmatpush2.bf16.msra.mxu0 0
    %8361 = vmatprep.subr.bf16.mxu0 0
    %8362 = vmatpush2.bf16.msra.mxu0 0
    %8363 = vmatprep.mubr.bf16.mxu0 0
    %8364 = vmatmul.mubr.bf16.gmra.mxu0 %v8247
    %v8365 = vpop.f32.mrf.mxu0
    %v8366 = vadd.f32 %v8145, %v8365
    %v8367 = vpop.f32.mrf.mxu0
    %v8368 = vadd.f32 %v8149, %v8367
    %v8369 = vpop.f32.mrf.mxu0
    %v8370 = vpop.f32.mrf.mxu0
    %8371 = vdwg.mxu0
    %8372 = vmatprep.subr.bf16.mxu0 0
    %8373 = vmatpush1.bf16.msra.mxu0 0
    %8374 = vmatprep.subr.bf16.mxu0 0
    %8375 = vmatpush1.bf16.msra.mxu0 0
    %8376 = vmatprep.subr.bf16.mxu0 0
    %8377 = vmatpush1.bf16.msra.mxu0 0
    %8378 = vmatprep.subr.bf16.mxu0 0
    %8379 = vmatpush1.bf16.msra.mxu0 0
    %8380 = vmatprep.subr.bf16.mxu0 0
    %8381 = vmatpush1.bf16.msra.mxu0 0
    %8382 = vmatprep.subr.bf16.mxu0 0
    %8383 = vmatpush1.bf16.msra.mxu0 0
    %8384 = vmatprep.subr.bf16.mxu0 %v8229
    %8385 = vmatpush1.bf16.msra.mxu0 %v8228
    %8386 = vmatprep.subr.bf16.mxu0 %v8221
    %8387 = vmatpush1.bf16.msra.mxu0 %v8220
    %8388 = vmatprep.subr.bf16.mxu0 0
    %8389 = vmatpush2.bf16.msra.mxu0 0
    %8390 = vmatprep.subr.bf16.mxu0 0
    %8391 = vmatpush2.bf16.msra.mxu0 0
    %8392 = vmatprep.subr.bf16.mxu0 0
    %8393 = vmatpush2.bf16.msra.mxu0 0
    %8394 = vmatprep.subr.bf16.mxu0 0
    %8395 = vmatpush2.bf16.msra.mxu0 0
    %8396 = vmatprep.subr.bf16.mxu0 0
    %8397 = vmatpush2.bf16.msra.mxu0 0
    %8398 = vmatprep.subr.bf16.mxu0 0
    %8399 = vmatpush2.bf16.msra.mxu0 0
    %8400 = vmatprep.subr.bf16.mxu0 0
    %8401 = vmatpush2.bf16.msra.mxu0 0
    %8402 = vmatprep.subr.bf16.mxu0 0
    %8403 = vmatpush2.bf16.msra.mxu0 0
    %8404 = vmatprep.mubr.bf16.mxu0 0
    %8405 = vmatmul.mubr.bf16.gmra.mxu0 %v8247
    %v8406 = vpop.f32.mrf.mxu0
    %v8407 = vadd.f32 %v8153, %v8406
    %v8408 = vpop.f32.mrf.mxu0
    %v8409 = vadd.f32 %v8157, %v8408
    %v8410 = vpop.f32.mrf.mxu0
    %v8411 = vpop.f32.mrf.mxu0
    %8412 = vdwg.mxu0
    %v8413 = vmax.f32 %v8284, 0.0
    %v8414 = vmax.f32 %v8286, 0.0
    %v8415 = vmax.f32 %v8325, 0.0
    %v8416 = vmax.f32 %v8327, 0.0
    %v8417 = vmax.f32 %v8366, 0.0
    %v8418 = vmax.f32 %v8368, 0.0
    %v8419 = vmax.f32 %v8407, 0.0
    %v8420 = vmax.f32 %v8409, 0.0
    %v8421 = vpack.c.bf16 %v8413, %v8413
    %8422 = vst [vmem:[#allocation6] sm:$0x1] %v8421
    %v8423 = vpack.c.bf16 %v8414, %v8414
    %v8425 = vunpack.c.l.b16 %v8423
    %v8426 = vpack.c.b16 %v8425, %v8425
    %v8427 = vrot.slane %v8426, 7
    %8429 = vst [vmem:[#allocation6] sm:$0x2] %v8427
    %v8430 = vpack.c.bf16 %v8415, %v8415
    %v8432 = vunpack.c.l.b16 %v8430
    %v8433 = vpack.c.b16 %v8432, %v8432
    %v8434 = vrot.slane %v8433, 6
    %8436 = vst [vmem:[#allocation6] sm:$0x4] %v8434
    %v8437 = vpack.c.bf16 %v8416, %v8416
    %v8439 = vunpack.c.l.b16 %v8437
    %v8440 = vpack.c.b16 %v8439, %v8439
    %v8441 = vrot.slane %v8440, 5
    %8443 = vst [vmem:[#allocation6] sm:$0x8] %v8441
    %v8444 = vpack.c.bf16 %v8417, %v8417
    %8445 = vst [vmem:[#allocation6 + $0x4] sm:$0x1] %v8444
    %v8446 = vpack.c.bf16 %v8418, %v8418
    %v8448 = vunpack.c.l.b16 %v8446
    %v8449 = vpack.c.b16 %v8448, %v8448
    %v8450 = vrot.slane %v8449, 7
    %8452 = vst [vmem:[#allocation6 + $0x4] sm:$0x2] %v8450
    %v8453 = vpack.c.bf16 %v8419, %v8419
    %v8455 = vunpack.c.l.b16 %v8453
    %v8456 = vpack.c.b16 %v8455, %v8455
    %v8457 = vrot.slane %v8456, 6
    %8459 = vst [vmem:[#allocation6 + $0x4] sm:$0x4] %v8457
    %v8460 = vpack.c.bf16 %v8420, %v8420
    %v8462 = vunpack.c.l.b16 %v8460
    %v8463 = vpack.c.b16 %v8462, %v8462
    %v8464 = vrot.slane %v8463, 5
    %8466 = vst [vmem:[#allocation6 + $0x4] sm:$0x8] %v8464
    %v8467 = vld [vmem:[#allocation6] sm:$0xf]
    %v8468 = vld [vmem:[#allocation6 + $0x4] sm:$0xf]
    %v8469 = vld [vmem:[%s41] sm:$0xff]
    %v8470 = vld [vmem:[%s41 + $0x8] sm:$0xff]
    %v8471 = vld [vmem:[%s41 + $0x10] sm:$0xff]
    %v8472 = vld [vmem:[%s41 + $0x18] sm:$0xff]
    %v8473 = vld [vmem:[%s41 + $0x20] sm:$0xff]
    %v8474 = vld [vmem:[%s41 + $0x28] sm:$0xff]
    %v8475 = vld [vmem:[%s41 + $0x30] sm:$0xff]
    %v8476 = vld [vmem:[%s41 + $0x38] sm:$0xff]
    %v8477 = vld [vmem:[%s41 + $0x40] sm:$0xff]
    %v8478 = vld [vmem:[%s41 + $0x48] sm:$0xff]
    %v8479 = vld [vmem:[%s41 + $0x50] sm:$0xff]
    %v8480 = vld [vmem:[%s41 + $0x58] sm:$0xff]
    %v8481 = vld [vmem:[%s41 + $0x60] sm:$0xff]
    %v8482 = vld [vmem:[%s41 + $0x68] sm:$0xff]
    %v8483 = vld [vmem:[%s41 + $0x70] sm:$0xff]
    %v8484 = vld [vmem:[%s41 + $0x78] sm:$0xff]
    %v8487 = vunpack.c.l.b16 %v8467
    %v8488 = vunpack.c.l.b16 %v8468
    %v8489 = vpack.c.b16 %v8488, %v8487
    %v8507 = vunpack.c.l.b16 %v8469
    %v8508 = vunpack.c.h.b16 %v8469
    %v8509 = vunpack.c.l.b16 %v8470
    %v8510 = vunpack.c.h.b16 %v8470
    %v8511 = vunpack.c.l.b16 %v8471
    %v8512 = vunpack.c.h.b16 %v8471
    %v8513 = vunpack.c.l.b16 %v8472
    %v8514 = vunpack.c.h.b16 %v8472
    %v8515 = vunpack.c.l.b16 %v8473
    %v8516 = vunpack.c.h.b16 %v8473
    %v8517 = vunpack.c.l.b16 %v8474
    %v8518 = vunpack.c.h.b16 %v8474
    %v8519 = vunpack.c.l.b16 %v8475
    %v8520 = vunpack.c.h.b16 %v8475
    %v8521 = vunpack.c.l.b16 %v8476
    %v8522 = vunpack.c.h.b16 %v8476
    %v8523 = vunpack.c.l.b16 %v8477
    %v8524 = vunpack.c.h.b16 %v8477
    %v8525 = vunpack.c.l.b16 %v8478
    %v8526 = vunpack.c.h.b16 %v8478
    %v8527 = vunpack.c.l.b16 %v8479
    %v8528 = vunpack.c.h.b16 %v8479
    %v8529 = vunpack.c.l.b16 %v8480
    %v8530 = vunpack.c.h.b16 %v8480
    %v8531 = vunpack.c.l.b16 %v8481
    %v8532 = vunpack.c.h.b16 %v8481
    %v8533 = vunpack.c.l.b16 %v8482
    %v8534 = vunpack.c.h.b16 %v8482
    %v8535 = vunpack.c.l.b16 %v8483
    %v8536 = vunpack.c.h.b16 %v8483
    %v8537 = vunpack.c.l.b16 %v8484
    %v8538 = vunpack.c.h.b16 %v8484
    %v8539 = vpack.c.b16 %v8509, %v8507
    %v8540 = vpack.c.b16 %v8510, %v8508
    %v8541 = vpack.c.b16 %v8513, %v8511
    %v8542 = vpack.c.b16 %v8514, %v8512
    %v8543 = vpack.c.b16 %v8517, %v8515
    %v8544 = vpack.c.b16 %v8518, %v8516
    %v8545 = vpack.c.b16 %v8521, %v8519
    %v8546 = vpack.c.b16 %v8522, %v8520
    %v8547 = vpack.c.b16 %v8525, %v8523
    %v8548 = vpack.c.b16 %v8526, %v8524
    %v8549 = vpack.c.b16 %v8529, %v8527
    %v8550 = vpack.c.b16 %v8530, %v8528
    %v8551 = vpack.c.b16 %v8533, %v8531
    %v8552 = vpack.c.b16 %v8534, %v8532
    %v8553 = vpack.c.b16 %v8537, %v8535
    %v8554 = vpack.c.b16 %v8538, %v8536
    %8571 = vmatprep.subr.bf16.mxu0 %v8554
    %8572 = vmatpush1.bf16.msra.mxu0 %v8553
    %8573 = vmatprep.subr.bf16.mxu0 %v8552
    %8574 = vmatpush1.bf16.msra.mxu0 %v8551
    %8575 = vmatprep.subr.bf16.mxu0 %v8550
    %8576 = vmatpush1.bf16.msra.mxu0 %v8549
    %8577 = vmatprep.subr.bf16.mxu0 %v8548
    %8578 = vmatpush1.bf16.msra.mxu0 %v8547
    %8579 = vmatprep.subr.bf16.mxu0 %v8546
    %8580 = vmatpush1.bf16.msra.mxu0 %v8545
    %8581 = vmatprep.subr.bf16.mxu0 %v8544
    %8582 = vmatpush1.bf16.msra.mxu0 %v8543
    %8583 = vmatprep.subr.bf16.mxu0 %v8542
    %8584 = vmatpush1.bf16.msra.mxu0 %v8541
    %8585 = vmatprep.subr.bf16.mxu0 %v8540
    %8586 = vmatpush1.bf16.msra.mxu0 %v8539
    %8587 = vmatprep.subr.bf16.mxu0 0
    %8588 = vmatpush2.bf16.msra.mxu0 0
    %8589 = vmatprep.subr.bf16.mxu0 0
    %8590 = vmatpush2.bf16.msra.mxu0 0
    %8591 = vmatprep.subr.bf16.mxu0 0
    %8592 = vmatpush2.bf16.msra.mxu0 0
    %8593 = vmatprep.subr.bf16.mxu0 0
    %8594 = vmatpush2.bf16.msra.mxu0 0
    %8595 = vmatprep.subr.bf16.mxu0 0
    %8596 = vmatpush2.bf16.msra.mxu0 0
    %8597 = vmatprep.subr.bf16.mxu0 0
    %8598 = vmatpush2.bf16.msra.mxu0 0
    %8599 = vmatprep.subr.bf16.mxu0 0
    %8600 = vmatpush2.bf16.msra.mxu0 0
    %8601 = vmatprep.subr.bf16.mxu0 0
    %8602 = vmatpush2.bf16.msra.mxu0 0
    %8603 = vmatprep.mubr.bf16.mxu0 0
    %8604 = vmatmul.mubr.bf16.gmra.mxu0 %v8489
    %v8605 = vpop.f32.mrf.mxu0
    %v8606 = vadd.f32 0.0, %v8605
    %v8607 = vpop.f32.mrf.mxu0
    %v8608 = vadd.f32 0.0, %v8607
    %v8609 = vpop.f32.mrf.mxu0
    %v8610 = vadd.f32 0.0, %v8609
    %v8611 = vpop.f32.mrf.mxu0
    %v8612 = vadd.f32 0.0, %v8611
    %8613 = vdwg.mxu0
    %v8614 = vpack.c.bf16 %v8610, %v8606
    %v8616 = vunpack.c.l.b16 %v8614
    %v8617 = vunpack.c.h.b16 %v8614
    %v8618 = vpack.c.b16 %v8616, %v8616
    %v8619 = vpack.c.b16 %v8617, %v8617
    %8622 = vst.msk [vmem:[#allocation7] sm:$0xf] %vm5427, %v8618
    %8623 = vst.msk [vmem:[#allocation7 + $0x4] sm:$0xf] %vm5427, %v8619
    %8624 = vrot.lane.b32.xlu0 %v8618, 64
    %v8625 = vpop.permute.xlu0 %8624
    %8626 = vrot.lane.b32.xlu0 %v8619, 64
    %v8627 = vpop.permute.xlu0 %8626
    %8630 = vst.msk [vmem:[#allocation7 + $0x8] sm:$0xf] %vm5427, %v8625
    %8631 = vst.msk [vmem:[#allocation7 + $0xc] sm:$0xf] %vm5427, %v8627
    %v8632 = vpack.c.bf16 %v8612, %v8608
    %v8634 = vunpack.c.l.b16 %v8632
    %v8635 = vunpack.c.h.b16 %v8632
    %v8636 = vpack.c.b16 %v8634, %v8634
    %v8637 = vpack.c.b16 %v8635, %v8635
    %8640 = vst.msk [vmem:[#allocation7 + $0x10] sm:$0xf] %vm5427, %v8636
    %8641 = vst.msk [vmem:[#allocation7 + $0x14] sm:$0xf] %vm5427, %v8637
    %v8642 = vld [vmem:[#allocation27] sm:$0xf]
    %v8643 = vld [vmem:[#allocation27 + $0x4] sm:$0xf]
    %v8644 = vld [vmem:[#allocation27 + $0x8] sm:$0xf]
    %v8645 = vld [vmem:[#allocation27 + $0xc] sm:$0xf]
    %v8646 = vld [vmem:[#allocation7] sm:$0xf]
    %v8647 = vld [vmem:[#allocation7 + $0x4] sm:$0xf]
    %v8648 = vld [vmem:[#allocation7 + $0x8] sm:$0xf]
    %v8649 = vld [vmem:[#allocation7 + $0xc] sm:$0xf]
    %v8650 = vld [vmem:[#allocation7 + $0x10] sm:$0xf]
    %v8651 = vld [vmem:[#allocation7 + $0x14] sm:$0xf]
    %v8652 = vld [vmem:[#allocation26] sm:$0x1]
    %v8654 = vlaneseq
    %v8655 = vshrl.u32 %v8654, 7
    %v8656 = vsub.s32 0, %v8655
    %v8657 = vrot.slane %v8652, %v8656
    %v8663 = vunpack.c.l.b16 %v8642
    %v8664 = vunpack.c.l.b16 %v8643
    %v8665 = vunpack.c.l.b16 %v8644
    %v8666 = vunpack.c.l.b16 %v8645
    %v8667 = vpack.c.b16 %v8664, %v8663
    %v8668 = vpack.c.b16 %v8666, %v8665
    %v8675 = vunpack.c.l.b16 %v8646
    %v8676 = vunpack.c.l.b16 %v8647
    %v8677 = vunpack.c.l.b16 %v8648
    %v8678 = vunpack.c.l.b16 %v8649
    %v8679 = vunpack.c.l.b16 %v8650
    %v8680 = vunpack.c.l.b16 %v8651
    %v8681 = vpack.c.b16 %v8676, %v8675
    %v8682 = vpack.c.b16 %v8678, %v8677
    %v8683 = vpack.c.b16 %v8680, %v8679
    %vm8687 = vcmask 392192
    %v8689 = vsel %vm8687, %v8667, 0
    %v8692 = vsel %vm8687, %v8668, 0
    %8694 = vmatprep.subr.bf16.mxu0 0
    %8695 = vmatpush1.bf16.msra.mxu0 0
    %8696 = vmatprep.subr.bf16.mxu0 0
    %8697 = vmatpush1.bf16.msra.mxu0 0
    %8698 = vmatprep.subr.bf16.mxu0 0
    %8699 = vmatpush1.bf16.msra.mxu0 0
    %8700 = vmatprep.subr.bf16.mxu0 0
    %8701 = vmatpush1.bf16.msra.mxu0 0
    %8702 = vmatprep.subr.bf16.mxu0 0
    %8703 = vmatpush1.bf16.msra.mxu0 0
    %8704 = vmatprep.subr.bf16.mxu0 0
    %8705 = vmatpush1.bf16.msra.mxu0 %v8683
    %8706 = vmatprep.subr.bf16.mxu0 0
    %8707 = vmatpush1.bf16.msra.mxu0 %v8682
    %8708 = vmatprep.subr.bf16.mxu0 0
    %8709 = vmatpush1.bf16.msra.mxu0 %v8681
    %8710 = vmatprep.subr.bf16.mxu0 0
    %8711 = vmatpush2.bf16.msra.mxu0 0
    %8712 = vmatprep.subr.bf16.mxu0 0
    %8713 = vmatpush2.bf16.msra.mxu0 0
    %8714 = vmatprep.subr.bf16.mxu0 0
    %8715 = vmatpush2.bf16.msra.mxu0 0
    %8716 = vmatprep.subr.bf16.mxu0 0
    %8717 = vmatpush2.bf16.msra.mxu0 0
    %8718 = vmatprep.subr.bf16.mxu0 0
    %8719 = vmatpush2.bf16.msra.mxu0 0
    %8720 = vmatprep.subr.bf16.mxu0 0
    %8721 = vmatpush2.bf16.msra.mxu0 0
    %8722 = vmatprep.subr.bf16.mxu0 0
    %8723 = vmatpush2.bf16.msra.mxu0 0
    %8724 = vmatprep.subr.bf16.mxu0 0
    %8725 = vmatpush2.bf16.msra.mxu0 0
    %8726 = vmatprep.mubr.bf16.mxu0 0
    %8727 = vmatmul.mubr.bf16.gmra.mxu0 %v8689
    %v8728 = vpop.f32.mrf.mxu0
    %v8729 = vadd.f32 %v8657, %v8728
    %v8730 = vpop.f32.mrf.mxu0
    %v8731 = vpop.f32.mrf.mxu0
    %v8732 = vadd.f32 %v8657, %v8731
    %v8733 = vpop.f32.mrf.mxu0
    %8734 = vmatprep.mubr.bf16.mxu0 0
    %8735 = vmatmul.mubr.bf16.gmra.mxu0 %v8692
    %v8736 = vpop.f32.mrf.mxu0
    %v8737 = vadd.f32 %v8657, %v8736
    %v8738 = vpop.f32.mrf.mxu0
    %v8739 = vpop.f32.mrf.mxu0
    %v8740 = vadd.f32 %v8657, %v8739
    %v8741 = vpop.f32.mrf.mxu0
    %8742 = vdwg.mxu0
    %vm8743 = vcmp.ge.f32.partialorder %v8729, 0.0
    %vm8744 = vcmp.ge.f32.partialorder %v8732, 0.0
    %vm8745 = vcmp.ge.f32.partialorder %v8737, 0.0
    %vm8746 = vcmp.ge.f32.partialorder %v8740, 0.0
    %v8747 = vmul.f32 %v8729, 0.1
    %v8748 = vmul.f32 %v8732, 0.1
    %v8749 = vmul.f32 %v8737, 0.1
    %v8750 = vmul.f32 %v8740, 0.1
    %v8751 = vsel %vm8743, %v8729, %v8747
    %v8752 = vsel %vm8744, %v8732, %v8748
    %v8753 = vsel %vm8745, %v8737, %v8749
    %v8754 = vsel %vm8746, %v8740, %v8750
    %v8755 = vpack.c.bf16 %v8752, %v8751
    %v8756 = vpack.c.bf16 %v8754, %v8753
    %v8757 = vld [vmem:[%s47] sm:$0xff]
    %v8758 = vld [vmem:[%s47 + $0x8] sm:$0xff]
    %v8759 = vld [vmem:[%s47 + $0x10] sm:$0xff]
    %v8760 = vld [vmem:[%s47 + $0x18] sm:$0xff]
    %v8761 = vld [vmem:[%s47 + $0x20] sm:$0xff]
    %v8762 = vld [vmem:[%s47 + $0x28] sm:$0xff]
    %v8763 = vld [vmem:[%s47 + $0x30] sm:$0xff]
    %v8764 = vld [vmem:[%s47 + $0x38] sm:$0xff]
    %v8773 = vunpack.c.l.b16 %v8757
    %v8774 = vunpack.c.h.b16 %v8757
    %v8775 = vunpack.c.l.b16 %v8758
    %v8776 = vunpack.c.h.b16 %v8758
    %v8777 = vunpack.c.l.b16 %v8759
    %v8778 = vunpack.c.h.b16 %v8759
    %v8779 = vunpack.c.l.b16 %v8760
    %v8780 = vunpack.c.h.b16 %v8760
    %v8781 = vunpack.c.l.b16 %v8761
    %v8782 = vunpack.c.h.b16 %v8761
    %v8783 = vunpack.c.l.b16 %v8762
    %v8784 = vunpack.c.h.b16 %v8762
    %v8785 = vunpack.c.l.b16 %v8763
    %v8786 = vunpack.c.h.b16 %v8763
    %v8787 = vunpack.c.l.b16 %v8764
    %v8788 = vunpack.c.h.b16 %v8764
    %v8789 = vpack.c.b16 %v8775, %v8773
    %v8790 = vpack.c.b16 %v8776, %v8774
    %v8791 = vpack.c.b16 %v8779, %v8777
    %v8792 = vpack.c.b16 %v8780, %v8778
    %v8793 = vpack.c.b16 %v8783, %v8781
    %v8794 = vpack.c.b16 %v8784, %v8782
    %v8795 = vpack.c.b16 %v8787, %v8785
    %v8796 = vpack.c.b16 %v8788, %v8786
    %v8806 = vsel %vm6490, %v8755, 0
    %v8809 = vsel %vm6490, %v8756, 0
    %8811 = vmatprep.subr.bf16.mxu0 0
    %8812 = vmatpush1.bf16.msra.mxu0 0
    %8813 = vmatprep.subr.bf16.mxu0 0
    %8814 = vmatpush1.bf16.msra.mxu0 0
    %8815 = vmatprep.subr.bf16.mxu0 0
    %8816 = vmatpush1.bf16.msra.mxu0 0
    %8817 = vmatprep.subr.bf16.mxu0 0
    %8818 = vmatpush1.bf16.msra.mxu0 0
    %8819 = vmatprep.subr.bf16.mxu0 %v8796
    %8820 = vmatpush1.bf16.msra.mxu0 %v8795
    %8821 = vmatprep.subr.bf16.mxu0 %v8794
    %8822 = vmatpush1.bf16.msra.mxu0 %v8793
    %8823 = vmatprep.subr.bf16.mxu0 %v8792
    %8824 = vmatpush1.bf16.msra.mxu0 %v8791
    %8825 = vmatprep.subr.bf16.mxu0 %v8790
    %8826 = vmatpush1.bf16.msra.mxu0 %v8789
    %8827 = vmatprep.subr.bf16.mxu0 0
    %8828 = vmatpush2.bf16.msra.mxu0 0
    %8829 = vmatprep.subr.bf16.mxu0 0
    %8830 = vmatpush2.bf16.msra.mxu0 0
    %8831 = vmatprep.subr.bf16.mxu0 0
    %8832 = vmatpush2.bf16.msra.mxu0 0
    %8833 = vmatprep.subr.bf16.mxu0 0
    %8834 = vmatpush2.bf16.msra.mxu0 0
    %8835 = vmatprep.subr.bf16.mxu0 0
    %8836 = vmatpush2.bf16.msra.mxu0 0
    %8837 = vmatprep.subr.bf16.mxu0 0
    %8838 = vmatpush2.bf16.msra.mxu0 0
    %8839 = vmatprep.subr.bf16.mxu0 0
    %8840 = vmatpush2.bf16.msra.mxu0 0
    %8841 = vmatprep.subr.bf16.mxu0 0
    %8842 = vmatpush2.bf16.msra.mxu0 0
    %8843 = vmatprep.mubr.bf16.mxu0 0
    %8844 = vmatmul.mubr.bf16.gmra.mxu0 %v8806
    %v8845 = vpop.f32.mrf.mxu0
    %v8846 = vadd.f32 0.0, %v8845
    %v8847 = vpop.f32.mrf.mxu0
    %v8848 = vadd.f32 0.0, %v8847
    %v8849 = vpop.f32.mrf.mxu0
    %v8850 = vadd.f32 0.0, %v8849
    %v8851 = vpop.f32.mrf.mxu0
    %v8852 = vadd.f32 0.0, %v8851
    %8853 = vmatprep.mubr.bf16.mxu0 0
    %8854 = vmatmul.mubr.bf16.gmra.mxu0 %v8809
    %v8855 = vpop.f32.mrf.mxu0
    %v8856 = vadd.f32 0.0, %v8855
    %v8857 = vpop.f32.mrf.mxu0
    %v8858 = vadd.f32 0.0, %v8857
    %v8859 = vpop.f32.mrf.mxu0
    %v8860 = vadd.f32 0.0, %v8859
    %v8861 = vpop.f32.mrf.mxu0
    %v8862 = vadd.f32 0.0, %v8861
    %8863 = vdwg.mxu0
    %v8864 = vpack.c.bf16 %v8850, %v8846
    %v8865 = vpack.c.bf16 %v8860, %v8856
    %v8868 = vunpack.c.l.b16 %v8864
    %v8869 = vunpack.c.h.b16 %v8864
    %v8870 = vunpack.c.l.b16 %v8865
    %v8871 = vunpack.c.h.b16 %v8865
    %v8872 = vpack.c.b16 %v8868, %v8868
    %v8873 = vpack.c.b16 %v8869, %v8869
    %v8874 = vpack.c.b16 %v8870, %v8870
    %v8875 = vpack.c.b16 %v8871, %v8871
    %8880 = vst.msk [vmem:[#allocation8] sm:$0xf] %vm829, %v8872
    %8881 = vst.msk [vmem:[#allocation8 + $0x4] sm:$0xf] %vm829, %v8873
    %8882 = vst.msk [vmem:[#allocation8 + $0x8] sm:$0xf] %vm829, %v8874
    %8883 = vst.msk [vmem:[#allocation8 + $0xc] sm:$0xf] %vm829, %v8875
    %8884 = vrot.lane.b32.xlu0 %v8872, 96
    %v8885 = vpop.permute.xlu0 %8884
    %8886 = vrot.lane.b32.xlu0 %v8873, 96
    %v8887 = vpop.permute.xlu0 %8886
    %8888 = vrot.lane.b32.xlu0 %v8874, 96
    %v8889 = vpop.permute.xlu0 %8888
    %8890 = vrot.lane.b32.xlu0 %v8875, 96
    %v8891 = vpop.permute.xlu0 %8890
    %8896 = vst.msk [vmem:[#allocation8 + $0x10] sm:$0xf] %vm829, %v8885
    %8897 = vst.msk [vmem:[#allocation8 + $0x14] sm:$0xf] %vm829, %v8887
    %8898 = vst.msk [vmem:[#allocation8 + $0x18] sm:$0xf] %vm829, %v8889
    %8899 = vst.msk [vmem:[#allocation8 + $0x1c] sm:$0xf] %vm829, %v8891
    %8900 = vrot.lane.b32.xlu0 %v8872, 64
    %v8901 = vpop.permute.xlu0 %8900
    %8902 = vrot.lane.b32.xlu0 %v8873, 64
    %v8903 = vpop.permute.xlu0 %8902
    %8904 = vrot.lane.b32.xlu0 %v8874, 64
    %v8905 = vpop.permute.xlu0 %8904
    %8906 = vrot.lane.b32.xlu0 %v8875, 64
    %v8907 = vpop.permute.xlu0 %8906
    %8912 = vst.msk [vmem:[#allocation8 + $0x20] sm:$0xf] %vm829, %v8901
    %8913 = vst.msk [vmem:[#allocation8 + $0x24] sm:$0xf] %vm829, %v8903
    %8914 = vst.msk [vmem:[#allocation8 + $0x28] sm:$0xf] %vm829, %v8905
    %8915 = vst.msk [vmem:[#allocation8 + $0x2c] sm:$0xf] %vm829, %v8907
    %8916 = vrot.lane.b32.xlu0 %v8872, 32
    %v8917 = vpop.permute.xlu0 %8916
    %8918 = vrot.lane.b32.xlu0 %v8873, 32
    %v8919 = vpop.permute.xlu0 %8918
    %8920 = vrot.lane.b32.xlu0 %v8874, 32
    %v8921 = vpop.permute.xlu0 %8920
    %8922 = vrot.lane.b32.xlu0 %v8875, 32
    %v8923 = vpop.permute.xlu0 %8922
    %8928 = vst.msk [vmem:[#allocation8 + $0x30] sm:$0xf] %vm829, %v8917
    %8929 = vst.msk [vmem:[#allocation8 + $0x34] sm:$0xf] %vm829, %v8919
    %8930 = vst.msk [vmem:[#allocation8 + $0x38] sm:$0xf] %vm829, %v8921
    %8931 = vst.msk [vmem:[#allocation8 + $0x3c] sm:$0xf] %vm829, %v8923
    %v8932 = vpack.c.bf16 %v8852, %v8848
    %v8933 = vpack.c.bf16 %v8862, %v8858
    %v8936 = vunpack.c.l.b16 %v8932
    %v8937 = vunpack.c.h.b16 %v8932
    %v8938 = vunpack.c.l.b16 %v8933
    %v8939 = vunpack.c.h.b16 %v8933
    %v8940 = vpack.c.b16 %v8936, %v8936
    %v8941 = vpack.c.b16 %v8937, %v8937
    %v8942 = vpack.c.b16 %v8938, %v8938
    %v8943 = vpack.c.b16 %v8939, %v8939
    %8948 = vst.msk [vmem:[#allocation8 + $0x40] sm:$0xf] %vm829, %v8940
    %8949 = vst.msk [vmem:[#allocation8 + $0x44] sm:$0xf] %vm829, %v8941
    %8950 = vst.msk [vmem:[#allocation8 + $0x48] sm:$0xf] %vm829, %v8942
    %8951 = vst.msk [vmem:[#allocation8 + $0x4c] sm:$0xf] %vm829, %v8943
    %v8952 = vld [vmem:[%s51] sm:$0xff]
    %v8953 = vld [vmem:[%s51 + $0x8] sm:$0xff]
    %v8954 = vld [vmem:[%s51 + $0x10] sm:$0xff]
    %v8955 = vld [vmem:[%s51 + $0x18] sm:$0xff]
    %v8956 = vld [vmem:[%s51 + $0x20] sm:$0xff]
    %v8957 = vld [vmem:[%s51 + $0x28] sm:$0xff]
    %v8958 = vld [vmem:[%s51 + $0x30] sm:$0xff]
    %v8959 = vld [vmem:[%s51 + $0x38] sm:$0xff]
    %v8960 = vld [vmem:[#allocation8] sm:$0xf]
    %v8961 = vld [vmem:[#allocation8 + $0x4] sm:$0xf]
    %v8962 = vld [vmem:[#allocation8 + $0x8] sm:$0xf]
    %v8963 = vld [vmem:[#allocation8 + $0xc] sm:$0xf]
    %v8964 = vld [vmem:[#allocation8 + $0x10] sm:$0xf]
    %v8965 = vld [vmem:[#allocation8 + $0x14] sm:$0xf]
    %v8966 = vld [vmem:[#allocation8 + $0x18] sm:$0xf]
    %v8967 = vld [vmem:[#allocation8 + $0x1c] sm:$0xf]
    %v8968 = vld [vmem:[#allocation8 + $0x20] sm:$0xf]
    %v8969 = vld [vmem:[#allocation8 + $0x24] sm:$0xf]
    %v8970 = vld [vmem:[#allocation8 + $0x28] sm:$0xf]
    %v8971 = vld [vmem:[#allocation8 + $0x2c] sm:$0xf]
    %v8972 = vld [vmem:[#allocation8 + $0x30] sm:$0xf]
    %v8973 = vld [vmem:[#allocation8 + $0x34] sm:$0xf]
    %v8974 = vld [vmem:[#allocation8 + $0x38] sm:$0xf]
    %v8975 = vld [vmem:[#allocation8 + $0x3c] sm:$0xf]
    %v8976 = vld [vmem:[#allocation8 + $0x40] sm:$0xf]
    %v8977 = vld [vmem:[#allocation8 + $0x44] sm:$0xf]
    %v8978 = vld [vmem:[#allocation8 + $0x48] sm:$0xf]
    %v8979 = vld [vmem:[#allocation8 + $0x4c] sm:$0xf]
    %v8980 = vld [vmem:[%s49] sm:$0x1]
    %v8982 = vlaneseq
    %v8983 = vshrl.u32 %v8982, 7
    %v8984 = vsub.s32 0, %v8983
    %v8985 = vrot.slane %v8980, %v8984
    %v8995 = vunpack.c.l.b16 %v8952
    %v8996 = vunpack.c.h.b16 %v8952
    %v8997 = vunpack.c.l.b16 %v8953
    %v8998 = vunpack.c.h.b16 %v8953
    %v8999 = vunpack.c.l.b16 %v8954
    %v9000 = vunpack.c.h.b16 %v8954
    %v9001 = vunpack.c.l.b16 %v8955
    %v9002 = vunpack.c.h.b16 %v8955
    %v9003 = vunpack.c.l.b16 %v8956
    %v9004 = vunpack.c.h.b16 %v8956
    %v9005 = vunpack.c.l.b16 %v8957
    %v9006 = vunpack.c.h.b16 %v8957
    %v9007 = vunpack.c.l.b16 %v8958
    %v9008 = vunpack.c.h.b16 %v8958
    %v9009 = vunpack.c.l.b16 %v8959
    %v9010 = vunpack.c.h.b16 %v8959
    %v9011 = vpack.c.b16 %v8997, %v8995
    %v9012 = vpack.c.b16 %v8998, %v8996
    %v9013 = vpack.c.b16 %v9001, %v8999
    %v9014 = vpack.c.b16 %v9002, %v9000
    %v9015 = vpack.c.b16 %v9005, %v9003
    %v9016 = vpack.c.b16 %v9006, %v9004
    %v9017 = vpack.c.b16 %v9009, %v9007
    %v9018 = vpack.c.b16 %v9010, %v9008
    %v9043 = vunpack.c.l.b16 %v8960
    %v9044 = vunpack.c.l.b16 %v8961
    %v9045 = vunpack.c.l.b16 %v8962
    %v9046 = vunpack.c.l.b16 %v8963
    %v9047 = vunpack.c.l.b16 %v8964
    %v9048 = vunpack.c.l.b16 %v8965
    %v9049 = vunpack.c.l.b16 %v8966
    %v9050 = vunpack.c.l.b16 %v8967
    %v9051 = vunpack.c.l.b16 %v8968
    %v9052 = vunpack.c.l.b16 %v8969
    %v9053 = vunpack.c.l.b16 %v8970
    %v9054 = vunpack.c.l.b16 %v8971
    %v9055 = vunpack.c.l.b16 %v8972
    %v9056 = vunpack.c.l.b16 %v8973
    %v9057 = vunpack.c.l.b16 %v8974
    %v9058 = vunpack.c.l.b16 %v8975
    %v9059 = vunpack.c.l.b16 %v8976
    %v9060 = vunpack.c.l.b16 %v8977
    %v9061 = vunpack.c.l.b16 %v8978
    %v9062 = vunpack.c.l.b16 %v8979
    %v9063 = vpack.c.b16 %v9044, %v9043
    %v9064 = vpack.c.b16 %v9046, %v9045
    %v9065 = vpack.c.b16 %v9048, %v9047
    %v9066 = vpack.c.b16 %v9050, %v9049
    %v9067 = vpack.c.b16 %v9052, %v9051
    %v9068 = vpack.c.b16 %v9054, %v9053
    %v9069 = vpack.c.b16 %v9056, %v9055
    %v9070 = vpack.c.b16 %v9058, %v9057
    %v9071 = vpack.c.b16 %v9060, %v9059
    %v9072 = vpack.c.b16 %v9062, %v9061
    %v9084 = vsel %vm5128, %v9012, 0
    %v9087 = vsel %vm5128, %v9014, 0
    %v9090 = vsel %vm5128, %v9016, 0
    %v9093 = vsel %vm5128, %v9018, 0
    %9095 = vmatprep.subr.bf16.mxu0 0
    %9096 = vmatpush1.bf16.msra.mxu0 %v9070
    %9097 = vmatprep.subr.bf16.mxu0 0
    %9098 = vmatpush1.bf16.msra.mxu0 %v9069
    %9099 = vmatprep.subr.bf16.mxu0 0
    %9100 = vmatpush1.bf16.msra.mxu0 %v9068
    %9101 = vmatprep.subr.bf16.mxu0 0
    %9102 = vmatpush1.bf16.msra.mxu0 %v9067
    %9103 = vmatprep.subr.bf16.mxu0 0
    %9104 = vmatpush1.bf16.msra.mxu0 %v9066
    %9105 = vmatprep.subr.bf16.mxu0 0
    %9106 = vmatpush1.bf16.msra.mxu0 %v9065
    %9107 = vmatprep.subr.bf16.mxu0 0
    %9108 = vmatpush1.bf16.msra.mxu0 %v9064
    %9109 = vmatprep.subr.bf16.mxu0 0
    %9110 = vmatpush1.bf16.msra.mxu0 %v9063
    %9111 = vmatprep.subr.bf16.mxu0 0
    %9112 = vmatpush2.bf16.msra.mxu0 0
    %9113 = vmatprep.subr.bf16.mxu0 0
    %9114 = vmatpush2.bf16.msra.mxu0 0
    %9115 = vmatprep.subr.bf16.mxu0 0
    %9116 = vmatpush2.bf16.msra.mxu0 0
    %9117 = vmatprep.subr.bf16.mxu0 0
    %9118 = vmatpush2.bf16.msra.mxu0 0
    %9119 = vmatprep.subr.bf16.mxu0 0
    %9120 = vmatpush2.bf16.msra.mxu0 0
    %9121 = vmatprep.subr.bf16.mxu0 0
    %9122 = vmatpush2.bf16.msra.mxu0 0
    %9123 = vmatprep.subr.bf16.mxu0 0
    %9124 = vmatpush2.bf16.msra.mxu0 %v9072
    %9125 = vmatprep.subr.bf16.mxu0 0
    %9126 = vmatpush2.bf16.msra.mxu0 %v9071
    %9127 = vmatprep.mubr.bf16.mxu0 %v9084
    %9128 = vmatmul.mubr.bf16.gmra.mxu0 %v9011
    %v9129 = vpop.f32.mrf.mxu0
    %v9130 = vadd.f32 %v8985, %v9129
    %v9131 = vpop.f32.mrf.mxu0
    %v9132 = vpop.f32.mrf.mxu0
    %v9133 = vadd.f32 %v8985, %v9132
    %v9134 = vpop.f32.mrf.mxu0
    %9135 = vmatprep.mubr.bf16.mxu0 %v9087
    %9136 = vmatmul.mubr.bf16.gmra.mxu0 %v9013
    %v9137 = vpop.f32.mrf.mxu0
    %v9138 = vadd.f32 %v8985, %v9137
    %v9139 = vpop.f32.mrf.mxu0
    %v9140 = vpop.f32.mrf.mxu0
    %v9141 = vadd.f32 %v8985, %v9140
    %v9142 = vpop.f32.mrf.mxu0
    %9143 = vmatprep.mubr.bf16.mxu0 %v9090
    %9144 = vmatmul.mubr.bf16.gmra.mxu0 %v9015
    %v9145 = vpop.f32.mrf.mxu0
    %v9146 = vadd.f32 %v8985, %v9145
    %v9147 = vpop.f32.mrf.mxu0
    %v9148 = vpop.f32.mrf.mxu0
    %v9149 = vadd.f32 %v8985, %v9148
    %v9150 = vpop.f32.mrf.mxu0
    %9151 = vmatprep.mubr.bf16.mxu0 %v9093
    %9152 = vmatmul.mubr.bf16.gmra.mxu0 %v9017
    %v9153 = vpop.f32.mrf.mxu0
    %v9154 = vadd.f32 %v8985, %v9153
    %v9155 = vpop.f32.mrf.mxu0
    %v9156 = vpop.f32.mrf.mxu0
    %v9157 = vadd.f32 %v8985, %v9156
    %v9158 = vpop.f32.mrf.mxu0
    %9159 = vdwg.mxu0
    %vm9160 = vcmp.ge.f32.partialorder %v9130, 0.0
    %vm9161 = vcmp.ge.f32.partialorder %v9133, 0.0
    %vm9162 = vcmp.ge.f32.partialorder %v9138, 0.0
    %vm9163 = vcmp.ge.f32.partialorder %v9141, 0.0
    %vm9164 = vcmp.ge.f32.partialorder %v9146, 0.0
    %vm9165 = vcmp.ge.f32.partialorder %v9149, 0.0
    %vm9166 = vcmp.ge.f32.partialorder %v9154, 0.0
    %vm9167 = vcmp.ge.f32.partialorder %v9157, 0.0
    %v9168 = vmul.f32 %v9130, 0.1
    %v9169 = vmul.f32 %v9133, 0.1
    %v9170 = vmul.f32 %v9138, 0.1
    %v9171 = vmul.f32 %v9141, 0.1
    %v9172 = vmul.f32 %v9146, 0.1
    %v9173 = vmul.f32 %v9149, 0.1
    %v9174 = vmul.f32 %v9154, 0.1
    %v9175 = vmul.f32 %v9157, 0.1
    %v9176 = vsel %vm9160, %v9130, %v9168
    %v9177 = vsel %vm9161, %v9133, %v9169
    %v9178 = vsel %vm9162, %v9138, %v9170
    %v9179 = vsel %vm9163, %v9141, %v9171
    %v9180 = vsel %vm9164, %v9146, %v9172
    %v9181 = vsel %vm9165, %v9149, %v9173
    %v9182 = vsel %vm9166, %v9154, %v9174
    %v9183 = vsel %vm9167, %v9157, %v9175
    %v9184 = vld [vmem:[%s53] sm:$0xf]
    %v9185 = vld [vmem:[%s53 + $0x4] sm:$0xf]
    %v9186 = vld [vmem:[%s53 + $0x8] sm:$0xf]
    %v9187 = vld [vmem:[%s53 + $0xc] sm:$0xf]
    %v9188 = vld [vmem:[%s53 + $0x10] sm:$0xf]
    %v9189 = vld [vmem:[%s53 + $0x14] sm:$0xf]
    %v9190 = vld [vmem:[%s53 + $0x18] sm:$0xf]
    %v9191 = vld [vmem:[%s53 + $0x1c] sm:$0xf]
    %v9192 = vld [vmem:[%s53 + $0x20] sm:$0xf]
    %v9193 = vld [vmem:[%s53 + $0x24] sm:$0xf]
    %v9194 = vld [vmem:[%s53 + $0x28] sm:$0xf]
    %v9195 = vld [vmem:[%s53 + $0x2c] sm:$0xf]
    %v9196 = vld [vmem:[%s53 + $0x30] sm:$0xf]
    %v9197 = vld [vmem:[%s53 + $0x34] sm:$0xf]
    %v9198 = vld [vmem:[%s53 + $0x38] sm:$0xf]
    %v9199 = vld [vmem:[%s53 + $0x3c] sm:$0xf]
    %v9200 = vld [vmem:[%s53 + $0x40] sm:$0xf]
    %v9201 = vld [vmem:[%s53 + $0x44] sm:$0xf]
    %v9202 = vld [vmem:[%s53 + $0x48] sm:$0xf]
    %v9203 = vld [vmem:[%s53 + $0x4c] sm:$0xf]
    %v9204 = vld [vmem:[%s53 + $0x50] sm:$0xf]
    %v9205 = vld [vmem:[%s53 + $0x54] sm:$0xf]
    %v9206 = vld [vmem:[%s53 + $0x58] sm:$0xf]
    %v9207 = vld [vmem:[%s53 + $0x5c] sm:$0xf]
    %v9208 = vld [vmem:[%s53 + $0x60] sm:$0xf]
    %v9209 = vld [vmem:[%s53 + $0x64] sm:$0xf]
    %v9210 = vld [vmem:[%s53 + $0x68] sm:$0xf]
    %v9211 = vld [vmem:[%s53 + $0x6c] sm:$0xf]
    %v9212 = vld [vmem:[%s53 + $0x70] sm:$0xf]
    %v9213 = vld [vmem:[%s53 + $0x74] sm:$0xf]
    %v9214 = vld [vmem:[%s53 + $0x78] sm:$0xf]
    %v9215 = vld [vmem:[%s53 + $0x7c] sm:$0xf]
    %v9216 = vld [vmem:[%s53 + $0x80] sm:$0xf]
    %v9217 = vld [vmem:[%s53 + $0x84] sm:$0xf]
    %v9218 = vld [vmem:[%s53 + $0x88] sm:$0xf]
    %v9219 = vld [vmem:[%s53 + $0x8c] sm:$0xf]
    %v9220 = vld [vmem:[%s53 + $0x90] sm:$0xf]
    %v9221 = vld [vmem:[%s53 + $0x94] sm:$0xf]
    %v9222 = vld [vmem:[%s53 + $0x98] sm:$0xf]
    %v9223 = vld [vmem:[%s53 + $0x9c] sm:$0xf]
    %v9224 = vld [vmem:[%s53 + $0xa0] sm:$0xf]
    %v9225 = vld [vmem:[%s53 + $0xa4] sm:$0xf]
    %v9226 = vld [vmem:[%s53 + $0xa8] sm:$0xf]
    %v9227 = vld [vmem:[%s53 + $0xac] sm:$0xf]
    %v9228 = vld [vmem:[%s53 + $0xb0] sm:$0xf]
    %v9229 = vld [vmem:[%s53 + $0xb4] sm:$0xf]
    %v9230 = vld [vmem:[%s53 + $0xb8] sm:$0xf]
    %v9231 = vld [vmem:[%s53 + $0xbc] sm:$0xf]
    %v9232 = vld [vmem:[%s53 + $0xc0] sm:$0xf]
    %v9233 = vld [vmem:[%s53 + $0xc4] sm:$0xf]
    %v9234 = vld [vmem:[%s53 + $0xc8] sm:$0xf]
    %v9235 = vld [vmem:[%s53 + $0xcc] sm:$0xf]
    %v9236 = vld [vmem:[%s53 + $0xd0] sm:$0xf]
    %v9237 = vld [vmem:[%s53 + $0xd4] sm:$0xf]
    %v9238 = vld [vmem:[%s53 + $0xd8] sm:$0xf]
    %v9239 = vld [vmem:[%s53 + $0xdc] sm:$0xf]
    %v9240 = vld [vmem:[%s53 + $0xe0] sm:$0xf]
    %v9241 = vld [vmem:[%s53 + $0xe4] sm:$0xf]
    %v9242 = vld [vmem:[%s53 + $0xe8] sm:$0xf]
    %v9243 = vld [vmem:[%s53 + $0xec] sm:$0xf]
    %v9244 = vld [vmem:[%s53 + $0xf0] sm:$0xf]
    %v9245 = vld [vmem:[%s53 + $0xf4] sm:$0xf]
    %v9246 = vld [vmem:[%s53 + $0xf8] sm:$0xf]
    %v9247 = vld [vmem:[%s53 + $0xfc] sm:$0xf]
    %v9248 = vld [vmem:[%s53 + $0x100] sm:$0xf]
    %v9249 = vld [vmem:[%s53 + $0x104] sm:$0xf]
    %v9250 = vld [vmem:[%s53 + $0x108] sm:$0xf]
    %v9251 = vld [vmem:[%s53 + $0x10c] sm:$0xf]
    %v9252 = vld [vmem:[%s53 + $0x110] sm:$0xf]
    %v9253 = vld [vmem:[%s53 + $0x114] sm:$0xf]
    %v9254 = vld [vmem:[%s53 + $0x118] sm:$0xf]
    %v9255 = vld [vmem:[%s53 + $0x11c] sm:$0xf]
    %v9256 = vld [vmem:[%s53 + $0x120] sm:$0xf]
    %v9257 = vld [vmem:[%s53 + $0x124] sm:$0xf]
    %v9258 = vld [vmem:[%s53 + $0x128] sm:$0xf]
    %v9259 = vld [vmem:[%s53 + $0x12c] sm:$0xf]
    %v9260 = vld [vmem:[%s53 + $0x130] sm:$0xf]
    %v9261 = vld [vmem:[%s53 + $0x134] sm:$0xf]
    %v9262 = vld [vmem:[%s53 + $0x138] sm:$0xf]
    %v9263 = vld [vmem:[%s53 + $0x13c] sm:$0xf]
    %v9264 = vld [vmem:[%s53 + $0x140] sm:$0xf]
    %v9265 = vld [vmem:[%s53 + $0x144] sm:$0xf]
    %v9266 = vld [vmem:[%s53 + $0x148] sm:$0xf]
    %v9267 = vld [vmem:[%s53 + $0x14c] sm:$0xf]
    %v9268 = vld [vmem:[%s53 + $0x150] sm:$0xf]
    %v9269 = vld [vmem:[%s53 + $0x154] sm:$0xf]
    %v9270 = vld [vmem:[%s53 + $0x158] sm:$0xf]
    %v9271 = vld [vmem:[%s53 + $0x15c] sm:$0xf]
    %v9272 = vld [vmem:[%s53 + $0x160] sm:$0xf]
    %v9273 = vld [vmem:[%s53 + $0x164] sm:$0xf]
    %v9274 = vld [vmem:[%s53 + $0x168] sm:$0xf]
    %v9275 = vld [vmem:[%s53 + $0x16c] sm:$0xf]
    %v9276 = vld [vmem:[%s53 + $0x170] sm:$0xf]
    %v9277 = vld [vmem:[%s53 + $0x174] sm:$0xf]
    %v9278 = vld [vmem:[%s53 + $0x178] sm:$0xf]
    %v9279 = vld [vmem:[%s53 + $0x17c] sm:$0xf]
    %v9280 = vld [vmem:[%s53 + $0x180] sm:$0xf]
    %v9281 = vld [vmem:[%s53 + $0x184] sm:$0xf]
    %v9282 = vld [vmem:[%s53 + $0x188] sm:$0xf]
    %v9283 = vld [vmem:[%s53 + $0x18c] sm:$0xf]
    %v9284 = vld [vmem:[%s53 + $0x190] sm:$0xf]
    %v9285 = vld [vmem:[%s53 + $0x194] sm:$0xf]
    %v9286 = vld [vmem:[%s53 + $0x198] sm:$0xf]
    %v9287 = vld [vmem:[%s53 + $0x19c] sm:$0xf]
    %v9288 = vld [vmem:[%s53 + $0x1a0] sm:$0xf]
    %v9289 = vld [vmem:[%s53 + $0x1a4] sm:$0xf]
    %v9290 = vld [vmem:[%s53 + $0x1a8] sm:$0xf]
    %v9291 = vld [vmem:[%s53 + $0x1ac] sm:$0xf]
    %v9292 = vld [vmem:[%s53 + $0x1b0] sm:$0xf]
    %v9293 = vld [vmem:[%s53 + $0x1b4] sm:$0xf]
    %v9294 = vld [vmem:[%s53 + $0x1b8] sm:$0xf]
    %v9295 = vld [vmem:[%s53 + $0x1bc] sm:$0xf]
    %v9296 = vpack.c.bf16 %v9177, %v9176
    %v9297 = vpack.c.bf16 %v9179, %v9178
    %v9298 = vpack.c.bf16 %v9181, %v9180
    %v9299 = vpack.c.bf16 %v9183, %v9182
    %v9412 = vunpack.c.l.b16 %v9184
    %v9413 = vunpack.c.l.b16 %v9185
    %v9414 = vunpack.c.l.b16 %v9186
    %v9415 = vunpack.c.l.b16 %v9187
    %v9416 = vunpack.c.l.b16 %v9188
    %v9417 = vunpack.c.l.b16 %v9189
    %v9418 = vunpack.c.l.b16 %v9190
    %v9419 = vunpack.c.l.b16 %v9191
    %v9420 = vunpack.c.l.b16 %v9192
    %v9421 = vunpack.c.l.b16 %v9193
    %v9422 = vunpack.c.l.b16 %v9194
    %v9423 = vunpack.c.l.b16 %v9195
    %v9424 = vunpack.c.l.b16 %v9196
    %v9425 = vunpack.c.l.b16 %v9197
    %v9426 = vunpack.c.l.b16 %v9198
    %v9427 = vunpack.c.l.b16 %v9199
    %v9428 = vunpack.c.l.b16 %v9200
    %v9429 = vunpack.c.l.b16 %v9201
    %v9430 = vunpack.c.l.b16 %v9202
    %v9431 = vunpack.c.l.b16 %v9203
    %v9432 = vunpack.c.l.b16 %v9204
    %v9433 = vunpack.c.l.b16 %v9205
    %v9434 = vunpack.c.l.b16 %v9206
    %v9435 = vunpack.c.l.b16 %v9207
    %v9436 = vunpack.c.l.b16 %v9208
    %v9437 = vunpack.c.l.b16 %v9209
    %v9438 = vunpack.c.l.b16 %v9210
    %v9439 = vunpack.c.l.b16 %v9211
    %v9440 = vunpack.c.l.b16 %v9212
    %v9441 = vunpack.c.l.b16 %v9213
    %v9442 = vunpack.c.l.b16 %v9214
    %v9443 = vunpack.c.l.b16 %v9215
    %v9444 = vunpack.c.l.b16 %v9216
    %v9445 = vunpack.c.l.b16 %v9217
    %v9446 = vunpack.c.l.b16 %v9218
    %v9447 = vunpack.c.l.b16 %v9219
    %v9448 = vunpack.c.l.b16 %v9220
    %v9449 = vunpack.c.l.b16 %v9221
    %v9450 = vunpack.c.l.b16 %v9222
    %v9451 = vunpack.c.l.b16 %v9223
    %v9452 = vunpack.c.l.b16 %v9224
    %v9453 = vunpack.c.l.b16 %v9225
    %v9454 = vunpack.c.l.b16 %v9226
    %v9455 = vunpack.c.l.b16 %v9227
    %v9456 = vunpack.c.l.b16 %v9228
    %v9457 = vunpack.c.l.b16 %v9229
    %v9458 = vunpack.c.l.b16 %v9230
    %v9459 = vunpack.c.l.b16 %v9231
    %v9460 = vunpack.c.l.b16 %v9232
    %v9461 = vunpack.c.l.b16 %v9233
    %v9462 = vunpack.c.l.b16 %v9234
    %v9463 = vunpack.c.l.b16 %v9235
    %v9464 = vunpack.c.l.b16 %v9236
    %v9465 = vunpack.c.l.b16 %v9237
    %v9466 = vunpack.c.l.b16 %v9238
    %v9467 = vunpack.c.l.b16 %v9239
    %v9468 = vunpack.c.l.b16 %v9240
    %v9469 = vunpack.c.l.b16 %v9241
    %v9470 = vunpack.c.l.b16 %v9242
    %v9471 = vunpack.c.l.b16 %v9243
    %v9472 = vunpack.c.l.b16 %v9244
    %v9473 = vunpack.c.l.b16 %v9245
    %v9474 = vunpack.c.l.b16 %v9246
    %v9475 = vunpack.c.l.b16 %v9247
    %v9476 = vunpack.c.l.b16 %v9248
    %v9477 = vunpack.c.l.b16 %v9249
    %v9478 = vunpack.c.l.b16 %v9250
    %v9479 = vunpack.c.l.b16 %v9251
    %v9480 = vunpack.c.l.b16 %v9252
    %v9481 = vunpack.c.l.b16 %v9253
    %v9482 = vunpack.c.l.b16 %v9254
    %v9483 = vunpack.c.l.b16 %v9255
    %v9484 = vunpack.c.l.b16 %v9256
    %v9485 = vunpack.c.l.b16 %v9257
    %v9486 = vunpack.c.l.b16 %v9258
    %v9487 = vunpack.c.l.b16 %v9259
    %v9488 = vunpack.c.l.b16 %v9260
    %v9489 = vunpack.c.l.b16 %v9261
    %v9490 = vunpack.c.l.b16 %v9262
    %v9491 = vunpack.c.l.b16 %v9263
    %v9492 = vunpack.c.l.b16 %v9264
    %v9493 = vunpack.c.l.b16 %v9265
    %v9494 = vunpack.c.l.b16 %v9266
    %v9495 = vunpack.c.l.b16 %v9267
    %v9496 = vunpack.c.l.b16 %v9268
    %v9497 = vunpack.c.l.b16 %v9269
    %v9498 = vunpack.c.l.b16 %v9270
    %v9499 = vunpack.c.l.b16 %v9271
    %v9500 = vunpack.c.l.b16 %v9272
    %v9501 = vunpack.c.l.b16 %v9273
    %v9502 = vunpack.c.l.b16 %v9274
    %v9503 = vunpack.c.l.b16 %v9275
    %v9504 = vunpack.c.l.b16 %v9276
    %v9505 = vunpack.c.l.b16 %v9277
    %v9506 = vunpack.c.l.b16 %v9278
    %v9507 = vunpack.c.l.b16 %v9279
    %v9508 = vunpack.c.l.b16 %v9280
    %v9509 = vunpack.c.l.b16 %v9281
    %v9510 = vunpack.c.l.b16 %v9282
    %v9511 = vunpack.c.l.b16 %v9283
    %v9512 = vunpack.c.l.b16 %v9284
    %v9513 = vunpack.c.l.b16 %v9285
    %v9514 = vunpack.c.l.b16 %v9286
    %v9515 = vunpack.c.l.b16 %v9287
    %v9516 = vunpack.c.l.b16 %v9288
    %v9517 = vunpack.c.l.b16 %v9289
    %v9518 = vunpack.c.l.b16 %v9290
    %v9519 = vunpack.c.l.b16 %v9291
    %v9520 = vunpack.c.l.b16 %v9292
    %v9521 = vunpack.c.l.b16 %v9293
    %v9522 = vunpack.c.l.b16 %v9294
    %v9523 = vunpack.c.l.b16 %v9295
    %v9524 = vpack.c.b16 %v9413, %v9412
    %v9525 = vpack.c.b16 %v9415, %v9414
    %v9526 = vpack.c.b16 %v9417, %v9416
    %v9527 = vpack.c.b16 %v9419, %v9418
    %v9528 = vpack.c.b16 %v9421, %v9420
    %v9529 = vpack.c.b16 %v9423, %v9422
    %v9530 = vpack.c.b16 %v9425, %v9424
    %v9531 = vpack.c.b16 %v9427, %v9426
    %v9532 = vpack.c.b16 %v9429, %v9428
    %v9533 = vpack.c.b16 %v9431, %v9430
    %v9534 = vpack.c.b16 %v9433, %v9432
    %v9535 = vpack.c.b16 %v9435, %v9434
    %v9536 = vpack.c.b16 %v9437, %v9436
    %v9537 = vpack.c.b16 %v9439, %v9438
    %v9538 = vpack.c.b16 %v9441, %v9440
    %v9539 = vpack.c.b16 %v9443, %v9442
    %v9540 = vpack.c.b16 %v9445, %v9444
    %v9541 = vpack.c.b16 %v9447, %v9446
    %v9542 = vpack.c.b16 %v9449, %v9448
    %v9543 = vpack.c.b16 %v9451, %v9450
    %v9544 = vpack.c.b16 %v9453, %v9452
    %v9545 = vpack.c.b16 %v9455, %v9454
    %v9546 = vpack.c.b16 %v9457, %v9456
    %v9547 = vpack.c.b16 %v9459, %v9458
    %v9548 = vpack.c.b16 %v9461, %v9460
    %v9549 = vpack.c.b16 %v9463, %v9462
    %v9550 = vpack.c.b16 %v9465, %v9464
    %v9551 = vpack.c.b16 %v9467, %v9466
    %v9552 = vpack.c.b16 %v9469, %v9468
    %v9553 = vpack.c.b16 %v9471, %v9470
    %v9554 = vpack.c.b16 %v9473, %v9472
    %v9555 = vpack.c.b16 %v9475, %v9474
    %v9556 = vpack.c.b16 %v9477, %v9476
    %v9557 = vpack.c.b16 %v9479, %v9478
    %v9558 = vpack.c.b16 %v9481, %v9480
    %v9559 = vpack.c.b16 %v9483, %v9482
    %v9560 = vpack.c.b16 %v9485, %v9484
    %v9561 = vpack.c.b16 %v9487, %v9486
    %v9562 = vpack.c.b16 %v9489, %v9488
    %v9563 = vpack.c.b16 %v9491, %v9490
    %v9564 = vpack.c.b16 %v9493, %v9492
    %v9565 = vpack.c.b16 %v9495, %v9494
    %v9566 = vpack.c.b16 %v9497, %v9496
    %v9567 = vpack.c.b16 %v9499, %v9498
    %v9568 = vpack.c.b16 %v9501, %v9500
    %v9569 = vpack.c.b16 %v9503, %v9502
    %v9570 = vpack.c.b16 %v9505, %v9504
    %v9571 = vpack.c.b16 %v9507, %v9506
    %v9572 = vpack.c.b16 %v9509, %v9508
    %v9573 = vpack.c.b16 %v9511, %v9510
    %v9574 = vpack.c.b16 %v9513, %v9512
    %v9575 = vpack.c.b16 %v9515, %v9514
    %v9576 = vpack.c.b16 %v9517, %v9516
    %v9577 = vpack.c.b16 %v9519, %v9518
    %v9578 = vpack.c.b16 %v9521, %v9520
    %v9579 = vpack.c.b16 %v9523, %v9522
    %v9581 = vsel %vm6490, %v9524, 0
    %v9584 = vsel %vm6490, %v9525, 0
    %v9587 = vsel %vm6490, %v9526, 0
    %v9590 = vsel %vm6490, %v9527, 0
    %v9593 = vsel %vm6490, %v9528, 0
    %v9596 = vsel %vm6490, %v9529, 0
    %v9599 = vsel %vm6490, %v9530, 0
    %v9602 = vsel %vm6490, %v9531, 0
    %v9605 = vsel %vm6490, %v9532, 0
    %v9608 = vsel %vm6490, %v9533, 0
    %v9611 = vsel %vm6490, %v9534, 0
    %v9614 = vsel %vm6490, %v9535, 0
    %v9617 = vsel %vm6490, %v9536, 0
    %v9620 = vsel %vm6490, %v9537, 0
    %v9623 = vsel %vm6490, %v9538, 0
    %v9626 = vsel %vm6490, %v9539, 0
    %v9629 = vsel %vm6490, %v9540, 0
    %v9632 = vsel %vm6490, %v9541, 0
    %v9635 = vsel %vm6490, %v9542, 0
    %v9638 = vsel %vm6490, %v9543, 0
    %v9641 = vsel %vm6490, %v9544, 0
    %v9644 = vsel %vm6490, %v9545, 0
    %v9647 = vsel %vm6490, %v9546, 0
    %v9650 = vsel %vm6490, %v9547, 0
    %v9653 = vsel %vm6490, %v9548, 0
    %v9656 = vsel %vm6490, %v9549, 0
    %v9659 = vsel %vm6490, %v9550, 0
    %v9662 = vsel %vm6490, %v9551, 0
    %v9665 = vsel %vm6490, %v9552, 0
    %v9668 = vsel %vm6490, %v9553, 0
    %v9671 = vsel %vm6490, %v9554, 0
    %v9674 = vsel %vm6490, %v9555, 0
    %v9677 = vsel %vm6490, %v9556, 0
    %v9680 = vsel %vm6490, %v9557, 0
    %v9683 = vsel %vm6490, %v9558, 0
    %v9686 = vsel %vm6490, %v9559, 0
    %v9689 = vsel %vm6490, %v9560, 0
    %v9692 = vsel %vm6490, %v9561, 0
    %v9695 = vsel %vm6490, %v9562, 0
    %v9698 = vsel %vm6490, %v9563, 0
    %v9701 = vsel %vm6490, %v9564, 0
    %v9704 = vsel %vm6490, %v9565, 0
    %v9707 = vsel %vm6490, %v9566, 0
    %v9710 = vsel %vm6490, %v9567, 0
    %v9713 = vsel %vm6490, %v9568, 0
    %v9716 = vsel %vm6490, %v9569, 0
    %v9719 = vsel %vm6490, %v9570, 0
    %v9722 = vsel %vm6490, %v9571, 0
    %v9725 = vsel %vm6490, %v9572, 0
    %v9728 = vsel %vm6490, %v9573, 0
    %v9731 = vsel %vm6490, %v9574, 0
    %v9734 = vsel %vm6490, %v9575, 0
    %v9737 = vsel %vm6490, %v9576, 0
    %v9740 = vsel %vm6490, %v9577, 0
    %v9743 = vsel %vm6490, %v9578, 0
    %v9746 = vsel %vm6490, %v9579, 0
    %9748 = vmatprep.subr.bf16.mxu0 0
    %9749 = vmatpush1.bf16.msra.mxu0 0
    %9750 = vmatprep.subr.bf16.mxu0 0
    %9751 = vmatpush1.bf16.msra.mxu0 0
    %9752 = vmatprep.subr.bf16.mxu0 0
    %9753 = vmatpush1.bf16.msra.mxu0 0
    %9754 = vmatprep.subr.bf16.mxu0 0
    %9755 = vmatpush1.bf16.msra.mxu0 0
    %9756 = vmatprep.subr.bf16.mxu0 0
    %9757 = vmatpush1.bf16.msra.mxu0 %v9299
    %9758 = vmatprep.subr.bf16.mxu0 0
    %9759 = vmatpush1.bf16.msra.mxu0 %v9298
    %9760 = vmatprep.subr.bf16.mxu0 0
    %9761 = vmatpush1.bf16.msra.mxu0 %v9297
    %9762 = vmatprep.subr.bf16.mxu0 0
    %9763 = vmatpush1.bf16.msra.mxu0 %v9296
    %9764 = vmatprep.subr.bf16.mxu0 0
    %9765 = vmatpush2.bf16.msra.mxu0 0
    %9766 = vmatprep.subr.bf16.mxu0 0
    %9767 = vmatpush2.bf16.msra.mxu0 0
    %9768 = vmatprep.subr.bf16.mxu0 0
    %9769 = vmatpush2.bf16.msra.mxu0 0
    %9770 = vmatprep.subr.bf16.mxu0 0
    %9771 = vmatpush2.bf16.msra.mxu0 0
    %9772 = vmatprep.subr.bf16.mxu0 0
    %9773 = vmatpush2.bf16.msra.mxu0 0
    %9774 = vmatprep.subr.bf16.mxu0 0
    %9775 = vmatpush2.bf16.msra.mxu0 0
    %9776 = vmatprep.subr.bf16.mxu0 0
    %9777 = vmatpush2.bf16.msra.mxu0 0
    %9778 = vmatprep.subr.bf16.mxu0 0
    %9779 = vmatpush2.bf16.msra.mxu0 0
    %9780 = vmatprep.mubr.bf16.mxu0 0
    %9781 = vmatmul.mubr.bf16.gmra.mxu0 %v9581
    %v9782 = vpop.f32.mrf.mxu0
    %v9783 = vadd.f32 0.0, %v9782
    %v9784 = vpop.f32.mrf.mxu0
    %v9785 = vpop.f32.mrf.mxu0
    %v9786 = vadd.f32 0.0, %v9785
    %v9787 = vpop.f32.mrf.mxu0
    %9788 = vmatprep.mubr.bf16.mxu0 0
    %9789 = vmatmul.mubr.bf16.gmra.mxu0 %v9584
    %v9790 = vpop.f32.mrf.mxu0
    %v9791 = vadd.f32 0.0, %v9790
    %v9792 = vpop.f32.mrf.mxu0
    %v9793 = vpop.f32.mrf.mxu0
    %v9794 = vadd.f32 0.0, %v9793
    %v9795 = vpop.f32.mrf.mxu0
    %9796 = vmatprep.mubr.bf16.mxu0 0
    %9797 = vmatmul.mubr.bf16.gmra.mxu0 %v9587
    %v9798 = vpop.f32.mrf.mxu0
    %v9799 = vadd.f32 0.0, %v9798
    %v9800 = vpop.f32.mrf.mxu0
    %v9801 = vpop.f32.mrf.mxu0
    %v9802 = vadd.f32 0.0, %v9801
    %v9803 = vpop.f32.mrf.mxu0
    %9804 = vmatprep.mubr.bf16.mxu0 0
    %9805 = vmatmul.mubr.bf16.gmra.mxu0 %v9590
    %v9806 = vpop.f32.mrf.mxu0
    %v9807 = vadd.f32 0.0, %v9806
    %v9808 = vpop.f32.mrf.mxu0
    %v9809 = vpop.f32.mrf.mxu0
    %v9810 = vadd.f32 0.0, %v9809
    %v9811 = vpop.f32.mrf.mxu0
    %9812 = vmatprep.mubr.bf16.mxu0 0
    %9813 = vmatmul.mubr.bf16.gmra.mxu0 %v9593
    %v9814 = vpop.f32.mrf.mxu0
    %v9815 = vadd.f32 0.0, %v9814
    %v9816 = vpop.f32.mrf.mxu0
    %v9817 = vpop.f32.mrf.mxu0
    %v9818 = vadd.f32 0.0, %v9817
    %v9819 = vpop.f32.mrf.mxu0
    %9820 = vmatprep.mubr.bf16.mxu0 0
    %9821 = vmatmul.mubr.bf16.gmra.mxu0 %v9596
    %v9822 = vpop.f32.mrf.mxu0
    %v9823 = vadd.f32 0.0, %v9822
    %v9824 = vpop.f32.mrf.mxu0
    %v9825 = vpop.f32.mrf.mxu0
    %v9826 = vadd.f32 0.0, %v9825
    %v9827 = vpop.f32.mrf.mxu0
    %9828 = vmatprep.mubr.bf16.mxu0 0
    %9829 = vmatmul.mubr.bf16.gmra.mxu0 %v9599
    %v9830 = vpop.f32.mrf.mxu0
    %v9831 = vadd.f32 0.0, %v9830
    %v9832 = vpop.f32.mrf.mxu0
    %v9833 = vpop.f32.mrf.mxu0
    %v9834 = vadd.f32 0.0, %v9833
    %v9835 = vpop.f32.mrf.mxu0
    %9836 = vmatprep.mubr.bf16.mxu0 0
    %9837 = vmatmul.mubr.bf16.gmra.mxu0 %v9602
    %v9838 = vpop.f32.mrf.mxu0
    %v9839 = vadd.f32 0.0, %v9838
    %v9840 = vpop.f32.mrf.mxu0
    %v9841 = vpop.f32.mrf.mxu0
    %v9842 = vadd.f32 0.0, %v9841
    %v9843 = vpop.f32.mrf.mxu0
    %9844 = vmatprep.mubr.bf16.mxu0 0
    %9845 = vmatmul.mubr.bf16.gmra.mxu0 %v9605
    %v9846 = vpop.f32.mrf.mxu0
    %v9847 = vadd.f32 0.0, %v9846
    %v9848 = vpop.f32.mrf.mxu0
    %v9849 = vpop.f32.mrf.mxu0
    %v9850 = vadd.f32 0.0, %v9849
    %v9851 = vpop.f32.mrf.mxu0
    %9852 = vmatprep.mubr.bf16.mxu0 0
    %9853 = vmatmul.mubr.bf16.gmra.mxu0 %v9608
    %v9854 = vpop.f32.mrf.mxu0
    %v9855 = vadd.f32 0.0, %v9854
    %v9856 = vpop.f32.mrf.mxu0
    %v9857 = vpop.f32.mrf.mxu0
    %v9858 = vadd.f32 0.0, %v9857
    %v9859 = vpop.f32.mrf.mxu0
    %9860 = vmatprep.mubr.bf16.mxu0 0
    %9861 = vmatmul.mubr.bf16.gmra.mxu0 %v9611
    %v9862 = vpop.f32.mrf.mxu0
    %v9863 = vadd.f32 0.0, %v9862
    %v9864 = vpop.f32.mrf.mxu0
    %v9865 = vpop.f32.mrf.mxu0
    %v9866 = vadd.f32 0.0, %v9865
    %v9867 = vpop.f32.mrf.mxu0
    %9868 = vmatprep.mubr.bf16.mxu0 0
    %9869 = vmatmul.mubr.bf16.gmra.mxu0 %v9614
    %v9870 = vpop.f32.mrf.mxu0
    %v9871 = vadd.f32 0.0, %v9870
    %v9872 = vpop.f32.mrf.mxu0
    %v9873 = vpop.f32.mrf.mxu0
    %v9874 = vadd.f32 0.0, %v9873
    %v9875 = vpop.f32.mrf.mxu0
    %9876 = vmatprep.mubr.bf16.mxu0 0
    %9877 = vmatmul.mubr.bf16.gmra.mxu0 %v9617
    %v9878 = vpop.f32.mrf.mxu0
    %v9879 = vadd.f32 0.0, %v9878
    %v9880 = vpop.f32.mrf.mxu0
    %v9881 = vpop.f32.mrf.mxu0
    %v9882 = vadd.f32 0.0, %v9881
    %v9883 = vpop.f32.mrf.mxu0
    %9884 = vmatprep.mubr.bf16.mxu0 0
    %9885 = vmatmul.mubr.bf16.gmra.mxu0 %v9620
    %v9886 = vpop.f32.mrf.mxu0
    %v9887 = vadd.f32 0.0, %v9886
    %v9888 = vpop.f32.mrf.mxu0
    %v9889 = vpop.f32.mrf.mxu0
    %v9890 = vadd.f32 0.0, %v9889
    %v9891 = vpop.f32.mrf.mxu0
    %9892 = vmatprep.mubr.bf16.mxu0 0
    %9893 = vmatmul.mubr.bf16.gmra.mxu0 %v9623
    %v9894 = vpop.f32.mrf.mxu0
    %v9895 = vadd.f32 0.0, %v9894
    %v9896 = vpop.f32.mrf.mxu0
    %v9897 = vpop.f32.mrf.mxu0
    %v9898 = vadd.f32 0.0, %v9897
    %v9899 = vpop.f32.mrf.mxu0
    %9900 = vmatprep.mubr.bf16.mxu0 0
    %9901 = vmatmul.mubr.bf16.gmra.mxu0 %v9626
    %v9902 = vpop.f32.mrf.mxu0
    %v9903 = vadd.f32 0.0, %v9902
    %v9904 = vpop.f32.mrf.mxu0
    %v9905 = vpop.f32.mrf.mxu0
    %v9906 = vadd.f32 0.0, %v9905
    %v9907 = vpop.f32.mrf.mxu0
    %9908 = vmatprep.mubr.bf16.mxu0 0
    %9909 = vmatmul.mubr.bf16.gmra.mxu0 %v9629
    %v9910 = vpop.f32.mrf.mxu0
    %v9911 = vadd.f32 0.0, %v9910
    %v9912 = vpop.f32.mrf.mxu0
    %v9913 = vpop.f32.mrf.mxu0
    %v9914 = vadd.f32 0.0, %v9913
    %v9915 = vpop.f32.mrf.mxu0
    %9916 = vmatprep.mubr.bf16.mxu0 0
    %9917 = vmatmul.mubr.bf16.gmra.mxu0 %v9632
    %v9918 = vpop.f32.mrf.mxu0
    %v9919 = vadd.f32 0.0, %v9918
    %v9920 = vpop.f32.mrf.mxu0
    %v9921 = vpop.f32.mrf.mxu0
    %v9922 = vadd.f32 0.0, %v9921
    %v9923 = vpop.f32.mrf.mxu0
    %9924 = vmatprep.mubr.bf16.mxu0 0
    %9925 = vmatmul.mubr.bf16.gmra.mxu0 %v9635
    %v9926 = vpop.f32.mrf.mxu0
    %v9927 = vadd.f32 0.0, %v9926
    %v9928 = vpop.f32.mrf.mxu0
    %v9929 = vpop.f32.mrf.mxu0
    %v9930 = vadd.f32 0.0, %v9929
    %v9931 = vpop.f32.mrf.mxu0
    %9932 = vmatprep.mubr.bf16.mxu0 0
    %9933 = vmatmul.mubr.bf16.gmra.mxu0 %v9638
    %v9934 = vpop.f32.mrf.mxu0
    %v9935 = vadd.f32 0.0, %v9934
    %v9936 = vpop.f32.mrf.mxu0
    %v9937 = vpop.f32.mrf.mxu0
    %v9938 = vadd.f32 0.0, %v9937
    %v9939 = vpop.f32.mrf.mxu0
    %9940 = vmatprep.mubr.bf16.mxu0 0
    %9941 = vmatmul.mubr.bf16.gmra.mxu0 %v9641
    %v9942 = vpop.f32.mrf.mxu0
    %v9943 = vadd.f32 0.0, %v9942
    %v9944 = vpop.f32.mrf.mxu0
    %v9945 = vpop.f32.mrf.mxu0
    %v9946 = vadd.f32 0.0, %v9945
    %v9947 = vpop.f32.mrf.mxu0
    %9948 = vmatprep.mubr.bf16.mxu0 0
    %9949 = vmatmul.mubr.bf16.gmra.mxu0 %v9644
    %v9950 = vpop.f32.mrf.mxu0
    %v9951 = vadd.f32 0.0, %v9950
    %v9952 = vpop.f32.mrf.mxu0
    %v9953 = vpop.f32.mrf.mxu0
    %v9954 = vadd.f32 0.0, %v9953
    %v9955 = vpop.f32.mrf.mxu0
    %9956 = vmatprep.mubr.bf16.mxu0 0
    %9957 = vmatmul.mubr.bf16.gmra.mxu0 %v9647
    %v9958 = vpop.f32.mrf.mxu0
    %v9959 = vadd.f32 0.0, %v9958
    %v9960 = vpop.f32.mrf.mxu0
    %v9961 = vpop.f32.mrf.mxu0
    %v9962 = vadd.f32 0.0, %v9961
    %v9963 = vpop.f32.mrf.mxu0
    %9964 = vmatprep.mubr.bf16.mxu0 0
    %9965 = vmatmul.mubr.bf16.gmra.mxu0 %v9650
    %v9966 = vpop.f32.mrf.mxu0
    %v9967 = vadd.f32 0.0, %v9966
    %v9968 = vpop.f32.mrf.mxu0
    %v9969 = vpop.f32.mrf.mxu0
    %v9970 = vadd.f32 0.0, %v9969
    %v9971 = vpop.f32.mrf.mxu0
    %9972 = vmatprep.mubr.bf16.mxu0 0
    %9973 = vmatmul.mubr.bf16.gmra.mxu0 %v9653
    %v9974 = vpop.f32.mrf.mxu0
    %v9975 = vadd.f32 0.0, %v9974
    %v9976 = vpop.f32.mrf.mxu0
    %v9977 = vpop.f32.mrf.mxu0
    %v9978 = vadd.f32 0.0, %v9977
    %v9979 = vpop.f32.mrf.mxu0
    %9980 = vmatprep.mubr.bf16.mxu0 0
    %9981 = vmatmul.mubr.bf16.gmra.mxu0 %v9656
    %v9982 = vpop.f32.mrf.mxu0
    %v9983 = vadd.f32 0.0, %v9982
    %v9984 = vpop.f32.mrf.mxu0
    %v9985 = vpop.f32.mrf.mxu0
    %v9986 = vadd.f32 0.0, %v9985
    %v9987 = vpop.f32.mrf.mxu0
    %9988 = vmatprep.mubr.bf16.mxu0 0
    %9989 = vmatmul.mubr.bf16.gmra.mxu0 %v9659
    %v9990 = vpop.f32.mrf.mxu0
    %v9991 = vadd.f32 0.0, %v9990
    %v9992 = vpop.f32.mrf.mxu0
    %v9993 = vpop.f32.mrf.mxu0
    %v9994 = vadd.f32 0.0, %v9993
    %v9995 = vpop.f32.mrf.mxu0
    %9996 = vmatprep.mubr.bf16.mxu0 0
    %9997 = vmatmul.mubr.bf16.gmra.mxu0 %v9662
    %v9998 = vpop.f32.mrf.mxu0
    %v9999 = vadd.f32 0.0, %v9998
    %v10000 = vpop.f32.mrf.mxu0
    %v10001 = vpop.f32.mrf.mxu0
    %v10002 = vadd.f32 0.0, %v10001
    %v10003 = vpop.f32.mrf.mxu0
    %10004 = vmatprep.mubr.bf16.mxu0 0
    %10005 = vmatmul.mubr.bf16.gmra.mxu0 %v9665
    %v10006 = vpop.f32.mrf.mxu0
    %v10007 = vadd.f32 0.0, %v10006
    %v10008 = vpop.f32.mrf.mxu0
    %v10009 = vpop.f32.mrf.mxu0
    %v10010 = vadd.f32 0.0, %v10009
    %v10011 = vpop.f32.mrf.mxu0
    %10012 = vmatprep.mubr.bf16.mxu0 0
    %10013 = vmatmul.mubr.bf16.gmra.mxu0 %v9668
    %v10014 = vpop.f32.mrf.mxu0
    %v10015 = vadd.f32 0.0, %v10014
    %v10016 = vpop.f32.mrf.mxu0
    %v10017 = vpop.f32.mrf.mxu0
    %v10018 = vadd.f32 0.0, %v10017
    %v10019 = vpop.f32.mrf.mxu0
    %10020 = vmatprep.mubr.bf16.mxu0 0
    %10021 = vmatmul.mubr.bf16.gmra.mxu0 %v9671
    %v10022 = vpop.f32.mrf.mxu0
    %v10023 = vadd.f32 0.0, %v10022
    %v10024 = vpop.f32.mrf.mxu0
    %v10025 = vpop.f32.mrf.mxu0
    %v10026 = vadd.f32 0.0, %v10025
    %v10027 = vpop.f32.mrf.mxu0
    %10028 = vmatprep.mubr.bf16.mxu0 0
    %10029 = vmatmul.mubr.bf16.gmra.mxu0 %v9674
    %v10030 = vpop.f32.mrf.mxu0
    %v10031 = vadd.f32 0.0, %v10030
    %v10032 = vpop.f32.mrf.mxu0
    %v10033 = vpop.f32.mrf.mxu0
    %v10034 = vadd.f32 0.0, %v10033
    %v10035 = vpop.f32.mrf.mxu0
    %10036 = vmatprep.mubr.bf16.mxu0 0
    %10037 = vmatmul.mubr.bf16.gmra.mxu0 %v9677
    %v10038 = vpop.f32.mrf.mxu0
    %v10039 = vadd.f32 0.0, %v10038
    %v10040 = vpop.f32.mrf.mxu0
    %v10041 = vpop.f32.mrf.mxu0
    %v10042 = vadd.f32 0.0, %v10041
    %v10043 = vpop.f32.mrf.mxu0
    %10044 = vmatprep.mubr.bf16.mxu0 0
    %10045 = vmatmul.mubr.bf16.gmra.mxu0 %v9680
    %v10046 = vpop.f32.mrf.mxu0
    %v10047 = vadd.f32 0.0, %v10046
    %v10048 = vpop.f32.mrf.mxu0
    %v10049 = vpop.f32.mrf.mxu0
    %v10050 = vadd.f32 0.0, %v10049
    %v10051 = vpop.f32.mrf.mxu0
    %10052 = vmatprep.mubr.bf16.mxu0 0
    %10053 = vmatmul.mubr.bf16.gmra.mxu0 %v9683
    %v10054 = vpop.f32.mrf.mxu0
    %v10055 = vadd.f32 0.0, %v10054
    %v10056 = vpop.f32.mrf.mxu0
    %v10057 = vpop.f32.mrf.mxu0
    %v10058 = vadd.f32 0.0, %v10057
    %v10059 = vpop.f32.mrf.mxu0
    %10060 = vmatprep.mubr.bf16.mxu0 0
    %10061 = vmatmul.mubr.bf16.gmra.mxu0 %v9686
    %v10062 = vpop.f32.mrf.mxu0
    %v10063 = vadd.f32 0.0, %v10062
    %v10064 = vpop.f32.mrf.mxu0
    %v10065 = vpop.f32.mrf.mxu0
    %v10066 = vadd.f32 0.0, %v10065
    %v10067 = vpop.f32.mrf.mxu0
    %10068 = vmatprep.mubr.bf16.mxu0 0
    %10069 = vmatmul.mubr.bf16.gmra.mxu0 %v9689
    %v10070 = vpop.f32.mrf.mxu0
    %v10071 = vadd.f32 0.0, %v10070
    %v10072 = vpop.f32.mrf.mxu0
    %v10073 = vpop.f32.mrf.mxu0
    %v10074 = vadd.f32 0.0, %v10073
    %v10075 = vpop.f32.mrf.mxu0
    %10076 = vmatprep.mubr.bf16.mxu0 0
    %10077 = vmatmul.mubr.bf16.gmra.mxu0 %v9692
    %v10078 = vpop.f32.mrf.mxu0
    %v10079 = vadd.f32 0.0, %v10078
    %v10080 = vpop.f32.mrf.mxu0
    %v10081 = vpop.f32.mrf.mxu0
    %v10082 = vadd.f32 0.0, %v10081
    %v10083 = vpop.f32.mrf.mxu0
    %10084 = vmatprep.mubr.bf16.mxu0 0
    %10085 = vmatmul.mubr.bf16.gmra.mxu0 %v9695
    %v10086 = vpop.f32.mrf.mxu0
    %v10087 = vadd.f32 0.0, %v10086
    %v10088 = vpop.f32.mrf.mxu0
    %v10089 = vpop.f32.mrf.mxu0
    %v10090 = vadd.f32 0.0, %v10089
    %v10091 = vpop.f32.mrf.mxu0
    %10092 = vmatprep.mubr.bf16.mxu0 0
    %10093 = vmatmul.mubr.bf16.gmra.mxu0 %v9698
    %v10094 = vpop.f32.mrf.mxu0
    %v10095 = vadd.f32 0.0, %v10094
    %v10096 = vpop.f32.mrf.mxu0
    %v10097 = vpop.f32.mrf.mxu0
    %v10098 = vadd.f32 0.0, %v10097
    %v10099 = vpop.f32.mrf.mxu0
    %10100 = vmatprep.mubr.bf16.mxu0 0
    %10101 = vmatmul.mubr.bf16.gmra.mxu0 %v9701
    %v10102 = vpop.f32.mrf.mxu0
    %v10103 = vadd.f32 0.0, %v10102
    %v10104 = vpop.f32.mrf.mxu0
    %v10105 = vpop.f32.mrf.mxu0
    %v10106 = vadd.f32 0.0, %v10105
    %v10107 = vpop.f32.mrf.mxu0
    %10108 = vmatprep.mubr.bf16.mxu0 0
    %10109 = vmatmul.mubr.bf16.gmra.mxu0 %v9704
    %v10110 = vpop.f32.mrf.mxu0
    %v10111 = vadd.f32 0.0, %v10110
    %v10112 = vpop.f32.mrf.mxu0
    %v10113 = vpop.f32.mrf.mxu0
    %v10114 = vadd.f32 0.0, %v10113
    %v10115 = vpop.f32.mrf.mxu0
    %10116 = vmatprep.mubr.bf16.mxu0 0
    %10117 = vmatmul.mubr.bf16.gmra.mxu0 %v9707
    %v10118 = vpop.f32.mrf.mxu0
    %v10119 = vadd.f32 0.0, %v10118
    %v10120 = vpop.f32.mrf.mxu0
    %v10121 = vpop.f32.mrf.mxu0
    %v10122 = vadd.f32 0.0, %v10121
    %v10123 = vpop.f32.mrf.mxu0
    %10124 = vmatprep.mubr.bf16.mxu0 0
    %10125 = vmatmul.mubr.bf16.gmra.mxu0 %v9710
    %v10126 = vpop.f32.mrf.mxu0
    %v10127 = vadd.f32 0.0, %v10126
    %v10128 = vpop.f32.mrf.mxu0
    %v10129 = vpop.f32.mrf.mxu0
    %v10130 = vadd.f32 0.0, %v10129
    %v10131 = vpop.f32.mrf.mxu0
    %10132 = vmatprep.mubr.bf16.mxu0 0
    %10133 = vmatmul.mubr.bf16.gmra.mxu0 %v9713
    %v10134 = vpop.f32.mrf.mxu0
    %v10135 = vadd.f32 0.0, %v10134
    %v10136 = vpop.f32.mrf.mxu0
    %v10137 = vpop.f32.mrf.mxu0
    %v10138 = vadd.f32 0.0, %v10137
    %v10139 = vpop.f32.mrf.mxu0
    %10140 = vmatprep.mubr.bf16.mxu0 0
    %10141 = vmatmul.mubr.bf16.gmra.mxu0 %v9716
    %v10142 = vpop.f32.mrf.mxu0
    %v10143 = vadd.f32 0.0, %v10142
    %v10144 = vpop.f32.mrf.mxu0
    %v10145 = vpop.f32.mrf.mxu0
    %v10146 = vadd.f32 0.0, %v10145
    %v10147 = vpop.f32.mrf.mxu0
    %10148 = vmatprep.mubr.bf16.mxu0 0
    %10149 = vmatmul.mubr.bf16.gmra.mxu0 %v9719
    %v10150 = vpop.f32.mrf.mxu0
    %v10151 = vadd.f32 0.0, %v10150
    %v10152 = vpop.f32.mrf.mxu0
    %v10153 = vpop.f32.mrf.mxu0
    %v10154 = vadd.f32 0.0, %v10153
    %v10155 = vpop.f32.mrf.mxu0
    %10156 = vmatprep.mubr.bf16.mxu0 0
    %10157 = vmatmul.mubr.bf16.gmra.mxu0 %v9722
    %v10158 = vpop.f32.mrf.mxu0
    %v10159 = vadd.f32 0.0, %v10158
    %v10160 = vpop.f32.mrf.mxu0
    %v10161 = vpop.f32.mrf.mxu0
    %v10162 = vadd.f32 0.0, %v10161
    %v10163 = vpop.f32.mrf.mxu0
    %10164 = vmatprep.mubr.bf16.mxu0 0
    %10165 = vmatmul.mubr.bf16.gmra.mxu0 %v9725
    %v10166 = vpop.f32.mrf.mxu0
    %v10167 = vadd.f32 0.0, %v10166
    %v10168 = vpop.f32.mrf.mxu0
    %v10169 = vpop.f32.mrf.mxu0
    %v10170 = vadd.f32 0.0, %v10169
    %v10171 = vpop.f32.mrf.mxu0
    %10172 = vmatprep.mubr.bf16.mxu0 0
    %10173 = vmatmul.mubr.bf16.gmra.mxu0 %v9728
    %v10174 = vpop.f32.mrf.mxu0
    %v10175 = vadd.f32 0.0, %v10174
    %v10176 = vpop.f32.mrf.mxu0
    %v10177 = vpop.f32.mrf.mxu0
    %v10178 = vadd.f32 0.0, %v10177
    %v10179 = vpop.f32.mrf.mxu0
    %10180 = vmatprep.mubr.bf16.mxu0 0
    %10181 = vmatmul.mubr.bf16.gmra.mxu0 %v9731
    %v10182 = vpop.f32.mrf.mxu0
    %v10183 = vadd.f32 0.0, %v10182
    %v10184 = vpop.f32.mrf.mxu0
    %v10185 = vpop.f32.mrf.mxu0
    %v10186 = vadd.f32 0.0, %v10185
    %v10187 = vpop.f32.mrf.mxu0
    %10188 = vmatprep.mubr.bf16.mxu0 0
    %10189 = vmatmul.mubr.bf16.gmra.mxu0 %v9734
    %v10190 = vpop.f32.mrf.mxu0
    %v10191 = vadd.f32 0.0, %v10190
    %v10192 = vpop.f32.mrf.mxu0
    %v10193 = vpop.f32.mrf.mxu0
    %v10194 = vadd.f32 0.0, %v10193
    %v10195 = vpop.f32.mrf.mxu0
    %10196 = vmatprep.mubr.bf16.mxu0 0
    %10197 = vmatmul.mubr.bf16.gmra.mxu0 %v9737
    %v10198 = vpop.f32.mrf.mxu0
    %v10199 = vadd.f32 0.0, %v10198
    %v10200 = vpop.f32.mrf.mxu0
    %v10201 = vpop.f32.mrf.mxu0
    %v10202 = vadd.f32 0.0, %v10201
    %v10203 = vpop.f32.mrf.mxu0
    %10204 = vmatprep.mubr.bf16.mxu0 0
    %10205 = vmatmul.mubr.bf16.gmra.mxu0 %v9740
    %v10206 = vpop.f32.mrf.mxu0
    %v10207 = vadd.f32 0.0, %v10206
    %v10208 = vpop.f32.mrf.mxu0
    %v10209 = vpop.f32.mrf.mxu0
    %v10210 = vadd.f32 0.0, %v10209
    %v10211 = vpop.f32.mrf.mxu0
    %10212 = vmatprep.mubr.bf16.mxu0 0
    %10213 = vmatmul.mubr.bf16.gmra.mxu0 %v9743
    %v10214 = vpop.f32.mrf.mxu0
    %v10215 = vadd.f32 0.0, %v10214
    %v10216 = vpop.f32.mrf.mxu0
    %v10217 = vpop.f32.mrf.mxu0
    %v10218 = vadd.f32 0.0, %v10217
    %v10219 = vpop.f32.mrf.mxu0
    %10220 = vmatprep.mubr.bf16.mxu0 0
    %10221 = vmatmul.mubr.bf16.gmra.mxu0 %v9746
    %v10222 = vpop.f32.mrf.mxu0
    %v10223 = vadd.f32 0.0, %v10222
    %v10224 = vpop.f32.mrf.mxu0
    %v10225 = vpop.f32.mrf.mxu0
    %v10226 = vadd.f32 0.0, %v10225
    %v10227 = vpop.f32.mrf.mxu0
    %10228 = vdwg.mxu0
    %v10229 = vpack.c.bf16 %v9786, %v9783
    %v10230 = vpack.c.bf16 %v9794, %v9791
    %v10231 = vpack.c.bf16 %v9802, %v9799
    %v10232 = vpack.c.bf16 %v9810, %v9807
    %v10233 = vpack.c.bf16 %v9818, %v9815
    %v10234 = vpack.c.bf16 %v9826, %v9823
    %v10235 = vpack.c.bf16 %v9834, %v9831
    %v10236 = vpack.c.bf16 %v9842, %v9839
    %v10245 = vunpack.c.l.b16 %v10229
    %v10246 = vunpack.c.h.b16 %v10229
    %v10247 = vunpack.c.l.b16 %v10230
    %v10248 = vunpack.c.h.b16 %v10230
    %v10249 = vunpack.c.l.b16 %v10231
    %v10250 = vunpack.c.h.b16 %v10231
    %v10251 = vunpack.c.l.b16 %v10232
    %v10252 = vunpack.c.h.b16 %v10232
    %v10253 = vunpack.c.l.b16 %v10233
    %v10254 = vunpack.c.h.b16 %v10233
    %v10255 = vunpack.c.l.b16 %v10234
    %v10256 = vunpack.c.h.b16 %v10234
    %v10257 = vunpack.c.l.b16 %v10235
    %v10258 = vunpack.c.h.b16 %v10235
    %v10259 = vunpack.c.l.b16 %v10236
    %v10260 = vunpack.c.h.b16 %v10236
    %v10261 = vpack.c.b16 %v10245, %v10245
    %v10262 = vpack.c.b16 %v10246, %v10246
    %v10263 = vpack.c.b16 %v10247, %v10247
    %v10264 = vpack.c.b16 %v10248, %v10248
    %v10265 = vpack.c.b16 %v10249, %v10249
    %v10266 = vpack.c.b16 %v10250, %v10250
    %v10267 = vpack.c.b16 %v10251, %v10251
    %v10268 = vpack.c.b16 %v10252, %v10252
    %v10269 = vpack.c.b16 %v10253, %v10253
    %v10270 = vpack.c.b16 %v10254, %v10254
    %v10271 = vpack.c.b16 %v10255, %v10255
    %v10272 = vpack.c.b16 %v10256, %v10256
    %v10273 = vpack.c.b16 %v10257, %v10257
    %v10274 = vpack.c.b16 %v10258, %v10258
    %v10275 = vpack.c.b16 %v10259, %v10259
    %v10276 = vpack.c.b16 %v10260, %v10260
    %10293 = vst.msk [vmem:[#allocation9] sm:$0xf] %vm829, %v10261
    %10294 = vst.msk [vmem:[#allocation9 + $0x8] sm:$0xf] %vm829, %v10262
    %10295 = vst.msk [vmem:[#allocation9 + $0x10] sm:$0xf] %vm829, %v10263
    %10296 = vst.msk [vmem:[#allocation9 + $0x18] sm:$0xf] %vm829, %v10264
    %10297 = vst.msk [vmem:[#allocation9 + $0x20] sm:$0xf] %vm829, %v10265
    %10298 = vst.msk [vmem:[#allocation9 + $0x28] sm:$0xf] %vm829, %v10266
    %10299 = vst.msk [vmem:[#allocation9 + $0x30] sm:$0xf] %vm829, %v10267
    %10300 = vst.msk [vmem:[#allocation9 + $0x38] sm:$0xf] %vm829, %v10268
    %10301 = vst.msk [vmem:[#allocation9 + $0x40] sm:$0xf] %vm829, %v10269
    %10302 = vst.msk [vmem:[#allocation9 + $0x48] sm:$0xf] %vm829, %v10270
    %10303 = vst.msk [vmem:[#allocation9 + $0x50] sm:$0xf] %vm829, %v10271
    %10304 = vst.msk [vmem:[#allocation9 + $0x58] sm:$0xf] %vm829, %v10272
    %10305 = vst.msk [vmem:[#allocation9 + $0x60] sm:$0xf] %vm829, %v10273
    %10306 = vst.msk [vmem:[#allocation9 + $0x68] sm:$0xf] %vm829, %v10274
    %10307 = vst.msk [vmem:[#allocation9 + $0x70] sm:$0xf] %vm829, %v10275
    %10308 = vst.msk [vmem:[#allocation9 + $0x78] sm:$0xf] %vm829, %v10276
    %v10309 = vpack.c.bf16 %v9850, %v9847
    %v10310 = vpack.c.bf16 %v9858, %v9855
    %v10311 = vpack.c.bf16 %v9866, %v9863
    %v10312 = vpack.c.bf16 %v9874, %v9871
    %v10313 = vpack.c.bf16 %v9882, %v9879
    %v10314 = vpack.c.bf16 %v9890, %v9887
    %v10315 = vpack.c.bf16 %v9898, %v9895
    %v10316 = vpack.c.bf16 %v9906, %v9903
    %v10325 = vunpack.c.l.b16 %v10309
    %v10326 = vunpack.c.h.b16 %v10309
    %v10327 = vunpack.c.l.b16 %v10310
    %v10328 = vunpack.c.h.b16 %v10310
    %v10329 = vunpack.c.l.b16 %v10311
    %v10330 = vunpack.c.h.b16 %v10311
    %v10331 = vunpack.c.l.b16 %v10312
    %v10332 = vunpack.c.h.b16 %v10312
    %v10333 = vunpack.c.l.b16 %v10313
    %v10334 = vunpack.c.h.b16 %v10313
    %v10335 = vunpack.c.l.b16 %v10314
    %v10336 = vunpack.c.h.b16 %v10314
    %v10337 = vunpack.c.l.b16 %v10315
    %v10338 = vunpack.c.h.b16 %v10315
    %v10339 = vunpack.c.l.b16 %v10316
    %v10340 = vunpack.c.h.b16 %v10316
    %v10341 = vpack.c.b16 %v10325, %v10325
    %v10342 = vpack.c.b16 %v10326, %v10326
    %v10343 = vpack.c.b16 %v10327, %v10327
    %v10344 = vpack.c.b16 %v10328, %v10328
    %v10345 = vpack.c.b16 %v10329, %v10329
    %v10346 = vpack.c.b16 %v10330, %v10330
    %v10347 = vpack.c.b16 %v10331, %v10331
    %v10348 = vpack.c.b16 %v10332, %v10332
    %v10349 = vpack.c.b16 %v10333, %v10333
    %v10350 = vpack.c.b16 %v10334, %v10334
    %v10351 = vpack.c.b16 %v10335, %v10335
    %v10352 = vpack.c.b16 %v10336, %v10336
    %v10353 = vpack.c.b16 %v10337, %v10337
    %v10354 = vpack.c.b16 %v10338, %v10338
    %v10355 = vpack.c.b16 %v10339, %v10339
    %v10356 = vpack.c.b16 %v10340, %v10340
    %10357 = vrot.lane.b32.xlu0 %v10341, 32
    %v10358 = vpop.permute.xlu0 %10357
    %10359 = vrot.lane.b32.xlu0 %v10342, 32
    %v10360 = vpop.permute.xlu0 %10359
    %10361 = vrot.lane.b32.xlu0 %v10343, 32
    %v10362 = vpop.permute.xlu0 %10361
    %10363 = vrot.lane.b32.xlu0 %v10344, 32
    %v10364 = vpop.permute.xlu0 %10363
    %10365 = vrot.lane.b32.xlu0 %v10345, 32
    %v10366 = vpop.permute.xlu0 %10365
    %10367 = vrot.lane.b32.xlu0 %v10346, 32
    %v10368 = vpop.permute.xlu0 %10367
    %10369 = vrot.lane.b32.xlu0 %v10347, 32
    %v10370 = vpop.permute.xlu0 %10369
    %10371 = vrot.lane.b32.xlu0 %v10348, 32
    %v10372 = vpop.permute.xlu0 %10371
    %10373 = vrot.lane.b32.xlu0 %v10349, 32
    %v10374 = vpop.permute.xlu0 %10373
    %10375 = vrot.lane.b32.xlu0 %v10350, 32
    %v10376 = vpop.permute.xlu0 %10375
    %10377 = vrot.lane.b32.xlu0 %v10351, 32
    %v10378 = vpop.permute.xlu0 %10377
    %10379 = vrot.lane.b32.xlu0 %v10352, 32
    %v10380 = vpop.permute.xlu0 %10379
    %10381 = vrot.lane.b32.xlu0 %v10353, 32
    %v10382 = vpop.permute.xlu0 %10381
    %10383 = vrot.lane.b32.xlu0 %v10354, 32
    %v10384 = vpop.permute.xlu0 %10383
    %10385 = vrot.lane.b32.xlu0 %v10355, 32
    %v10386 = vpop.permute.xlu0 %10385
    %10387 = vrot.lane.b32.xlu0 %v10356, 32
    %v10388 = vpop.permute.xlu0 %10387
    %vm10405 = vcmask 519424
    %10406 = vst.msk [vmem:[#allocation9] sm:$0xf] %vm10405, %v10358
    %10407 = vst.msk [vmem:[#allocation9 + $0x8] sm:$0xf] %vm10405, %v10360
    %10408 = vst.msk [vmem:[#allocation9 + $0x10] sm:$0xf] %vm10405, %v10362
    %10409 = vst.msk [vmem:[#allocation9 + $0x18] sm:$0xf] %vm10405, %v10364
    %10410 = vst.msk [vmem:[#allocation9 + $0x20] sm:$0xf] %vm10405, %v10366
    %10411 = vst.msk [vmem:[#allocation9 + $0x28] sm:$0xf] %vm10405, %v10368
    %10412 = vst.msk [vmem:[#allocation9 + $0x30] sm:$0xf] %vm10405, %v10370
    %10413 = vst.msk [vmem:[#allocation9 + $0x38] sm:$0xf] %vm10405, %v10372
    %10414 = vst.msk [vmem:[#allocation9 + $0x40] sm:$0xf] %vm10405, %v10374
    %10415 = vst.msk [vmem:[#allocation9 + $0x48] sm:$0xf] %vm10405, %v10376
    %10416 = vst.msk [vmem:[#allocation9 + $0x50] sm:$0xf] %vm10405, %v10378
    %10417 = vst.msk [vmem:[#allocation9 + $0x58] sm:$0xf] %vm10405, %v10380
    %10418 = vst.msk [vmem:[#allocation9 + $0x60] sm:$0xf] %vm10405, %v10382
    %10419 = vst.msk [vmem:[#allocation9 + $0x68] sm:$0xf] %vm10405, %v10384
    %10420 = vst.msk [vmem:[#allocation9 + $0x70] sm:$0xf] %vm10405, %v10386
    %10421 = vst.msk [vmem:[#allocation9 + $0x78] sm:$0xf] %vm10405, %v10388
    %v10422 = vpack.c.bf16 %v9914, %v9911
    %v10423 = vpack.c.bf16 %v9922, %v9919
    %v10424 = vpack.c.bf16 %v9930, %v9927
    %v10425 = vpack.c.bf16 %v9938, %v9935
    %v10426 = vpack.c.bf16 %v9946, %v9943
    %v10427 = vpack.c.bf16 %v9954, %v9951
    %v10428 = vpack.c.bf16 %v9962, %v9959
    %v10429 = vpack.c.bf16 %v9970, %v9967
    %v10438 = vunpack.c.l.b16 %v10422
    %v10439 = vunpack.c.h.b16 %v10422
    %v10440 = vunpack.c.l.b16 %v10423
    %v10441 = vunpack.c.h.b16 %v10423
    %v10442 = vunpack.c.l.b16 %v10424
    %v10443 = vunpack.c.h.b16 %v10424
    %v10444 = vunpack.c.l.b16 %v10425
    %v10445 = vunpack.c.h.b16 %v10425
    %v10446 = vunpack.c.l.b16 %v10426
    %v10447 = vunpack.c.h.b16 %v10426
    %v10448 = vunpack.c.l.b16 %v10427
    %v10449 = vunpack.c.h.b16 %v10427
    %v10450 = vunpack.c.l.b16 %v10428
    %v10451 = vunpack.c.h.b16 %v10428
    %v10452 = vunpack.c.l.b16 %v10429
    %v10453 = vunpack.c.h.b16 %v10429
    %v10454 = vpack.c.b16 %v10438, %v10438
    %v10455 = vpack.c.b16 %v10439, %v10439
    %v10456 = vpack.c.b16 %v10440, %v10440
    %v10457 = vpack.c.b16 %v10441, %v10441
    %v10458 = vpack.c.b16 %v10442, %v10442
    %v10459 = vpack.c.b16 %v10443, %v10443
    %v10460 = vpack.c.b16 %v10444, %v10444
    %v10461 = vpack.c.b16 %v10445, %v10445
    %v10462 = vpack.c.b16 %v10446, %v10446
    %v10463 = vpack.c.b16 %v10447, %v10447
    %v10464 = vpack.c.b16 %v10448, %v10448
    %v10465 = vpack.c.b16 %v10449, %v10449
    %v10466 = vpack.c.b16 %v10450, %v10450
    %v10467 = vpack.c.b16 %v10451, %v10451
    %v10468 = vpack.c.b16 %v10452, %v10452
    %v10469 = vpack.c.b16 %v10453, %v10453
    %10470 = vrot.lane.b32.xlu0 %v10454, 64
    %v10471 = vpop.permute.xlu0 %10470
    %10472 = vrot.lane.b32.xlu0 %v10455, 64
    %v10473 = vpop.permute.xlu0 %10472
    %10474 = vrot.lane.b32.xlu0 %v10456, 64
    %v10475 = vpop.permute.xlu0 %10474
    %10476 = vrot.lane.b32.xlu0 %v10457, 64
    %v10477 = vpop.permute.xlu0 %10476
    %10478 = vrot.lane.b32.xlu0 %v10458, 64
    %v10479 = vpop.permute.xlu0 %10478
    %10480 = vrot.lane.b32.xlu0 %v10459, 64
    %v10481 = vpop.permute.xlu0 %10480
    %10482 = vrot.lane.b32.xlu0 %v10460, 64
    %v10483 = vpop.permute.xlu0 %10482
    %10484 = vrot.lane.b32.xlu0 %v10461, 64
    %v10485 = vpop.permute.xlu0 %10484
    %10486 = vrot.lane.b32.xlu0 %v10462, 64
    %v10487 = vpop.permute.xlu0 %10486
    %10488 = vrot.lane.b32.xlu0 %v10463, 64
    %v10489 = vpop.permute.xlu0 %10488
    %10490 = vrot.lane.b32.xlu0 %v10464, 64
    %v10491 = vpop.permute.xlu0 %10490
    %10492 = vrot.lane.b32.xlu0 %v10465, 64
    %v10493 = vpop.permute.xlu0 %10492
    %10494 = vrot.lane.b32.xlu0 %v10466, 64
    %v10495 = vpop.permute.xlu0 %10494
    %10496 = vrot.lane.b32.xlu0 %v10467, 64
    %v10497 = vpop.permute.xlu0 %10496
    %10498 = vrot.lane.b32.xlu0 %v10468, 64
    %v10499 = vpop.permute.xlu0 %10498
    %10500 = vrot.lane.b32.xlu0 %v10469, 64
    %v10501 = vpop.permute.xlu0 %10500
    %vm10518 = vcmask 781824
    %10519 = vst.msk [vmem:[#allocation9] sm:$0xf] %vm10518, %v10471
    %10520 = vst.msk [vmem:[#allocation9 + $0x8] sm:$0xf] %vm10518, %v10473
    %10521 = vst.msk [vmem:[#allocation9 + $0x10] sm:$0xf] %vm10518, %v10475
    %10522 = vst.msk [vmem:[#allocation9 + $0x18] sm:$0xf] %vm10518, %v10477
    %10523 = vst.msk [vmem:[#allocation9 + $0x20] sm:$0xf] %vm10518, %v10479
    %10524 = vst.msk [vmem:[#allocation9 + $0x28] sm:$0xf] %vm10518, %v10481
    %10525 = vst.msk [vmem:[#allocation9 + $0x30] sm:$0xf] %vm10518, %v10483
    %10526 = vst.msk [vmem:[#allocation9 + $0x38] sm:$0xf] %vm10518, %v10485
    %10527 = vst.msk [vmem:[#allocation9 + $0x40] sm:$0xf] %vm10518, %v10487
    %10528 = vst.msk [vmem:[#allocation9 + $0x48] sm:$0xf] %vm10518, %v10489
    %10529 = vst.msk [vmem:[#allocation9 + $0x50] sm:$0xf] %vm10518, %v10491
    %10530 = vst.msk [vmem:[#allocation9 + $0x58] sm:$0xf] %vm10518, %v10493
    %10531 = vst.msk [vmem:[#allocation9 + $0x60] sm:$0xf] %vm10518, %v10495
    %10532 = vst.msk [vmem:[#allocation9 + $0x68] sm:$0xf] %vm10518, %v10497
    %10533 = vst.msk [vmem:[#allocation9 + $0x70] sm:$0xf] %vm10518, %v10499
    %10534 = vst.msk [vmem:[#allocation9 + $0x78] sm:$0xf] %vm10518, %v10501
    %v10535 = vpack.c.bf16 %v9978, %v9975
    %v10536 = vpack.c.bf16 %v9986, %v9983
    %v10537 = vpack.c.bf16 %v9994, %v9991
    %v10538 = vpack.c.bf16 %v10002, %v9999
    %v10539 = vpack.c.bf16 %v10010, %v10007
    %v10540 = vpack.c.bf16 %v10018, %v10015
    %v10541 = vpack.c.bf16 %v10026, %v10023
    %v10542 = vpack.c.bf16 %v10034, %v10031
    %v10551 = vunpack.c.l.b16 %v10535
    %v10552 = vunpack.c.h.b16 %v10535
    %v10553 = vunpack.c.l.b16 %v10536
    %v10554 = vunpack.c.h.b16 %v10536
    %v10555 = vunpack.c.l.b16 %v10537
    %v10556 = vunpack.c.h.b16 %v10537
    %v10557 = vunpack.c.l.b16 %v10538
    %v10558 = vunpack.c.h.b16 %v10538
    %v10559 = vunpack.c.l.b16 %v10539
    %v10560 = vunpack.c.h.b16 %v10539
    %v10561 = vunpack.c.l.b16 %v10540
    %v10562 = vunpack.c.h.b16 %v10540
    %v10563 = vunpack.c.l.b16 %v10541
    %v10564 = vunpack.c.h.b16 %v10541
    %v10565 = vunpack.c.l.b16 %v10542
    %v10566 = vunpack.c.h.b16 %v10542
    %v10567 = vpack.c.b16 %v10551, %v10551
    %v10568 = vpack.c.b16 %v10552, %v10552
    %v10569 = vpack.c.b16 %v10553, %v10553
    %v10570 = vpack.c.b16 %v10554, %v10554
    %v10571 = vpack.c.b16 %v10555, %v10555
    %v10572 = vpack.c.b16 %v10556, %v10556
    %v10573 = vpack.c.b16 %v10557, %v10557
    %v10574 = vpack.c.b16 %v10558, %v10558
    %v10575 = vpack.c.b16 %v10559, %v10559
    %v10576 = vpack.c.b16 %v10560, %v10560
    %v10577 = vpack.c.b16 %v10561, %v10561
    %v10578 = vpack.c.b16 %v10562, %v10562
    %v10579 = vpack.c.b16 %v10563, %v10563
    %v10580 = vpack.c.b16 %v10564, %v10564
    %v10581 = vpack.c.b16 %v10565, %v10565
    %v10582 = vpack.c.b16 %v10566, %v10566
    %10583 = vrot.lane.b32.xlu0 %v10567, 96
    %v10584 = vpop.permute.xlu0 %10583
    %10585 = vrot.lane.b32.xlu0 %v10568, 96
    %v10586 = vpop.permute.xlu0 %10585
    %10587 = vrot.lane.b32.xlu0 %v10569, 96
    %v10588 = vpop.permute.xlu0 %10587
    %10589 = vrot.lane.b32.xlu0 %v10570, 96
    %v10590 = vpop.permute.xlu0 %10589
    %10591 = vrot.lane.b32.xlu0 %v10571, 96
    %v10592 = vpop.permute.xlu0 %10591
    %10593 = vrot.lane.b32.xlu0 %v10572, 96
    %v10594 = vpop.permute.xlu0 %10593
    %10595 = vrot.lane.b32.xlu0 %v10573, 96
    %v10596 = vpop.permute.xlu0 %10595
    %10597 = vrot.lane.b32.xlu0 %v10574, 96
    %v10598 = vpop.permute.xlu0 %10597
    %10599 = vrot.lane.b32.xlu0 %v10575, 96
    %v10600 = vpop.permute.xlu0 %10599
    %10601 = vrot.lane.b32.xlu0 %v10576, 96
    %v10602 = vpop.permute.xlu0 %10601
    %10603 = vrot.lane.b32.xlu0 %v10577, 96
    %v10604 = vpop.permute.xlu0 %10603
    %10605 = vrot.lane.b32.xlu0 %v10578, 96
    %v10606 = vpop.permute.xlu0 %10605
    %10607 = vrot.lane.b32.xlu0 %v10579, 96
    %v10608 = vpop.permute.xlu0 %10607
    %10609 = vrot.lane.b32.xlu0 %v10580, 96
    %v10610 = vpop.permute.xlu0 %10609
    %10611 = vrot.lane.b32.xlu0 %v10581, 96
    %v10612 = vpop.permute.xlu0 %10611
    %10613 = vrot.lane.b32.xlu0 %v10582, 96
    %v10614 = vpop.permute.xlu0 %10613
    %vm10631 = vcmask 1044224
    %10632 = vst.msk [vmem:[#allocation9] sm:$0xf] %vm10631, %v10584
    %10633 = vst.msk [vmem:[#allocation9 + $0x8] sm:$0xf] %vm10631, %v10586
    %10634 = vst.msk [vmem:[#allocation9 + $0x10] sm:$0xf] %vm10631, %v10588
    %10635 = vst.msk [vmem:[#allocation9 + $0x18] sm:$0xf] %vm10631, %v10590
    %10636 = vst.msk [vmem:[#allocation9 + $0x20] sm:$0xf] %vm10631, %v10592
    %10637 = vst.msk [vmem:[#allocation9 + $0x28] sm:$0xf] %vm10631, %v10594
    %10638 = vst.msk [vmem:[#allocation9 + $0x30] sm:$0xf] %vm10631, %v10596
    %10639 = vst.msk [vmem:[#allocation9 + $0x38] sm:$0xf] %vm10631, %v10598
    %10640 = vst.msk [vmem:[#allocation9 + $0x40] sm:$0xf] %vm10631, %v10600
    %10641 = vst.msk [vmem:[#allocation9 + $0x48] sm:$0xf] %vm10631, %v10602
    %10642 = vst.msk [vmem:[#allocation9 + $0x50] sm:$0xf] %vm10631, %v10604
    %10643 = vst.msk [vmem:[#allocation9 + $0x58] sm:$0xf] %vm10631, %v10606
    %10644 = vst.msk [vmem:[#allocation9 + $0x60] sm:$0xf] %vm10631, %v10608
    %10645 = vst.msk [vmem:[#allocation9 + $0x68] sm:$0xf] %vm10631, %v10610
    %10646 = vst.msk [vmem:[#allocation9 + $0x70] sm:$0xf] %vm10631, %v10612
    %10647 = vst.msk [vmem:[#allocation9 + $0x78] sm:$0xf] %vm10631, %v10614
    %v10648 = vpack.c.bf16 %v10042, %v10039
    %v10649 = vpack.c.bf16 %v10050, %v10047
    %v10650 = vpack.c.bf16 %v10058, %v10055
    %v10651 = vpack.c.bf16 %v10066, %v10063
    %v10652 = vpack.c.bf16 %v10074, %v10071
    %v10653 = vpack.c.bf16 %v10082, %v10079
    %v10654 = vpack.c.bf16 %v10090, %v10087
    %v10655 = vpack.c.bf16 %v10098, %v10095
    %v10664 = vunpack.c.l.b16 %v10648
    %v10665 = vunpack.c.h.b16 %v10648
    %v10666 = vunpack.c.l.b16 %v10649
    %v10667 = vunpack.c.h.b16 %v10649
    %v10668 = vunpack.c.l.b16 %v10650
    %v10669 = vunpack.c.h.b16 %v10650
    %v10670 = vunpack.c.l.b16 %v10651
    %v10671 = vunpack.c.h.b16 %v10651
    %v10672 = vunpack.c.l.b16 %v10652
    %v10673 = vunpack.c.h.b16 %v10652
    %v10674 = vunpack.c.l.b16 %v10653
    %v10675 = vunpack.c.h.b16 %v10653
    %v10676 = vunpack.c.l.b16 %v10654
    %v10677 = vunpack.c.h.b16 %v10654
    %v10678 = vunpack.c.l.b16 %v10655
    %v10679 = vunpack.c.h.b16 %v10655
    %v10680 = vpack.c.b16 %v10664, %v10664
    %v10681 = vpack.c.b16 %v10665, %v10665
    %v10682 = vpack.c.b16 %v10666, %v10666
    %v10683 = vpack.c.b16 %v10667, %v10667
    %v10684 = vpack.c.b16 %v10668, %v10668
    %v10685 = vpack.c.b16 %v10669, %v10669
    %v10686 = vpack.c.b16 %v10670, %v10670
    %v10687 = vpack.c.b16 %v10671, %v10671
    %v10688 = vpack.c.b16 %v10672, %v10672
    %v10689 = vpack.c.b16 %v10673, %v10673
    %v10690 = vpack.c.b16 %v10674, %v10674
    %v10691 = vpack.c.b16 %v10675, %v10675
    %v10692 = vpack.c.b16 %v10676, %v10676
    %v10693 = vpack.c.b16 %v10677, %v10677
    %v10694 = vpack.c.b16 %v10678, %v10678
    %v10695 = vpack.c.b16 %v10679, %v10679
    %10712 = vst.msk [vmem:[#allocation9 + $0x4] sm:$0xf] %vm829, %v10680
    %10713 = vst.msk [vmem:[#allocation9 + $0xc] sm:$0xf] %vm829, %v10681
    %10714 = vst.msk [vmem:[#allocation9 + $0x14] sm:$0xf] %vm829, %v10682
    %10715 = vst.msk [vmem:[#allocation9 + $0x1c] sm:$0xf] %vm829, %v10683
    %10716 = vst.msk [vmem:[#allocation9 + $0x24] sm:$0xf] %vm829, %v10684
    %10717 = vst.msk [vmem:[#allocation9 + $0x2c] sm:$0xf] %vm829, %v10685
    %10718 = vst.msk [vmem:[#allocation9 + $0x34] sm:$0xf] %vm829, %v10686
    %10719 = vst.msk [vmem:[#allocation9 + $0x3c] sm:$0xf] %vm829, %v10687
    %10720 = vst.msk [vmem:[#allocation9 + $0x44] sm:$0xf] %vm829, %v10688
    %10721 = vst.msk [vmem:[#allocation9 + $0x4c] sm:$0xf] %vm829, %v10689
    %10722 = vst.msk [vmem:[#allocation9 + $0x54] sm:$0xf] %vm829, %v10690
    %10723 = vst.msk [vmem:[#allocation9 + $0x5c] sm:$0xf] %vm829, %v10691
    %10724 = vst.msk [vmem:[#allocation9 + $0x64] sm:$0xf] %vm829, %v10692
    %10725 = vst.msk [vmem:[#allocation9 + $0x6c] sm:$0xf] %vm829, %v10693
    %10726 = vst.msk [vmem:[#allocation9 + $0x74] sm:$0xf] %vm829, %v10694
    %10727 = vst.msk [vmem:[#allocation9 + $0x7c] sm:$0xf] %vm829, %v10695
    %v10728 = vpack.c.bf16 %v10106, %v10103
    %v10729 = vpack.c.bf16 %v10114, %v10111
    %v10730 = vpack.c.bf16 %v10122, %v10119
    %v10731 = vpack.c.bf16 %v10130, %v10127
    %v10732 = vpack.c.bf16 %v10138, %v10135
    %v10733 = vpack.c.bf16 %v10146, %v10143
    %v10734 = vpack.c.bf16 %v10154, %v10151
    %v10735 = vpack.c.bf16 %v10162, %v10159
    %v10744 = vunpack.c.l.b16 %v10728
    %v10745 = vunpack.c.h.b16 %v10728
    %v10746 = vunpack.c.l.b16 %v10729
    %v10747 = vunpack.c.h.b16 %v10729
    %v10748 = vunpack.c.l.b16 %v10730
    %v10749 = vunpack.c.h.b16 %v10730
    %v10750 = vunpack.c.l.b16 %v10731
    %v10751 = vunpack.c.h.b16 %v10731
    %v10752 = vunpack.c.l.b16 %v10732
    %v10753 = vunpack.c.h.b16 %v10732
    %v10754 = vunpack.c.l.b16 %v10733
    %v10755 = vunpack.c.h.b16 %v10733
    %v10756 = vunpack.c.l.b16 %v10734
    %v10757 = vunpack.c.h.b16 %v10734
    %v10758 = vunpack.c.l.b16 %v10735
    %v10759 = vunpack.c.h.b16 %v10735
    %v10760 = vpack.c.b16 %v10744, %v10744
    %v10761 = vpack.c.b16 %v10745, %v10745
    %v10762 = vpack.c.b16 %v10746, %v10746
    %v10763 = vpack.c.b16 %v10747, %v10747
    %v10764 = vpack.c.b16 %v10748, %v10748
    %v10765 = vpack.c.b16 %v10749, %v10749
    %v10766 = vpack.c.b16 %v10750, %v10750
    %v10767 = vpack.c.b16 %v10751, %v10751
    %v10768 = vpack.c.b16 %v10752, %v10752
    %v10769 = vpack.c.b16 %v10753, %v10753
    %v10770 = vpack.c.b16 %v10754, %v10754
    %v10771 = vpack.c.b16 %v10755, %v10755
    %v10772 = vpack.c.b16 %v10756, %v10756
    %v10773 = vpack.c.b16 %v10757, %v10757
    %v10774 = vpack.c.b16 %v10758, %v10758
    %v10775 = vpack.c.b16 %v10759, %v10759
    %10776 = vrot.lane.b32.xlu0 %v10760, 32
    %v10777 = vpop.permute.xlu0 %10776
    %10778 = vrot.lane.b32.xlu0 %v10761, 32
    %v10779 = vpop.permute.xlu0 %10778
    %10780 = vrot.lane.b32.xlu0 %v10762, 32
    %v10781 = vpop.permute.xlu0 %10780
    %10782 = vrot.lane.b32.xlu0 %v10763, 32
    %v10783 = vpop.permute.xlu0 %10782
    %10784 = vrot.lane.b32.xlu0 %v10764, 32
    %v10785 = vpop.permute.xlu0 %10784
    %10786 = vrot.lane.b32.xlu0 %v10765, 32
    %v10787 = vpop.permute.xlu0 %10786
    %10788 = vrot.lane.b32.xlu0 %v10766, 32
    %v10789 = vpop.permute.xlu0 %10788
    %10790 = vrot.lane.b32.xlu0 %v10767, 32
    %v10791 = vpop.permute.xlu0 %10790
    %10792 = vrot.lane.b32.xlu0 %v10768, 32
    %v10793 = vpop.permute.xlu0 %10792
    %10794 = vrot.lane.b32.xlu0 %v10769, 32
    %v10795 = vpop.permute.xlu0 %10794
    %10796 = vrot.lane.b32.xlu0 %v10770, 32
    %v10797 = vpop.permute.xlu0 %10796
    %10798 = vrot.lane.b32.xlu0 %v10771, 32
    %v10799 = vpop.permute.xlu0 %10798
    %10800 = vrot.lane.b32.xlu0 %v10772, 32
    %v10801 = vpop.permute.xlu0 %10800
    %10802 = vrot.lane.b32.xlu0 %v10773, 32
    %v10803 = vpop.permute.xlu0 %10802
    %10804 = vrot.lane.b32.xlu0 %v10774, 32
    %v10805 = vpop.permute.xlu0 %10804
    %10806 = vrot.lane.b32.xlu0 %v10775, 32
    %v10807 = vpop.permute.xlu0 %10806
    %10824 = vst.msk [vmem:[#allocation9 + $0x4] sm:$0xf] %vm10405, %v10777
    %10825 = vst.msk [vmem:[#allocation9 + $0xc] sm:$0xf] %vm10405, %v10779
    %10826 = vst.msk [vmem:[#allocation9 + $0x14] sm:$0xf] %vm10405, %v10781
    %10827 = vst.msk [vmem:[#allocation9 + $0x1c] sm:$0xf] %vm10405, %v10783
    %10828 = vst.msk [vmem:[#allocation9 + $0x24] sm:$0xf] %vm10405, %v10785
    %10829 = vst.msk [vmem:[#allocation9 + $0x2c] sm:$0xf] %vm10405, %v10787
    %10830 = vst.msk [vmem:[#allocation9 + $0x34] sm:$0xf] %vm10405, %v10789
    %10831 = vst.msk [vmem:[#allocation9 + $0x3c] sm:$0xf] %vm10405, %v10791
    %10832 = vst.msk [vmem:[#allocation9 + $0x44] sm:$0xf] %vm10405, %v10793
    %10833 = vst.msk [vmem:[#allocation9 + $0x4c] sm:$0xf] %vm10405, %v10795
    %10834 = vst.msk [vmem:[#allocation9 + $0x54] sm:$0xf] %vm10405, %v10797
    %10835 = vst.msk [vmem:[#allocation9 + $0x5c] sm:$0xf] %vm10405, %v10799
    %10836 = vst.msk [vmem:[#allocation9 + $0x64] sm:$0xf] %vm10405, %v10801
    %10837 = vst.msk [vmem:[#allocation9 + $0x6c] sm:$0xf] %vm10405, %v10803
    %10838 = vst.msk [vmem:[#allocation9 + $0x74] sm:$0xf] %vm10405, %v10805
    %10839 = vst.msk [vmem:[#allocation9 + $0x7c] sm:$0xf] %vm10405, %v10807
    %v10840 = vpack.c.bf16 %v10170, %v10167
    %v10841 = vpack.c.bf16 %v10178, %v10175
    %v10842 = vpack.c.bf16 %v10186, %v10183
    %v10843 = vpack.c.bf16 %v10194, %v10191
    %v10844 = vpack.c.bf16 %v10202, %v10199
    %v10845 = vpack.c.bf16 %v10210, %v10207
    %v10846 = vpack.c.bf16 %v10218, %v10215
    %v10847 = vpack.c.bf16 %v10226, %v10223
    %v10856 = vunpack.c.l.b16 %v10840
    %v10857 = vunpack.c.h.b16 %v10840
    %v10858 = vunpack.c.l.b16 %v10841
    %v10859 = vunpack.c.h.b16 %v10841
    %v10860 = vunpack.c.l.b16 %v10842
    %v10861 = vunpack.c.h.b16 %v10842
    %v10862 = vunpack.c.l.b16 %v10843
    %v10863 = vunpack.c.h.b16 %v10843
    %v10864 = vunpack.c.l.b16 %v10844
    %v10865 = vunpack.c.h.b16 %v10844
    %v10866 = vunpack.c.l.b16 %v10845
    %v10867 = vunpack.c.h.b16 %v10845
    %v10868 = vunpack.c.l.b16 %v10846
    %v10869 = vunpack.c.h.b16 %v10846
    %v10870 = vunpack.c.l.b16 %v10847
    %v10871 = vunpack.c.h.b16 %v10847
    %v10872 = vpack.c.b16 %v10856, %v10856
    %v10873 = vpack.c.b16 %v10857, %v10857
    %v10874 = vpack.c.b16 %v10858, %v10858
    %v10875 = vpack.c.b16 %v10859, %v10859
    %v10876 = vpack.c.b16 %v10860, %v10860
    %v10877 = vpack.c.b16 %v10861, %v10861
    %v10878 = vpack.c.b16 %v10862, %v10862
    %v10879 = vpack.c.b16 %v10863, %v10863
    %v10880 = vpack.c.b16 %v10864, %v10864
    %v10881 = vpack.c.b16 %v10865, %v10865
    %v10882 = vpack.c.b16 %v10866, %v10866
    %v10883 = vpack.c.b16 %v10867, %v10867
    %v10884 = vpack.c.b16 %v10868, %v10868
    %v10885 = vpack.c.b16 %v10869, %v10869
    %v10886 = vpack.c.b16 %v10870, %v10870
    %v10887 = vpack.c.b16 %v10871, %v10871
    %10888 = vrot.lane.b32.xlu0 %v10872, 64
    %v10889 = vpop.permute.xlu0 %10888
    %10890 = vrot.lane.b32.xlu0 %v10873, 64
    %v10891 = vpop.permute.xlu0 %10890
    %10892 = vrot.lane.b32.xlu0 %v10874, 64
    %v10893 = vpop.permute.xlu0 %10892
    %10894 = vrot.lane.b32.xlu0 %v10875, 64
    %v10895 = vpop.permute.xlu0 %10894
    %10896 = vrot.lane.b32.xlu0 %v10876, 64
    %v10897 = vpop.permute.xlu0 %10896
    %10898 = vrot.lane.b32.xlu0 %v10877, 64
    %v10899 = vpop.permute.xlu0 %10898
    %10900 = vrot.lane.b32.xlu0 %v10878, 64
    %v10901 = vpop.permute.xlu0 %10900
    %10902 = vrot.lane.b32.xlu0 %v10879, 64
    %v10903 = vpop.permute.xlu0 %10902
    %10904 = vrot.lane.b32.xlu0 %v10880, 64
    %v10905 = vpop.permute.xlu0 %10904
    %10906 = vrot.lane.b32.xlu0 %v10881, 64
    %v10907 = vpop.permute.xlu0 %10906
    %10908 = vrot.lane.b32.xlu0 %v10882, 64
    %v10909 = vpop.permute.xlu0 %10908
    %10910 = vrot.lane.b32.xlu0 %v10883, 64
    %v10911 = vpop.permute.xlu0 %10910
    %10912 = vrot.lane.b32.xlu0 %v10884, 64
    %v10913 = vpop.permute.xlu0 %10912
    %10914 = vrot.lane.b32.xlu0 %v10885, 64
    %v10915 = vpop.permute.xlu0 %10914
    %10916 = vrot.lane.b32.xlu0 %v10886, 64
    %v10917 = vpop.permute.xlu0 %10916
    %10918 = vrot.lane.b32.xlu0 %v10887, 64
    %v10919 = vpop.permute.xlu0 %10918
    %10936 = vst.msk [vmem:[#allocation9 + $0x4] sm:$0xf] %vm10518, %v10889
    %10937 = vst.msk [vmem:[#allocation9 + $0xc] sm:$0xf] %vm10518, %v10891
    %10938 = vst.msk [vmem:[#allocation9 + $0x14] sm:$0xf] %vm10518, %v10893
    %10939 = vst.msk [vmem:[#allocation9 + $0x1c] sm:$0xf] %vm10518, %v10895
    %10940 = vst.msk [vmem:[#allocation9 + $0x24] sm:$0xf] %vm10518, %v10897
    %10941 = vst.msk [vmem:[#allocation9 + $0x2c] sm:$0xf] %vm10518, %v10899
    %10942 = vst.msk [vmem:[#allocation9 + $0x34] sm:$0xf] %vm10518, %v10901
    %10943 = vst.msk [vmem:[#allocation9 + $0x3c] sm:$0xf] %vm10518, %v10903
    %10944 = vst.msk [vmem:[#allocation9 + $0x44] sm:$0xf] %vm10518, %v10905
    %10945 = vst.msk [vmem:[#allocation9 + $0x4c] sm:$0xf] %vm10518, %v10907
    %10946 = vst.msk [vmem:[#allocation9 + $0x54] sm:$0xf] %vm10518, %v10909
    %10947 = vst.msk [vmem:[#allocation9 + $0x5c] sm:$0xf] %vm10518, %v10911
    %10948 = vst.msk [vmem:[#allocation9 + $0x64] sm:$0xf] %vm10518, %v10913
    %10949 = vst.msk [vmem:[#allocation9 + $0x6c] sm:$0xf] %vm10518, %v10915
    %10950 = vst.msk [vmem:[#allocation9 + $0x74] sm:$0xf] %vm10518, %v10917
    %10951 = vst.msk [vmem:[#allocation9 + $0x7c] sm:$0xf] %vm10518, %v10919
    %v10952 = vld [vmem:[#allocation9] sm:$0xff]
    %v10953 = vld [vmem:[#allocation9 + $0x8] sm:$0xff]
    %v10954 = vld [vmem:[#allocation9 + $0x10] sm:$0xff]
    %v10955 = vld [vmem:[#allocation9 + $0x18] sm:$0xff]
    %v10956 = vld [vmem:[#allocation9 + $0x20] sm:$0xff]
    %v10957 = vld [vmem:[#allocation9 + $0x28] sm:$0xff]
    %v10958 = vld [vmem:[#allocation9 + $0x30] sm:$0xff]
    %v10959 = vld [vmem:[#allocation9 + $0x38] sm:$0xff]
    %v10960 = vld [vmem:[#allocation9 + $0x40] sm:$0xff]
    %v10961 = vld [vmem:[#allocation9 + $0x48] sm:$0xff]
    %v10962 = vld [vmem:[#allocation9 + $0x50] sm:$0xff]
    %v10963 = vld [vmem:[#allocation9 + $0x58] sm:$0xff]
    %v10964 = vld [vmem:[#allocation9 + $0x60] sm:$0xff]
    %v10965 = vld [vmem:[#allocation9 + $0x68] sm:$0xff]
    %v10966 = vld [vmem:[#allocation9 + $0x70] sm:$0xff]
    %v10967 = vld [vmem:[#allocation9 + $0x78] sm:$0xff]
    %v10968 = vld [vmem:[%s55] sm:$0xf]
    %v10969 = vld [vmem:[%s55 + $0x4] sm:$0xf]
    %v10970 = vld [vmem:[%s55 + $0x8] sm:$0xf]
    %v10971 = vld [vmem:[%s55 + $0xc] sm:$0xf]
    %v10972 = vld [vmem:[%s55 + $0x10] sm:$0xf]
    %v10973 = vld [vmem:[%s55 + $0x14] sm:$0xf]
    %v10974 = vld [vmem:[%s55 + $0x18] sm:$0xf]
    %v10975 = vld [vmem:[%s55 + $0x1c] sm:$0xf]
    %v10976 = vld [vmem:[%s55 + $0x20] sm:$0xf]
    %v10977 = vld [vmem:[%s55 + $0x24] sm:$0xf]
    %v10978 = vld [vmem:[%s55 + $0x28] sm:$0xf]
    %v10979 = vld [vmem:[%s55 + $0x2c] sm:$0xf]
    %v10980 = vld [vmem:[%s55 + $0x30] sm:$0xf]
    %v10981 = vld [vmem:[%s55 + $0x34] sm:$0xf]
    %v10982 = vld [vmem:[%s55 + $0x38] sm:$0xf]
    %v10983 = vld [vmem:[%s55 + $0x3c] sm:$0xf]
    %v10984 = vld [vmem:[%s55 + $0x40] sm:$0xf]
    %v10985 = vld [vmem:[%s55 + $0x44] sm:$0xf]
    %v10986 = vld [vmem:[%s55 + $0x48] sm:$0xf]
    %v10987 = vld [vmem:[%s55 + $0x4c] sm:$0xf]
    %v10988 = vld [vmem:[%s55 + $0x50] sm:$0xf]
    %v10989 = vld [vmem:[%s55 + $0x54] sm:$0xf]
    %v10990 = vld [vmem:[%s55 + $0x58] sm:$0xf]
    %v10991 = vld [vmem:[%s55 + $0x5c] sm:$0xf]
    %v10992 = vld [vmem:[%s55 + $0x60] sm:$0xf]
    %v10993 = vld [vmem:[%s55 + $0x64] sm:$0xf]
    %v10994 = vld [vmem:[%s55 + $0x68] sm:$0xf]
    %v10995 = vld [vmem:[%s55 + $0x6c] sm:$0xf]
    %v10996 = vld [vmem:[%s57] sm:$0x1]
    %v10998 = vlaneseq
    %v10999 = vshrl.u32 %v10998, 7
    %v11000 = vsub.s32 0, %v10999
    %v11001 = vrot.slane %v10996, %v11000
    %v11019 = vunpack.c.l.b16 %v10952
    %v11020 = vunpack.c.h.b16 %v10952
    %v11021 = vunpack.c.l.b16 %v10953
    %v11022 = vunpack.c.h.b16 %v10953
    %v11023 = vunpack.c.l.b16 %v10954
    %v11024 = vunpack.c.h.b16 %v10954
    %v11025 = vunpack.c.l.b16 %v10955
    %v11026 = vunpack.c.h.b16 %v10955
    %v11027 = vunpack.c.l.b16 %v10956
    %v11028 = vunpack.c.h.b16 %v10956
    %v11029 = vunpack.c.l.b16 %v10957
    %v11030 = vunpack.c.h.b16 %v10957
    %v11031 = vunpack.c.l.b16 %v10958
    %v11032 = vunpack.c.h.b16 %v10958
    %v11033 = vunpack.c.l.b16 %v10959
    %v11034 = vunpack.c.h.b16 %v10959
    %v11035 = vunpack.c.l.b16 %v10960
    %v11036 = vunpack.c.h.b16 %v10960
    %v11037 = vunpack.c.l.b16 %v10961
    %v11038 = vunpack.c.h.b16 %v10961
    %v11039 = vunpack.c.l.b16 %v10962
    %v11040 = vunpack.c.h.b16 %v10962
    %v11041 = vunpack.c.l.b16 %v10963
    %v11042 = vunpack.c.h.b16 %v10963
    %v11043 = vunpack.c.l.b16 %v10964
    %v11044 = vunpack.c.h.b16 %v10964
    %v11045 = vunpack.c.l.b16 %v10965
    %v11046 = vunpack.c.h.b16 %v10965
    %v11047 = vunpack.c.l.b16 %v10966
    %v11048 = vunpack.c.h.b16 %v10966
    %v11049 = vunpack.c.l.b16 %v10967
    %v11050 = vunpack.c.h.b16 %v10967
    %v11051 = vpack.c.b16 %v11021, %v11019
    %v11052 = vpack.c.b16 %v11022, %v11020
    %v11053 = vpack.c.b16 %v11025, %v11023
    %v11054 = vpack.c.b16 %v11026, %v11024
    %v11055 = vpack.c.b16 %v11029, %v11027
    %v11056 = vpack.c.b16 %v11030, %v11028
    %v11057 = vpack.c.b16 %v11033, %v11031
    %v11058 = vpack.c.b16 %v11034, %v11032
    %v11059 = vpack.c.b16 %v11037, %v11035
    %v11060 = vpack.c.b16 %v11038, %v11036
    %v11061 = vpack.c.b16 %v11041, %v11039
    %v11062 = vpack.c.b16 %v11042, %v11040
    %v11063 = vpack.c.b16 %v11045, %v11043
    %v11064 = vpack.c.b16 %v11046, %v11044
    %v11065 = vpack.c.b16 %v11049, %v11047
    %v11066 = vpack.c.b16 %v11050, %v11048
    %v11103 = vunpack.c.l.b16 %v10968
    %v11104 = vunpack.c.l.b16 %v10969
    %v11105 = vunpack.c.l.b16 %v10970
    %v11106 = vunpack.c.l.b16 %v10971
    %v11107 = vunpack.c.l.b16 %v10972
    %v11108 = vunpack.c.l.b16 %v10973
    %v11109 = vunpack.c.l.b16 %v10974
    %v11110 = vunpack.c.l.b16 %v10975
    %v11111 = vunpack.c.l.b16 %v10976
    %v11112 = vunpack.c.l.b16 %v10977
    %v11113 = vunpack.c.l.b16 %v10978
    %v11114 = vunpack.c.l.b16 %v10979
    %v11115 = vunpack.c.l.b16 %v10980
    %v11116 = vunpack.c.l.b16 %v10981
    %v11117 = vunpack.c.l.b16 %v10982
    %v11118 = vunpack.c.l.b16 %v10983
    %v11119 = vunpack.c.l.b16 %v10984
    %v11120 = vunpack.c.l.b16 %v10985
    %v11121 = vunpack.c.l.b16 %v10986
    %v11122 = vunpack.c.l.b16 %v10987
    %v11123 = vunpack.c.l.b16 %v10988
    %v11124 = vunpack.c.l.b16 %v10989
    %v11125 = vunpack.c.l.b16 %v10990
    %v11126 = vunpack.c.l.b16 %v10991
    %v11127 = vunpack.c.l.b16 %v10992
    %v11128 = vunpack.c.l.b16 %v10993
    %v11129 = vunpack.c.l.b16 %v10994
    %v11130 = vunpack.c.l.b16 %v10995
    %v11131 = vpack.c.b16 %v11104, %v11103
    %v11132 = vpack.c.b16 %v11106, %v11105
    %v11133 = vpack.c.b16 %v11108, %v11107
    %v11134 = vpack.c.b16 %v11110, %v11109
    %v11135 = vpack.c.b16 %v11112, %v11111
    %v11136 = vpack.c.b16 %v11114, %v11113
    %v11137 = vpack.c.b16 %v11116, %v11115
    %v11138 = vpack.c.b16 %v11118, %v11117
    %v11139 = vpack.c.b16 %v11120, %v11119
    %v11140 = vpack.c.b16 %v11122, %v11121
    %v11141 = vpack.c.b16 %v11124, %v11123
    %v11142 = vpack.c.b16 %v11126, %v11125
    %v11143 = vpack.c.b16 %v11128, %v11127
    %v11144 = vpack.c.b16 %v11130, %v11129
    %vm11159 = vcmask 785408
    %v11161 = vsel %vm11159, %v11052, 0
    %v11164 = vsel %vm11159, %v11054, 0
    %v11167 = vsel %vm11159, %v11056, 0
    %v11170 = vsel %vm11159, %v11058, 0
    %v11173 = vsel %vm11159, %v11060, 0
    %v11176 = vsel %vm11159, %v11062, 0
    %v11179 = vsel %vm11159, %v11064, 0
    %v11182 = vsel %vm11159, %v11066, 0
    %11184 = vmatprep.subr.bf16.mxu0 0
    %11185 = vmatpush1.bf16.msra.mxu0 %v11138
    %11186 = vmatprep.subr.bf16.mxu0 0
    %11187 = vmatpush1.bf16.msra.mxu0 %v11137
    %11188 = vmatprep.subr.bf16.mxu0 0
    %11189 = vmatpush1.bf16.msra.mxu0 %v11136
    %11190 = vmatprep.subr.bf16.mxu0 0
    %11191 = vmatpush1.bf16.msra.mxu0 %v11135
    %11192 = vmatprep.subr.bf16.mxu0 0
    %11193 = vmatpush1.bf16.msra.mxu0 %v11134
    %11194 = vmatprep.subr.bf16.mxu0 0
    %11195 = vmatpush1.bf16.msra.mxu0 %v11133
    %11196 = vmatprep.subr.bf16.mxu0 0
    %11197 = vmatpush1.bf16.msra.mxu0 %v11132
    %11198 = vmatprep.subr.bf16.mxu0 0
    %11199 = vmatpush1.bf16.msra.mxu0 %v11131
    %11200 = vmatprep.subr.bf16.mxu0 0
    %11201 = vmatpush2.bf16.msra.mxu0 0
    %11202 = vmatprep.subr.bf16.mxu0 0
    %11203 = vmatpush2.bf16.msra.mxu0 0
    %11204 = vmatprep.subr.bf16.mxu0 0
    %11205 = vmatpush2.bf16.msra.mxu0 %v11144
    %11206 = vmatprep.subr.bf16.mxu0 0
    %11207 = vmatpush2.bf16.msra.mxu0 %v11143
    %11208 = vmatprep.subr.bf16.mxu0 0
    %11209 = vmatpush2.bf16.msra.mxu0 %v11142
    %11210 = vmatprep.subr.bf16.mxu0 0
    %11211 = vmatpush2.bf16.msra.mxu0 %v11141
    %11212 = vmatprep.subr.bf16.mxu0 0
    %11213 = vmatpush2.bf16.msra.mxu0 %v11140
    %11214 = vmatprep.subr.bf16.mxu0 0
    %11215 = vmatpush2.bf16.msra.mxu0 %v11139
    %11216 = vmatprep.mubr.bf16.mxu0 %v11161
    %11217 = vmatmul.mubr.bf16.gmra.mxu0 %v11051
    %v11218 = vpop.f32.mrf.mxu0
    %v11219 = vadd.f32 %v11001, %v11218
    %v11220 = vpop.f32.mrf.mxu0
    %v11221 = vpop.f32.mrf.mxu0
    %v11222 = vadd.f32 %v11001, %v11221
    %v11223 = vpop.f32.mrf.mxu0
    %11224 = vmatprep.mubr.bf16.mxu0 %v11164
    %11225 = vmatmul.mubr.bf16.gmra.mxu0 %v11053
    %v11226 = vpop.f32.mrf.mxu0
    %v11227 = vadd.f32 %v11001, %v11226
    %v11228 = vpop.f32.mrf.mxu0
    %v11229 = vpop.f32.mrf.mxu0
    %v11230 = vadd.f32 %v11001, %v11229
    %v11231 = vpop.f32.mrf.mxu0
    %11232 = vmatprep.mubr.bf16.mxu0 %v11167
    %11233 = vmatmul.mubr.bf16.gmra.mxu0 %v11055
    %v11234 = vpop.f32.mrf.mxu0
    %v11235 = vadd.f32 %v11001, %v11234
    %v11236 = vpop.f32.mrf.mxu0
    %v11237 = vpop.f32.mrf.mxu0
    %v11238 = vadd.f32 %v11001, %v11237
    %v11239 = vpop.f32.mrf.mxu0
    %11240 = vmatprep.mubr.bf16.mxu0 %v11170
    %11241 = vmatmul.mubr.bf16.gmra.mxu0 %v11057
    %v11242 = vpop.f32.mrf.mxu0
    %v11243 = vadd.f32 %v11001, %v11242
    %v11244 = vpop.f32.mrf.mxu0
    %v11245 = vpop.f32.mrf.mxu0
    %v11246 = vadd.f32 %v11001, %v11245
    %v11247 = vpop.f32.mrf.mxu0
    %11248 = vmatprep.mubr.bf16.mxu0 %v11173
    %11249 = vmatmul.mubr.bf16.gmra.mxu0 %v11059
    %v11250 = vpop.f32.mrf.mxu0
    %v11251 = vadd.f32 %v11001, %v11250
    %v11252 = vpop.f32.mrf.mxu0
    %v11253 = vpop.f32.mrf.mxu0
    %v11254 = vadd.f32 %v11001, %v11253
    %v11255 = vpop.f32.mrf.mxu0
    %11256 = vmatprep.mubr.bf16.mxu0 %v11176
    %11257 = vmatmul.mubr.bf16.gmra.mxu0 %v11061
    %v11258 = vpop.f32.mrf.mxu0
    %v11259 = vadd.f32 %v11001, %v11258
    %v11260 = vpop.f32.mrf.mxu0
    %v11261 = vpop.f32.mrf.mxu0
    %v11262 = vadd.f32 %v11001, %v11261
    %v11263 = vpop.f32.mrf.mxu0
    %11264 = vmatprep.mubr.bf16.mxu0 %v11179
    %11265 = vmatmul.mubr.bf16.gmra.mxu0 %v11063
    %v11266 = vpop.f32.mrf.mxu0
    %v11267 = vadd.f32 %v11001, %v11266
    %v11268 = vpop.f32.mrf.mxu0
    %v11269 = vpop.f32.mrf.mxu0
    %v11270 = vadd.f32 %v11001, %v11269
    %v11271 = vpop.f32.mrf.mxu0
    %11272 = vmatprep.mubr.bf16.mxu0 %v11182
    %11273 = vmatmul.mubr.bf16.gmra.mxu0 %v11065
    %v11274 = vpop.f32.mrf.mxu0
    %v11275 = vadd.f32 %v11001, %v11274
    %v11276 = vpop.f32.mrf.mxu0
    %v11277 = vpop.f32.mrf.mxu0
    %v11278 = vadd.f32 %v11001, %v11277
    %v11279 = vpop.f32.mrf.mxu0
    %11280 = vdwg.mxu0
    %v11281 = vld [vmem:[%s59] sm:$0xf]
    %v11282 = vld [vmem:[%s59 + $0x4] sm:$0xf]
    %v11283 = vld [vmem:[%s59 + $0x8] sm:$0xf]
    %v11284 = vld [vmem:[%s59 + $0xc] sm:$0xf]
    %v11285 = vld [vmem:[%s59 + $0x10] sm:$0xf]
    %v11286 = vld [vmem:[%s59 + $0x14] sm:$0xf]
    %v11287 = vld [vmem:[%s59 + $0x18] sm:$0xf]
    %v11288 = vld [vmem:[%s59 + $0x1c] sm:$0xf]
    %v11289 = vld [vmem:[%s59 + $0x20] sm:$0xf]
    %v11290 = vld [vmem:[%s59 + $0x24] sm:$0xf]
    %v11291 = vld [vmem:[%s59 + $0x28] sm:$0xf]
    %v11292 = vld [vmem:[%s59 + $0x2c] sm:$0xf]
    %v11293 = vld [vmem:[%s59 + $0x30] sm:$0xf]
    %v11294 = vld [vmem:[%s59 + $0x34] sm:$0xf]
    %v11295 = vld [vmem:[%s59 + $0x38] sm:$0xf]
    %v11296 = vld [vmem:[%s59 + $0x3c] sm:$0xf]
    %v11297 = vld [vmem:[%s59 + $0x40] sm:$0xf]
    %v11298 = vld [vmem:[%s59 + $0x44] sm:$0xf]
    %v11299 = vld [vmem:[%s59 + $0x48] sm:$0xf]
    %v11300 = vld [vmem:[%s59 + $0x4c] sm:$0xf]
    %v11301 = vld [vmem:[%s59 + $0x50] sm:$0xf]
    %v11302 = vld [vmem:[%s59 + $0x54] sm:$0xf]
    %v11303 = vld [vmem:[%s59 + $0x58] sm:$0xf]
    %v11304 = vld [vmem:[%s59 + $0x5c] sm:$0xf]
    %v11305 = vld [vmem:[%s59 + $0x60] sm:$0xf]
    %v11306 = vld [vmem:[%s59 + $0x64] sm:$0xf]
    %v11307 = vld [vmem:[%s59 + $0x68] sm:$0xf]
    %v11308 = vld [vmem:[%s59 + $0x6c] sm:$0xf]
    %v11309 = vld [vmem:[%s59 + $0x70] sm:$0xf]
    %v11310 = vld [vmem:[%s59 + $0x74] sm:$0xf]
    %v11311 = vld [vmem:[%s59 + $0x78] sm:$0xf]
    %v11312 = vld [vmem:[%s59 + $0x7c] sm:$0xf]
    %v11313 = vpack.c.bf16 %v11222, %v11219
    %v11314 = vpack.c.bf16 %v11230, %v11227
    %v11315 = vpack.c.bf16 %v11238, %v11235
    %v11316 = vpack.c.bf16 %v11246, %v11243
    %v11317 = vpack.c.bf16 %v11254, %v11251
    %v11318 = vpack.c.bf16 %v11262, %v11259
    %v11319 = vpack.c.bf16 %v11270, %v11267
    %v11320 = vpack.c.bf16 %v11278, %v11275
    %v11353 = vunpack.c.l.b16 %v11281
    %v11354 = vunpack.c.l.b16 %v11282
    %v11355 = vunpack.c.l.b16 %v11283
    %v11356 = vunpack.c.l.b16 %v11284
    %v11357 = vunpack.c.l.b16 %v11285
    %v11358 = vunpack.c.l.b16 %v11286
    %v11359 = vunpack.c.l.b16 %v11287
    %v11360 = vunpack.c.l.b16 %v11288
    %v11361 = vunpack.c.l.b16 %v11289
    %v11362 = vunpack.c.l.b16 %v11290
    %v11363 = vunpack.c.l.b16 %v11291
    %v11364 = vunpack.c.l.b16 %v11292
    %v11365 = vunpack.c.l.b16 %v11293
    %v11366 = vunpack.c.l.b16 %v11294
    %v11367 = vunpack.c.l.b16 %v11295
    %v11368 = vunpack.c.l.b16 %v11296
    %v11369 = vunpack.c.l.b16 %v11297
    %v11370 = vunpack.c.l.b16 %v11298
    %v11371 = vunpack.c.l.b16 %v11299
    %v11372 = vunpack.c.l.b16 %v11300
    %v11373 = vunpack.c.l.b16 %v11301
    %v11374 = vunpack.c.l.b16 %v11302
    %v11375 = vunpack.c.l.b16 %v11303
    %v11376 = vunpack.c.l.b16 %v11304
    %v11377 = vunpack.c.l.b16 %v11305
    %v11378 = vunpack.c.l.b16 %v11306
    %v11379 = vunpack.c.l.b16 %v11307
    %v11380 = vunpack.c.l.b16 %v11308
    %v11381 = vunpack.c.l.b16 %v11309
    %v11382 = vunpack.c.l.b16 %v11310
    %v11383 = vunpack.c.l.b16 %v11311
    %v11384 = vunpack.c.l.b16 %v11312
    %v11385 = vpack.c.b16 %v11354, %v11353
    %v11386 = vpack.c.b16 %v11356, %v11355
    %v11387 = vpack.c.b16 %v11358, %v11357
    %v11388 = vpack.c.b16 %v11360, %v11359
    %v11389 = vpack.c.b16 %v11362, %v11361
    %v11390 = vpack.c.b16 %v11364, %v11363
    %v11391 = vpack.c.b16 %v11366, %v11365
    %v11392 = vpack.c.b16 %v11368, %v11367
    %v11393 = vpack.c.b16 %v11370, %v11369
    %v11394 = vpack.c.b16 %v11372, %v11371
    %v11395 = vpack.c.b16 %v11374, %v11373
    %v11396 = vpack.c.b16 %v11376, %v11375
    %v11397 = vpack.c.b16 %v11378, %v11377
    %v11398 = vpack.c.b16 %v11380, %v11379
    %v11399 = vpack.c.b16 %v11382, %v11381
    %v11400 = vpack.c.b16 %v11384, %v11383
    %11417 = vmatprep.subr.bf16.mxu0 0
    %11418 = vmatpush1.bf16.msra.mxu0 %v11320
    %11419 = vmatprep.subr.bf16.mxu0 0
    %11420 = vmatpush1.bf16.msra.mxu0 %v11319
    %11421 = vmatprep.subr.bf16.mxu0 0
    %11422 = vmatpush1.bf16.msra.mxu0 %v11318
    %11423 = vmatprep.subr.bf16.mxu0 0
    %11424 = vmatpush1.bf16.msra.mxu0 %v11317
    %11425 = vmatprep.subr.bf16.mxu0 0
    %11426 = vmatpush1.bf16.msra.mxu0 %v11316
    %11427 = vmatprep.subr.bf16.mxu0 0
    %11428 = vmatpush1.bf16.msra.mxu0 %v11315
    %11429 = vmatprep.subr.bf16.mxu0 0
    %11430 = vmatpush1.bf16.msra.mxu0 %v11314
    %11431 = vmatprep.subr.bf16.mxu0 0
    %11432 = vmatpush1.bf16.msra.mxu0 %v11313
    %11433 = vmatprep.subr.bf16.mxu0 0
    %11434 = vmatpush2.bf16.msra.mxu0 0
    %11435 = vmatprep.subr.bf16.mxu0 0
    %11436 = vmatpush2.bf16.msra.mxu0 0
    %11437 = vmatprep.subr.bf16.mxu0 0
    %11438 = vmatpush2.bf16.msra.mxu0 0
    %11439 = vmatprep.subr.bf16.mxu0 0
    %11440 = vmatpush2.bf16.msra.mxu0 0
    %11441 = vmatprep.subr.bf16.mxu0 0
    %11442 = vmatpush2.bf16.msra.mxu0 0
    %11443 = vmatprep.subr.bf16.mxu0 0
    %11444 = vmatpush2.bf16.msra.mxu0 0
    %11445 = vmatprep.subr.bf16.mxu0 0
    %11446 = vmatpush2.bf16.msra.mxu0 0
    %11447 = vmatprep.subr.bf16.mxu0 0
    %11448 = vmatpush2.bf16.msra.mxu0 0
    %11449 = vmatprep.mubr.bf16.mxu0 0
    %11450 = vmatmul.mubr.bf16.gmra.mxu0 %v11385
    %v11451 = vpop.f32.mrf.mxu0
    %v11452 = vadd.f32 0.0, %v11451
    %v11453 = vpop.f32.mrf.mxu0
    %v11454 = vpop.f32.mrf.mxu0
    %v11455 = vadd.f32 0.0, %v11454
    %v11456 = vpop.f32.mrf.mxu0
    %11457 = vmatprep.mubr.bf16.mxu0 0
    %11458 = vmatmul.mubr.bf16.gmra.mxu0 %v11386
    %v11459 = vpop.f32.mrf.mxu0
    %v11460 = vadd.f32 0.0, %v11459
    %v11461 = vpop.f32.mrf.mxu0
    %v11462 = vpop.f32.mrf.mxu0
    %v11463 = vadd.f32 0.0, %v11462
    %v11464 = vpop.f32.mrf.mxu0
    %11465 = vmatprep.mubr.bf16.mxu0 0
    %11466 = vmatmul.mubr.bf16.gmra.mxu0 %v11387
    %v11467 = vpop.f32.mrf.mxu0
    %v11468 = vadd.f32 0.0, %v11467
    %v11469 = vpop.f32.mrf.mxu0
    %v11470 = vpop.f32.mrf.mxu0
    %v11471 = vadd.f32 0.0, %v11470
    %v11472 = vpop.f32.mrf.mxu0
    %11473 = vmatprep.mubr.bf16.mxu0 0
    %11474 = vmatmul.mubr.bf16.gmra.mxu0 %v11388
    %v11475 = vpop.f32.mrf.mxu0
    %v11476 = vadd.f32 0.0, %v11475
    %v11477 = vpop.f32.mrf.mxu0
    %v11478 = vpop.f32.mrf.mxu0
    %v11479 = vadd.f32 0.0, %v11478
    %v11480 = vpop.f32.mrf.mxu0
    %11481 = vmatprep.mubr.bf16.mxu0 0
    %11482 = vmatmul.mubr.bf16.gmra.mxu0 %v11389
    %v11483 = vpop.f32.mrf.mxu0
    %v11484 = vadd.f32 0.0, %v11483
    %v11485 = vpop.f32.mrf.mxu0
    %v11486 = vpop.f32.mrf.mxu0
    %v11487 = vadd.f32 0.0, %v11486
    %v11488 = vpop.f32.mrf.mxu0
    %11489 = vmatprep.mubr.bf16.mxu0 0
    %11490 = vmatmul.mubr.bf16.gmra.mxu0 %v11390
    %v11491 = vpop.f32.mrf.mxu0
    %v11492 = vadd.f32 0.0, %v11491
    %v11493 = vpop.f32.mrf.mxu0
    %v11494 = vpop.f32.mrf.mxu0
    %v11495 = vadd.f32 0.0, %v11494
    %v11496 = vpop.f32.mrf.mxu0
    %11497 = vmatprep.mubr.bf16.mxu0 0
    %11498 = vmatmul.mubr.bf16.gmra.mxu0 %v11391
    %v11499 = vpop.f32.mrf.mxu0
    %v11500 = vadd.f32 0.0, %v11499
    %v11501 = vpop.f32.mrf.mxu0
    %v11502 = vpop.f32.mrf.mxu0
    %v11503 = vadd.f32 0.0, %v11502
    %v11504 = vpop.f32.mrf.mxu0
    %11505 = vmatprep.mubr.bf16.mxu0 0
    %11506 = vmatmul.mubr.bf16.gmra.mxu0 %v11392
    %v11507 = vpop.f32.mrf.mxu0
    %v11508 = vadd.f32 0.0, %v11507
    %v11509 = vpop.f32.mrf.mxu0
    %v11510 = vpop.f32.mrf.mxu0
    %v11511 = vadd.f32 0.0, %v11510
    %v11512 = vpop.f32.mrf.mxu0
    %11513 = vmatprep.mubr.bf16.mxu0 0
    %11514 = vmatmul.mubr.bf16.gmra.mxu0 %v11393
    %v11515 = vpop.f32.mrf.mxu0
    %v11516 = vadd.f32 0.0, %v11515
    %v11517 = vpop.f32.mrf.mxu0
    %v11518 = vpop.f32.mrf.mxu0
    %v11519 = vadd.f32 0.0, %v11518
    %v11520 = vpop.f32.mrf.mxu0
    %11521 = vmatprep.mubr.bf16.mxu0 0
    %11522 = vmatmul.mubr.bf16.gmra.mxu0 %v11394
    %v11523 = vpop.f32.mrf.mxu0
    %v11524 = vadd.f32 0.0, %v11523
    %v11525 = vpop.f32.mrf.mxu0
    %v11526 = vpop.f32.mrf.mxu0
    %v11527 = vadd.f32 0.0, %v11526
    %v11528 = vpop.f32.mrf.mxu0
    %11529 = vmatprep.mubr.bf16.mxu0 0
    %11530 = vmatmul.mubr.bf16.gmra.mxu0 %v11395
    %v11531 = vpop.f32.mrf.mxu0
    %v11532 = vadd.f32 0.0, %v11531
    %v11533 = vpop.f32.mrf.mxu0
    %v11534 = vpop.f32.mrf.mxu0
    %v11535 = vadd.f32 0.0, %v11534
    %v11536 = vpop.f32.mrf.mxu0
    %11537 = vmatprep.mubr.bf16.mxu0 0
    %11538 = vmatmul.mubr.bf16.gmra.mxu0 %v11396
    %v11539 = vpop.f32.mrf.mxu0
    %v11540 = vadd.f32 0.0, %v11539
    %v11541 = vpop.f32.mrf.mxu0
    %v11542 = vpop.f32.mrf.mxu0
    %v11543 = vadd.f32 0.0, %v11542
    %v11544 = vpop.f32.mrf.mxu0
    %11545 = vmatprep.mubr.bf16.mxu0 0
    %11546 = vmatmul.mubr.bf16.gmra.mxu0 %v11397
    %v11547 = vpop.f32.mrf.mxu0
    %v11548 = vadd.f32 0.0, %v11547
    %v11549 = vpop.f32.mrf.mxu0
    %v11550 = vpop.f32.mrf.mxu0
    %v11551 = vadd.f32 0.0, %v11550
    %v11552 = vpop.f32.mrf.mxu0
    %11553 = vmatprep.mubr.bf16.mxu0 0
    %11554 = vmatmul.mubr.bf16.gmra.mxu0 %v11398
    %v11555 = vpop.f32.mrf.mxu0
    %v11556 = vadd.f32 0.0, %v11555
    %v11557 = vpop.f32.mrf.mxu0
    %v11558 = vpop.f32.mrf.mxu0
    %v11559 = vadd.f32 0.0, %v11558
    %v11560 = vpop.f32.mrf.mxu0
    %11561 = vmatprep.mubr.bf16.mxu0 0
    %11562 = vmatmul.mubr.bf16.gmra.mxu0 %v11399
    %v11563 = vpop.f32.mrf.mxu0
    %v11564 = vadd.f32 0.0, %v11563
    %v11565 = vpop.f32.mrf.mxu0
    %v11566 = vpop.f32.mrf.mxu0
    %v11567 = vadd.f32 0.0, %v11566
    %v11568 = vpop.f32.mrf.mxu0
    %11569 = vmatprep.mubr.bf16.mxu0 0
    %11570 = vmatmul.mubr.bf16.gmra.mxu0 %v11400
    %v11571 = vpop.f32.mrf.mxu0
    %v11572 = vadd.f32 0.0, %v11571
    %v11573 = vpop.f32.mrf.mxu0
    %v11574 = vpop.f32.mrf.mxu0
    %v11575 = vadd.f32 0.0, %v11574
    %v11576 = vpop.f32.mrf.mxu0
    %11577 = vdwg.mxu0
    %vm11578 = vcmask 15360
    %11579 = vst.msk [vmem:[%s61] sm:$0xff] %vm11578, %v11452
    %11580 = vst.msk [vmem:[%s61 + $0x8] sm:$0xff] %vm11578, %v11455
    %11581 = vst.msk [vmem:[%s61 + $0x10] sm:$0xff] %vm11578, %v11460
    %11582 = vst.msk [vmem:[%s61 + $0x18] sm:$0xff] %vm11578, %v11463
    %11583 = vst.msk [vmem:[%s61 + $0x20] sm:$0xff] %vm11578, %v11468
    %11584 = vst.msk [vmem:[%s61 + $0x28] sm:$0xff] %vm11578, %v11471
    %11585 = vst.msk [vmem:[%s61 + $0x30] sm:$0xff] %vm11578, %v11476
    %11586 = vst.msk [vmem:[%s61 + $0x38] sm:$0xff] %vm11578, %v11479
    %11587 = vst.msk [vmem:[%s61 + $0x40] sm:$0xff] %vm11578, %v11484
    %11588 = vst.msk [vmem:[%s61 + $0x48] sm:$0xff] %vm11578, %v11487
    %11589 = vst.msk [vmem:[%s61 + $0x50] sm:$0xff] %vm11578, %v11492
    %11590 = vst.msk [vmem:[%s61 + $0x58] sm:$0xff] %vm11578, %v11495
    %11591 = vst.msk [vmem:[%s61 + $0x60] sm:$0xff] %vm11578, %v11500
    %11592 = vst.msk [vmem:[%s61 + $0x68] sm:$0xff] %vm11578, %v11503
    %11593 = vst.msk [vmem:[%s61 + $0x70] sm:$0xff] %vm11578, %v11508
    %11594 = vst.msk [vmem:[%s61 + $0x78] sm:$0xff] %vm11578, %v11511
    %11595 = vst.msk [vmem:[%s61 + $0x80] sm:$0xff] %vm11578, %v11516
    %11596 = vst.msk [vmem:[%s61 + $0x88] sm:$0xff] %vm11578, %v11519
    %11597 = vst.msk [vmem:[%s61 + $0x90] sm:$0xff] %vm11578, %v11524
    %11598 = vst.msk [vmem:[%s61 + $0x98] sm:$0xff] %vm11578, %v11527
    %11599 = vst.msk [vmem:[%s61 + $0xa0] sm:$0xff] %vm11578, %v11532
    %11600 = vst.msk [vmem:[%s61 + $0xa8] sm:$0xff] %vm11578, %v11535
    %11601 = vst.msk [vmem:[%s61 + $0xb0] sm:$0xff] %vm11578, %v11540
    %11602 = vst.msk [vmem:[%s61 + $0xb8] sm:$0xff] %vm11578, %v11543
    %11603 = vst.msk [vmem:[%s61 + $0xc0] sm:$0xff] %vm11578, %v11548
    %11604 = vst.msk [vmem:[%s61 + $0xc8] sm:$0xff] %vm11578, %v11551
    %11605 = vst.msk [vmem:[%s61 + $0xd0] sm:$0xff] %vm11578, %v11556
    %11606 = vst.msk [vmem:[%s61 + $0xd8] sm:$0xff] %vm11578, %v11559
    %11607 = vst.msk [vmem:[%s61 + $0xe0] sm:$0xff] %vm11578, %v11564
    %11608 = vst.msk [vmem:[%s61 + $0xe8] sm:$0xff] %vm11578, %v11567
    %11609 = vst.msk [vmem:[%s61 + $0xf0] sm:$0xff] %vm11578, %v11572
    %11610 = vst.msk [vmem:[%s61 + $0xf8] sm:$0xff] %vm11578, %v11575
    // Predicated region
    $region170: #{fwd.1} parent=1 // pred_check
      _
    $region171: #{fwd.1} parent=1 // pred_check_branch
      %11612 = sbr.rel (0) target = $region173
    $region172: #{fwd.1} parent=1 // pred_region
      _
    $region173: #{fwd.1} parent=1 // pred_fallthru
      _
    // Predicated region
    $region174: #{fwd.1} parent=1 // pred_check
      _
    $region175: #{fwd.1} parent=1 // pred_check_branch
      %11614 = sbr.rel (0) target = $region177
    $region176: #{fwd.1} parent=1 // pred_region
      _
    $region177: #{fwd.1} parent=1 // pred_fallthru
      _
    // Predicated region
    $region178: #{fwd.1} parent=1 // pred_check
      _
    $region179: #{fwd.1} parent=1 // pred_check_branch
      %11616 = sbr.rel (0) target = $region181
    $region180: #{fwd.1} parent=1 // pred_region
      _
    $region181: #{fwd.1} parent=1 // pred_fallthru
      _
    // Predicated region
    $region182: #{fwd.1} parent=1 // pred_check
      _
    $region183: #{fwd.1} parent=1 // pred_check_branch
      %11618 = sbr.rel (0) target = $region185
    $region184: #{fwd.1} parent=1 // pred_region
      _
    $region185: #{fwd.1} parent=1 // pred_fallthru
      _
    %11619 = vsyncpa [#allocation11], 1
    %11620 = vsyncpa [#allocation13], 1
    %11621 = vsyncpa [#allocation16], 1
    %11622 = vsyncpa [#allocation19], 1
    %11623 = vsyncpa [#allocation22], 1
    %11624 = vsyncpa [#allocation25], 1
    %11625 = vsyncpa [#allocation28], 1

</llo_original>
